<compile_context>
chip_gen: v5e
topology: v5e:2x2
jax: 0.10.0
libtpu: 0.0.40
codegen_flags: <defaults>
</compile_context>

<pallas_src>
import functools

import jax
import jax.numpy as jnp
from jax.experimental import pallas as pl
from jax.experimental.pallas import tpu as pltpu

K = 3          # kernel_size
EPS = 1e-5     # InstanceNorm3d default eps


def _conv3d_in_relu_kernel(x_ref, w_ref, b_ref, o_ref, patch_ref, acc_ref,
                           *, D, H, W, Cin, Cout):
    """One batch element per grid step.

    x_ref:     (1, D+2, H+2, W+2, Cin)  zero-padded channels-last input (VMEM)
    w_ref:     (27*Cin, Cout)           flattened conv weights (VMEM)
    b_ref:     (Cout, 1)                conv bias (VMEM)
    o_ref:     (1, Cout, D*H*W)         output in NCDHW order (lane-dense store)
    patch_ref: (D*H*W, 27*Cin)          im2col scratch (VMEM)
    acc_ref:   (Cout, D*H*W)            f32 accumulator scratch (VMEM)
    """
    S = D * H * W

    # ---- im2col: build the patch matrix once in VMEM ------------------------
    # 27 shifted-window copies, amortized against a single deep matmul below
    # (every column block 0..27*Cin is overwritten each grid step).
    for kd in range(K):
        for kh in range(K):
            for kw in range(K):
                tap = (kd * K + kh) * K + kw
                xs = x_ref[0, kd:kd + D, kh:kh + H, kw:kw + W, :]     # (D,H,W,Cin)
                patch_ref[:, tap * Cin:(tap + 1) * Cin] = (
                    xs.reshape(S, Cin).astype(patch_ref.dtype))

    # ---- single MXU matmul, contraction depth 27*Cin (f32 accumulation) -----
    conv = jnp.dot(patch_ref[...], w_ref[...],
                   preferred_element_type=jnp.float32)                # (S, Cout)

    # One transpose -> lane-dense (Cout, S) accumulator: the norm, ReLU and the
    # output store below all operate with S (>=128) on the lane dimension, and
    # the store lands directly in NCDHW order (no wrapper transpose).
    # (The conv bias is mathematically cancelled by the InstanceNorm mean
    #  subtraction; kept for a faithful mapping of the module.)
    acc_ref[...] = conv.T + b_ref[...]

    # ---- InstanceNorm3d (affine=False, biased variance) + ReLU --------------
    acc = acc_ref[...]                                                # (Cout, S)
    mean = jnp.mean(acc, axis=1, keepdims=True)                       # (Cout, 1)
    cent = acc - mean
    var = jnp.mean(cent * cent, axis=1, keepdims=True)                # (Cout, 1)
    out = jnp.maximum(cent * jax.lax.rsqrt(var + EPS), 0.0)
    o_ref[0] = out.astype(o_ref.dtype)


def conv3d_relu_block(x_ncdhw, weight_oidhw, bias, *, compute_dtype=jnp.float32):
    """Forward pass of Conv3DReLUBlock.

    x_ncdhw:      (N, Cin, D, H, W)     float32
    weight_oidhw: (Cout, Cin, 3, 3, 3)  float32 (PyTorch Conv3d layout)
    bias:         (Cout,)               float32
    compute_dtype: dtype fed to the MXU.  jnp.bfloat16 is recommended on
                   v6e/v7x (f32 accumulation is always used) but re-verify the
                   tolerance; default f32 is exact and right for v5e.
    returns:      (N, Cout, D, H, W)    float32
    """
    N, Cin, D, H, W = x_ncdhw.shape
    Cout = weight_oidhw.shape[0]
    S = D * H * W
    KKKC = K * K * K * Cin

    # Layout plumbing in plain JAX: channels-last + explicit zero pad for the
    # kernel input.  The kernel writes its output directly in NCDHW order, so
    # there is no output transpose anymore.
    # TODO(synk): fold the zero padding into the kernel and keep activations
    # channels-last end-to-end across the model to drop these remaining HBM
    # passes as well.
    x = jnp.transpose(x_ncdhw, (0, 2, 3, 4, 1))                        # N,D,H,W,Cin
    x_pad = jnp.pad(x, ((0, 0), (1, 1), (1, 1), (1, 1), (0, 0)))       # padding=1

    # Weights flattened so the whole (kd,kh,kw,Cin) neighbourhood is one
    # contraction: row index = ((kd*3 + kh)*3 + kw)*Cin + cin.
    w2d = jnp.transpose(weight_oidhw, (2, 3, 4, 1, 0)).reshape(KKKC, Cout)
    w2d = w2d.astype(compute_dtype)
    b = bias.reshape(Cout, 1).astype(jnp.float32)

    kernel = functools.partial(
        _conv3d_in_relu_kernel, D=D, H=H, W=W, Cin=Cin, Cout=Cout)

    # VMEM budget (rough, lane-padding aware) + headroom; set explicitly so the
    # pipeline never silently falls back once tiles grow.
    f32b = 4
    cdb = jnp.dtype(compute_dtype).itemsize
    block_bytes = 2 * ((D + 2) * (H + 2) * (W + 2) * max(Cin, 128) * f32b   # x
                       + KKKC * max(Cout, 128) * cdb                        # w
                       + Cout * 128 * f32b                                  # bias
                       + Cout * S * f32b)                                   # out
    scratch_bytes = S * max(KKKC, 128) * cdb + Cout * S * f32b
    vmem_limit = int(min(64 * 1024 * 1024,
                         max(16 * 1024 * 1024, 2 * (block_bytes + scratch_bytes))))

    cost = pl.CostEstimate(
        flops=2 * N * S * KKKC * Cout + 10 * N * S * Cout,
        transcendentals=N * Cout,
        bytes_accessed=(x_pad.size * f32b + w2d.size * cdb + b.size * f32b
                        + N * Cout * S * f32b))

    # TODO(synk): for large volumes (e.g. 64^3 x 64ch) the whole-volume block no
    # longer fits VMEM (notably v7x's 64 MiB): add a D-tiled grid axis with a
    # 2-plane halo and a two-pass (sum/sumsq carry) InstanceNorm.
    out_flat = pl.pallas_call(
        kernel,
        out_shape=jax.ShapeDtypeStruct((N, Cout, S), x_ncdhw.dtype),
        grid=(N,),
        in_specs=[
            pl.BlockSpec((1, D + 2, H + 2, W + 2, Cin),
                         lambda n: (n, 0, 0, 0, 0)),
            pl.BlockSpec((KKKC, Cout), lambda n: (0, 0)),
            pl.BlockSpec((Cout, 1), lambda n: (0, 0)),
        ],
        out_specs=pl.BlockSpec((1, Cout, S), lambda n: (n, 0, 0)),
        scratch_shapes=[
            pltpu.VMEM((S, KKKC), compute_dtype),     # im2col patch matrix
            pltpu.VMEM((Cout, S), jnp.float32),       # lane-dense accumulator
        ],
        compiler_params=pltpu.CompilerParams(
            dimension_semantics=("parallel",),
            vmem_limit_bytes=vmem_limit),
        cost_estimate=cost,
    )(x_pad, w2d, b)

    # (N, Cout, D*H*W) -> (N, Cout, D, H, W): pure reshape, no transpose.
    return out_flat.reshape(N, Cout, D, H, W)


def _reference(x_ncdhw, weight_oidhw, bias):
    """Pure-JAX reference of the PyTorch forward pass (for verification)."""
    y = jax.lax.conv_general_dilated(
        x_ncdhw, weight_oidhw,
        window_strides=(1, 1, 1),
        padding=((1, 1), (1, 1), (1, 1)),
        dimension_numbers=("NCDHW", "OIDHW", "NCDHW"))
    y = y + bias[None, :, None, None, None]
    mean = jnp.mean(y, axis=(2, 3, 4), keepdims=True)
    var = jnp.mean((y - mean) ** 2, axis=(2, 3, 4), keepdims=True)
    y = (y - mean) / jnp.sqrt(var + EPS)
    return jnp.maximum(y, 0.0)


if __name__ == "__main__":
    # Small deterministic example consistent with the module:
    # batch=2, in_channels=4, out_channels=8, spatial 8x8x8.
    N, Cin, Cout, D, H, W = 2, 4, 8, 8, 8, 8

    key = jax.random.PRNGKey(0)
    kx, kw_, kb = jax.random.split(key, 3)

    x = jax.random.normal(kx, (N, Cin, D, H, W), dtype=jnp.float32)
    # Deterministic synthetic parameters (shapes from nn.Conv3d(Cin, Cout, 3, 1, 1)).
    fan_in = Cin * K * K * K
    bound = 1.0 / jnp.sqrt(jnp.float32(fan_in))
    weight = jax.random.uniform(kw_, (Cout, Cin, K, K, K),
                                minval=-bound, maxval=bound, dtype=jnp.float32)
    bias = jax.random.uniform(kb, (Cout,),
                              minval=-bound, maxval=bound, dtype=jnp.float32)

    out = conv3d_relu_block(x, weight, bias)
    out = jax.block_until_ready(out)

    ref = _reference(x, weight, bias)
    assert out.shape == (N, Cout, D, H, W)
    assert jnp.allclose(out, ref, atol=2e-3, rtol=2e-3), (
        f"max abs diff = {jnp.max(jnp.abs(out - ref))}")

    print("KERNEL_OK")
</pallas_src>

<mosaic_0001>
module attributes {stable_mosaic.version = 11 : i64} {
  func.func @_conv3d_in_relu_kernel(%arg0: i32, %arg1: memref<1x10x10x10x4xf32, #tpu.memory_space<vmem>>, %arg2: memref<108x8xf32, #tpu.memory_space<vmem>>, %arg3: memref<8x1xf32, #tpu.memory_space<vmem>>, %arg4: memref<1x8x512xf32, #tpu.memory_space<vmem>>, %arg5: memref<512x108xf32, #tpu.memory_space<vmem>>, %arg6: memref<8x512xf32, #tpu.memory_space<vmem>>) attributes {dimension_semantics = [#tpu.dimension_semantics<parallel>], iteration_bounds = array<i64: 2>, scalar_prefetch = 0 : i64, scratch_operands = 2 : i64, tpu.core_type = #tpu.core_type<tc>, window_params = [{transform_indices = @transform_0, window_bounds = array<i64: 1, 10, 10, 10, 4>}, {pipeline_mode = #tpu.pipeline_mode<synchronous>, transform_indices = @transform_1, window_bounds = array<i64: 108, 8>}, {pipeline_mode = #tpu.pipeline_mode<synchronous>, transform_indices = @transform_2, window_bounds = array<i64: 8, 1>}, {transform_indices = @transform_3, window_bounds = array<i64: 1, 8, 512>}]} {
    %c0 = arith.constant 0 : index
    %c0_0 = arith.constant 0 : index
    %c0_1 = arith.constant 0 : index
    %c0_2 = arith.constant 0 : index
    %c0_3 = arith.constant 0 : index
    %0 = vector.load %arg1[%c0, %c0_0, %c0_1, %c0_2, %c0_3] : memref<1x10x10x10x4xf32, #tpu.memory_space<vmem>>, vector<1x8x8x8x4xf32>
    %1 = vector.shape_cast %0 : vector<1x8x8x8x4xf32> to vector<8x8x8x4xf32>
    %2 = vector.shape_cast %1 : vector<8x8x8x4xf32> to vector<512x4xf32>
    %c0_4 = arith.constant 0 : index
    %c0_5 = arith.constant 0 : index
    %3 = vector.load %arg5[%c0_4, %c0_5] : memref<512x108xf32, #tpu.memory_space<vmem>>, vector<512x4xf32>
    tpu.vector_store %arg5[%c0_4, %c0_5], %2 {strides = array<i32>} : memref<512x108xf32, #tpu.memory_space<vmem>>, vector<512x4xf32>,
    %c0_6 = arith.constant 0 : index
    %c0_7 = arith.constant 0 : index
    %c0_8 = arith.constant 0 : index
    %c1 = arith.constant 1 : index
    %c0_9 = arith.constant 0 : index
    %4 = vector.load %arg1[%c0_6, %c0_7, %c0_8, %c1, %c0_9] : memref<1x10x10x10x4xf32, #tpu.memory_space<vmem>>, vector<1x8x8x8x4xf32>
    %5 = vector.shape_cast %4 : vector<1x8x8x8x4xf32> to vector<8x8x8x4xf32>
    %6 = vector.shape_cast %5 : vector<8x8x8x4xf32> to vector<512x4xf32>
    %c0_10 = arith.constant 0 : index
    %c4 = arith.constant 4 : index
    %7 = vector.load %arg5[%c0_10, %c4] : memref<512x108xf32, #tpu.memory_space<vmem>>, vector<512x4xf32>
    tpu.vector_store %arg5[%c0_10, %c4], %6 {strides = array<i32>} : memref<512x108xf32, #tpu.memory_space<vmem>>, vector<512x4xf32>,
    %c0_11 = arith.constant 0 : index
    %c0_12 = arith.constant 0 : index
    %c0_13 = arith.constant 0 : index
    %c2 = arith.constant 2 : index
    %c0_14 = arith.constant 0 : index
    %8 = vector.load %arg1[%c0_11, %c0_12, %c0_13, %c2, %c0_14] : memref<1x10x10x10x4xf32, #tpu.memory_space<vmem>>, vector<1x8x8x8x4xf32>
    %9 = vector.shape_cast %8 : vector<1x8x8x8x4xf32> to vector<8x8x8x4xf32>
    %10 = vector.shape_cast %9 : vector<8x8x8x4xf32> to vector<512x4xf32>
    %c0_15 = arith.constant 0 : index
    %c8 = arith.constant 8 : index
    %11 = vector.load %arg5[%c0_15, %c8] : memref<512x108xf32, #tpu.memory_space<vmem>>, vector<512x4xf32>
    tpu.vector_store %arg5[%c0_15, %c8], %10 {strides = array<i32>} : memref<512x108xf32, #tpu.memory_space<vmem>>, vector<512x4xf32>,
    %c0_16 = arith.constant 0 : index
    %c0_17 = arith.constant 0 : index
    %c1_18 = arith.constant 1 : index
    %c0_19 = arith.constant 0 : index
    %c0_20 = arith.constant 0 : index
    %12 = vector.load %arg1[%c0_16, %c0_17, %c1_18, %c0_19, %c0_20] : memref<1x10x10x10x4xf32, #tpu.memory_space<vmem>>, vector<1x8x8x8x4xf32>
    %13 = vector.shape_cast %12 : vector<1x8x8x8x4xf32> to vector<8x8x8x4xf32>
    %14 = vector.shape_cast %13 : vector<8x8x8x4xf32> to vector<512x4xf32>
    %c0_21 = arith.constant 0 : index
    %c12 = arith.constant 12 : index
    %15 = vector.load %arg5[%c0_21, %c12] : memref<512x108xf32, #tpu.memory_space<vmem>>, vector<512x4xf32>
    tpu.vector_store %arg5[%c0_21, %c12], %14 {strides = array<i32>} : memref<512x108xf32, #tpu.memory_space<vmem>>, vector<512x4xf32>,
    %c0_22 = arith.constant 0 : index
    %c0_23 = arith.constant 0 : index
    %c1_24 = arith.constant 1 : index
    %c1_25 = arith.constant 1 : index
    %c0_26 = arith.constant 0 : index
    %16 = vector.load %arg1[%c0_22, %c0_23, %c1_24, %c1_25, %c0_26] : memref<1x10x10x10x4xf32, #tpu.memory_space<vmem>>, vector<1x8x8x8x4xf32>
    %17 = vector.shape_cast %16 : vector<1x8x8x8x4xf32> to vector<8x8x8x4xf32>
    %18 = vector.shape_cast %17 : vector<8x8x8x4xf32> to vector<512x4xf32>
    %c0_27 = arith.constant 0 : index
    %c16 = arith.constant 16 : index
    %19 = vector.load %arg5[%c0_27, %c16] : memref<512x108xf32, #tpu.memory_space<vmem>>, vector<512x4xf32>
    tpu.vector_store %arg5[%c0_27, %c16], %18 {strides = array<i32>} : memref<512x108xf32, #tpu.memory_space<vmem>>, vector<512x4xf32>,
    %c0_28 = arith.constant 0 : index
    %c0_29 = arith.constant 0 : index
    %c1_30 = arith.constant 1 : index
    %c2_31 = arith.constant 2 : index
    %c0_32 = arith.constant 0 : index
    %20 = vector.load %arg1[%c0_28, %c0_29, %c1_30, %c2_31, %c0_32] : memref<1x10x10x10x4xf32, #tpu.memory_space<vmem>>, vector<1x8x8x8x4xf32>
    %21 = vector.shape_cast %20 : vector<1x8x8x8x4xf32> to vector<8x8x8x4xf32>
    %22 = vector.shape_cast %21 : vector<8x8x8x4xf32> to vector<512x4xf32>
    %c0_33 = arith.constant 0 : index
    %c20 = arith.constant 20 : index
    %23 = vector.load %arg5[%c0_33, %c20] : memref<512x108xf32, #tpu.memory_space<vmem>>, vector<512x4xf32>
    tpu.vector_store %arg5[%c0_33, %c20], %22 {strides = array<i32>} : memref<512x108xf32, #tpu.memory_space<vmem>>, vector<512x4xf32>,
    %c0_34 = arith.constant 0 : index
    %c0_35 = arith.constant 0 : index
    %c2_36 = arith.constant 2 : index
    %c0_37 = arith.constant 0 : index
    %c0_38 = arith.constant 0 : index
    %24 = vector.load %arg1[%c0_34, %c0_35, %c2_36, %c0_37, %c0_38] : memref<1x10x10x10x4xf32, #tpu.memory_space<vmem>>, vector<1x8x8x8x4xf32>
    %25 = vector.shape_cast %24 : vector<1x8x8x8x4xf32> to vector<8x8x8x4xf32>
    %26 = vector.shape_cast %25 : vector<8x8x8x4xf32> to vector<512x4xf32>
    %c0_39 = arith.constant 0 : index
    %c24 = arith.constant 24 : index
    %27 = vector.load %arg5[%c0_39, %c24] : memref<512x108xf32, #tpu.memory_space<vmem>>, vector<512x4xf32>
    tpu.vector_store %arg5[%c0_39, %c24], %26 {strides = array<i32>} : memref<512x108xf32, #tpu.memory_space<vmem>>, vector<512x4xf32>,
    %c0_40 = arith.constant 0 : index
    %c0_41 = arith.constant 0 : index
    %c2_42 = arith.constant 2 : index
    %c1_43 = arith.constant 1 : index
    %c0_44 = arith.constant 0 : index
    %28 = vector.load %arg1[%c0_40, %c0_41, %c2_42, %c1_43, %c0_44] : memref<1x10x10x10x4xf32, #tpu.memory_space<vmem>>, vector<1x8x8x8x4xf32>
    %29 = vector.shape_cast %28 : vector<1x8x8x8x4xf32> to vector<8x8x8x4xf32>
    %30 = vector.shape_cast %29 : vector<8x8x8x4xf32> to vector<512x4xf32>
    %c0_45 = arith.constant 0 : index
    %c28 = arith.constant 28 : index
    %31 = vector.load %arg5[%c0_45, %c28] : memref<512x108xf32, #tpu.memory_space<vmem>>, vector<512x4xf32>
    tpu.vector_store %arg5[%c0_45, %c28], %30 {strides = array<i32>} : memref<512x108xf32, #tpu.memory_space<vmem>>, vector<512x4xf32>,
    %c0_46 = arith.constant 0 : index
    %c0_47 = arith.constant 0 : index
    %c2_48 = arith.constant 2 : index
    %c2_49 = arith.constant 2 : index
    %c0_50 = arith.constant 0 : index
    %32 = vector.load %arg1[%c0_46, %c0_47, %c2_48, %c2_49, %c0_50] : memref<1x10x10x10x4xf32, #tpu.memory_space<vmem>>, vector<1x8x8x8x4xf32>
    %33 = vector.shape_cast %32 : vector<1x8x8x8x4xf32> to vector<8x8x8x4xf32>
    %34 = vector.shape_cast %33 : vector<8x8x8x4xf32> to vector<512x4xf32>
    %c0_51 = arith.constant 0 : index
    %c32 = arith.constant 32 : index
    %35 = vector.load %arg5[%c0_51, %c32] : memref<512x108xf32, #tpu.memory_space<vmem>>, vector<512x4xf32>
    tpu.vector_store %arg5[%c0_51, %c32], %34 {strides = array<i32>} : memref<512x108xf32, #tpu.memory_space<vmem>>, vector<512x4xf32>,
    %c0_52 = arith.constant 0 : index
    %c1_53 = arith.constant 1 : index
    %c0_54 = arith.constant 0 : index
    %c0_55 = arith.constant 0 : index
    %c0_56 = arith.constant 0 : index
    %36 = vector.load %arg1[%c0_52, %c1_53, %c0_54, %c0_55, %c0_56] : memref<1x10x10x10x4xf32, #tpu.memory_space<vmem>>, vector<1x8x8x8x4xf32>
    %37 = vector.shape_cast %36 : vector<1x8x8x8x4xf32> to vector<8x8x8x4xf32>
    %38 = vector.shape_cast %37 : vector<8x8x8x4xf32> to vector<512x4xf32>
    %c0_57 = arith.constant 0 : index
    %c36 = arith.constant 36 : index
    %39 = vector.load %arg5[%c0_57, %c36] : memref<512x108xf32, #tpu.memory_space<vmem>>, vector<512x4xf32>
    tpu.vector_store %arg5[%c0_57, %c36], %38 {strides = array<i32>} : memref<512x108xf32, #tpu.memory_space<vmem>>, vector<512x4xf32>,
    %c0_58 = arith.constant 0 : index
    %c1_59 = arith.constant 1 : index
    %c0_60 = arith.constant 0 : index
    %c1_61 = arith.constant 1 : index
    %c0_62 = arith.constant 0 : index
    %40 = vector.load %arg1[%c0_58, %c1_59, %c0_60, %c1_61, %c0_62] : memref<1x10x10x10x4xf32, #tpu.memory_space<vmem>>, vector<1x8x8x8x4xf32>
    %41 = vector.shape_cast %40 : vector<1x8x8x8x4xf32> to vector<8x8x8x4xf32>
    %42 = vector.shape_cast %41 : vector<8x8x8x4xf32> to vector<512x4xf32>
    %c0_63 = arith.constant 0 : index
    %c40 = arith.constant 40 : index
    %43 = vector.load %arg5[%c0_63, %c40] : memref<512x108xf32, #tpu.memory_space<vmem>>, vector<512x4xf32>
    tpu.vector_store %arg5[%c0_63, %c40], %42 {strides = array<i32>} : memref<512x108xf32, #tpu.memory_space<vmem>>, vector<512x4xf32>,
    %c0_64 = arith.constant 0 : index
    %c1_65 = arith.constant 1 : index
    %c0_66 = arith.constant 0 : index
    %c2_67 = arith.constant 2 : index
    %c0_68 = arith.constant 0 : index
    %44 = vector.load %arg1[%c0_64, %c1_65, %c0_66, %c2_67, %c0_68] : memref<1x10x10x10x4xf32, #tpu.memory_space<vmem>>, vector<1x8x8x8x4xf32>
    %45 = vector.shape_cast %44 : vector<1x8x8x8x4xf32> to vector<8x8x8x4xf32>
    %46 = vector.shape_cast %45 : vector<8x8x8x4xf32> to vector<512x4xf32>
    %c0_69 = arith.constant 0 : index
    %c44 = arith.constant 44 : index
    %47 = vector.load %arg5[%c0_69, %c44] : memref<512x108xf32, #tpu.memory_space<vmem>>, vector<512x4xf32>
    tpu.vector_store %arg5[%c0_69, %c44], %46 {strides = array<i32>} : memref<512x108xf32, #tpu.memory_space<vmem>>, vector<512x4xf32>,
    %c0_70 = arith.constant 0 : index
    %c1_71 = arith.constant 1 : index
    %c1_72 = arith.constant 1 : index
    %c0_73 = arith.constant 0 : index
    %c0_74 = arith.constant 0 : index
    %48 = vector.load %arg1[%c0_70, %c1_71, %c1_72, %c0_73, %c0_74] : memref<1x10x10x10x4xf32, #tpu.memory_space<vmem>>, vector<1x8x8x8x4xf32>
    %49 = vector.shape_cast %48 : vector<1x8x8x8x4xf32> to vector<8x8x8x4xf32>
    %50 = vector.shape_cast %49 : vector<8x8x8x4xf32> to vector<512x4xf32>
    %c0_75 = arith.constant 0 : index
    %c48 = arith.constant 48 : index
    %51 = vector.load %arg5[%c0_75, %c48] : memref<512x108xf32, #tpu.memory_space<vmem>>, vector<512x4xf32>
    tpu.vector_store %arg5[%c0_75, %c48], %50 {strides = array<i32>} : memref<512x108xf32, #tpu.memory_space<vmem>>, vector<512x4xf32>,
    %c0_76 = arith.constant 0 : index
    %c1_77 = arith.constant 1 : index
    %c1_78 = arith.constant 1 : index
    %c1_79 = arith.constant 1 : index
    %c0_80 = arith.constant 0 : index
    %52 = vector.load %arg1[%c0_76, %c1_77, %c1_78, %c1_79, %c0_80] : memref<1x10x10x10x4xf32, #tpu.memory_space<vmem>>, vector<1x8x8x8x4xf32>
    %53 = vector.shape_cast %52 : vector<1x8x8x8x4xf32> to vector<8x8x8x4xf32>
    %54 = vector.shape_cast %53 : vector<8x8x8x4xf32> to vector<512x4xf32>
    %c0_81 = arith.constant 0 : index
    %c52 = arith.constant 52 : index
    %55 = vector.load %arg5[%c0_81, %c52] : memref<512x108xf32, #tpu.memory_space<vmem>>, vector<512x4xf32>
    tpu.vector_store %arg5[%c0_81, %c52], %54 {strides = array<i32>} : memref<512x108xf32, #tpu.memory_space<vmem>>, vector<512x4xf32>,
    %c0_82 = arith.constant 0 : index
    %c1_83 = arith.constant 1 : index
    %c1_84 = arith.constant 1 : index
    %c2_85 = arith.constant 2 : index
    %c0_86 = arith.constant 0 : index
    %56 = vector.load %arg1[%c0_82, %c1_83, %c1_84, %c2_85, %c0_86] : memref<1x10x10x10x4xf32, #tpu.memory_space<vmem>>, vector<1x8x8x8x4xf32>
    %57 = vector.shape_cast %56 : vector<1x8x8x8x4xf32> to vector<8x8x8x4xf32>
    %58 = vector.shape_cast %57 : vector<8x8x8x4xf32> to vector<512x4xf32>
    %c0_87 = arith.constant 0 : index
    %c56 = arith.constant 56 : index
    %59 = vector.load %arg5[%c0_87, %c56] : memref<512x108xf32, #tpu.memory_space<vmem>>, vector<512x4xf32>
    tpu.vector_store %arg5[%c0_87, %c56], %58 {strides = array<i32>} : memref<512x108xf32, #tpu.memory_space<vmem>>, vector<512x4xf32>,
    %c0_88 = arith.constant 0 : index
    %c1_89 = arith.constant 1 : index
    %c2_90 = arith.constant 2 : index
    %c0_91 = arith.constant 0 : index
    %c0_92 = arith.constant 0 : index
    %60 = vector.load %arg1[%c0_88, %c1_89, %c2_90, %c0_91, %c0_92] : memref<1x10x10x10x4xf32, #tpu.memory_space<vmem>>, vector<1x8x8x8x4xf32>
    %61 = vector.shape_cast %60 : vector<1x8x8x8x4xf32> to vector<8x8x8x4xf32>
    %62 = vector.shape_cast %61 : vector<8x8x8x4xf32> to vector<512x4xf32>
    %c0_93 = arith.constant 0 : index
    %c60 = arith.constant 60 : index
    %63 = vector.load %arg5[%c0_93, %c60] : memref<512x108xf32, #tpu.memory_space<vmem>>, vector<512x4xf32>
    tpu.vector_store %arg5[%c0_93, %c60], %62 {strides = array<i32>} : memref<512x108xf32, #tpu.memory_space<vmem>>, vector<512x4xf32>,
    %c0_94 = arith.constant 0 : index
    %c1_95 = arith.constant 1 : index
    %c2_96 = arith.constant 2 : index
    %c1_97 = arith.constant 1 : index
    %c0_98 = arith.constant 0 : index
    %64 = vector.load %arg1[%c0_94, %c1_95, %c2_96, %c1_97, %c0_98] : memref<1x10x10x10x4xf32, #tpu.memory_space<vmem>>, vector<1x8x8x8x4xf32>
    %65 = vector.shape_cast %64 : vector<1x8x8x8x4xf32> to vector<8x8x8x4xf32>
    %66 = vector.shape_cast %65 : vector<8x8x8x4xf32> to vector<512x4xf32>
    %c0_99 = arith.constant 0 : index
    %c64 = arith.constant 64 : index
    %67 = vector.load %arg5[%c0_99, %c64] : memref<512x108xf32, #tpu.memory_space<vmem>>, vector<512x4xf32>
    tpu.vector_store %arg5[%c0_99, %c64], %66 {strides = array<i32>} : memref<512x108xf32, #tpu.memory_space<vmem>>, vector<512x4xf32>,
    %c0_100 = arith.constant 0 : index
    %c1_101 = arith.constant 1 : index
    %c2_102 = arith.constant 2 : index
    %c2_103 = arith.constant 2 : index
    %c0_104 = arith.constant 0 : index
    %68 = vector.load %arg1[%c0_100, %c1_101, %c2_102, %c2_103, %c0_104] : memref<1x10x10x10x4xf32, #tpu.memory_space<vmem>>, vector<1x8x8x8x4xf32>
    %69 = vector.shape_cast %68 : vector<1x8x8x8x4xf32> to vector<8x8x8x4xf32>
    %70 = vector.shape_cast %69 : vector<8x8x8x4xf32> to vector<512x4xf32>
    %c0_105 = arith.constant 0 : index
    %c68 = arith.constant 68 : index
    %71 = vector.load %arg5[%c0_105, %c68] : memref<512x108xf32, #tpu.memory_space<vmem>>, vector<512x4xf32>
    tpu.vector_store %arg5[%c0_105, %c68], %70 {strides = array<i32>} : memref<512x108xf32, #tpu.memory_space<vmem>>, vector<512x4xf32>,
    %c0_106 = arith.constant 0 : index
    %c2_107 = arith.constant 2 : index
    %c0_108 = arith.constant 0 : index
    %c0_109 = arith.constant 0 : index
    %c0_110 = arith.constant 0 : index
    %72 = vector.load %arg1[%c0_106, %c2_107, %c0_108, %c0_109, %c0_110] : memref<1x10x10x10x4xf32, #tpu.memory_space<vmem>>, vector<1x8x8x8x4xf32>
    %73 = vector.shape_cast %72 : vector<1x8x8x8x4xf32> to vector<8x8x8x4xf32>
    %74 = vector.shape_cast %73 : vector<8x8x8x4xf32> to vector<512x4xf32>
    %c0_111 = arith.constant 0 : index
    %c72 = arith.constant 72 : index
    %75 = vector.load %arg5[%c0_111, %c72] : memref<512x108xf32, #tpu.memory_space<vmem>>, vector<512x4xf32>
    tpu.vector_store %arg5[%c0_111, %c72], %74 {strides = array<i32>} : memref<512x108xf32, #tpu.memory_space<vmem>>, vector<512x4xf32>,
    %c0_112 = arith.constant 0 : index
    %c2_113 = arith.constant 2 : index
    %c0_114 = arith.constant 0 : index
    %c1_115 = arith.constant 1 : index
    %c0_116 = arith.constant 0 : index
    %76 = vector.load %arg1[%c0_112, %c2_113, %c0_114, %c1_115, %c0_116] : memref<1x10x10x10x4xf32, #tpu.memory_space<vmem>>, vector<1x8x8x8x4xf32>
    %77 = vector.shape_cast %76 : vector<1x8x8x8x4xf32> to vector<8x8x8x4xf32>
    %78 = vector.shape_cast %77 : vector<8x8x8x4xf32> to vector<512x4xf32>
    %c0_117 = arith.constant 0 : index
    %c76 = arith.constant 76 : index
    %79 = vector.load %arg5[%c0_117, %c76] : memref<512x108xf32, #tpu.memory_space<vmem>>, vector<512x4xf32>
    tpu.vector_store %arg5[%c0_117, %c76], %78 {strides = array<i32>} : memref<512x108xf32, #tpu.memory_space<vmem>>, vector<512x4xf32>,
    %c0_118 = arith.constant 0 : index
    %c2_119 = arith.constant 2 : index
    %c0_120 = arith.constant 0 : index
    %c2_121 = arith.constant 2 : index
    %c0_122 = arith.constant 0 : index
    %80 = vector.load %arg1[%c0_118, %c2_119, %c0_120, %c2_121, %c0_122] : memref<1x10x10x10x4xf32, #tpu.memory_space<vmem>>, vector<1x8x8x8x4xf32>
    %81 = vector.shape_cast %80 : vector<1x8x8x8x4xf32> to vector<8x8x8x4xf32>
    %82 = vector.shape_cast %81 : vector<8x8x8x4xf32> to vector<512x4xf32>
    %c0_123 = arith.constant 0 : index
    %c80 = arith.constant 80 : index
    %83 = vector.load %arg5[%c0_123, %c80] : memref<512x108xf32, #tpu.memory_space<vmem>>, vector<512x4xf32>
    tpu.vector_store %arg5[%c0_123, %c80], %82 {strides = array<i32>} : memref<512x108xf32, #tpu.memory_space<vmem>>, vector<512x4xf32>,
    %c0_124 = arith.constant 0 : index
    %c2_125 = arith.constant 2 : index
    %c1_126 = arith.constant 1 : index
    %c0_127 = arith.constant 0 : index
    %c0_128 = arith.constant 0 : index
    %84 = vector.load %arg1[%c0_124, %c2_125, %c1_126, %c0_127, %c0_128] : memref<1x10x10x10x4xf32, #tpu.memory_space<vmem>>, vector<1x8x8x8x4xf32>
    %85 = vector.shape_cast %84 : vector<1x8x8x8x4xf32> to vector<8x8x8x4xf32>
    %86 = vector.shape_cast %85 : vector<8x8x8x4xf32> to vector<512x4xf32>
    %c0_129 = arith.constant 0 : index
    %c84 = arith.constant 84 : index
    %87 = vector.load %arg5[%c0_129, %c84] : memref<512x108xf32, #tpu.memory_space<vmem>>, vector<512x4xf32>
    tpu.vector_store %arg5[%c0_129, %c84], %86 {strides = array<i32>} : memref<512x108xf32, #tpu.memory_space<vmem>>, vector<512x4xf32>,
    %c0_130 = arith.constant 0 : index
    %c2_131 = arith.constant 2 : index
    %c1_132 = arith.constant 1 : index
    %c1_133 = arith.constant 1 : index
    %c0_134 = arith.constant 0 : index
    %88 = vector.load %arg1[%c0_130, %c2_131, %c1_132, %c1_133, %c0_134] : memref<1x10x10x10x4xf32, #tpu.memory_space<vmem>>, vector<1x8x8x8x4xf32>
    %89 = vector.shape_cast %88 : vector<1x8x8x8x4xf32> to vector<8x8x8x4xf32>
    %90 = vector.shape_cast %89 : vector<8x8x8x4xf32> to vector<512x4xf32>
    %c0_135 = arith.constant 0 : index
    %c88 = arith.constant 88 : index
    %91 = vector.load %arg5[%c0_135, %c88] : memref<512x108xf32, #tpu.memory_space<vmem>>, vector<512x4xf32>
    tpu.vector_store %arg5[%c0_135, %c88], %90 {strides = array<i32>} : memref<512x108xf32, #tpu.memory_space<vmem>>, vector<512x4xf32>,
    %c0_136 = arith.constant 0 : index
    %c2_137 = arith.constant 2 : index
    %c1_138 = arith.constant 1 : index
    %c2_139 = arith.constant 2 : index
    %c0_140 = arith.constant 0 : index
    %92 = vector.load %arg1[%c0_136, %c2_137, %c1_138, %c2_139, %c0_140] : memref<1x10x10x10x4xf32, #tpu.memory_space<vmem>>, vector<1x8x8x8x4xf32>
    %93 = vector.shape_cast %92 : vector<1x8x8x8x4xf32> to vector<8x8x8x4xf32>
    %94 = vector.shape_cast %93 : vector<8x8x8x4xf32> to vector<512x4xf32>
    %c0_141 = arith.constant 0 : index
    %c92 = arith.constant 92 : index
    %95 = vector.load %arg5[%c0_141, %c92] : memref<512x108xf32, #tpu.memory_space<vmem>>, vector<512x4xf32>
    tpu.vector_store %arg5[%c0_141, %c92], %94 {strides = array<i32>} : memref<512x108xf32, #tpu.memory_space<vmem>>, vector<512x4xf32>,
    %c0_142 = arith.constant 0 : index
    %c2_143 = arith.constant 2 : index
    %c2_144 = arith.constant 2 : index
    %c0_145 = arith.constant 0 : index
    %c0_146 = arith.constant 0 : index
    %96 = vector.load %arg1[%c0_142, %c2_143, %c2_144, %c0_145, %c0_146] : memref<1x10x10x10x4xf32, #tpu.memory_space<vmem>>, vector<1x8x8x8x4xf32>
    %97 = vector.shape_cast %96 : vector<1x8x8x8x4xf32> to vector<8x8x8x4xf32>
    %98 = vector.shape_cast %97 : vector<8x8x8x4xf32> to vector<512x4xf32>
    %c0_147 = arith.constant 0 : index
    %c96 = arith.constant 96 : index
    %99 = vector.load %arg5[%c0_147, %c96] : memref<512x108xf32, #tpu.memory_space<vmem>>, vector<512x4xf32>
    tpu.vector_store %arg5[%c0_147, %c96], %98 {strides = array<i32>} : memref<512x108xf32, #tpu.memory_space<vmem>>, vector<512x4xf32>,
    %c0_148 = arith.constant 0 : index
    %c2_149 = arith.constant 2 : index
    %c2_150 = arith.constant 2 : index
    %c1_151 = arith.constant 1 : index
    %c0_152 = arith.constant 0 : index
    %100 = vector.load %arg1[%c0_148, %c2_149, %c2_150, %c1_151, %c0_152] : memref<1x10x10x10x4xf32, #tpu.memory_space<vmem>>, vector<1x8x8x8x4xf32>
    %101 = vector.shape_cast %100 : vector<1x8x8x8x4xf32> to vector<8x8x8x4xf32>
    %102 = vector.shape_cast %101 : vector<8x8x8x4xf32> to vector<512x4xf32>
    %c0_153 = arith.constant 0 : index
    %c100 = arith.constant 100 : index
    %103 = vector.load %arg5[%c0_153, %c100] : memref<512x108xf32, #tpu.memory_space<vmem>>, vector<512x4xf32>
    tpu.vector_store %arg5[%c0_153, %c100], %102 {strides = array<i32>} : memref<512x108xf32, #tpu.memory_space<vmem>>, vector<512x4xf32>,
    %c0_154 = arith.constant 0 : index
    %c2_155 = arith.constant 2 : index
    %c2_156 = arith.constant 2 : index
    %c2_157 = arith.constant 2 : index
    %c0_158 = arith.constant 0 : index
    %104 = vector.load %arg1[%c0_154, %c2_155, %c2_156, %c2_157, %c0_158] : memref<1x10x10x10x4xf32, #tpu.memory_space<vmem>>, vector<1x8x8x8x4xf32>
    %105 = vector.shape_cast %104 : vector<1x8x8x8x4xf32> to vector<8x8x8x4xf32>
    %106 = vector.shape_cast %105 : vector<8x8x8x4xf32> to vector<512x4xf32>
    %c0_159 = arith.constant 0 : index
    %c104 = arith.constant 104 : index
    %107 = vector.load %arg5[%c0_159, %c104] : memref<512x108xf32, #tpu.memory_space<vmem>>, vector<512x4xf32>
    tpu.vector_store %arg5[%c0_159, %c104], %106 {strides = array<i32>} : memref<512x108xf32, #tpu.memory_space<vmem>>, vector<512x4xf32>,
    %c0_160 = arith.constant 0 : index
    %c0_161 = arith.constant 0 : index
    %108 = vector.load %arg5[%c0_160, %c0_161] : memref<512x108xf32, #tpu.memory_space<vmem>>, vector<512x108xf32>
    %c0_162 = arith.constant 0 : index
    %c0_163 = arith.constant 0 : index
    %109 = vector.load %arg2[%c0_162, %c0_163] : memref<108x8xf32, #tpu.memory_space<vmem>>, vector<108x8xf32>
    %cst = arith.constant dense<0.000000e+00> : vector<512x8xf32>
    %110 = tpu.matmul %108, %109, %cst {dimension_numbers = #tpu.dot_dimension_numbers<[1], [0], [0], [1], [0, 0, 1, 1], [], []>} : vector<512x108xf32>, vector<108x8xf32>, vector<512x8xf32> -> vector<512x8xf32>
    %111 = tpu.transpose %110, [1, 0] : vector<512x8xf32> -> vector<8x512xf32>
    %c0_164 = arith.constant 0 : index
    %c0_165 = arith.constant 0 : index
    %112 = vector.load %arg3[%c0_164, %c0_165] : memref<8x1xf32, #tpu.memory_space<vmem>>, vector<8x1xf32>
    %113 = vector.broadcast %112 : vector<8x1xf32> to vector<8x512xf32>
    %114 = arith.addf %111, %113 : vector<8x512xf32>
    %c0_166 = arith.constant 0 : index
    %c0_167 = arith.constant 0 : index
    %115 = vector.load %arg6[%c0_166, %c0_167] : memref<8x512xf32, #tpu.memory_space<vmem>>, vector<8x512xf32>
    tpu.vector_store %arg6[%c0_166, %c0_167], %114 {strides = array<i32>} : memref<8x512xf32, #tpu.memory_space<vmem>>, vector<8x512xf32>,
    %c0_168 = arith.constant 0 : index
    %c0_169 = arith.constant 0 : index
    %116 = vector.load %arg6[%c0_168, %c0_169] : memref<8x512xf32, #tpu.memory_space<vmem>>, vector<8x512xf32>
    %cst_170 = arith.constant dense<0.000000e+00> : vector<8xf32>
    %117 = vector.multi_reduction <add>, %116, %cst_170 [1] : vector<8x512xf32> to vector<8xf32>
    %118 = vector.shape_cast %117 : vector<8xf32> to vector<8x1xf32>
    %cst_171 = arith.constant 5.120000e+02 : f32
    %119 = vector.broadcast %cst_171 : f32 to vector<8x1xf32>
    %120 = arith.divf %118, %119 : vector<8x1xf32>
    %121 = vector.broadcast %120 : vector<8x1xf32> to vector<8x512xf32>
    %122 = arith.subf %116, %121 : vector<8x512xf32>
    %123 = arith.mulf %122, %122 : vector<8x512xf32>
    %cst_172 = arith.constant dense<0.000000e+00> : vector<8xf32>
    %124 = vector.multi_reduction <add>, %123, %cst_172 [1] : vector<8x512xf32> to vector<8xf32>
    %125 = vector.shape_cast %124 : vector<8xf32> to vector<8x1xf32>
    %cst_173 = arith.constant 5.120000e+02 : f32
    %126 = vector.broadcast %cst_173 : f32 to vector<8x1xf32>
    %127 = arith.divf %125, %126 : vector<8x1xf32>
    %cst_174 = arith.constant 9.99999974E-6 : f32
    %128 = vector.broadcast %cst_174 : f32 to vector<8x1xf32>
    %129 = arith.addf %127, %128 : vector<8x1xf32>
    %130 = math.rsqrt %129 : vector<8x1xf32>
    %131 = vector.broadcast %130 : vector<8x1xf32> to vector<8x512xf32>
    %132 = arith.mulf %122, %131 : vector<8x512xf32>
    %cst_175 = arith.constant 0.000000e+00 : f32
    %133 = vector.broadcast %cst_175 : f32 to vector<8x512xf32>
    %134 = arith.maximumf %132, %133 : vector<8x512xf32>
    %c0_176 = arith.constant 0 : index
    %c0_177 = arith.constant 0 : index
    %c0_178 = arith.constant 0 : index
    %135 = vector.load %arg4[%c0_176, %c0_177, %c0_178] : memref<1x8x512xf32, #tpu.memory_space<vmem>>, vector<1x8x512xf32>
    %136 = vector.shape_cast %135 : vector<1x8x512xf32> to vector<8x512xf32>
    %137 = vector.shape_cast %134 : vector<8x512xf32> to vector<1x8x512xf32>
    tpu.vector_store %arg4[%c0_176, %c0_177, %c0_178], %137 {strides = array<i32>} : memref<1x8x512xf32, #tpu.memory_space<vmem>>, vector<1x8x512xf32>,
    return
  }
  func.func @transform_0(%arg0: i32) -> (i32, i32, i32, i32, i32) {
    %c0_i32 = arith.constant 0 : i32
    %c0_i32_0 = arith.constant 0 : i32
    %c0_i32_1 = arith.constant 0 : i32
    %c0_i32_2 = arith.constant 0 : i32
    %c0_i32_3 = arith.constant 0 : i32
    return %arg0, %c0_i32, %c0_i32_0, %c0_i32_1, %c0_i32_2 : i32, i32, i32, i32, i32
  }
  func.func @transform_1(%arg0: i32) -> (i32, i32) {
    %c0_i32 = arith.constant 0 : i32
    %c0_i32_0 = arith.constant 0 : i32
    %c0_i32_1 = arith.constant 0 : i32
    return %c0_i32, %c0_i32_0 : i32, i32
  }
  func.func @transform_2(%arg0: i32) -> (i32, i32) {
    %c0_i32 = arith.constant 0 : i32
    %c0_i32_0 = arith.constant 0 : i32
    %c0_i32_1 = arith.constant 0 : i32
    return %c0_i32, %c0_i32_0 : i32, i32
  }
  func.func @transform_3(%arg0: i32) -> (i32, i32, i32) {
    %c0_i32 = arith.constant 0 : i32
    %c0_i32_0 = arith.constant 0 : i32
    %c0_i32_1 = arith.constant 0 : i32
    return %arg0, %c0_i32, %c0_i32_0 : i32, i32, i32
  }
}

</mosaic_0001>

<llo_original>
// kernel: tpu_custom_call.1
$region0: #{tpu_custom_call.1}
  #allocation0 [shape = 'u32[]', space=smem, size = 0x4, offset = 0x4, fixed_abs, tag = 'smem constant byte address 0x4 - core index']
  #allocation1 [shape = 'u32[72,128]{1,0:T(1,128)}', space=vmem, size = 0x9000, scoped, tag = 'internal scratch']
  #allocation2 [shape = 'f32[512,108]{1,0:T(8,128)}', space=vmem, size = 0x40000, scoped, tag = 'scratch operand']
  #allocation3 [shape = 'f32[8,512]{1,0:T(8,128)}', space=vmem, size = 0x4000, scoped, tag = 'scratch operand']
  %s0 = inlined_call_operand.vmem [shape: f32[2,10,10,10,4], index: 0, kind: input, shape index: {}]
  %s1 = inlined_call_operand.vmem [shape: f32[108,8], index: 1, kind: input, shape index: {}]
  %s2 = inlined_call_operand.vmem [shape: f32[8,1], index: 2, kind: input, shape index: {}]
  %s3 = inlined_call_operand.hbm [shape: f32[2,8,512], index: 3, kind: output, shape index: {}]
  %s4 = sld [smem:[#allocation0]]
  $region45: #{tpu_custom_call.1} parent=0
    _
  %s6 = ssub.s32 1, %s4
  %s7 = scalar_select 0, %s6, %s4
  $region1: #{tpu_custom_call.1} parent=0
    #allocation4 [shape = 'u8[32768]{0}', space=vmem, size = 0x8000, scoped, tag = 'output window, operand 0']
    #allocation5 [shape = 's32[2]{0}', space=sflag, size = 0x8, scoped, tag = 'scoped memory for tpu_custom_call.1']
    %8 = vsyncpa [#allocation5], 0
    %s9 = scalar_lea.sflag [#allocation5], 1
    %10 = vsyncpa %s9, 0
    loop: start=0, step=1, limit=4
    $region2: #{tpu_custom_call.1} parent=1 // loop_pre_header
      _
    $region3: #{tpu_custom_call.1} parent=1 // loop_header
      %s12 = sphi 0, %s16
      %p13 = scmp.ge.s32.totalorder %s12, 4
      %s22 = sphi 0, %s24
      %s25 = sphi 0, %s22
      %s26 = sphi 0, %s25
      %s42 = sphi 0, %s26
      %s46 = sphi 0, %s46
      %s48 = sphi 0, %s46
      %s49 = sphi 0, %s48
      %s63 = sphi 0, %s49
      %s67 = sphi 0, %s67
      %s69 = sphi 0, %s67
      %s70 = sphi 0, %s69
      %s84 = sphi 0, %s70
      %s90 = sphi 0, %s92
      %s93 = sphi 0, %s90
      %s94 = sphi 0, %s93
      %s110 = sphi 0, %s94
    $region4: #{tpu_custom_call.1} parent=1 // loop_header_branch
      %15 = sbr.rel (%p13) target = $region8
    $region5: #{tpu_custom_call.1} parent=1 // loop_body
      %s17 = ssub.s32 %s12, 1
      %s18 = ssub.s32 %s12, 2
      %s19 = sadd.s32 %s12, 1
      %s20 = ssub.s32 %s12, %s19
      %p21 = scmp.eq.s32.totalorder %s20, 0
      %s23 = sadd.s32 %s22, 1
      %s24 = scalar_select %p21, %s22, %s23
      %p27 = pneg %p21
      %p28 = scmp.eq.s32.totalorder %s12, 1
      %p29 = por %p27, %p28
      %p30 = scmp.ne.s32.totalorder %s22, %s25
      %p31 = scmp.eq.s32.totalorder %s12, 0
      %p32 = por %p30, %p31
      %p33 = scmp.ne.s32.totalorder %s22, %s25
      %p34 = scmp.eq.s32.totalorder %s17, 1
      %p35 = por %p33, %p34
      %p36 = scmp.ne.s32.totalorder %s25, %s26
      %p37 = scmp.eq.s32.totalorder %s17, 0
      %p38 = por %p36, %p37
      %p39 = scmp.ne.s32.totalorder %s25, %s26
      %p40 = scmp.eq.s32.totalorder %s18, 1
      %p41 = por %p39, %p40
      %p43 = scmp.ne.s32.totalorder %s26, %s42
      %p44 = scmp.eq.s32.totalorder %s18, 0
      %p45 = por %p43, %p44
      %s47 = sadd.s32 %s46, 1
      %p50 = scmp.eq.s32.totalorder %s12, 1
      %p51 = scmp.ne.s32.totalorder %s46, %s48
      %p52 = scmp.eq.s32.totalorder %s12, 0
      %p53 = por %p51, %p52
      %p54 = scmp.ne.s32.totalorder %s46, %s48
      %p55 = scmp.eq.s32.totalorder %s17, 1
      %p56 = por %p54, %p55
      %p57 = scmp.ne.s32.totalorder %s48, %s49
      %p58 = scmp.eq.s32.totalorder %s17, 0
      %p59 = por %p57, %p58
      %p60 = scmp.ne.s32.totalorder %s48, %s49
      %p61 = scmp.eq.s32.totalorder %s18, 1
      %p62 = por %p60, %p61
      %p64 = scmp.ne.s32.totalorder %s49, %s63
      %p65 = scmp.eq.s32.totalorder %s18, 0
      %p66 = por %p64, %p65
      %s68 = sadd.s32 %s67, 1
      %p71 = scmp.eq.s32.totalorder %s12, 1
      %p72 = scmp.ne.s32.totalorder %s67, %s69
      %p73 = scmp.eq.s32.totalorder %s12, 0
      %p74 = por %p72, %p73
      %p75 = scmp.ne.s32.totalorder %s67, %s69
      %p76 = scmp.eq.s32.totalorder %s17, 1
      %p77 = por %p75, %p76
      %p78 = scmp.ne.s32.totalorder %s69, %s70
      %p79 = scmp.eq.s32.totalorder %s17, 0
      %p80 = por %p78, %p79
      %p81 = scmp.ne.s32.totalorder %s69, %s70
      %p82 = scmp.eq.s32.totalorder %s18, 1
      %p83 = por %p81, %p82
      %p85 = scmp.ne.s32.totalorder %s70, %s84
      %p86 = scmp.eq.s32.totalorder %s18, 0
      %p87 = por %p85, %p86
      %s88 = ssub.s32 %s12, %s19
      %p89 = scmp.eq.s32.totalorder %s88, 0
      %s91 = sadd.s32 %s90, 1
      %s92 = scalar_select %p89, %s90, %s91
      %p95 = pneg %p89
      %p96 = scmp.eq.s32.totalorder %s12, 1
      %p97 = por %p95, %p96
      %p98 = scmp.ne.s32.totalorder %s90, %s93
      %p99 = scmp.eq.s32.totalorder %s12, 0
      %p100 = por %p98, %p99
      %p101 = scmp.ne.s32.totalorder %s90, %s93
      %p102 = scmp.eq.s32.totalorder %s17, 1
      %p103 = por %p101, %p102
      %p104 = scmp.ne.s32.totalorder %s93, %s94
      %p105 = scmp.eq.s32.totalorder %s17, 0
      %p106 = por %p104, %p105
      %p107 = scmp.ne.s32.totalorder %s93, %s94
      %p108 = scmp.eq.s32.totalorder %s18, 1
      %p109 = por %p107, %p108
      %p111 = scmp.ne.s32.totalorder %s94, %s110
      %p112 = scmp.eq.s32.totalorder %s18, 0
      %p113 = por %p111, %p112
      %p114 = scmp.le.s32.totalorder 1, %s12
      %p115 = scmp.lt.s32.totalorder %s12, 3
      %p116 = pnand %p114, %p115
      %p117 = pneg %p116
      // Predicated region
      $region9: #{tpu_custom_call.1} parent=5 // pred_check
        _
      $region10: #{tpu_custom_call.1} parent=5 // pred_check_branch
        %119 = sbr.rel (%p116) target = $region12
      $region11: #{tpu_custom_call.1} parent=5 // pred_region
        %s120 = ssub.s32 %s12, 1
        // Predicated region
        $region13: #{tpu_custom_call.1} parent=11 // pred_check
          %p121 = pneg %p59
        $region14: #{tpu_custom_call.1} parent=11 // pred_check_branch
          %123 = sbr.rel (%p121) target = $region16
        $region15: #{tpu_custom_call.1} parent=11 // pred_region
          _
        $region16: #{tpu_custom_call.1} parent=11 // pred_fallthru
          _
        // Predicated region
        $region17: #{tpu_custom_call.1} parent=11 // pred_check
          %p124 = pneg %p80
        $region18: #{tpu_custom_call.1} parent=11 // pred_check_branch
          %126 = sbr.rel (%p124) target = $region20
        $region19: #{tpu_custom_call.1} parent=11 // pred_region
          _
        $region20: #{tpu_custom_call.1} parent=11 // pred_fallthru
          _
      $region12: #{tpu_custom_call.1} parent=5 // pred_fallthru
        _
      %p127 = scmp.lt.s32.totalorder %s12, 2
      // Predicated region
      $region21: #{tpu_custom_call.1} parent=5 // pred_check
        %p128 = pneg %p127
      $region22: #{tpu_custom_call.1} parent=5 // pred_check_branch
        %130 = sbr.rel (%p128) target = $region24
      $region23: #{tpu_custom_call.1} parent=5 // pred_region
        // Predicated region
        $region25: #{tpu_custom_call.1} parent=23 // pred_check
          %p131 = pneg %p32
        $region26: #{tpu_custom_call.1} parent=23 // pred_check_branch
          %133 = sbr.rel (%p131) target = $region28
        $region27: #{tpu_custom_call.1} parent=23 // pred_region
          %p134 = scmp.lt.s32.totalorder %s12, 1
          %s135 = scalar_select %p134, %s12, 1
          %s136 = smul.addr %s135, 200
          %s137 = smul.addr %s136, 8
          %s138 = scalar_lea.vmem %s0, %s137
        $region28: #{tpu_custom_call.1} parent=23 // pred_fallthru
          _
      $region24: #{tpu_custom_call.1} parent=5 // pred_fallthru
        _
      %p139 = scmp.le.s32.totalorder 1, %s12
      %p140 = scmp.lt.s32.totalorder %s12, 3
      %p141 = pnand %p139, %p140
      %p142 = pneg %p141
      // Predicated region
      $region29: #{tpu_custom_call.1} parent=5 // pred_check
        _
      $region30: #{tpu_custom_call.1} parent=5 // pred_check_branch
        %144 = sbr.rel (%p141) target = $region32
      $region31: #{tpu_custom_call.1} parent=5 // pred_region
        %s145 = ssub.s32 %s12, 1
        %p146 = scmp.lt.s32.totalorder %s17, 1
        %s147 = scalar_select %p146, %s17, 1
        %s148 = smul.addr %s147, 200
        %s149 = smul.addr %s148, 8
        %s150 = scalar_lea.vmem %s0, %s149
        %p151 = pneg %p38
        %p152 = pneg %p35
        %p153 = pneg %p59
        %p154 = pneg %p56
        %p155 = pneg %p80
        %p156 = pneg %p77
        %p157 = pneg %p106
        %p158 = pneg %p103
        %s159 = sand.u32 %s93, 1
        %s160 = scalar_lea.sflag [#allocation5], %s159
        %s161 = sand.u32 %s93, 1
        %s162 = smul.addr %s161, 32
        %s163 = scalar_lea.vmem [#allocation4], %s162
        %p164 = scmp.lt.s32.totalorder %s17, 1
        %s165 = scalar_select %p164, %s17, 1
        %s166 = smul.addr %s165, 200
        %s167 = smul.addr %s166, 8
        %s168 = scalar_lea.vmem %s0, %s167
        %v169 = vld [vmem:[%s168] sm:$0xff]
        %v170 = vld [vmem:[%s168 + $0x10] sm:$0xff]
        %v171 = vld [vmem:[%s168 + $0x20] sm:$0xff]
        %v172 = vld [vmem:[%s168 + $0x30] sm:$0xff]
        %v173 = vld [vmem:[%s168 + $0x40] sm:$0xff]
        %v174 = vld [vmem:[%s168 + $0x50] sm:$0xff]
        %v175 = vld [vmem:[%s168 + $0x60] sm:$0xff]
        %v176 = vld [vmem:[%s168 + $0x70] sm:$0xff]
        %v177 = vld [vmem:[%s168 + $0xa0] sm:$0xff]
        %v178 = vld [vmem:[%s168 + $0xb0] sm:$0xff]
        %v179 = vld [vmem:[%s168 + $0xc0] sm:$0xff]
        %v180 = vld [vmem:[%s168 + $0xd0] sm:$0xff]
        %v181 = vld [vmem:[%s168 + $0xe0] sm:$0xff]
        %v182 = vld [vmem:[%s168 + $0xf0] sm:$0xff]
        %v183 = vld [vmem:[%s168 + $0x100] sm:$0xff]
        %v184 = vld [vmem:[%s168 + $0x110] sm:$0xff]
        %v185 = vld [vmem:[%s168 + $0x140] sm:$0xff]
        %v186 = vld [vmem:[%s168 + $0x150] sm:$0xff]
        %v187 = vld [vmem:[%s168 + $0x160] sm:$0xff]
        %v188 = vld [vmem:[%s168 + $0x170] sm:$0xff]
        %v189 = vld [vmem:[%s168 + $0x180] sm:$0xff]
        %v190 = vld [vmem:[%s168 + $0x190] sm:$0xff]
        %v191 = vld [vmem:[%s168 + $0x1a0] sm:$0xff]
        %v192 = vld [vmem:[%s168 + $0x1b0] sm:$0xff]
        %v193 = vld [vmem:[%s168 + $0x1e0] sm:$0xff]
        %v194 = vld [vmem:[%s168 + $0x1f0] sm:$0xff]
        %v195 = vld [vmem:[%s168 + $0x200] sm:$0xff]
        %v196 = vld [vmem:[%s168 + $0x210] sm:$0xff]
        %v197 = vld [vmem:[%s168 + $0x220] sm:$0xff]
        %v198 = vld [vmem:[%s168 + $0x230] sm:$0xff]
        %v199 = vld [vmem:[%s168 + $0x240] sm:$0xff]
        %v200 = vld [vmem:[%s168 + $0x250] sm:$0xff]
        %v201 = vld [vmem:[%s168 + $0x280] sm:$0xff]
        %v202 = vld [vmem:[%s168 + $0x290] sm:$0xff]
        %v203 = vld [vmem:[%s168 + $0x2a0] sm:$0xff]
        %v204 = vld [vmem:[%s168 + $0x2b0] sm:$0xff]
        %v205 = vld [vmem:[%s168 + $0x2c0] sm:$0xff]
        %v206 = vld [vmem:[%s168 + $0x2d0] sm:$0xff]
        %v207 = vld [vmem:[%s168 + $0x2e0] sm:$0xff]
        %v208 = vld [vmem:[%s168 + $0x2f0] sm:$0xff]
        %v209 = vld [vmem:[%s168 + $0x320] sm:$0xff]
        %v210 = vld [vmem:[%s168 + $0x330] sm:$0xff]
        %v211 = vld [vmem:[%s168 + $0x340] sm:$0xff]
        %v212 = vld [vmem:[%s168 + $0x350] sm:$0xff]
        %v213 = vld [vmem:[%s168 + $0x360] sm:$0xff]
        %v214 = vld [vmem:[%s168 + $0x370] sm:$0xff]
        %v215 = vld [vmem:[%s168 + $0x380] sm:$0xff]
        %v216 = vld [vmem:[%s168 + $0x390] sm:$0xff]
        %v217 = vld [vmem:[%s168 + $0x3c0] sm:$0xff]
        %v218 = vld [vmem:[%s168 + $0x3d0] sm:$0xff]
        %v219 = vld [vmem:[%s168 + $0x3e0] sm:$0xff]
        %v220 = vld [vmem:[%s168 + $0x3f0] sm:$0xff]
        %v221 = vld [vmem:[%s168 + $0x400] sm:$0xff]
        %v222 = vld [vmem:[%s168 + $0x410] sm:$0xff]
        %v223 = vld [vmem:[%s168 + $0x420] sm:$0xff]
        %v224 = vld [vmem:[%s168 + $0x430] sm:$0xff]
        %v225 = vld [vmem:[%s168 + $0x460] sm:$0xff]
        %v226 = vld [vmem:[%s168 + $0x470] sm:$0xff]
        %v227 = vld [vmem:[%s168 + $0x480] sm:$0xff]
        %v228 = vld [vmem:[%s168 + $0x490] sm:$0xff]
        %v229 = vld [vmem:[%s168 + $0x4a0] sm:$0xff]
        %v230 = vld [vmem:[%s168 + $0x4b0] sm:$0xff]
        %v231 = vld [vmem:[%s168 + $0x4c0] sm:$0xff]
        %v232 = vld [vmem:[%s168 + $0x4d0] sm:$0xff]
        %vm233 = vcmask 31744
        %234 = vst.msk [vmem:[#allocation2] sm:$0xff] %vm233, %v169
        %235 = vst.msk [vmem:[#allocation2 + $0x8] sm:$0xff] %vm233, %v170
        %236 = vst.msk [vmem:[#allocation2 + $0x10] sm:$0xff] %vm233, %v171
        %237 = vst.msk [vmem:[#allocation2 + $0x18] sm:$0xff] %vm233, %v172
        %238 = vst.msk [vmem:[#allocation2 + $0x20] sm:$0xff] %vm233, %v173
        %239 = vst.msk [vmem:[#allocation2 + $0x28] sm:$0xff] %vm233, %v174
        %240 = vst.msk [vmem:[#allocation2 + $0x30] sm:$0xff] %vm233, %v175
        %241 = vst.msk [vmem:[#allocation2 + $0x38] sm:$0xff] %vm233, %v176
        %242 = vst.msk [vmem:[#allocation2 + $0x40] sm:$0xff] %vm233, %v177
        %243 = vst.msk [vmem:[#allocation2 + $0x48] sm:$0xff] %vm233, %v178
        %244 = vst.msk [vmem:[#allocation2 + $0x50] sm:$0xff] %vm233, %v179
        %245 = vst.msk [vmem:[#allocation2 + $0x58] sm:$0xff] %vm233, %v180
        %246 = vst.msk [vmem:[#allocation2 + $0x60] sm:$0xff] %vm233, %v181
        %247 = vst.msk [vmem:[#allocation2 + $0x68] sm:$0xff] %vm233, %v182
        %248 = vst.msk [vmem:[#allocation2 + $0x70] sm:$0xff] %vm233, %v183
        %249 = vst.msk [vmem:[#allocation2 + $0x78] sm:$0xff] %vm233, %v184
        %250 = vst.msk [vmem:[#allocation2 + $0x80] sm:$0xff] %vm233, %v185
        %251 = vst.msk [vmem:[#allocation2 + $0x88] sm:$0xff] %vm233, %v186
        %252 = vst.msk [vmem:[#allocation2 + $0x90] sm:$0xff] %vm233, %v187
        %253 = vst.msk [vmem:[#allocation2 + $0x98] sm:$0xff] %vm233, %v188
        %254 = vst.msk [vmem:[#allocation2 + $0xa0] sm:$0xff] %vm233, %v189
        %255 = vst.msk [vmem:[#allocation2 + $0xa8] sm:$0xff] %vm233, %v190
        %256 = vst.msk [vmem:[#allocation2 + $0xb0] sm:$0xff] %vm233, %v191
        %257 = vst.msk [vmem:[#allocation2 + $0xb8] sm:$0xff] %vm233, %v192
        %258 = vst.msk [vmem:[#allocation2 + $0xc0] sm:$0xff] %vm233, %v193
        %259 = vst.msk [vmem:[#allocation2 + $0xc8] sm:$0xff] %vm233, %v194
        %260 = vst.msk [vmem:[#allocation2 + $0xd0] sm:$0xff] %vm233, %v195
        %261 = vst.msk [vmem:[#allocation2 + $0xd8] sm:$0xff] %vm233, %v196
        %262 = vst.msk [vmem:[#allocation2 + $0xe0] sm:$0xff] %vm233, %v197
        %263 = vst.msk [vmem:[#allocation2 + $0xe8] sm:$0xff] %vm233, %v198
        %264 = vst.msk [vmem:[#allocation2 + $0xf0] sm:$0xff] %vm233, %v199
        %265 = vst.msk [vmem:[#allocation2 + $0xf8] sm:$0xff] %vm233, %v200
        %266 = vst.msk [vmem:[#allocation2 + $0x100] sm:$0xff] %vm233, %v201
        %267 = vst.msk [vmem:[#allocation2 + $0x108] sm:$0xff] %vm233, %v202
        %268 = vst.msk [vmem:[#allocation2 + $0x110] sm:$0xff] %vm233, %v203
        %269 = vst.msk [vmem:[#allocation2 + $0x118] sm:$0xff] %vm233, %v204
        %270 = vst.msk [vmem:[#allocation2 + $0x120] sm:$0xff] %vm233, %v205
        %271 = vst.msk [vmem:[#allocation2 + $0x128] sm:$0xff] %vm233, %v206
        %272 = vst.msk [vmem:[#allocation2 + $0x130] sm:$0xff] %vm233, %v207
        %273 = vst.msk [vmem:[#allocation2 + $0x138] sm:$0xff] %vm233, %v208
        %274 = vst.msk [vmem:[#allocation2 + $0x140] sm:$0xff] %vm233, %v209
        %275 = vst.msk [vmem:[#allocation2 + $0x148] sm:$0xff] %vm233, %v210
        %276 = vst.msk [vmem:[#allocation2 + $0x150] sm:$0xff] %vm233, %v211
        %277 = vst.msk [vmem:[#allocation2 + $0x158] sm:$0xff] %vm233, %v212
        %278 = vst.msk [vmem:[#allocation2 + $0x160] sm:$0xff] %vm233, %v213
        %279 = vst.msk [vmem:[#allocation2 + $0x168] sm:$0xff] %vm233, %v214
        %280 = vst.msk [vmem:[#allocation2 + $0x170] sm:$0xff] %vm233, %v215
        %281 = vst.msk [vmem:[#allocation2 + $0x178] sm:$0xff] %vm233, %v216
        %282 = vst.msk [vmem:[#allocation2 + $0x180] sm:$0xff] %vm233, %v217
        %283 = vst.msk [vmem:[#allocation2 + $0x188] sm:$0xff] %vm233, %v218
        %284 = vst.msk [vmem:[#allocation2 + $0x190] sm:$0xff] %vm233, %v219
        %285 = vst.msk [vmem:[#allocation2 + $0x198] sm:$0xff] %vm233, %v220
        %286 = vst.msk [vmem:[#allocation2 + $0x1a0] sm:$0xff] %vm233, %v221
        %287 = vst.msk [vmem:[#allocation2 + $0x1a8] sm:$0xff] %vm233, %v222
        %288 = vst.msk [vmem:[#allocation2 + $0x1b0] sm:$0xff] %vm233, %v223
        %289 = vst.msk [vmem:[#allocation2 + $0x1b8] sm:$0xff] %vm233, %v224
        %290 = vst.msk [vmem:[#allocation2 + $0x1c0] sm:$0xff] %vm233, %v225
        %291 = vst.msk [vmem:[#allocation2 + $0x1c8] sm:$0xff] %vm233, %v226
        %292 = vst.msk [vmem:[#allocation2 + $0x1d0] sm:$0xff] %vm233, %v227
        %293 = vst.msk [vmem:[#allocation2 + $0x1d8] sm:$0xff] %vm233, %v228
        %294 = vst.msk [vmem:[#allocation2 + $0x1e0] sm:$0xff] %vm233, %v229
        %295 = vst.msk [vmem:[#allocation2 + $0x1e8] sm:$0xff] %vm233, %v230
        %296 = vst.msk [vmem:[#allocation2 + $0x1f0] sm:$0xff] %vm233, %v231
        %297 = vst.msk [vmem:[#allocation2 + $0x1f8] sm:$0xff] %vm233, %v232
        %v298 = vld [vmem:[%s168 + $0x1] sm:$0xff]
        %v299 = vld [vmem:[%s168 + $0x11] sm:$0xff]
        %v300 = vld [vmem:[%s168 + $0x21] sm:$0xff]
        %v301 = vld [vmem:[%s168 + $0x31] sm:$0xff]
        %v302 = vld [vmem:[%s168 + $0x41] sm:$0xff]
        %v303 = vld [vmem:[%s168 + $0x51] sm:$0xff]
        %v304 = vld [vmem:[%s168 + $0x61] sm:$0xff]
        %v305 = vld [vmem:[%s168 + $0x71] sm:$0xff]
        %v306 = vld [vmem:[%s168 + $0xa1] sm:$0xff]
        %v307 = vld [vmem:[%s168 + $0xb1] sm:$0xff]
        %v308 = vld [vmem:[%s168 + $0xc1] sm:$0xff]
        %v309 = vld [vmem:[%s168 + $0xd1] sm:$0xff]
        %v310 = vld [vmem:[%s168 + $0xe1] sm:$0xff]
        %v311 = vld [vmem:[%s168 + $0xf1] sm:$0xff]
        %v312 = vld [vmem:[%s168 + $0x101] sm:$0xff]
        %v313 = vld [vmem:[%s168 + $0x111] sm:$0xff]
        %v314 = vld [vmem:[%s168 + $0x141] sm:$0xff]
        %v315 = vld [vmem:[%s168 + $0x151] sm:$0xff]
        %v316 = vld [vmem:[%s168 + $0x161] sm:$0xff]
        %v317 = vld [vmem:[%s168 + $0x171] sm:$0xff]
        %v318 = vld [vmem:[%s168 + $0x181] sm:$0xff]
        %v319 = vld [vmem:[%s168 + $0x191] sm:$0xff]
        %v320 = vld [vmem:[%s168 + $0x1a1] sm:$0xff]
        %v321 = vld [vmem:[%s168 + $0x1b1] sm:$0xff]
        %v322 = vld [vmem:[%s168 + $0x1e1] sm:$0xff]
        %v323 = vld [vmem:[%s168 + $0x1f1] sm:$0xff]
        %v324 = vld [vmem:[%s168 + $0x201] sm:$0xff]
        %v325 = vld [vmem:[%s168 + $0x211] sm:$0xff]
        %v326 = vld [vmem:[%s168 + $0x221] sm:$0xff]
        %v327 = vld [vmem:[%s168 + $0x231] sm:$0xff]
        %v328 = vld [vmem:[%s168 + $0x241] sm:$0xff]
        %v329 = vld [vmem:[%s168 + $0x251] sm:$0xff]
        %v330 = vld [vmem:[%s168 + $0x281] sm:$0xff]
        %v331 = vld [vmem:[%s168 + $0x291] sm:$0xff]
        %v332 = vld [vmem:[%s168 + $0x2a1] sm:$0xff]
        %v333 = vld [vmem:[%s168 + $0x2b1] sm:$0xff]
        %v334 = vld [vmem:[%s168 + $0x2c1] sm:$0xff]
        %v335 = vld [vmem:[%s168 + $0x2d1] sm:$0xff]
        %v336 = vld [vmem:[%s168 + $0x2e1] sm:$0xff]
        %v337 = vld [vmem:[%s168 + $0x2f1] sm:$0xff]
        %v338 = vld [vmem:[%s168 + $0x321] sm:$0xff]
        %v339 = vld [vmem:[%s168 + $0x331] sm:$0xff]
        %v340 = vld [vmem:[%s168 + $0x341] sm:$0xff]
        %v341 = vld [vmem:[%s168 + $0x351] sm:$0xff]
        %v342 = vld [vmem:[%s168 + $0x361] sm:$0xff]
        %v343 = vld [vmem:[%s168 + $0x371] sm:$0xff]
        %v344 = vld [vmem:[%s168 + $0x381] sm:$0xff]
        %v345 = vld [vmem:[%s168 + $0x391] sm:$0xff]
        %v346 = vld [vmem:[%s168 + $0x3c1] sm:$0xff]
        %v347 = vld [vmem:[%s168 + $0x3d1] sm:$0xff]
        %v348 = vld [vmem:[%s168 + $0x3e1] sm:$0xff]
        %v349 = vld [vmem:[%s168 + $0x3f1] sm:$0xff]
        %v350 = vld [vmem:[%s168 + $0x401] sm:$0xff]
        %v351 = vld [vmem:[%s168 + $0x411] sm:$0xff]
        %v352 = vld [vmem:[%s168 + $0x421] sm:$0xff]
        %v353 = vld [vmem:[%s168 + $0x431] sm:$0xff]
        %v354 = vld [vmem:[%s168 + $0x461] sm:$0xff]
        %v355 = vld [vmem:[%s168 + $0x471] sm:$0xff]
        %v356 = vld [vmem:[%s168 + $0x481] sm:$0xff]
        %v357 = vld [vmem:[%s168 + $0x491] sm:$0xff]
        %v358 = vld [vmem:[%s168 + $0x4a1] sm:$0xff]
        %v359 = vld [vmem:[%s168 + $0x4b1] sm:$0xff]
        %v360 = vld [vmem:[%s168 + $0x4c1] sm:$0xff]
        %v361 = vld [vmem:[%s168 + $0x4d1] sm:$0xff]
        %426 = vrot.lane.b32.xlu0 %v298, 4
        %v427 = vpop.permute.xlu0 %426
        %428 = vrot.lane.b32.xlu0 %v299, 4
        %v429 = vpop.permute.xlu0 %428
        %430 = vrot.lane.b32.xlu0 %v300, 4
        %v431 = vpop.permute.xlu0 %430
        %432 = vrot.lane.b32.xlu0 %v301, 4
        %v433 = vpop.permute.xlu0 %432
        %434 = vrot.lane.b32.xlu0 %v302, 4
        %v435 = vpop.permute.xlu0 %434
        %436 = vrot.lane.b32.xlu0 %v303, 4
        %v437 = vpop.permute.xlu0 %436
        %438 = vrot.lane.b32.xlu0 %v304, 4
        %v439 = vpop.permute.xlu0 %438
        %440 = vrot.lane.b32.xlu0 %v305, 4
        %v441 = vpop.permute.xlu0 %440
        %442 = vrot.lane.b32.xlu0 %v306, 4
        %v443 = vpop.permute.xlu0 %442
        %444 = vrot.lane.b32.xlu0 %v307, 4
        %v445 = vpop.permute.xlu0 %444
        %446 = vrot.lane.b32.xlu0 %v308, 4
        %v447 = vpop.permute.xlu0 %446
        %448 = vrot.lane.b32.xlu0 %v309, 4
        %v449 = vpop.permute.xlu0 %448
        %450 = vrot.lane.b32.xlu0 %v310, 4
        %v451 = vpop.permute.xlu0 %450
        %452 = vrot.lane.b32.xlu0 %v311, 4
        %v453 = vpop.permute.xlu0 %452
        %454 = vrot.lane.b32.xlu0 %v312, 4
        %v455 = vpop.permute.xlu0 %454
        %456 = vrot.lane.b32.xlu0 %v313, 4
        %v457 = vpop.permute.xlu0 %456
        %458 = vrot.lane.b32.xlu0 %v314, 4
        %v459 = vpop.permute.xlu0 %458
        %460 = vrot.lane.b32.xlu0 %v315, 4
        %v461 = vpop.permute.xlu0 %460
        %462 = vrot.lane.b32.xlu0 %v316, 4
        %v463 = vpop.permute.xlu0 %462
        %464 = vrot.lane.b32.xlu0 %v317, 4
        %v465 = vpop.permute.xlu0 %464
        %466 = vrot.lane.b32.xlu0 %v318, 4
        %v467 = vpop.permute.xlu0 %466
        %468 = vrot.lane.b32.xlu0 %v319, 4
        %v469 = vpop.permute.xlu0 %468
        %470 = vrot.lane.b32.xlu0 %v320, 4
        %v471 = vpop.permute.xlu0 %470
        %472 = vrot.lane.b32.xlu0 %v321, 4
        %v473 = vpop.permute.xlu0 %472
        %474 = vrot.lane.b32.xlu0 %v322, 4
        %v475 = vpop.permute.xlu0 %474
        %476 = vrot.lane.b32.xlu0 %v323, 4
        %v477 = vpop.permute.xlu0 %476
        %478 = vrot.lane.b32.xlu0 %v324, 4
        %v479 = vpop.permute.xlu0 %478
        %480 = vrot.lane.b32.xlu0 %v325, 4
        %v481 = vpop.permute.xlu0 %480
        %482 = vrot.lane.b32.xlu0 %v326, 4
        %v483 = vpop.permute.xlu0 %482
        %484 = vrot.lane.b32.xlu0 %v327, 4
        %v485 = vpop.permute.xlu0 %484
        %486 = vrot.lane.b32.xlu0 %v328, 4
        %v487 = vpop.permute.xlu0 %486
        %488 = vrot.lane.b32.xlu0 %v329, 4
        %v489 = vpop.permute.xlu0 %488
        %490 = vrot.lane.b32.xlu0 %v330, 4
        %v491 = vpop.permute.xlu0 %490
        %492 = vrot.lane.b32.xlu0 %v331, 4
        %v493 = vpop.permute.xlu0 %492
        %494 = vrot.lane.b32.xlu0 %v332, 4
        %v495 = vpop.permute.xlu0 %494
        %496 = vrot.lane.b32.xlu0 %v333, 4
        %v497 = vpop.permute.xlu0 %496
        %498 = vrot.lane.b32.xlu0 %v334, 4
        %v499 = vpop.permute.xlu0 %498
        %500 = vrot.lane.b32.xlu0 %v335, 4
        %v501 = vpop.permute.xlu0 %500
        %502 = vrot.lane.b32.xlu0 %v336, 4
        %v503 = vpop.permute.xlu0 %502
        %504 = vrot.lane.b32.xlu0 %v337, 4
        %v505 = vpop.permute.xlu0 %504
        %506 = vrot.lane.b32.xlu0 %v338, 4
        %v507 = vpop.permute.xlu0 %506
        %508 = vrot.lane.b32.xlu0 %v339, 4
        %v509 = vpop.permute.xlu0 %508
        %510 = vrot.lane.b32.xlu0 %v340, 4
        %v511 = vpop.permute.xlu0 %510
        %512 = vrot.lane.b32.xlu0 %v341, 4
        %v513 = vpop.permute.xlu0 %512
        %514 = vrot.lane.b32.xlu0 %v342, 4
        %v515 = vpop.permute.xlu0 %514
        %516 = vrot.lane.b32.xlu0 %v343, 4
        %v517 = vpop.permute.xlu0 %516
        %518 = vrot.lane.b32.xlu0 %v344, 4
        %v519 = vpop.permute.xlu0 %518
        %520 = vrot.lane.b32.xlu0 %v345, 4
        %v521 = vpop.permute.xlu0 %520
        %522 = vrot.lane.b32.xlu0 %v346, 4
        %v523 = vpop.permute.xlu0 %522
        %524 = vrot.lane.b32.xlu0 %v347, 4
        %v525 = vpop.permute.xlu0 %524
        %526 = vrot.lane.b32.xlu0 %v348, 4
        %v527 = vpop.permute.xlu0 %526
        %528 = vrot.lane.b32.xlu0 %v349, 4
        %v529 = vpop.permute.xlu0 %528
        %530 = vrot.lane.b32.xlu0 %v350, 4
        %v531 = vpop.permute.xlu0 %530
        %532 = vrot.lane.b32.xlu0 %v351, 4
        %v533 = vpop.permute.xlu0 %532
        %534 = vrot.lane.b32.xlu0 %v352, 4
        %v535 = vpop.permute.xlu0 %534
        %536 = vrot.lane.b32.xlu0 %v353, 4
        %v537 = vpop.permute.xlu0 %536
        %538 = vrot.lane.b32.xlu0 %v354, 4
        %v539 = vpop.permute.xlu0 %538
        %540 = vrot.lane.b32.xlu0 %v355, 4
        %v541 = vpop.permute.xlu0 %540
        %542 = vrot.lane.b32.xlu0 %v356, 4
        %v543 = vpop.permute.xlu0 %542
        %544 = vrot.lane.b32.xlu0 %v357, 4
        %v545 = vpop.permute.xlu0 %544
        %546 = vrot.lane.b32.xlu0 %v358, 4
        %v547 = vpop.permute.xlu0 %546
        %548 = vrot.lane.b32.xlu0 %v359, 4
        %v549 = vpop.permute.xlu0 %548
        %550 = vrot.lane.b32.xlu0 %v360, 4
        %v551 = vpop.permute.xlu0 %550
        %552 = vrot.lane.b32.xlu0 %v361, 4
        %v553 = vpop.permute.xlu0 %552
        %vm618 = vcmask 64544
        %619 = vst.msk [vmem:[#allocation2] sm:$0xff] %vm618, %v427
        %620 = vst.msk [vmem:[#allocation2 + $0x8] sm:$0xff] %vm618, %v429
        %621 = vst.msk [vmem:[#allocation2 + $0x10] sm:$0xff] %vm618, %v431
        %622 = vst.msk [vmem:[#allocation2 + $0x18] sm:$0xff] %vm618, %v433
        %623 = vst.msk [vmem:[#allocation2 + $0x20] sm:$0xff] %vm618, %v435
        %624 = vst.msk [vmem:[#allocation2 + $0x28] sm:$0xff] %vm618, %v437
        %625 = vst.msk [vmem:[#allocation2 + $0x30] sm:$0xff] %vm618, %v439
        %626 = vst.msk [vmem:[#allocation2 + $0x38] sm:$0xff] %vm618, %v441
        %627 = vst.msk [vmem:[#allocation2 + $0x40] sm:$0xff] %vm618, %v443
        %628 = vst.msk [vmem:[#allocation2 + $0x48] sm:$0xff] %vm618, %v445
        %629 = vst.msk [vmem:[#allocation2 + $0x50] sm:$0xff] %vm618, %v447
        %630 = vst.msk [vmem:[#allocation2 + $0x58] sm:$0xff] %vm618, %v449
        %631 = vst.msk [vmem:[#allocation2 + $0x60] sm:$0xff] %vm618, %v451
        %632 = vst.msk [vmem:[#allocation2 + $0x68] sm:$0xff] %vm618, %v453
        %633 = vst.msk [vmem:[#allocation2 + $0x70] sm:$0xff] %vm618, %v455
        %634 = vst.msk [vmem:[#allocation2 + $0x78] sm:$0xff] %vm618, %v457
        %635 = vst.msk [vmem:[#allocation2 + $0x80] sm:$0xff] %vm618, %v459
        %636 = vst.msk [vmem:[#allocation2 + $0x88] sm:$0xff] %vm618, %v461
        %637 = vst.msk [vmem:[#allocation2 + $0x90] sm:$0xff] %vm618, %v463
        %638 = vst.msk [vmem:[#allocation2 + $0x98] sm:$0xff] %vm618, %v465
        %639 = vst.msk [vmem:[#allocation2 + $0xa0] sm:$0xff] %vm618, %v467
        %640 = vst.msk [vmem:[#allocation2 + $0xa8] sm:$0xff] %vm618, %v469
        %641 = vst.msk [vmem:[#allocation2 + $0xb0] sm:$0xff] %vm618, %v471
        %642 = vst.msk [vmem:[#allocation2 + $0xb8] sm:$0xff] %vm618, %v473
        %643 = vst.msk [vmem:[#allocation2 + $0xc0] sm:$0xff] %vm618, %v475
        %644 = vst.msk [vmem:[#allocation2 + $0xc8] sm:$0xff] %vm618, %v477
        %645 = vst.msk [vmem:[#allocation2 + $0xd0] sm:$0xff] %vm618, %v479
        %646 = vst.msk [vmem:[#allocation2 + $0xd8] sm:$0xff] %vm618, %v481
        %647 = vst.msk [vmem:[#allocation2 + $0xe0] sm:$0xff] %vm618, %v483
        %648 = vst.msk [vmem:[#allocation2 + $0xe8] sm:$0xff] %vm618, %v485
        %649 = vst.msk [vmem:[#allocation2 + $0xf0] sm:$0xff] %vm618, %v487
        %650 = vst.msk [vmem:[#allocation2 + $0xf8] sm:$0xff] %vm618, %v489
        %651 = vst.msk [vmem:[#allocation2 + $0x100] sm:$0xff] %vm618, %v491
        %652 = vst.msk [vmem:[#allocation2 + $0x108] sm:$0xff] %vm618, %v493
        %653 = vst.msk [vmem:[#allocation2 + $0x110] sm:$0xff] %vm618, %v495
        %654 = vst.msk [vmem:[#allocation2 + $0x118] sm:$0xff] %vm618, %v497
        %655 = vst.msk [vmem:[#allocation2 + $0x120] sm:$0xff] %vm618, %v499
        %656 = vst.msk [vmem:[#allocation2 + $0x128] sm:$0xff] %vm618, %v501
        %657 = vst.msk [vmem:[#allocation2 + $0x130] sm:$0xff] %vm618, %v503
        %658 = vst.msk [vmem:[#allocation2 + $0x138] sm:$0xff] %vm618, %v505
        %659 = vst.msk [vmem:[#allocation2 + $0x140] sm:$0xff] %vm618, %v507
        %660 = vst.msk [vmem:[#allocation2 + $0x148] sm:$0xff] %vm618, %v509
        %661 = vst.msk [vmem:[#allocation2 + $0x150] sm:$0xff] %vm618, %v511
        %662 = vst.msk [vmem:[#allocation2 + $0x158] sm:$0xff] %vm618, %v513
        %663 = vst.msk [vmem:[#allocation2 + $0x160] sm:$0xff] %vm618, %v515
        %664 = vst.msk [vmem:[#allocation2 + $0x168] sm:$0xff] %vm618, %v517
        %665 = vst.msk [vmem:[#allocation2 + $0x170] sm:$0xff] %vm618, %v519
        %666 = vst.msk [vmem:[#allocation2 + $0x178] sm:$0xff] %vm618, %v521
        %667 = vst.msk [vmem:[#allocation2 + $0x180] sm:$0xff] %vm618, %v523
        %668 = vst.msk [vmem:[#allocation2 + $0x188] sm:$0xff] %vm618, %v525
        %669 = vst.msk [vmem:[#allocation2 + $0x190] sm:$0xff] %vm618, %v527
        %670 = vst.msk [vmem:[#allocation2 + $0x198] sm:$0xff] %vm618, %v529
        %671 = vst.msk [vmem:[#allocation2 + $0x1a0] sm:$0xff] %vm618, %v531
        %672 = vst.msk [vmem:[#allocation2 + $0x1a8] sm:$0xff] %vm618, %v533
        %673 = vst.msk [vmem:[#allocation2 + $0x1b0] sm:$0xff] %vm618, %v535
        %674 = vst.msk [vmem:[#allocation2 + $0x1b8] sm:$0xff] %vm618, %v537
        %675 = vst.msk [vmem:[#allocation2 + $0x1c0] sm:$0xff] %vm618, %v539
        %676 = vst.msk [vmem:[#allocation2 + $0x1c8] sm:$0xff] %vm618, %v541
        %677 = vst.msk [vmem:[#allocation2 + $0x1d0] sm:$0xff] %vm618, %v543
        %678 = vst.msk [vmem:[#allocation2 + $0x1d8] sm:$0xff] %vm618, %v545
        %679 = vst.msk [vmem:[#allocation2 + $0x1e0] sm:$0xff] %vm618, %v547
        %680 = vst.msk [vmem:[#allocation2 + $0x1e8] sm:$0xff] %vm618, %v549
        %681 = vst.msk [vmem:[#allocation2 + $0x1f0] sm:$0xff] %vm618, %v551
        %682 = vst.msk [vmem:[#allocation2 + $0x1f8] sm:$0xff] %vm618, %v553
        %v683 = vld [vmem:[%s168 + $0x2] sm:$0xff]
        %v684 = vld [vmem:[%s168 + $0x12] sm:$0xff]
        %v685 = vld [vmem:[%s168 + $0x22] sm:$0xff]
        %v686 = vld [vmem:[%s168 + $0x32] sm:$0xff]
        %v687 = vld [vmem:[%s168 + $0x42] sm:$0xff]
        %v688 = vld [vmem:[%s168 + $0x52] sm:$0xff]
        %v689 = vld [vmem:[%s168 + $0x62] sm:$0xff]
        %v690 = vld [vmem:[%s168 + $0x72] sm:$0xff]
        %v691 = vld [vmem:[%s168 + $0xa2] sm:$0xff]
        %v692 = vld [vmem:[%s168 + $0xb2] sm:$0xff]
        %v693 = vld [vmem:[%s168 + $0xc2] sm:$0xff]
        %v694 = vld [vmem:[%s168 + $0xd2] sm:$0xff]
        %v695 = vld [vmem:[%s168 + $0xe2] sm:$0xff]
        %v696 = vld [vmem:[%s168 + $0xf2] sm:$0xff]
        %v697 = vld [vmem:[%s168 + $0x102] sm:$0xff]
        %v698 = vld [vmem:[%s168 + $0x112] sm:$0xff]
        %v699 = vld [vmem:[%s168 + $0x142] sm:$0xff]
        %v700 = vld [vmem:[%s168 + $0x152] sm:$0xff]
        %v701 = vld [vmem:[%s168 + $0x162] sm:$0xff]
        %v702 = vld [vmem:[%s168 + $0x172] sm:$0xff]
        %v703 = vld [vmem:[%s168 + $0x182] sm:$0xff]
        %v704 = vld [vmem:[%s168 + $0x192] sm:$0xff]
        %v705 = vld [vmem:[%s168 + $0x1a2] sm:$0xff]
        %v706 = vld [vmem:[%s168 + $0x1b2] sm:$0xff]
        %v707 = vld [vmem:[%s168 + $0x1e2] sm:$0xff]
        %v708 = vld [vmem:[%s168 + $0x1f2] sm:$0xff]
        %v709 = vld [vmem:[%s168 + $0x202] sm:$0xff]
        %v710 = vld [vmem:[%s168 + $0x212] sm:$0xff]
        %v711 = vld [vmem:[%s168 + $0x222] sm:$0xff]
        %v712 = vld [vmem:[%s168 + $0x232] sm:$0xff]
        %v713 = vld [vmem:[%s168 + $0x242] sm:$0xff]
        %v714 = vld [vmem:[%s168 + $0x252] sm:$0xff]
        %v715 = vld [vmem:[%s168 + $0x282] sm:$0xff]
        %v716 = vld [vmem:[%s168 + $0x292] sm:$0xff]
        %v717 = vld [vmem:[%s168 + $0x2a2] sm:$0xff]
        %v718 = vld [vmem:[%s168 + $0x2b2] sm:$0xff]
        %v719 = vld [vmem:[%s168 + $0x2c2] sm:$0xff]
        %v720 = vld [vmem:[%s168 + $0x2d2] sm:$0xff]
        %v721 = vld [vmem:[%s168 + $0x2e2] sm:$0xff]
        %v722 = vld [vmem:[%s168 + $0x2f2] sm:$0xff]
        %v723 = vld [vmem:[%s168 + $0x322] sm:$0xff]
        %v724 = vld [vmem:[%s168 + $0x332] sm:$0xff]
        %v725 = vld [vmem:[%s168 + $0x342] sm:$0xff]
        %v726 = vld [vmem:[%s168 + $0x352] sm:$0xff]
        %v727 = vld [vmem:[%s168 + $0x362] sm:$0xff]
        %v728 = vld [vmem:[%s168 + $0x372] sm:$0xff]
        %v729 = vld [vmem:[%s168 + $0x382] sm:$0xff]
        %v730 = vld [vmem:[%s168 + $0x392] sm:$0xff]
        %v731 = vld [vmem:[%s168 + $0x3c2] sm:$0xff]
        %v732 = vld [vmem:[%s168 + $0x3d2] sm:$0xff]
        %v733 = vld [vmem:[%s168 + $0x3e2] sm:$0xff]
        %v734 = vld [vmem:[%s168 + $0x3f2] sm:$0xff]
        %v735 = vld [vmem:[%s168 + $0x402] sm:$0xff]
        %v736 = vld [vmem:[%s168 + $0x412] sm:$0xff]
        %v737 = vld [vmem:[%s168 + $0x422] sm:$0xff]
        %v738 = vld [vmem:[%s168 + $0x432] sm:$0xff]
        %v739 = vld [vmem:[%s168 + $0x462] sm:$0xff]
        %v740 = vld [vmem:[%s168 + $0x472] sm:$0xff]
        %v741 = vld [vmem:[%s168 + $0x482] sm:$0xff]
        %v742 = vld [vmem:[%s168 + $0x492] sm:$0xff]
        %v743 = vld [vmem:[%s168 + $0x4a2] sm:$0xff]
        %v744 = vld [vmem:[%s168 + $0x4b2] sm:$0xff]
        %v745 = vld [vmem:[%s168 + $0x4c2] sm:$0xff]
        %v746 = vld [vmem:[%s168 + $0x4d2] sm:$0xff]
        %811 = vrot.lane.b32.xlu0 %v683, 8
        %v812 = vpop.permute.xlu0 %811
        %813 = vrot.lane.b32.xlu0 %v684, 8
        %v814 = vpop.permute.xlu0 %813
        %815 = vrot.lane.b32.xlu0 %v685, 8
        %v816 = vpop.permute.xlu0 %815
        %817 = vrot.lane.b32.xlu0 %v686, 8
        %v818 = vpop.permute.xlu0 %817
        %819 = vrot.lane.b32.xlu0 %v687, 8
        %v820 = vpop.permute.xlu0 %819
        %821 = vrot.lane.b32.xlu0 %v688, 8
        %v822 = vpop.permute.xlu0 %821
        %823 = vrot.lane.b32.xlu0 %v689, 8
        %v824 = vpop.permute.xlu0 %823
        %825 = vrot.lane.b32.xlu0 %v690, 8
        %v826 = vpop.permute.xlu0 %825
        %827 = vrot.lane.b32.xlu0 %v691, 8
        %v828 = vpop.permute.xlu0 %827
        %829 = vrot.lane.b32.xlu0 %v692, 8
        %v830 = vpop.permute.xlu0 %829
        %831 = vrot.lane.b32.xlu0 %v693, 8
        %v832 = vpop.permute.xlu0 %831
        %833 = vrot.lane.b32.xlu0 %v694, 8
        %v834 = vpop.permute.xlu0 %833
        %835 = vrot.lane.b32.xlu0 %v695, 8
        %v836 = vpop.permute.xlu0 %835
        %837 = vrot.lane.b32.xlu0 %v696, 8
        %v838 = vpop.permute.xlu0 %837
        %839 = vrot.lane.b32.xlu0 %v697, 8
        %v840 = vpop.permute.xlu0 %839
        %841 = vrot.lane.b32.xlu0 %v698, 8
        %v842 = vpop.permute.xlu0 %841
        %843 = vrot.lane.b32.xlu0 %v699, 8
        %v844 = vpop.permute.xlu0 %843
        %845 = vrot.lane.b32.xlu0 %v700, 8
        %v846 = vpop.permute.xlu0 %845
        %847 = vrot.lane.b32.xlu0 %v701, 8
        %v848 = vpop.permute.xlu0 %847
        %849 = vrot.lane.b32.xlu0 %v702, 8
        %v850 = vpop.permute.xlu0 %849
        %851 = vrot.lane.b32.xlu0 %v703, 8
        %v852 = vpop.permute.xlu0 %851
        %853 = vrot.lane.b32.xlu0 %v704, 8
        %v854 = vpop.permute.xlu0 %853
        %855 = vrot.lane.b32.xlu0 %v705, 8
        %v856 = vpop.permute.xlu0 %855
        %857 = vrot.lane.b32.xlu0 %v706, 8
        %v858 = vpop.permute.xlu0 %857
        %859 = vrot.lane.b32.xlu0 %v707, 8
        %v860 = vpop.permute.xlu0 %859
        %861 = vrot.lane.b32.xlu0 %v708, 8
        %v862 = vpop.permute.xlu0 %861
        %863 = vrot.lane.b32.xlu0 %v709, 8
        %v864 = vpop.permute.xlu0 %863
        %865 = vrot.lane.b32.xlu0 %v710, 8
        %v866 = vpop.permute.xlu0 %865
        %867 = vrot.lane.b32.xlu0 %v711, 8
        %v868 = vpop.permute.xlu0 %867
        %869 = vrot.lane.b32.xlu0 %v712, 8
        %v870 = vpop.permute.xlu0 %869
        %871 = vrot.lane.b32.xlu0 %v713, 8
        %v872 = vpop.permute.xlu0 %871
        %873 = vrot.lane.b32.xlu0 %v714, 8
        %v874 = vpop.permute.xlu0 %873
        %875 = vrot.lane.b32.xlu0 %v715, 8
        %v876 = vpop.permute.xlu0 %875
        %877 = vrot.lane.b32.xlu0 %v716, 8
        %v878 = vpop.permute.xlu0 %877
        %879 = vrot.lane.b32.xlu0 %v717, 8
        %v880 = vpop.permute.xlu0 %879
        %881 = vrot.lane.b32.xlu0 %v718, 8
        %v882 = vpop.permute.xlu0 %881
        %883 = vrot.lane.b32.xlu0 %v719, 8
        %v884 = vpop.permute.xlu0 %883
        %885 = vrot.lane.b32.xlu0 %v720, 8
        %v886 = vpop.permute.xlu0 %885
        %887 = vrot.lane.b32.xlu0 %v721, 8
        %v888 = vpop.permute.xlu0 %887
        %889 = vrot.lane.b32.xlu0 %v722, 8
        %v890 = vpop.permute.xlu0 %889
        %891 = vrot.lane.b32.xlu0 %v723, 8
        %v892 = vpop.permute.xlu0 %891
        %893 = vrot.lane.b32.xlu0 %v724, 8
        %v894 = vpop.permute.xlu0 %893
        %895 = vrot.lane.b32.xlu0 %v725, 8
        %v896 = vpop.permute.xlu0 %895
        %897 = vrot.lane.b32.xlu0 %v726, 8
        %v898 = vpop.permute.xlu0 %897
        %899 = vrot.lane.b32.xlu0 %v727, 8
        %v900 = vpop.permute.xlu0 %899
        %901 = vrot.lane.b32.xlu0 %v728, 8
        %v902 = vpop.permute.xlu0 %901
        %903 = vrot.lane.b32.xlu0 %v729, 8
        %v904 = vpop.permute.xlu0 %903
        %905 = vrot.lane.b32.xlu0 %v730, 8
        %v906 = vpop.permute.xlu0 %905
        %907 = vrot.lane.b32.xlu0 %v731, 8
        %v908 = vpop.permute.xlu0 %907
        %909 = vrot.lane.b32.xlu0 %v732, 8
        %v910 = vpop.permute.xlu0 %909
        %911 = vrot.lane.b32.xlu0 %v733, 8
        %v912 = vpop.permute.xlu0 %911
        %913 = vrot.lane.b32.xlu0 %v734, 8
        %v914 = vpop.permute.xlu0 %913
        %915 = vrot.lane.b32.xlu0 %v735, 8
        %v916 = vpop.permute.xlu0 %915
        %917 = vrot.lane.b32.xlu0 %v736, 8
        %v918 = vpop.permute.xlu0 %917
        %919 = vrot.lane.b32.xlu0 %v737, 8
        %v920 = vpop.permute.xlu0 %919
        %921 = vrot.lane.b32.xlu0 %v738, 8
        %v922 = vpop.permute.xlu0 %921
        %923 = vrot.lane.b32.xlu0 %v739, 8
        %v924 = vpop.permute.xlu0 %923
        %925 = vrot.lane.b32.xlu0 %v740, 8
        %v926 = vpop.permute.xlu0 %925
        %927 = vrot.lane.b32.xlu0 %v741, 8
        %v928 = vpop.permute.xlu0 %927
        %929 = vrot.lane.b32.xlu0 %v742, 8
        %v930 = vpop.permute.xlu0 %929
        %931 = vrot.lane.b32.xlu0 %v743, 8
        %v932 = vpop.permute.xlu0 %931
        %933 = vrot.lane.b32.xlu0 %v744, 8
        %v934 = vpop.permute.xlu0 %933
        %935 = vrot.lane.b32.xlu0 %v745, 8
        %v936 = vpop.permute.xlu0 %935
        %937 = vrot.lane.b32.xlu0 %v746, 8
        %v938 = vpop.permute.xlu0 %937
        %vm1003 = vcmask 97344
        %1004 = vst.msk [vmem:[#allocation2] sm:$0xff] %vm1003, %v812
        %1005 = vst.msk [vmem:[#allocation2 + $0x8] sm:$0xff] %vm1003, %v814
        %1006 = vst.msk [vmem:[#allocation2 + $0x10] sm:$0xff] %vm1003, %v816
        %1007 = vst.msk [vmem:[#allocation2 + $0x18] sm:$0xff] %vm1003, %v818
        %1008 = vst.msk [vmem:[#allocation2 + $0x20] sm:$0xff] %vm1003, %v820
        %1009 = vst.msk [vmem:[#allocation2 + $0x28] sm:$0xff] %vm1003, %v822
        %1010 = vst.msk [vmem:[#allocation2 + $0x30] sm:$0xff] %vm1003, %v824
        %1011 = vst.msk [vmem:[#allocation2 + $0x38] sm:$0xff] %vm1003, %v826
        %1012 = vst.msk [vmem:[#allocation2 + $0x40] sm:$0xff] %vm1003, %v828
        %1013 = vst.msk [vmem:[#allocation2 + $0x48] sm:$0xff] %vm1003, %v830
        %1014 = vst.msk [vmem:[#allocation2 + $0x50] sm:$0xff] %vm1003, %v832
        %1015 = vst.msk [vmem:[#allocation2 + $0x58] sm:$0xff] %vm1003, %v834
        %1016 = vst.msk [vmem:[#allocation2 + $0x60] sm:$0xff] %vm1003, %v836
        %1017 = vst.msk [vmem:[#allocation2 + $0x68] sm:$0xff] %vm1003, %v838
        %1018 = vst.msk [vmem:[#allocation2 + $0x70] sm:$0xff] %vm1003, %v840
        %1019 = vst.msk [vmem:[#allocation2 + $0x78] sm:$0xff] %vm1003, %v842
        %1020 = vst.msk [vmem:[#allocation2 + $0x80] sm:$0xff] %vm1003, %v844
        %1021 = vst.msk [vmem:[#allocation2 + $0x88] sm:$0xff] %vm1003, %v846
        %1022 = vst.msk [vmem:[#allocation2 + $0x90] sm:$0xff] %vm1003, %v848
        %1023 = vst.msk [vmem:[#allocation2 + $0x98] sm:$0xff] %vm1003, %v850
        %1024 = vst.msk [vmem:[#allocation2 + $0xa0] sm:$0xff] %vm1003, %v852
        %1025 = vst.msk [vmem:[#allocation2 + $0xa8] sm:$0xff] %vm1003, %v854
        %1026 = vst.msk [vmem:[#allocation2 + $0xb0] sm:$0xff] %vm1003, %v856
        %1027 = vst.msk [vmem:[#allocation2 + $0xb8] sm:$0xff] %vm1003, %v858
        %1028 = vst.msk [vmem:[#allocation2 + $0xc0] sm:$0xff] %vm1003, %v860
        %1029 = vst.msk [vmem:[#allocation2 + $0xc8] sm:$0xff] %vm1003, %v862
        %1030 = vst.msk [vmem:[#allocation2 + $0xd0] sm:$0xff] %vm1003, %v864
        %1031 = vst.msk [vmem:[#allocation2 + $0xd8] sm:$0xff] %vm1003, %v866
        %1032 = vst.msk [vmem:[#allocation2 + $0xe0] sm:$0xff] %vm1003, %v868
        %1033 = vst.msk [vmem:[#allocation2 + $0xe8] sm:$0xff] %vm1003, %v870
        %1034 = vst.msk [vmem:[#allocation2 + $0xf0] sm:$0xff] %vm1003, %v872
        %1035 = vst.msk [vmem:[#allocation2 + $0xf8] sm:$0xff] %vm1003, %v874
        %1036 = vst.msk [vmem:[#allocation2 + $0x100] sm:$0xff] %vm1003, %v876
        %1037 = vst.msk [vmem:[#allocation2 + $0x108] sm:$0xff] %vm1003, %v878
        %1038 = vst.msk [vmem:[#allocation2 + $0x110] sm:$0xff] %vm1003, %v880
        %1039 = vst.msk [vmem:[#allocation2 + $0x118] sm:$0xff] %vm1003, %v882
        %1040 = vst.msk [vmem:[#allocation2 + $0x120] sm:$0xff] %vm1003, %v884
        %1041 = vst.msk [vmem:[#allocation2 + $0x128] sm:$0xff] %vm1003, %v886
        %1042 = vst.msk [vmem:[#allocation2 + $0x130] sm:$0xff] %vm1003, %v888
        %1043 = vst.msk [vmem:[#allocation2 + $0x138] sm:$0xff] %vm1003, %v890
        %1044 = vst.msk [vmem:[#allocation2 + $0x140] sm:$0xff] %vm1003, %v892
        %1045 = vst.msk [vmem:[#allocation2 + $0x148] sm:$0xff] %vm1003, %v894
        %1046 = vst.msk [vmem:[#allocation2 + $0x150] sm:$0xff] %vm1003, %v896
        %1047 = vst.msk [vmem:[#allocation2 + $0x158] sm:$0xff] %vm1003, %v898
        %1048 = vst.msk [vmem:[#allocation2 + $0x160] sm:$0xff] %vm1003, %v900
        %1049 = vst.msk [vmem:[#allocation2 + $0x168] sm:$0xff] %vm1003, %v902
        %1050 = vst.msk [vmem:[#allocation2 + $0x170] sm:$0xff] %vm1003, %v904
        %1051 = vst.msk [vmem:[#allocation2 + $0x178] sm:$0xff] %vm1003, %v906
        %1052 = vst.msk [vmem:[#allocation2 + $0x180] sm:$0xff] %vm1003, %v908
        %1053 = vst.msk [vmem:[#allocation2 + $0x188] sm:$0xff] %vm1003, %v910
        %1054 = vst.msk [vmem:[#allocation2 + $0x190] sm:$0xff] %vm1003, %v912
        %1055 = vst.msk [vmem:[#allocation2 + $0x198] sm:$0xff] %vm1003, %v914
        %1056 = vst.msk [vmem:[#allocation2 + $0x1a0] sm:$0xff] %vm1003, %v916
        %1057 = vst.msk [vmem:[#allocation2 + $0x1a8] sm:$0xff] %vm1003, %v918
        %1058 = vst.msk [vmem:[#allocation2 + $0x1b0] sm:$0xff] %vm1003, %v920
        %1059 = vst.msk [vmem:[#allocation2 + $0x1b8] sm:$0xff] %vm1003, %v922
        %1060 = vst.msk [vmem:[#allocation2 + $0x1c0] sm:$0xff] %vm1003, %v924
        %1061 = vst.msk [vmem:[#allocation2 + $0x1c8] sm:$0xff] %vm1003, %v926
        %1062 = vst.msk [vmem:[#allocation2 + $0x1d0] sm:$0xff] %vm1003, %v928
        %1063 = vst.msk [vmem:[#allocation2 + $0x1d8] sm:$0xff] %vm1003, %v930
        %1064 = vst.msk [vmem:[#allocation2 + $0x1e0] sm:$0xff] %vm1003, %v932
        %1065 = vst.msk [vmem:[#allocation2 + $0x1e8] sm:$0xff] %vm1003, %v934
        %1066 = vst.msk [vmem:[#allocation2 + $0x1f0] sm:$0xff] %vm1003, %v936
        %1067 = vst.msk [vmem:[#allocation2 + $0x1f8] sm:$0xff] %vm1003, %v938
        %s1068 = scalar_lea.vmem %s168, 16
        %v1069 = vld [vmem:[%s1068] sm:$0xff]
        %v1070 = vld [vmem:[%s1068 + $0x10] sm:$0xff]
        %v1071 = vld [vmem:[%s1068 + $0x20] sm:$0xff]
        %v1072 = vld [vmem:[%s1068 + $0x30] sm:$0xff]
        %v1073 = vld [vmem:[%s1068 + $0x40] sm:$0xff]
        %v1074 = vld [vmem:[%s1068 + $0x50] sm:$0xff]
        %v1075 = vld [vmem:[%s1068 + $0x60] sm:$0xff]
        %v1076 = vld [vmem:[%s1068 + $0x70] sm:$0xff]
        %v1077 = vld [vmem:[%s1068 + $0xa0] sm:$0xff]
        %v1078 = vld [vmem:[%s1068 + $0xb0] sm:$0xff]
        %v1079 = vld [vmem:[%s1068 + $0xc0] sm:$0xff]
        %v1080 = vld [vmem:[%s1068 + $0xd0] sm:$0xff]
        %v1081 = vld [vmem:[%s1068 + $0xe0] sm:$0xff]
        %v1082 = vld [vmem:[%s1068 + $0xf0] sm:$0xff]
        %v1083 = vld [vmem:[%s1068 + $0x100] sm:$0xff]
        %v1084 = vld [vmem:[%s1068 + $0x110] sm:$0xff]
        %v1085 = vld [vmem:[%s1068 + $0x140] sm:$0xff]
        %v1086 = vld [vmem:[%s1068 + $0x150] sm:$0xff]
        %v1087 = vld [vmem:[%s1068 + $0x160] sm:$0xff]
        %v1088 = vld [vmem:[%s1068 + $0x170] sm:$0xff]
        %v1089 = vld [vmem:[%s1068 + $0x180] sm:$0xff]
        %v1090 = vld [vmem:[%s1068 + $0x190] sm:$0xff]
        %v1091 = vld [vmem:[%s1068 + $0x1a0] sm:$0xff]
        %v1092 = vld [vmem:[%s1068 + $0x1b0] sm:$0xff]
        %v1093 = vld [vmem:[%s1068 + $0x1e0] sm:$0xff]
        %v1094 = vld [vmem:[%s1068 + $0x1f0] sm:$0xff]
        %v1095 = vld [vmem:[%s1068 + $0x200] sm:$0xff]
        %v1096 = vld [vmem:[%s1068 + $0x210] sm:$0xff]
        %v1097 = vld [vmem:[%s1068 + $0x220] sm:$0xff]
        %v1098 = vld [vmem:[%s1068 + $0x230] sm:$0xff]
        %v1099 = vld [vmem:[%s1068 + $0x240] sm:$0xff]
        %v1100 = vld [vmem:[%s1068 + $0x250] sm:$0xff]
        %v1101 = vld [vmem:[%s1068 + $0x280] sm:$0xff]
        %v1102 = vld [vmem:[%s1068 + $0x290] sm:$0xff]
        %v1103 = vld [vmem:[%s1068 + $0x2a0] sm:$0xff]
        %v1104 = vld [vmem:[%s1068 + $0x2b0] sm:$0xff]
        %v1105 = vld [vmem:[%s1068 + $0x2c0] sm:$0xff]
        %v1106 = vld [vmem:[%s1068 + $0x2d0] sm:$0xff]
        %v1107 = vld [vmem:[%s1068 + $0x2e0] sm:$0xff]
        %v1108 = vld [vmem:[%s1068 + $0x2f0] sm:$0xff]
        %v1109 = vld [vmem:[%s1068 + $0x320] sm:$0xff]
        %v1110 = vld [vmem:[%s1068 + $0x330] sm:$0xff]
        %v1111 = vld [vmem:[%s1068 + $0x340] sm:$0xff]
        %v1112 = vld [vmem:[%s1068 + $0x350] sm:$0xff]
        %v1113 = vld [vmem:[%s1068 + $0x360] sm:$0xff]
        %v1114 = vld [vmem:[%s1068 + $0x370] sm:$0xff]
        %v1115 = vld [vmem:[%s1068 + $0x380] sm:$0xff]
        %v1116 = vld [vmem:[%s1068 + $0x390] sm:$0xff]
        %v1117 = vld [vmem:[%s1068 + $0x3c0] sm:$0xff]
        %v1118 = vld [vmem:[%s1068 + $0x3d0] sm:$0xff]
        %v1119 = vld [vmem:[%s1068 + $0x3e0] sm:$0xff]
        %v1120 = vld [vmem:[%s1068 + $0x3f0] sm:$0xff]
        %v1121 = vld [vmem:[%s1068 + $0x400] sm:$0xff]
        %v1122 = vld [vmem:[%s1068 + $0x410] sm:$0xff]
        %v1123 = vld [vmem:[%s1068 + $0x420] sm:$0xff]
        %v1124 = vld [vmem:[%s1068 + $0x430] sm:$0xff]
        %v1125 = vld [vmem:[%s1068 + $0x460] sm:$0xff]
        %v1126 = vld [vmem:[%s1068 + $0x470] sm:$0xff]
        %v1127 = vld [vmem:[%s1068 + $0x480] sm:$0xff]
        %v1128 = vld [vmem:[%s1068 + $0x490] sm:$0xff]
        %v1129 = vld [vmem:[%s1068 + $0x4a0] sm:$0xff]
        %v1130 = vld [vmem:[%s1068 + $0x4b0] sm:$0xff]
        %v1131 = vld [vmem:[%s1068 + $0x4c0] sm:$0xff]
        %v1132 = vld [vmem:[%s1068 + $0x4d0] sm:$0xff]
        %1197 = vrot.lane.b32.xlu0 %v1069, 12
        %v1198 = vpop.permute.xlu0 %1197
        %1199 = vrot.lane.b32.xlu0 %v1070, 12
        %v1200 = vpop.permute.xlu0 %1199
        %1201 = vrot.lane.b32.xlu0 %v1071, 12
        %v1202 = vpop.permute.xlu0 %1201
        %1203 = vrot.lane.b32.xlu0 %v1072, 12
        %v1204 = vpop.permute.xlu0 %1203
        %1205 = vrot.lane.b32.xlu0 %v1073, 12
        %v1206 = vpop.permute.xlu0 %1205
        %1207 = vrot.lane.b32.xlu0 %v1074, 12
        %v1208 = vpop.permute.xlu0 %1207
        %1209 = vrot.lane.b32.xlu0 %v1075, 12
        %v1210 = vpop.permute.xlu0 %1209
        %1211 = vrot.lane.b32.xlu0 %v1076, 12
        %v1212 = vpop.permute.xlu0 %1211
        %1213 = vrot.lane.b32.xlu0 %v1077, 12
        %v1214 = vpop.permute.xlu0 %1213
        %1215 = vrot.lane.b32.xlu0 %v1078, 12
        %v1216 = vpop.permute.xlu0 %1215
        %1217 = vrot.lane.b32.xlu0 %v1079, 12
        %v1218 = vpop.permute.xlu0 %1217
        %1219 = vrot.lane.b32.xlu0 %v1080, 12
        %v1220 = vpop.permute.xlu0 %1219
        %1221 = vrot.lane.b32.xlu0 %v1081, 12
        %v1222 = vpop.permute.xlu0 %1221
        %1223 = vrot.lane.b32.xlu0 %v1082, 12
        %v1224 = vpop.permute.xlu0 %1223
        %1225 = vrot.lane.b32.xlu0 %v1083, 12
        %v1226 = vpop.permute.xlu0 %1225
        %1227 = vrot.lane.b32.xlu0 %v1084, 12
        %v1228 = vpop.permute.xlu0 %1227
        %1229 = vrot.lane.b32.xlu0 %v1085, 12
        %v1230 = vpop.permute.xlu0 %1229
        %1231 = vrot.lane.b32.xlu0 %v1086, 12
        %v1232 = vpop.permute.xlu0 %1231
        %1233 = vrot.lane.b32.xlu0 %v1087, 12
        %v1234 = vpop.permute.xlu0 %1233
        %1235 = vrot.lane.b32.xlu0 %v1088, 12
        %v1236 = vpop.permute.xlu0 %1235
        %1237 = vrot.lane.b32.xlu0 %v1089, 12
        %v1238 = vpop.permute.xlu0 %1237
        %1239 = vrot.lane.b32.xlu0 %v1090, 12
        %v1240 = vpop.permute.xlu0 %1239
        %1241 = vrot.lane.b32.xlu0 %v1091, 12
        %v1242 = vpop.permute.xlu0 %1241
        %1243 = vrot.lane.b32.xlu0 %v1092, 12
        %v1244 = vpop.permute.xlu0 %1243
        %1245 = vrot.lane.b32.xlu0 %v1093, 12
        %v1246 = vpop.permute.xlu0 %1245
        %1247 = vrot.lane.b32.xlu0 %v1094, 12
        %v1248 = vpop.permute.xlu0 %1247
        %1249 = vrot.lane.b32.xlu0 %v1095, 12
        %v1250 = vpop.permute.xlu0 %1249
        %1251 = vrot.lane.b32.xlu0 %v1096, 12
        %v1252 = vpop.permute.xlu0 %1251
        %1253 = vrot.lane.b32.xlu0 %v1097, 12
        %v1254 = vpop.permute.xlu0 %1253
        %1255 = vrot.lane.b32.xlu0 %v1098, 12
        %v1256 = vpop.permute.xlu0 %1255
        %1257 = vrot.lane.b32.xlu0 %v1099, 12
        %v1258 = vpop.permute.xlu0 %1257
        %1259 = vrot.lane.b32.xlu0 %v1100, 12
        %v1260 = vpop.permute.xlu0 %1259
        %1261 = vrot.lane.b32.xlu0 %v1101, 12
        %v1262 = vpop.permute.xlu0 %1261
        %1263 = vrot.lane.b32.xlu0 %v1102, 12
        %v1264 = vpop.permute.xlu0 %1263
        %1265 = vrot.lane.b32.xlu0 %v1103, 12
        %v1266 = vpop.permute.xlu0 %1265
        %1267 = vrot.lane.b32.xlu0 %v1104, 12
        %v1268 = vpop.permute.xlu0 %1267
        %1269 = vrot.lane.b32.xlu0 %v1105, 12
        %v1270 = vpop.permute.xlu0 %1269
        %1271 = vrot.lane.b32.xlu0 %v1106, 12
        %v1272 = vpop.permute.xlu0 %1271
        %1273 = vrot.lane.b32.xlu0 %v1107, 12
        %v1274 = vpop.permute.xlu0 %1273
        %1275 = vrot.lane.b32.xlu0 %v1108, 12
        %v1276 = vpop.permute.xlu0 %1275
        %1277 = vrot.lane.b32.xlu0 %v1109, 12
        %v1278 = vpop.permute.xlu0 %1277
        %1279 = vrot.lane.b32.xlu0 %v1110, 12
        %v1280 = vpop.permute.xlu0 %1279
        %1281 = vrot.lane.b32.xlu0 %v1111, 12
        %v1282 = vpop.permute.xlu0 %1281
        %1283 = vrot.lane.b32.xlu0 %v1112, 12
        %v1284 = vpop.permute.xlu0 %1283
        %1285 = vrot.lane.b32.xlu0 %v1113, 12
        %v1286 = vpop.permute.xlu0 %1285
        %1287 = vrot.lane.b32.xlu0 %v1114, 12
        %v1288 = vpop.permute.xlu0 %1287
        %1289 = vrot.lane.b32.xlu0 %v1115, 12
        %v1290 = vpop.permute.xlu0 %1289
        %1291 = vrot.lane.b32.xlu0 %v1116, 12
        %v1292 = vpop.permute.xlu0 %1291
        %1293 = vrot.lane.b32.xlu0 %v1117, 12
        %v1294 = vpop.permute.xlu0 %1293
        %1295 = vrot.lane.b32.xlu0 %v1118, 12
        %v1296 = vpop.permute.xlu0 %1295
        %1297 = vrot.lane.b32.xlu0 %v1119, 12
        %v1298 = vpop.permute.xlu0 %1297
        %1299 = vrot.lane.b32.xlu0 %v1120, 12
        %v1300 = vpop.permute.xlu0 %1299
        %1301 = vrot.lane.b32.xlu0 %v1121, 12
        %v1302 = vpop.permute.xlu0 %1301
        %1303 = vrot.lane.b32.xlu0 %v1122, 12
        %v1304 = vpop.permute.xlu0 %1303
        %1305 = vrot.lane.b32.xlu0 %v1123, 12
        %v1306 = vpop.permute.xlu0 %1305
        %1307 = vrot.lane.b32.xlu0 %v1124, 12
        %v1308 = vpop.permute.xlu0 %1307
        %1309 = vrot.lane.b32.xlu0 %v1125, 12
        %v1310 = vpop.permute.xlu0 %1309
        %1311 = vrot.lane.b32.xlu0 %v1126, 12
        %v1312 = vpop.permute.xlu0 %1311
        %1313 = vrot.lane.b32.xlu0 %v1127, 12
        %v1314 = vpop.permute.xlu0 %1313
        %1315 = vrot.lane.b32.xlu0 %v1128, 12
        %v1316 = vpop.permute.xlu0 %1315
        %1317 = vrot.lane.b32.xlu0 %v1129, 12
        %v1318 = vpop.permute.xlu0 %1317
        %1319 = vrot.lane.b32.xlu0 %v1130, 12
        %v1320 = vpop.permute.xlu0 %1319
        %1321 = vrot.lane.b32.xlu0 %v1131, 12
        %v1322 = vpop.permute.xlu0 %1321
        %1323 = vrot.lane.b32.xlu0 %v1132, 12
        %v1324 = vpop.permute.xlu0 %1323
        %vm1389 = vcmask 130144
        %1390 = vst.msk [vmem:[#allocation2] sm:$0xff] %vm1389, %v1198
        %1391 = vst.msk [vmem:[#allocation2 + $0x8] sm:$0xff] %vm1389, %v1200
        %1392 = vst.msk [vmem:[#allocation2 + $0x10] sm:$0xff] %vm1389, %v1202
        %1393 = vst.msk [vmem:[#allocation2 + $0x18] sm:$0xff] %vm1389, %v1204
        %1394 = vst.msk [vmem:[#allocation2 + $0x20] sm:$0xff] %vm1389, %v1206
        %1395 = vst.msk [vmem:[#allocation2 + $0x28] sm:$0xff] %vm1389, %v1208
        %1396 = vst.msk [vmem:[#allocation2 + $0x30] sm:$0xff] %vm1389, %v1210
        %1397 = vst.msk [vmem:[#allocation2 + $0x38] sm:$0xff] %vm1389, %v1212
        %1398 = vst.msk [vmem:[#allocation2 + $0x40] sm:$0xff] %vm1389, %v1214
        %1399 = vst.msk [vmem:[#allocation2 + $0x48] sm:$0xff] %vm1389, %v1216
        %1400 = vst.msk [vmem:[#allocation2 + $0x50] sm:$0xff] %vm1389, %v1218
        %1401 = vst.msk [vmem:[#allocation2 + $0x58] sm:$0xff] %vm1389, %v1220
        %1402 = vst.msk [vmem:[#allocation2 + $0x60] sm:$0xff] %vm1389, %v1222
        %1403 = vst.msk [vmem:[#allocation2 + $0x68] sm:$0xff] %vm1389, %v1224
        %1404 = vst.msk [vmem:[#allocation2 + $0x70] sm:$0xff] %vm1389, %v1226
        %1405 = vst.msk [vmem:[#allocation2 + $0x78] sm:$0xff] %vm1389, %v1228
        %1406 = vst.msk [vmem:[#allocation2 + $0x80] sm:$0xff] %vm1389, %v1230
        %1407 = vst.msk [vmem:[#allocation2 + $0x88] sm:$0xff] %vm1389, %v1232
        %1408 = vst.msk [vmem:[#allocation2 + $0x90] sm:$0xff] %vm1389, %v1234
        %1409 = vst.msk [vmem:[#allocation2 + $0x98] sm:$0xff] %vm1389, %v1236
        %1410 = vst.msk [vmem:[#allocation2 + $0xa0] sm:$0xff] %vm1389, %v1238
        %1411 = vst.msk [vmem:[#allocation2 + $0xa8] sm:$0xff] %vm1389, %v1240
        %1412 = vst.msk [vmem:[#allocation2 + $0xb0] sm:$0xff] %vm1389, %v1242
        %1413 = vst.msk [vmem:[#allocation2 + $0xb8] sm:$0xff] %vm1389, %v1244
        %1414 = vst.msk [vmem:[#allocation2 + $0xc0] sm:$0xff] %vm1389, %v1246
        %1415 = vst.msk [vmem:[#allocation2 + $0xc8] sm:$0xff] %vm1389, %v1248
        %1416 = vst.msk [vmem:[#allocation2 + $0xd0] sm:$0xff] %vm1389, %v1250
        %1417 = vst.msk [vmem:[#allocation2 + $0xd8] sm:$0xff] %vm1389, %v1252
        %1418 = vst.msk [vmem:[#allocation2 + $0xe0] sm:$0xff] %vm1389, %v1254
        %1419 = vst.msk [vmem:[#allocation2 + $0xe8] sm:$0xff] %vm1389, %v1256
        %1420 = vst.msk [vmem:[#allocation2 + $0xf0] sm:$0xff] %vm1389, %v1258
        %1421 = vst.msk [vmem:[#allocation2 + $0xf8] sm:$0xff] %vm1389, %v1260
        %1422 = vst.msk [vmem:[#allocation2 + $0x100] sm:$0xff] %vm1389, %v1262
        %1423 = vst.msk [vmem:[#allocation2 + $0x108] sm:$0xff] %vm1389, %v1264
        %1424 = vst.msk [vmem:[#allocation2 + $0x110] sm:$0xff] %vm1389, %v1266
        %1425 = vst.msk [vmem:[#allocation2 + $0x118] sm:$0xff] %vm1389, %v1268
        %1426 = vst.msk [vmem:[#allocation2 + $0x120] sm:$0xff] %vm1389, %v1270
        %1427 = vst.msk [vmem:[#allocation2 + $0x128] sm:$0xff] %vm1389, %v1272
        %1428 = vst.msk [vmem:[#allocation2 + $0x130] sm:$0xff] %vm1389, %v1274
        %1429 = vst.msk [vmem:[#allocation2 + $0x138] sm:$0xff] %vm1389, %v1276
        %1430 = vst.msk [vmem:[#allocation2 + $0x140] sm:$0xff] %vm1389, %v1278
        %1431 = vst.msk [vmem:[#allocation2 + $0x148] sm:$0xff] %vm1389, %v1280
        %1432 = vst.msk [vmem:[#allocation2 + $0x150] sm:$0xff] %vm1389, %v1282
        %1433 = vst.msk [vmem:[#allocation2 + $0x158] sm:$0xff] %vm1389, %v1284
        %1434 = vst.msk [vmem:[#allocation2 + $0x160] sm:$0xff] %vm1389, %v1286
        %1435 = vst.msk [vmem:[#allocation2 + $0x168] sm:$0xff] %vm1389, %v1288
        %1436 = vst.msk [vmem:[#allocation2 + $0x170] sm:$0xff] %vm1389, %v1290
        %1437 = vst.msk [vmem:[#allocation2 + $0x178] sm:$0xff] %vm1389, %v1292
        %1438 = vst.msk [vmem:[#allocation2 + $0x180] sm:$0xff] %vm1389, %v1294
        %1439 = vst.msk [vmem:[#allocation2 + $0x188] sm:$0xff] %vm1389, %v1296
        %1440 = vst.msk [vmem:[#allocation2 + $0x190] sm:$0xff] %vm1389, %v1298
        %1441 = vst.msk [vmem:[#allocation2 + $0x198] sm:$0xff] %vm1389, %v1300
        %1442 = vst.msk [vmem:[#allocation2 + $0x1a0] sm:$0xff] %vm1389, %v1302
        %1443 = vst.msk [vmem:[#allocation2 + $0x1a8] sm:$0xff] %vm1389, %v1304
        %1444 = vst.msk [vmem:[#allocation2 + $0x1b0] sm:$0xff] %vm1389, %v1306
        %1445 = vst.msk [vmem:[#allocation2 + $0x1b8] sm:$0xff] %vm1389, %v1308
        %1446 = vst.msk [vmem:[#allocation2 + $0x1c0] sm:$0xff] %vm1389, %v1310
        %1447 = vst.msk [vmem:[#allocation2 + $0x1c8] sm:$0xff] %vm1389, %v1312
        %1448 = vst.msk [vmem:[#allocation2 + $0x1d0] sm:$0xff] %vm1389, %v1314
        %1449 = vst.msk [vmem:[#allocation2 + $0x1d8] sm:$0xff] %vm1389, %v1316
        %1450 = vst.msk [vmem:[#allocation2 + $0x1e0] sm:$0xff] %vm1389, %v1318
        %1451 = vst.msk [vmem:[#allocation2 + $0x1e8] sm:$0xff] %vm1389, %v1320
        %1452 = vst.msk [vmem:[#allocation2 + $0x1f0] sm:$0xff] %vm1389, %v1322
        %1453 = vst.msk [vmem:[#allocation2 + $0x1f8] sm:$0xff] %vm1389, %v1324
        %v1454 = vld [vmem:[%s1068 + $0x1] sm:$0xff]
        %v1455 = vld [vmem:[%s1068 + $0x11] sm:$0xff]
        %v1456 = vld [vmem:[%s1068 + $0x21] sm:$0xff]
        %v1457 = vld [vmem:[%s1068 + $0x31] sm:$0xff]
        %v1458 = vld [vmem:[%s1068 + $0x41] sm:$0xff]
        %v1459 = vld [vmem:[%s1068 + $0x51] sm:$0xff]
        %v1460 = vld [vmem:[%s1068 + $0x61] sm:$0xff]
        %v1461 = vld [vmem:[%s1068 + $0x71] sm:$0xff]
        %v1462 = vld [vmem:[%s1068 + $0xa1] sm:$0xff]
        %v1463 = vld [vmem:[%s1068 + $0xb1] sm:$0xff]
        %v1464 = vld [vmem:[%s1068 + $0xc1] sm:$0xff]
        %v1465 = vld [vmem:[%s1068 + $0xd1] sm:$0xff]
        %v1466 = vld [vmem:[%s1068 + $0xe1] sm:$0xff]
        %v1467 = vld [vmem:[%s1068 + $0xf1] sm:$0xff]
        %v1468 = vld [vmem:[%s1068 + $0x101] sm:$0xff]
        %v1469 = vld [vmem:[%s1068 + $0x111] sm:$0xff]
        %v1470 = vld [vmem:[%s1068 + $0x141] sm:$0xff]
        %v1471 = vld [vmem:[%s1068 + $0x151] sm:$0xff]
        %v1472 = vld [vmem:[%s1068 + $0x161] sm:$0xff]
        %v1473 = vld [vmem:[%s1068 + $0x171] sm:$0xff]
        %v1474 = vld [vmem:[%s1068 + $0x181] sm:$0xff]
        %v1475 = vld [vmem:[%s1068 + $0x191] sm:$0xff]
        %v1476 = vld [vmem:[%s1068 + $0x1a1] sm:$0xff]
        %v1477 = vld [vmem:[%s1068 + $0x1b1] sm:$0xff]
        %v1478 = vld [vmem:[%s1068 + $0x1e1] sm:$0xff]
        %v1479 = vld [vmem:[%s1068 + $0x1f1] sm:$0xff]
        %v1480 = vld [vmem:[%s1068 + $0x201] sm:$0xff]
        %v1481 = vld [vmem:[%s1068 + $0x211] sm:$0xff]
        %v1482 = vld [vmem:[%s1068 + $0x221] sm:$0xff]
        %v1483 = vld [vmem:[%s1068 + $0x231] sm:$0xff]
        %v1484 = vld [vmem:[%s1068 + $0x241] sm:$0xff]
        %v1485 = vld [vmem:[%s1068 + $0x251] sm:$0xff]
        %v1486 = vld [vmem:[%s1068 + $0x281] sm:$0xff]
        %v1487 = vld [vmem:[%s1068 + $0x291] sm:$0xff]
        %v1488 = vld [vmem:[%s1068 + $0x2a1] sm:$0xff]
        %v1489 = vld [vmem:[%s1068 + $0x2b1] sm:$0xff]
        %v1490 = vld [vmem:[%s1068 + $0x2c1] sm:$0xff]
        %v1491 = vld [vmem:[%s1068 + $0x2d1] sm:$0xff]
        %v1492 = vld [vmem:[%s1068 + $0x2e1] sm:$0xff]
        %v1493 = vld [vmem:[%s1068 + $0x2f1] sm:$0xff]
        %v1494 = vld [vmem:[%s1068 + $0x321] sm:$0xff]
        %v1495 = vld [vmem:[%s1068 + $0x331] sm:$0xff]
        %v1496 = vld [vmem:[%s1068 + $0x341] sm:$0xff]
        %v1497 = vld [vmem:[%s1068 + $0x351] sm:$0xff]
        %v1498 = vld [vmem:[%s1068 + $0x361] sm:$0xff]
        %v1499 = vld [vmem:[%s1068 + $0x371] sm:$0xff]
        %v1500 = vld [vmem:[%s1068 + $0x381] sm:$0xff]
        %v1501 = vld [vmem:[%s1068 + $0x391] sm:$0xff]
        %v1502 = vld [vmem:[%s1068 + $0x3c1] sm:$0xff]
        %v1503 = vld [vmem:[%s1068 + $0x3d1] sm:$0xff]
        %v1504 = vld [vmem:[%s1068 + $0x3e1] sm:$0xff]
        %v1505 = vld [vmem:[%s1068 + $0x3f1] sm:$0xff]
        %v1506 = vld [vmem:[%s1068 + $0x401] sm:$0xff]
        %v1507 = vld [vmem:[%s1068 + $0x411] sm:$0xff]
        %v1508 = vld [vmem:[%s1068 + $0x421] sm:$0xff]
        %v1509 = vld [vmem:[%s1068 + $0x431] sm:$0xff]
        %v1510 = vld [vmem:[%s1068 + $0x461] sm:$0xff]
        %v1511 = vld [vmem:[%s1068 + $0x471] sm:$0xff]
        %v1512 = vld [vmem:[%s1068 + $0x481] sm:$0xff]
        %v1513 = vld [vmem:[%s1068 + $0x491] sm:$0xff]
        %v1514 = vld [vmem:[%s1068 + $0x4a1] sm:$0xff]
        %v1515 = vld [vmem:[%s1068 + $0x4b1] sm:$0xff]
        %v1516 = vld [vmem:[%s1068 + $0x4c1] sm:$0xff]
        %v1517 = vld [vmem:[%s1068 + $0x4d1] sm:$0xff]
        %1582 = vrot.lane.b32.xlu0 %v1454, 16
        %v1583 = vpop.permute.xlu0 %1582
        %1584 = vrot.lane.b32.xlu0 %v1455, 16
        %v1585 = vpop.permute.xlu0 %1584
        %1586 = vrot.lane.b32.xlu0 %v1456, 16
        %v1587 = vpop.permute.xlu0 %1586
        %1588 = vrot.lane.b32.xlu0 %v1457, 16
        %v1589 = vpop.permute.xlu0 %1588
        %1590 = vrot.lane.b32.xlu0 %v1458, 16
        %v1591 = vpop.permute.xlu0 %1590
        %1592 = vrot.lane.b32.xlu0 %v1459, 16
        %v1593 = vpop.permute.xlu0 %1592
        %1594 = vrot.lane.b32.xlu0 %v1460, 16
        %v1595 = vpop.permute.xlu0 %1594
        %1596 = vrot.lane.b32.xlu0 %v1461, 16
        %v1597 = vpop.permute.xlu0 %1596
        %1598 = vrot.lane.b32.xlu0 %v1462, 16
        %v1599 = vpop.permute.xlu0 %1598
        %1600 = vrot.lane.b32.xlu0 %v1463, 16
        %v1601 = vpop.permute.xlu0 %1600
        %1602 = vrot.lane.b32.xlu0 %v1464, 16
        %v1603 = vpop.permute.xlu0 %1602
        %1604 = vrot.lane.b32.xlu0 %v1465, 16
        %v1605 = vpop.permute.xlu0 %1604
        %1606 = vrot.lane.b32.xlu0 %v1466, 16
        %v1607 = vpop.permute.xlu0 %1606
        %1608 = vrot.lane.b32.xlu0 %v1467, 16
        %v1609 = vpop.permute.xlu0 %1608
        %1610 = vrot.lane.b32.xlu0 %v1468, 16
        %v1611 = vpop.permute.xlu0 %1610
        %1612 = vrot.lane.b32.xlu0 %v1469, 16
        %v1613 = vpop.permute.xlu0 %1612
        %1614 = vrot.lane.b32.xlu0 %v1470, 16
        %v1615 = vpop.permute.xlu0 %1614
        %1616 = vrot.lane.b32.xlu0 %v1471, 16
        %v1617 = vpop.permute.xlu0 %1616
        %1618 = vrot.lane.b32.xlu0 %v1472, 16
        %v1619 = vpop.permute.xlu0 %1618
        %1620 = vrot.lane.b32.xlu0 %v1473, 16
        %v1621 = vpop.permute.xlu0 %1620
        %1622 = vrot.lane.b32.xlu0 %v1474, 16
        %v1623 = vpop.permute.xlu0 %1622
        %1624 = vrot.lane.b32.xlu0 %v1475, 16
        %v1625 = vpop.permute.xlu0 %1624
        %1626 = vrot.lane.b32.xlu0 %v1476, 16
        %v1627 = vpop.permute.xlu0 %1626
        %1628 = vrot.lane.b32.xlu0 %v1477, 16
        %v1629 = vpop.permute.xlu0 %1628
        %1630 = vrot.lane.b32.xlu0 %v1478, 16
        %v1631 = vpop.permute.xlu0 %1630
        %1632 = vrot.lane.b32.xlu0 %v1479, 16
        %v1633 = vpop.permute.xlu0 %1632
        %1634 = vrot.lane.b32.xlu0 %v1480, 16
        %v1635 = vpop.permute.xlu0 %1634
        %1636 = vrot.lane.b32.xlu0 %v1481, 16
        %v1637 = vpop.permute.xlu0 %1636
        %1638 = vrot.lane.b32.xlu0 %v1482, 16
        %v1639 = vpop.permute.xlu0 %1638
        %1640 = vrot.lane.b32.xlu0 %v1483, 16
        %v1641 = vpop.permute.xlu0 %1640
        %1642 = vrot.lane.b32.xlu0 %v1484, 16
        %v1643 = vpop.permute.xlu0 %1642
        %1644 = vrot.lane.b32.xlu0 %v1485, 16
        %v1645 = vpop.permute.xlu0 %1644
        %1646 = vrot.lane.b32.xlu0 %v1486, 16
        %v1647 = vpop.permute.xlu0 %1646
        %1648 = vrot.lane.b32.xlu0 %v1487, 16
        %v1649 = vpop.permute.xlu0 %1648
        %1650 = vrot.lane.b32.xlu0 %v1488, 16
        %v1651 = vpop.permute.xlu0 %1650
        %1652 = vrot.lane.b32.xlu0 %v1489, 16
        %v1653 = vpop.permute.xlu0 %1652
        %1654 = vrot.lane.b32.xlu0 %v1490, 16
        %v1655 = vpop.permute.xlu0 %1654
        %1656 = vrot.lane.b32.xlu0 %v1491, 16
        %v1657 = vpop.permute.xlu0 %1656
        %1658 = vrot.lane.b32.xlu0 %v1492, 16
        %v1659 = vpop.permute.xlu0 %1658
        %1660 = vrot.lane.b32.xlu0 %v1493, 16
        %v1661 = vpop.permute.xlu0 %1660
        %1662 = vrot.lane.b32.xlu0 %v1494, 16
        %v1663 = vpop.permute.xlu0 %1662
        %1664 = vrot.lane.b32.xlu0 %v1495, 16
        %v1665 = vpop.permute.xlu0 %1664
        %1666 = vrot.lane.b32.xlu0 %v1496, 16
        %v1667 = vpop.permute.xlu0 %1666
        %1668 = vrot.lane.b32.xlu0 %v1497, 16
        %v1669 = vpop.permute.xlu0 %1668
        %1670 = vrot.lane.b32.xlu0 %v1498, 16
        %v1671 = vpop.permute.xlu0 %1670
        %1672 = vrot.lane.b32.xlu0 %v1499, 16
        %v1673 = vpop.permute.xlu0 %1672
        %1674 = vrot.lane.b32.xlu0 %v1500, 16
        %v1675 = vpop.permute.xlu0 %1674
        %1676 = vrot.lane.b32.xlu0 %v1501, 16
        %v1677 = vpop.permute.xlu0 %1676
        %1678 = vrot.lane.b32.xlu0 %v1502, 16
        %v1679 = vpop.permute.xlu0 %1678
        %1680 = vrot.lane.b32.xlu0 %v1503, 16
        %v1681 = vpop.permute.xlu0 %1680
        %1682 = vrot.lane.b32.xlu0 %v1504, 16
        %v1683 = vpop.permute.xlu0 %1682
        %1684 = vrot.lane.b32.xlu0 %v1505, 16
        %v1685 = vpop.permute.xlu0 %1684
        %1686 = vrot.lane.b32.xlu0 %v1506, 16
        %v1687 = vpop.permute.xlu0 %1686
        %1688 = vrot.lane.b32.xlu0 %v1507, 16
        %v1689 = vpop.permute.xlu0 %1688
        %1690 = vrot.lane.b32.xlu0 %v1508, 16
        %v1691 = vpop.permute.xlu0 %1690
        %1692 = vrot.lane.b32.xlu0 %v1509, 16
        %v1693 = vpop.permute.xlu0 %1692
        %1694 = vrot.lane.b32.xlu0 %v1510, 16
        %v1695 = vpop.permute.xlu0 %1694
        %1696 = vrot.lane.b32.xlu0 %v1511, 16
        %v1697 = vpop.permute.xlu0 %1696
        %1698 = vrot.lane.b32.xlu0 %v1512, 16
        %v1699 = vpop.permute.xlu0 %1698
        %1700 = vrot.lane.b32.xlu0 %v1513, 16
        %v1701 = vpop.permute.xlu0 %1700
        %1702 = vrot.lane.b32.xlu0 %v1514, 16
        %v1703 = vpop.permute.xlu0 %1702
        %1704 = vrot.lane.b32.xlu0 %v1515, 16
        %v1705 = vpop.permute.xlu0 %1704
        %1706 = vrot.lane.b32.xlu0 %v1516, 16
        %v1707 = vpop.permute.xlu0 %1706
        %1708 = vrot.lane.b32.xlu0 %v1517, 16
        %v1709 = vpop.permute.xlu0 %1708
        %vm1774 = vcmask 162944
        %1775 = vst.msk [vmem:[#allocation2] sm:$0xff] %vm1774, %v1583
        %1776 = vst.msk [vmem:[#allocation2 + $0x8] sm:$0xff] %vm1774, %v1585
        %1777 = vst.msk [vmem:[#allocation2 + $0x10] sm:$0xff] %vm1774, %v1587
        %1778 = vst.msk [vmem:[#allocation2 + $0x18] sm:$0xff] %vm1774, %v1589
        %1779 = vst.msk [vmem:[#allocation2 + $0x20] sm:$0xff] %vm1774, %v1591
        %1780 = vst.msk [vmem:[#allocation2 + $0x28] sm:$0xff] %vm1774, %v1593
        %1781 = vst.msk [vmem:[#allocation2 + $0x30] sm:$0xff] %vm1774, %v1595
        %1782 = vst.msk [vmem:[#allocation2 + $0x38] sm:$0xff] %vm1774, %v1597
        %1783 = vst.msk [vmem:[#allocation2 + $0x40] sm:$0xff] %vm1774, %v1599
        %1784 = vst.msk [vmem:[#allocation2 + $0x48] sm:$0xff] %vm1774, %v1601
        %1785 = vst.msk [vmem:[#allocation2 + $0x50] sm:$0xff] %vm1774, %v1603
        %1786 = vst.msk [vmem:[#allocation2 + $0x58] sm:$0xff] %vm1774, %v1605
        %1787 = vst.msk [vmem:[#allocation2 + $0x60] sm:$0xff] %vm1774, %v1607
        %1788 = vst.msk [vmem:[#allocation2 + $0x68] sm:$0xff] %vm1774, %v1609
        %1789 = vst.msk [vmem:[#allocation2 + $0x70] sm:$0xff] %vm1774, %v1611
        %1790 = vst.msk [vmem:[#allocation2 + $0x78] sm:$0xff] %vm1774, %v1613
        %1791 = vst.msk [vmem:[#allocation2 + $0x80] sm:$0xff] %vm1774, %v1615
        %1792 = vst.msk [vmem:[#allocation2 + $0x88] sm:$0xff] %vm1774, %v1617
        %1793 = vst.msk [vmem:[#allocation2 + $0x90] sm:$0xff] %vm1774, %v1619
        %1794 = vst.msk [vmem:[#allocation2 + $0x98] sm:$0xff] %vm1774, %v1621
        %1795 = vst.msk [vmem:[#allocation2 + $0xa0] sm:$0xff] %vm1774, %v1623
        %1796 = vst.msk [vmem:[#allocation2 + $0xa8] sm:$0xff] %vm1774, %v1625
        %1797 = vst.msk [vmem:[#allocation2 + $0xb0] sm:$0xff] %vm1774, %v1627
        %1798 = vst.msk [vmem:[#allocation2 + $0xb8] sm:$0xff] %vm1774, %v1629
        %1799 = vst.msk [vmem:[#allocation2 + $0xc0] sm:$0xff] %vm1774, %v1631
        %1800 = vst.msk [vmem:[#allocation2 + $0xc8] sm:$0xff] %vm1774, %v1633
        %1801 = vst.msk [vmem:[#allocation2 + $0xd0] sm:$0xff] %vm1774, %v1635
        %1802 = vst.msk [vmem:[#allocation2 + $0xd8] sm:$0xff] %vm1774, %v1637
        %1803 = vst.msk [vmem:[#allocation2 + $0xe0] sm:$0xff] %vm1774, %v1639
        %1804 = vst.msk [vmem:[#allocation2 + $0xe8] sm:$0xff] %vm1774, %v1641
        %1805 = vst.msk [vmem:[#allocation2 + $0xf0] sm:$0xff] %vm1774, %v1643
        %1806 = vst.msk [vmem:[#allocation2 + $0xf8] sm:$0xff] %vm1774, %v1645
        %1807 = vst.msk [vmem:[#allocation2 + $0x100] sm:$0xff] %vm1774, %v1647
        %1808 = vst.msk [vmem:[#allocation2 + $0x108] sm:$0xff] %vm1774, %v1649
        %1809 = vst.msk [vmem:[#allocation2 + $0x110] sm:$0xff] %vm1774, %v1651
        %1810 = vst.msk [vmem:[#allocation2 + $0x118] sm:$0xff] %vm1774, %v1653
        %1811 = vst.msk [vmem:[#allocation2 + $0x120] sm:$0xff] %vm1774, %v1655
        %1812 = vst.msk [vmem:[#allocation2 + $0x128] sm:$0xff] %vm1774, %v1657
        %1813 = vst.msk [vmem:[#allocation2 + $0x130] sm:$0xff] %vm1774, %v1659
        %1814 = vst.msk [vmem:[#allocation2 + $0x138] sm:$0xff] %vm1774, %v1661
        %1815 = vst.msk [vmem:[#allocation2 + $0x140] sm:$0xff] %vm1774, %v1663
        %1816 = vst.msk [vmem:[#allocation2 + $0x148] sm:$0xff] %vm1774, %v1665
        %1817 = vst.msk [vmem:[#allocation2 + $0x150] sm:$0xff] %vm1774, %v1667
        %1818 = vst.msk [vmem:[#allocation2 + $0x158] sm:$0xff] %vm1774, %v1669
        %1819 = vst.msk [vmem:[#allocation2 + $0x160] sm:$0xff] %vm1774, %v1671
        %1820 = vst.msk [vmem:[#allocation2 + $0x168] sm:$0xff] %vm1774, %v1673
        %1821 = vst.msk [vmem:[#allocation2 + $0x170] sm:$0xff] %vm1774, %v1675
        %1822 = vst.msk [vmem:[#allocation2 + $0x178] sm:$0xff] %vm1774, %v1677
        %1823 = vst.msk [vmem:[#allocation2 + $0x180] sm:$0xff] %vm1774, %v1679
        %1824 = vst.msk [vmem:[#allocation2 + $0x188] sm:$0xff] %vm1774, %v1681
        %1825 = vst.msk [vmem:[#allocation2 + $0x190] sm:$0xff] %vm1774, %v1683
        %1826 = vst.msk [vmem:[#allocation2 + $0x198] sm:$0xff] %vm1774, %v1685
        %1827 = vst.msk [vmem:[#allocation2 + $0x1a0] sm:$0xff] %vm1774, %v1687
        %1828 = vst.msk [vmem:[#allocation2 + $0x1a8] sm:$0xff] %vm1774, %v1689
        %1829 = vst.msk [vmem:[#allocation2 + $0x1b0] sm:$0xff] %vm1774, %v1691
        %1830 = vst.msk [vmem:[#allocation2 + $0x1b8] sm:$0xff] %vm1774, %v1693
        %1831 = vst.msk [vmem:[#allocation2 + $0x1c0] sm:$0xff] %vm1774, %v1695
        %1832 = vst.msk [vmem:[#allocation2 + $0x1c8] sm:$0xff] %vm1774, %v1697
        %1833 = vst.msk [vmem:[#allocation2 + $0x1d0] sm:$0xff] %vm1774, %v1699
        %1834 = vst.msk [vmem:[#allocation2 + $0x1d8] sm:$0xff] %vm1774, %v1701
        %1835 = vst.msk [vmem:[#allocation2 + $0x1e0] sm:$0xff] %vm1774, %v1703
        %1836 = vst.msk [vmem:[#allocation2 + $0x1e8] sm:$0xff] %vm1774, %v1705
        %1837 = vst.msk [vmem:[#allocation2 + $0x1f0] sm:$0xff] %vm1774, %v1707
        %1838 = vst.msk [vmem:[#allocation2 + $0x1f8] sm:$0xff] %vm1774, %v1709
        %v1839 = vld [vmem:[%s1068 + $0x2] sm:$0xff]
        %v1840 = vld [vmem:[%s1068 + $0x12] sm:$0xff]
        %v1841 = vld [vmem:[%s1068 + $0x22] sm:$0xff]
        %v1842 = vld [vmem:[%s1068 + $0x32] sm:$0xff]
        %v1843 = vld [vmem:[%s1068 + $0x42] sm:$0xff]
        %v1844 = vld [vmem:[%s1068 + $0x52] sm:$0xff]
        %v1845 = vld [vmem:[%s1068 + $0x62] sm:$0xff]
        %v1846 = vld [vmem:[%s1068 + $0x72] sm:$0xff]
        %v1847 = vld [vmem:[%s1068 + $0xa2] sm:$0xff]
        %v1848 = vld [vmem:[%s1068 + $0xb2] sm:$0xff]
        %v1849 = vld [vmem:[%s1068 + $0xc2] sm:$0xff]
        %v1850 = vld [vmem:[%s1068 + $0xd2] sm:$0xff]
        %v1851 = vld [vmem:[%s1068 + $0xe2] sm:$0xff]
        %v1852 = vld [vmem:[%s1068 + $0xf2] sm:$0xff]
        %v1853 = vld [vmem:[%s1068 + $0x102] sm:$0xff]
        %v1854 = vld [vmem:[%s1068 + $0x112] sm:$0xff]
        %v1855 = vld [vmem:[%s1068 + $0x142] sm:$0xff]
        %v1856 = vld [vmem:[%s1068 + $0x152] sm:$0xff]
        %v1857 = vld [vmem:[%s1068 + $0x162] sm:$0xff]
        %v1858 = vld [vmem:[%s1068 + $0x172] sm:$0xff]
        %v1859 = vld [vmem:[%s1068 + $0x182] sm:$0xff]
        %v1860 = vld [vmem:[%s1068 + $0x192] sm:$0xff]
        %v1861 = vld [vmem:[%s1068 + $0x1a2] sm:$0xff]
        %v1862 = vld [vmem:[%s1068 + $0x1b2] sm:$0xff]
        %v1863 = vld [vmem:[%s1068 + $0x1e2] sm:$0xff]
        %v1864 = vld [vmem:[%s1068 + $0x1f2] sm:$0xff]
        %v1865 = vld [vmem:[%s1068 + $0x202] sm:$0xff]
        %v1866 = vld [vmem:[%s1068 + $0x212] sm:$0xff]
        %v1867 = vld [vmem:[%s1068 + $0x222] sm:$0xff]
        %v1868 = vld [vmem:[%s1068 + $0x232] sm:$0xff]
        %v1869 = vld [vmem:[%s1068 + $0x242] sm:$0xff]
        %v1870 = vld [vmem:[%s1068 + $0x252] sm:$0xff]
        %v1871 = vld [vmem:[%s1068 + $0x282] sm:$0xff]
        %v1872 = vld [vmem:[%s1068 + $0x292] sm:$0xff]
        %v1873 = vld [vmem:[%s1068 + $0x2a2] sm:$0xff]
        %v1874 = vld [vmem:[%s1068 + $0x2b2] sm:$0xff]
        %v1875 = vld [vmem:[%s1068 + $0x2c2] sm:$0xff]
        %v1876 = vld [vmem:[%s1068 + $0x2d2] sm:$0xff]
        %v1877 = vld [vmem:[%s1068 + $0x2e2] sm:$0xff]
        %v1878 = vld [vmem:[%s1068 + $0x2f2] sm:$0xff]
        %v1879 = vld [vmem:[%s1068 + $0x322] sm:$0xff]
        %v1880 = vld [vmem:[%s1068 + $0x332] sm:$0xff]
        %v1881 = vld [vmem:[%s1068 + $0x342] sm:$0xff]
        %v1882 = vld [vmem:[%s1068 + $0x352] sm:$0xff]
        %v1883 = vld [vmem:[%s1068 + $0x362] sm:$0xff]
        %v1884 = vld [vmem:[%s1068 + $0x372] sm:$0xff]
        %v1885 = vld [vmem:[%s1068 + $0x382] sm:$0xff]
        %v1886 = vld [vmem:[%s1068 + $0x392] sm:$0xff]
        %v1887 = vld [vmem:[%s1068 + $0x3c2] sm:$0xff]
        %v1888 = vld [vmem:[%s1068 + $0x3d2] sm:$0xff]
        %v1889 = vld [vmem:[%s1068 + $0x3e2] sm:$0xff]
        %v1890 = vld [vmem:[%s1068 + $0x3f2] sm:$0xff]
        %v1891 = vld [vmem:[%s1068 + $0x402] sm:$0xff]
        %v1892 = vld [vmem:[%s1068 + $0x412] sm:$0xff]
        %v1893 = vld [vmem:[%s1068 + $0x422] sm:$0xff]
        %v1894 = vld [vmem:[%s1068 + $0x432] sm:$0xff]
        %v1895 = vld [vmem:[%s1068 + $0x462] sm:$0xff]
        %v1896 = vld [vmem:[%s1068 + $0x472] sm:$0xff]
        %v1897 = vld [vmem:[%s1068 + $0x482] sm:$0xff]
        %v1898 = vld [vmem:[%s1068 + $0x492] sm:$0xff]
        %v1899 = vld [vmem:[%s1068 + $0x4a2] sm:$0xff]
        %v1900 = vld [vmem:[%s1068 + $0x4b2] sm:$0xff]
        %v1901 = vld [vmem:[%s1068 + $0x4c2] sm:$0xff]
        %v1902 = vld [vmem:[%s1068 + $0x4d2] sm:$0xff]
        %1967 = vrot.lane.b32.xlu0 %v1839, 20
        %v1968 = vpop.permute.xlu0 %1967
        %1969 = vrot.lane.b32.xlu0 %v1840, 20
        %v1970 = vpop.permute.xlu0 %1969
        %1971 = vrot.lane.b32.xlu0 %v1841, 20
        %v1972 = vpop.permute.xlu0 %1971
        %1973 = vrot.lane.b32.xlu0 %v1842, 20
        %v1974 = vpop.permute.xlu0 %1973
        %1975 = vrot.lane.b32.xlu0 %v1843, 20
        %v1976 = vpop.permute.xlu0 %1975
        %1977 = vrot.lane.b32.xlu0 %v1844, 20
        %v1978 = vpop.permute.xlu0 %1977
        %1979 = vrot.lane.b32.xlu0 %v1845, 20
        %v1980 = vpop.permute.xlu0 %1979
        %1981 = vrot.lane.b32.xlu0 %v1846, 20
        %v1982 = vpop.permute.xlu0 %1981
        %1983 = vrot.lane.b32.xlu0 %v1847, 20
        %v1984 = vpop.permute.xlu0 %1983
        %1985 = vrot.lane.b32.xlu0 %v1848, 20
        %v1986 = vpop.permute.xlu0 %1985
        %1987 = vrot.lane.b32.xlu0 %v1849, 20
        %v1988 = vpop.permute.xlu0 %1987
        %1989 = vrot.lane.b32.xlu0 %v1850, 20
        %v1990 = vpop.permute.xlu0 %1989
        %1991 = vrot.lane.b32.xlu0 %v1851, 20
        %v1992 = vpop.permute.xlu0 %1991
        %1993 = vrot.lane.b32.xlu0 %v1852, 20
        %v1994 = vpop.permute.xlu0 %1993
        %1995 = vrot.lane.b32.xlu0 %v1853, 20
        %v1996 = vpop.permute.xlu0 %1995
        %1997 = vrot.lane.b32.xlu0 %v1854, 20
        %v1998 = vpop.permute.xlu0 %1997
        %1999 = vrot.lane.b32.xlu0 %v1855, 20
        %v2000 = vpop.permute.xlu0 %1999
        %2001 = vrot.lane.b32.xlu0 %v1856, 20
        %v2002 = vpop.permute.xlu0 %2001
        %2003 = vrot.lane.b32.xlu0 %v1857, 20
        %v2004 = vpop.permute.xlu0 %2003
        %2005 = vrot.lane.b32.xlu0 %v1858, 20
        %v2006 = vpop.permute.xlu0 %2005
        %2007 = vrot.lane.b32.xlu0 %v1859, 20
        %v2008 = vpop.permute.xlu0 %2007
        %2009 = vrot.lane.b32.xlu0 %v1860, 20
        %v2010 = vpop.permute.xlu0 %2009
        %2011 = vrot.lane.b32.xlu0 %v1861, 20
        %v2012 = vpop.permute.xlu0 %2011
        %2013 = vrot.lane.b32.xlu0 %v1862, 20
        %v2014 = vpop.permute.xlu0 %2013
        %2015 = vrot.lane.b32.xlu0 %v1863, 20
        %v2016 = vpop.permute.xlu0 %2015
        %2017 = vrot.lane.b32.xlu0 %v1864, 20
        %v2018 = vpop.permute.xlu0 %2017
        %2019 = vrot.lane.b32.xlu0 %v1865, 20
        %v2020 = vpop.permute.xlu0 %2019
        %2021 = vrot.lane.b32.xlu0 %v1866, 20
        %v2022 = vpop.permute.xlu0 %2021
        %2023 = vrot.lane.b32.xlu0 %v1867, 20
        %v2024 = vpop.permute.xlu0 %2023
        %2025 = vrot.lane.b32.xlu0 %v1868, 20
        %v2026 = vpop.permute.xlu0 %2025
        %2027 = vrot.lane.b32.xlu0 %v1869, 20
        %v2028 = vpop.permute.xlu0 %2027
        %2029 = vrot.lane.b32.xlu0 %v1870, 20
        %v2030 = vpop.permute.xlu0 %2029
        %2031 = vrot.lane.b32.xlu0 %v1871, 20
        %v2032 = vpop.permute.xlu0 %2031
        %2033 = vrot.lane.b32.xlu0 %v1872, 20
        %v2034 = vpop.permute.xlu0 %2033
        %2035 = vrot.lane.b32.xlu0 %v1873, 20
        %v2036 = vpop.permute.xlu0 %2035
        %2037 = vrot.lane.b32.xlu0 %v1874, 20
        %v2038 = vpop.permute.xlu0 %2037
        %2039 = vrot.lane.b32.xlu0 %v1875, 20
        %v2040 = vpop.permute.xlu0 %2039
        %2041 = vrot.lane.b32.xlu0 %v1876, 20
        %v2042 = vpop.permute.xlu0 %2041
        %2043 = vrot.lane.b32.xlu0 %v1877, 20
        %v2044 = vpop.permute.xlu0 %2043
        %2045 = vrot.lane.b32.xlu0 %v1878, 20
        %v2046 = vpop.permute.xlu0 %2045
        %2047 = vrot.lane.b32.xlu0 %v1879, 20
        %v2048 = vpop.permute.xlu0 %2047
        %2049 = vrot.lane.b32.xlu0 %v1880, 20
        %v2050 = vpop.permute.xlu0 %2049
        %2051 = vrot.lane.b32.xlu0 %v1881, 20
        %v2052 = vpop.permute.xlu0 %2051
        %2053 = vrot.lane.b32.xlu0 %v1882, 20
        %v2054 = vpop.permute.xlu0 %2053
        %2055 = vrot.lane.b32.xlu0 %v1883, 20
        %v2056 = vpop.permute.xlu0 %2055
        %2057 = vrot.lane.b32.xlu0 %v1884, 20
        %v2058 = vpop.permute.xlu0 %2057
        %2059 = vrot.lane.b32.xlu0 %v1885, 20
        %v2060 = vpop.permute.xlu0 %2059
        %2061 = vrot.lane.b32.xlu0 %v1886, 20
        %v2062 = vpop.permute.xlu0 %2061
        %2063 = vrot.lane.b32.xlu0 %v1887, 20
        %v2064 = vpop.permute.xlu0 %2063
        %2065 = vrot.lane.b32.xlu0 %v1888, 20
        %v2066 = vpop.permute.xlu0 %2065
        %2067 = vrot.lane.b32.xlu0 %v1889, 20
        %v2068 = vpop.permute.xlu0 %2067
        %2069 = vrot.lane.b32.xlu0 %v1890, 20
        %v2070 = vpop.permute.xlu0 %2069
        %2071 = vrot.lane.b32.xlu0 %v1891, 20
        %v2072 = vpop.permute.xlu0 %2071
        %2073 = vrot.lane.b32.xlu0 %v1892, 20
        %v2074 = vpop.permute.xlu0 %2073
        %2075 = vrot.lane.b32.xlu0 %v1893, 20
        %v2076 = vpop.permute.xlu0 %2075
        %2077 = vrot.lane.b32.xlu0 %v1894, 20
        %v2078 = vpop.permute.xlu0 %2077
        %2079 = vrot.lane.b32.xlu0 %v1895, 20
        %v2080 = vpop.permute.xlu0 %2079
        %2081 = vrot.lane.b32.xlu0 %v1896, 20
        %v2082 = vpop.permute.xlu0 %2081
        %2083 = vrot.lane.b32.xlu0 %v1897, 20
        %v2084 = vpop.permute.xlu0 %2083
        %2085 = vrot.lane.b32.xlu0 %v1898, 20
        %v2086 = vpop.permute.xlu0 %2085
        %2087 = vrot.lane.b32.xlu0 %v1899, 20
        %v2088 = vpop.permute.xlu0 %2087
        %2089 = vrot.lane.b32.xlu0 %v1900, 20
        %v2090 = vpop.permute.xlu0 %2089
        %2091 = vrot.lane.b32.xlu0 %v1901, 20
        %v2092 = vpop.permute.xlu0 %2091
        %2093 = vrot.lane.b32.xlu0 %v1902, 20
        %v2094 = vpop.permute.xlu0 %2093
        %vm2159 = vcmask 195744
        %2160 = vst.msk [vmem:[#allocation2] sm:$0xff] %vm2159, %v1968
        %2161 = vst.msk [vmem:[#allocation2 + $0x8] sm:$0xff] %vm2159, %v1970
        %2162 = vst.msk [vmem:[#allocation2 + $0x10] sm:$0xff] %vm2159, %v1972
        %2163 = vst.msk [vmem:[#allocation2 + $0x18] sm:$0xff] %vm2159, %v1974
        %2164 = vst.msk [vmem:[#allocation2 + $0x20] sm:$0xff] %vm2159, %v1976
        %2165 = vst.msk [vmem:[#allocation2 + $0x28] sm:$0xff] %vm2159, %v1978
        %2166 = vst.msk [vmem:[#allocation2 + $0x30] sm:$0xff] %vm2159, %v1980
        %2167 = vst.msk [vmem:[#allocation2 + $0x38] sm:$0xff] %vm2159, %v1982
        %2168 = vst.msk [vmem:[#allocation2 + $0x40] sm:$0xff] %vm2159, %v1984
        %2169 = vst.msk [vmem:[#allocation2 + $0x48] sm:$0xff] %vm2159, %v1986
        %2170 = vst.msk [vmem:[#allocation2 + $0x50] sm:$0xff] %vm2159, %v1988
        %2171 = vst.msk [vmem:[#allocation2 + $0x58] sm:$0xff] %vm2159, %v1990
        %2172 = vst.msk [vmem:[#allocation2 + $0x60] sm:$0xff] %vm2159, %v1992
        %2173 = vst.msk [vmem:[#allocation2 + $0x68] sm:$0xff] %vm2159, %v1994
        %2174 = vst.msk [vmem:[#allocation2 + $0x70] sm:$0xff] %vm2159, %v1996
        %2175 = vst.msk [vmem:[#allocation2 + $0x78] sm:$0xff] %vm2159, %v1998
        %2176 = vst.msk [vmem:[#allocation2 + $0x80] sm:$0xff] %vm2159, %v2000
        %2177 = vst.msk [vmem:[#allocation2 + $0x88] sm:$0xff] %vm2159, %v2002
        %2178 = vst.msk [vmem:[#allocation2 + $0x90] sm:$0xff] %vm2159, %v2004
        %2179 = vst.msk [vmem:[#allocation2 + $0x98] sm:$0xff] %vm2159, %v2006
        %2180 = vst.msk [vmem:[#allocation2 + $0xa0] sm:$0xff] %vm2159, %v2008
        %2181 = vst.msk [vmem:[#allocation2 + $0xa8] sm:$0xff] %vm2159, %v2010
        %2182 = vst.msk [vmem:[#allocation2 + $0xb0] sm:$0xff] %vm2159, %v2012
        %2183 = vst.msk [vmem:[#allocation2 + $0xb8] sm:$0xff] %vm2159, %v2014
        %2184 = vst.msk [vmem:[#allocation2 + $0xc0] sm:$0xff] %vm2159, %v2016
        %2185 = vst.msk [vmem:[#allocation2 + $0xc8] sm:$0xff] %vm2159, %v2018
        %2186 = vst.msk [vmem:[#allocation2 + $0xd0] sm:$0xff] %vm2159, %v2020
        %2187 = vst.msk [vmem:[#allocation2 + $0xd8] sm:$0xff] %vm2159, %v2022
        %2188 = vst.msk [vmem:[#allocation2 + $0xe0] sm:$0xff] %vm2159, %v2024
        %2189 = vst.msk [vmem:[#allocation2 + $0xe8] sm:$0xff] %vm2159, %v2026
        %2190 = vst.msk [vmem:[#allocation2 + $0xf0] sm:$0xff] %vm2159, %v2028
        %2191 = vst.msk [vmem:[#allocation2 + $0xf8] sm:$0xff] %vm2159, %v2030
        %2192 = vst.msk [vmem:[#allocation2 + $0x100] sm:$0xff] %vm2159, %v2032
        %2193 = vst.msk [vmem:[#allocation2 + $0x108] sm:$0xff] %vm2159, %v2034
        %2194 = vst.msk [vmem:[#allocation2 + $0x110] sm:$0xff] %vm2159, %v2036
        %2195 = vst.msk [vmem:[#allocation2 + $0x118] sm:$0xff] %vm2159, %v2038
        %2196 = vst.msk [vmem:[#allocation2 + $0x120] sm:$0xff] %vm2159, %v2040
        %2197 = vst.msk [vmem:[#allocation2 + $0x128] sm:$0xff] %vm2159, %v2042
        %2198 = vst.msk [vmem:[#allocation2 + $0x130] sm:$0xff] %vm2159, %v2044
        %2199 = vst.msk [vmem:[#allocation2 + $0x138] sm:$0xff] %vm2159, %v2046
        %2200 = vst.msk [vmem:[#allocation2 + $0x140] sm:$0xff] %vm2159, %v2048
        %2201 = vst.msk [vmem:[#allocation2 + $0x148] sm:$0xff] %vm2159, %v2050
        %2202 = vst.msk [vmem:[#allocation2 + $0x150] sm:$0xff] %vm2159, %v2052
        %2203 = vst.msk [vmem:[#allocation2 + $0x158] sm:$0xff] %vm2159, %v2054
        %2204 = vst.msk [vmem:[#allocation2 + $0x160] sm:$0xff] %vm2159, %v2056
        %2205 = vst.msk [vmem:[#allocation2 + $0x168] sm:$0xff] %vm2159, %v2058
        %2206 = vst.msk [vmem:[#allocation2 + $0x170] sm:$0xff] %vm2159, %v2060
        %2207 = vst.msk [vmem:[#allocation2 + $0x178] sm:$0xff] %vm2159, %v2062
        %2208 = vst.msk [vmem:[#allocation2 + $0x180] sm:$0xff] %vm2159, %v2064
        %2209 = vst.msk [vmem:[#allocation2 + $0x188] sm:$0xff] %vm2159, %v2066
        %2210 = vst.msk [vmem:[#allocation2 + $0x190] sm:$0xff] %vm2159, %v2068
        %2211 = vst.msk [vmem:[#allocation2 + $0x198] sm:$0xff] %vm2159, %v2070
        %2212 = vst.msk [vmem:[#allocation2 + $0x1a0] sm:$0xff] %vm2159, %v2072
        %2213 = vst.msk [vmem:[#allocation2 + $0x1a8] sm:$0xff] %vm2159, %v2074
        %2214 = vst.msk [vmem:[#allocation2 + $0x1b0] sm:$0xff] %vm2159, %v2076
        %2215 = vst.msk [vmem:[#allocation2 + $0x1b8] sm:$0xff] %vm2159, %v2078
        %2216 = vst.msk [vmem:[#allocation2 + $0x1c0] sm:$0xff] %vm2159, %v2080
        %2217 = vst.msk [vmem:[#allocation2 + $0x1c8] sm:$0xff] %vm2159, %v2082
        %2218 = vst.msk [vmem:[#allocation2 + $0x1d0] sm:$0xff] %vm2159, %v2084
        %2219 = vst.msk [vmem:[#allocation2 + $0x1d8] sm:$0xff] %vm2159, %v2086
        %2220 = vst.msk [vmem:[#allocation2 + $0x1e0] sm:$0xff] %vm2159, %v2088
        %2221 = vst.msk [vmem:[#allocation2 + $0x1e8] sm:$0xff] %vm2159, %v2090
        %2222 = vst.msk [vmem:[#allocation2 + $0x1f0] sm:$0xff] %vm2159, %v2092
        %2223 = vst.msk [vmem:[#allocation2 + $0x1f8] sm:$0xff] %vm2159, %v2094
        %s2224 = scalar_lea.vmem %s168, 32
        %v2225 = vld [vmem:[%s2224] sm:$0xff]
        %v2226 = vld [vmem:[%s2224 + $0x10] sm:$0xff]
        %v2227 = vld [vmem:[%s2224 + $0x20] sm:$0xff]
        %v2228 = vld [vmem:[%s2224 + $0x30] sm:$0xff]
        %v2229 = vld [vmem:[%s2224 + $0x40] sm:$0xff]
        %v2230 = vld [vmem:[%s2224 + $0x50] sm:$0xff]
        %v2231 = vld [vmem:[%s2224 + $0x60] sm:$0xff]
        %v2232 = vld [vmem:[%s2224 + $0x70] sm:$0xff]
        %v2233 = vld [vmem:[%s2224 + $0xa0] sm:$0xff]
        %v2234 = vld [vmem:[%s2224 + $0xb0] sm:$0xff]
        %v2235 = vld [vmem:[%s2224 + $0xc0] sm:$0xff]
        %v2236 = vld [vmem:[%s2224 + $0xd0] sm:$0xff]
        %v2237 = vld [vmem:[%s2224 + $0xe0] sm:$0xff]
        %v2238 = vld [vmem:[%s2224 + $0xf0] sm:$0xff]
        %v2239 = vld [vmem:[%s2224 + $0x100] sm:$0xff]
        %v2240 = vld [vmem:[%s2224 + $0x110] sm:$0xff]
        %v2241 = vld [vmem:[%s2224 + $0x140] sm:$0xff]
        %v2242 = vld [vmem:[%s2224 + $0x150] sm:$0xff]
        %v2243 = vld [vmem:[%s2224 + $0x160] sm:$0xff]
        %v2244 = vld [vmem:[%s2224 + $0x170] sm:$0xff]
        %v2245 = vld [vmem:[%s2224 + $0x180] sm:$0xff]
        %v2246 = vld [vmem:[%s2224 + $0x190] sm:$0xff]
        %v2247 = vld [vmem:[%s2224 + $0x1a0] sm:$0xff]
        %v2248 = vld [vmem:[%s2224 + $0x1b0] sm:$0xff]
        %v2249 = vld [vmem:[%s2224 + $0x1e0] sm:$0xff]
        %v2250 = vld [vmem:[%s2224 + $0x1f0] sm:$0xff]
        %v2251 = vld [vmem:[%s2224 + $0x200] sm:$0xff]
        %v2252 = vld [vmem:[%s2224 + $0x210] sm:$0xff]
        %v2253 = vld [vmem:[%s2224 + $0x220] sm:$0xff]
        %v2254 = vld [vmem:[%s2224 + $0x230] sm:$0xff]
        %v2255 = vld [vmem:[%s2224 + $0x240] sm:$0xff]
        %v2256 = vld [vmem:[%s2224 + $0x250] sm:$0xff]
        %v2257 = vld [vmem:[%s2224 + $0x280] sm:$0xff]
        %v2258 = vld [vmem:[%s2224 + $0x290] sm:$0xff]
        %v2259 = vld [vmem:[%s2224 + $0x2a0] sm:$0xff]
        %v2260 = vld [vmem:[%s2224 + $0x2b0] sm:$0xff]
        %v2261 = vld [vmem:[%s2224 + $0x2c0] sm:$0xff]
        %v2262 = vld [vmem:[%s2224 + $0x2d0] sm:$0xff]
        %v2263 = vld [vmem:[%s2224 + $0x2e0] sm:$0xff]
        %v2264 = vld [vmem:[%s2224 + $0x2f0] sm:$0xff]
        %v2265 = vld [vmem:[%s2224 + $0x320] sm:$0xff]
        %v2266 = vld [vmem:[%s2224 + $0x330] sm:$0xff]
        %v2267 = vld [vmem:[%s2224 + $0x340] sm:$0xff]
        %v2268 = vld [vmem:[%s2224 + $0x350] sm:$0xff]
        %v2269 = vld [vmem:[%s2224 + $0x360] sm:$0xff]
        %v2270 = vld [vmem:[%s2224 + $0x370] sm:$0xff]
        %v2271 = vld [vmem:[%s2224 + $0x380] sm:$0xff]
        %v2272 = vld [vmem:[%s2224 + $0x390] sm:$0xff]
        %v2273 = vld [vmem:[%s2224 + $0x3c0] sm:$0xff]
        %v2274 = vld [vmem:[%s2224 + $0x3d0] sm:$0xff]
        %v2275 = vld [vmem:[%s2224 + $0x3e0] sm:$0xff]
        %v2276 = vld [vmem:[%s2224 + $0x3f0] sm:$0xff]
        %v2277 = vld [vmem:[%s2224 + $0x400] sm:$0xff]
        %v2278 = vld [vmem:[%s2224 + $0x410] sm:$0xff]
        %v2279 = vld [vmem:[%s2224 + $0x420] sm:$0xff]
        %v2280 = vld [vmem:[%s2224 + $0x430] sm:$0xff]
        %v2281 = vld [vmem:[%s2224 + $0x460] sm:$0xff]
        %v2282 = vld [vmem:[%s2224 + $0x470] sm:$0xff]
        %v2283 = vld [vmem:[%s2224 + $0x480] sm:$0xff]
        %v2284 = vld [vmem:[%s2224 + $0x490] sm:$0xff]
        %v2285 = vld [vmem:[%s2224 + $0x4a0] sm:$0xff]
        %v2286 = vld [vmem:[%s2224 + $0x4b0] sm:$0xff]
        %v2287 = vld [vmem:[%s2224 + $0x4c0] sm:$0xff]
        %v2288 = vld [vmem:[%s2224 + $0x4d0] sm:$0xff]
        %2353 = vrot.lane.b32.xlu0 %v2225, 24
        %v2354 = vpop.permute.xlu0 %2353
        %2355 = vrot.lane.b32.xlu0 %v2226, 24
        %v2356 = vpop.permute.xlu0 %2355
        %2357 = vrot.lane.b32.xlu0 %v2227, 24
        %v2358 = vpop.permute.xlu0 %2357
        %2359 = vrot.lane.b32.xlu0 %v2228, 24
        %v2360 = vpop.permute.xlu0 %2359
        %2361 = vrot.lane.b32.xlu0 %v2229, 24
        %v2362 = vpop.permute.xlu0 %2361
        %2363 = vrot.lane.b32.xlu0 %v2230, 24
        %v2364 = vpop.permute.xlu0 %2363
        %2365 = vrot.lane.b32.xlu0 %v2231, 24
        %v2366 = vpop.permute.xlu0 %2365
        %2367 = vrot.lane.b32.xlu0 %v2232, 24
        %v2368 = vpop.permute.xlu0 %2367
        %2369 = vrot.lane.b32.xlu0 %v2233, 24
        %v2370 = vpop.permute.xlu0 %2369
        %2371 = vrot.lane.b32.xlu0 %v2234, 24
        %v2372 = vpop.permute.xlu0 %2371
        %2373 = vrot.lane.b32.xlu0 %v2235, 24
        %v2374 = vpop.permute.xlu0 %2373
        %2375 = vrot.lane.b32.xlu0 %v2236, 24
        %v2376 = vpop.permute.xlu0 %2375
        %2377 = vrot.lane.b32.xlu0 %v2237, 24
        %v2378 = vpop.permute.xlu0 %2377
        %2379 = vrot.lane.b32.xlu0 %v2238, 24
        %v2380 = vpop.permute.xlu0 %2379
        %2381 = vrot.lane.b32.xlu0 %v2239, 24
        %v2382 = vpop.permute.xlu0 %2381
        %2383 = vrot.lane.b32.xlu0 %v2240, 24
        %v2384 = vpop.permute.xlu0 %2383
        %2385 = vrot.lane.b32.xlu0 %v2241, 24
        %v2386 = vpop.permute.xlu0 %2385
        %2387 = vrot.lane.b32.xlu0 %v2242, 24
        %v2388 = vpop.permute.xlu0 %2387
        %2389 = vrot.lane.b32.xlu0 %v2243, 24
        %v2390 = vpop.permute.xlu0 %2389
        %2391 = vrot.lane.b32.xlu0 %v2244, 24
        %v2392 = vpop.permute.xlu0 %2391
        %2393 = vrot.lane.b32.xlu0 %v2245, 24
        %v2394 = vpop.permute.xlu0 %2393
        %2395 = vrot.lane.b32.xlu0 %v2246, 24
        %v2396 = vpop.permute.xlu0 %2395
        %2397 = vrot.lane.b32.xlu0 %v2247, 24
        %v2398 = vpop.permute.xlu0 %2397
        %2399 = vrot.lane.b32.xlu0 %v2248, 24
        %v2400 = vpop.permute.xlu0 %2399
        %2401 = vrot.lane.b32.xlu0 %v2249, 24
        %v2402 = vpop.permute.xlu0 %2401
        %2403 = vrot.lane.b32.xlu0 %v2250, 24
        %v2404 = vpop.permute.xlu0 %2403
        %2405 = vrot.lane.b32.xlu0 %v2251, 24
        %v2406 = vpop.permute.xlu0 %2405
        %2407 = vrot.lane.b32.xlu0 %v2252, 24
        %v2408 = vpop.permute.xlu0 %2407
        %2409 = vrot.lane.b32.xlu0 %v2253, 24
        %v2410 = vpop.permute.xlu0 %2409
        %2411 = vrot.lane.b32.xlu0 %v2254, 24
        %v2412 = vpop.permute.xlu0 %2411
        %2413 = vrot.lane.b32.xlu0 %v2255, 24
        %v2414 = vpop.permute.xlu0 %2413
        %2415 = vrot.lane.b32.xlu0 %v2256, 24
        %v2416 = vpop.permute.xlu0 %2415
        %2417 = vrot.lane.b32.xlu0 %v2257, 24
        %v2418 = vpop.permute.xlu0 %2417
        %2419 = vrot.lane.b32.xlu0 %v2258, 24
        %v2420 = vpop.permute.xlu0 %2419
        %2421 = vrot.lane.b32.xlu0 %v2259, 24
        %v2422 = vpop.permute.xlu0 %2421
        %2423 = vrot.lane.b32.xlu0 %v2260, 24
        %v2424 = vpop.permute.xlu0 %2423
        %2425 = vrot.lane.b32.xlu0 %v2261, 24
        %v2426 = vpop.permute.xlu0 %2425
        %2427 = vrot.lane.b32.xlu0 %v2262, 24
        %v2428 = vpop.permute.xlu0 %2427
        %2429 = vrot.lane.b32.xlu0 %v2263, 24
        %v2430 = vpop.permute.xlu0 %2429
        %2431 = vrot.lane.b32.xlu0 %v2264, 24
        %v2432 = vpop.permute.xlu0 %2431
        %2433 = vrot.lane.b32.xlu0 %v2265, 24
        %v2434 = vpop.permute.xlu0 %2433
        %2435 = vrot.lane.b32.xlu0 %v2266, 24
        %v2436 = vpop.permute.xlu0 %2435
        %2437 = vrot.lane.b32.xlu0 %v2267, 24
        %v2438 = vpop.permute.xlu0 %2437
        %2439 = vrot.lane.b32.xlu0 %v2268, 24
        %v2440 = vpop.permute.xlu0 %2439
        %2441 = vrot.lane.b32.xlu0 %v2269, 24
        %v2442 = vpop.permute.xlu0 %2441
        %2443 = vrot.lane.b32.xlu0 %v2270, 24
        %v2444 = vpop.permute.xlu0 %2443
        %2445 = vrot.lane.b32.xlu0 %v2271, 24
        %v2446 = vpop.permute.xlu0 %2445
        %2447 = vrot.lane.b32.xlu0 %v2272, 24
        %v2448 = vpop.permute.xlu0 %2447
        %2449 = vrot.lane.b32.xlu0 %v2273, 24
        %v2450 = vpop.permute.xlu0 %2449
        %2451 = vrot.lane.b32.xlu0 %v2274, 24
        %v2452 = vpop.permute.xlu0 %2451
        %2453 = vrot.lane.b32.xlu0 %v2275, 24
        %v2454 = vpop.permute.xlu0 %2453
        %2455 = vrot.lane.b32.xlu0 %v2276, 24
        %v2456 = vpop.permute.xlu0 %2455
        %2457 = vrot.lane.b32.xlu0 %v2277, 24
        %v2458 = vpop.permute.xlu0 %2457
        %2459 = vrot.lane.b32.xlu0 %v2278, 24
        %v2460 = vpop.permute.xlu0 %2459
        %2461 = vrot.lane.b32.xlu0 %v2279, 24
        %v2462 = vpop.permute.xlu0 %2461
        %2463 = vrot.lane.b32.xlu0 %v2280, 24
        %v2464 = vpop.permute.xlu0 %2463
        %2465 = vrot.lane.b32.xlu0 %v2281, 24
        %v2466 = vpop.permute.xlu0 %2465
        %2467 = vrot.lane.b32.xlu0 %v2282, 24
        %v2468 = vpop.permute.xlu0 %2467
        %2469 = vrot.lane.b32.xlu0 %v2283, 24
        %v2470 = vpop.permute.xlu0 %2469
        %2471 = vrot.lane.b32.xlu0 %v2284, 24
        %v2472 = vpop.permute.xlu0 %2471
        %2473 = vrot.lane.b32.xlu0 %v2285, 24
        %v2474 = vpop.permute.xlu0 %2473
        %2475 = vrot.lane.b32.xlu0 %v2286, 24
        %v2476 = vpop.permute.xlu0 %2475
        %2477 = vrot.lane.b32.xlu0 %v2287, 24
        %v2478 = vpop.permute.xlu0 %2477
        %2479 = vrot.lane.b32.xlu0 %v2288, 24
        %v2480 = vpop.permute.xlu0 %2479
        %vm2545 = vcmask 228544
        %2546 = vst.msk [vmem:[#allocation2] sm:$0xff] %vm2545, %v2354
        %2547 = vst.msk [vmem:[#allocation2 + $0x8] sm:$0xff] %vm2545, %v2356
        %2548 = vst.msk [vmem:[#allocation2 + $0x10] sm:$0xff] %vm2545, %v2358
        %2549 = vst.msk [vmem:[#allocation2 + $0x18] sm:$0xff] %vm2545, %v2360
        %2550 = vst.msk [vmem:[#allocation2 + $0x20] sm:$0xff] %vm2545, %v2362
        %2551 = vst.msk [vmem:[#allocation2 + $0x28] sm:$0xff] %vm2545, %v2364
        %2552 = vst.msk [vmem:[#allocation2 + $0x30] sm:$0xff] %vm2545, %v2366
        %2553 = vst.msk [vmem:[#allocation2 + $0x38] sm:$0xff] %vm2545, %v2368
        %2554 = vst.msk [vmem:[#allocation2 + $0x40] sm:$0xff] %vm2545, %v2370
        %2555 = vst.msk [vmem:[#allocation2 + $0x48] sm:$0xff] %vm2545, %v2372
        %2556 = vst.msk [vmem:[#allocation2 + $0x50] sm:$0xff] %vm2545, %v2374
        %2557 = vst.msk [vmem:[#allocation2 + $0x58] sm:$0xff] %vm2545, %v2376
        %2558 = vst.msk [vmem:[#allocation2 + $0x60] sm:$0xff] %vm2545, %v2378
        %2559 = vst.msk [vmem:[#allocation2 + $0x68] sm:$0xff] %vm2545, %v2380
        %2560 = vst.msk [vmem:[#allocation2 + $0x70] sm:$0xff] %vm2545, %v2382
        %2561 = vst.msk [vmem:[#allocation2 + $0x78] sm:$0xff] %vm2545, %v2384
        %2562 = vst.msk [vmem:[#allocation2 + $0x80] sm:$0xff] %vm2545, %v2386
        %2563 = vst.msk [vmem:[#allocation2 + $0x88] sm:$0xff] %vm2545, %v2388
        %2564 = vst.msk [vmem:[#allocation2 + $0x90] sm:$0xff] %vm2545, %v2390
        %2565 = vst.msk [vmem:[#allocation2 + $0x98] sm:$0xff] %vm2545, %v2392
        %2566 = vst.msk [vmem:[#allocation2 + $0xa0] sm:$0xff] %vm2545, %v2394
        %2567 = vst.msk [vmem:[#allocation2 + $0xa8] sm:$0xff] %vm2545, %v2396
        %2568 = vst.msk [vmem:[#allocation2 + $0xb0] sm:$0xff] %vm2545, %v2398
        %2569 = vst.msk [vmem:[#allocation2 + $0xb8] sm:$0xff] %vm2545, %v2400
        %2570 = vst.msk [vmem:[#allocation2 + $0xc0] sm:$0xff] %vm2545, %v2402
        %2571 = vst.msk [vmem:[#allocation2 + $0xc8] sm:$0xff] %vm2545, %v2404
        %2572 = vst.msk [vmem:[#allocation2 + $0xd0] sm:$0xff] %vm2545, %v2406
        %2573 = vst.msk [vmem:[#allocation2 + $0xd8] sm:$0xff] %vm2545, %v2408
        %2574 = vst.msk [vmem:[#allocation2 + $0xe0] sm:$0xff] %vm2545, %v2410
        %2575 = vst.msk [vmem:[#allocation2 + $0xe8] sm:$0xff] %vm2545, %v2412
        %2576 = vst.msk [vmem:[#allocation2 + $0xf0] sm:$0xff] %vm2545, %v2414
        %2577 = vst.msk [vmem:[#allocation2 + $0xf8] sm:$0xff] %vm2545, %v2416
        %2578 = vst.msk [vmem:[#allocation2 + $0x100] sm:$0xff] %vm2545, %v2418
        %2579 = vst.msk [vmem:[#allocation2 + $0x108] sm:$0xff] %vm2545, %v2420
        %2580 = vst.msk [vmem:[#allocation2 + $0x110] sm:$0xff] %vm2545, %v2422
        %2581 = vst.msk [vmem:[#allocation2 + $0x118] sm:$0xff] %vm2545, %v2424
        %2582 = vst.msk [vmem:[#allocation2 + $0x120] sm:$0xff] %vm2545, %v2426
        %2583 = vst.msk [vmem:[#allocation2 + $0x128] sm:$0xff] %vm2545, %v2428
        %2584 = vst.msk [vmem:[#allocation2 + $0x130] sm:$0xff] %vm2545, %v2430
        %2585 = vst.msk [vmem:[#allocation2 + $0x138] sm:$0xff] %vm2545, %v2432
        %2586 = vst.msk [vmem:[#allocation2 + $0x140] sm:$0xff] %vm2545, %v2434
        %2587 = vst.msk [vmem:[#allocation2 + $0x148] sm:$0xff] %vm2545, %v2436
        %2588 = vst.msk [vmem:[#allocation2 + $0x150] sm:$0xff] %vm2545, %v2438
        %2589 = vst.msk [vmem:[#allocation2 + $0x158] sm:$0xff] %vm2545, %v2440
        %2590 = vst.msk [vmem:[#allocation2 + $0x160] sm:$0xff] %vm2545, %v2442
        %2591 = vst.msk [vmem:[#allocation2 + $0x168] sm:$0xff] %vm2545, %v2444
        %2592 = vst.msk [vmem:[#allocation2 + $0x170] sm:$0xff] %vm2545, %v2446
        %2593 = vst.msk [vmem:[#allocation2 + $0x178] sm:$0xff] %vm2545, %v2448
        %2594 = vst.msk [vmem:[#allocation2 + $0x180] sm:$0xff] %vm2545, %v2450
        %2595 = vst.msk [vmem:[#allocation2 + $0x188] sm:$0xff] %vm2545, %v2452
        %2596 = vst.msk [vmem:[#allocation2 + $0x190] sm:$0xff] %vm2545, %v2454
        %2597 = vst.msk [vmem:[#allocation2 + $0x198] sm:$0xff] %vm2545, %v2456
        %2598 = vst.msk [vmem:[#allocation2 + $0x1a0] sm:$0xff] %vm2545, %v2458
        %2599 = vst.msk [vmem:[#allocation2 + $0x1a8] sm:$0xff] %vm2545, %v2460
        %2600 = vst.msk [vmem:[#allocation2 + $0x1b0] sm:$0xff] %vm2545, %v2462
        %2601 = vst.msk [vmem:[#allocation2 + $0x1b8] sm:$0xff] %vm2545, %v2464
        %2602 = vst.msk [vmem:[#allocation2 + $0x1c0] sm:$0xff] %vm2545, %v2466
        %2603 = vst.msk [vmem:[#allocation2 + $0x1c8] sm:$0xff] %vm2545, %v2468
        %2604 = vst.msk [vmem:[#allocation2 + $0x1d0] sm:$0xff] %vm2545, %v2470
        %2605 = vst.msk [vmem:[#allocation2 + $0x1d8] sm:$0xff] %vm2545, %v2472
        %2606 = vst.msk [vmem:[#allocation2 + $0x1e0] sm:$0xff] %vm2545, %v2474
        %2607 = vst.msk [vmem:[#allocation2 + $0x1e8] sm:$0xff] %vm2545, %v2476
        %2608 = vst.msk [vmem:[#allocation2 + $0x1f0] sm:$0xff] %vm2545, %v2478
        %2609 = vst.msk [vmem:[#allocation2 + $0x1f8] sm:$0xff] %vm2545, %v2480
        %v2610 = vld [vmem:[%s2224 + $0x1] sm:$0xff]
        %v2611 = vld [vmem:[%s2224 + $0x11] sm:$0xff]
        %v2612 = vld [vmem:[%s2224 + $0x21] sm:$0xff]
        %v2613 = vld [vmem:[%s2224 + $0x31] sm:$0xff]
        %v2614 = vld [vmem:[%s2224 + $0x41] sm:$0xff]
        %v2615 = vld [vmem:[%s2224 + $0x51] sm:$0xff]
        %v2616 = vld [vmem:[%s2224 + $0x61] sm:$0xff]
        %v2617 = vld [vmem:[%s2224 + $0x71] sm:$0xff]
        %v2618 = vld [vmem:[%s2224 + $0xa1] sm:$0xff]
        %v2619 = vld [vmem:[%s2224 + $0xb1] sm:$0xff]
        %v2620 = vld [vmem:[%s2224 + $0xc1] sm:$0xff]
        %v2621 = vld [vmem:[%s2224 + $0xd1] sm:$0xff]
        %v2622 = vld [vmem:[%s2224 + $0xe1] sm:$0xff]
        %v2623 = vld [vmem:[%s2224 + $0xf1] sm:$0xff]
        %v2624 = vld [vmem:[%s2224 + $0x101] sm:$0xff]
        %v2625 = vld [vmem:[%s2224 + $0x111] sm:$0xff]
        %v2626 = vld [vmem:[%s2224 + $0x141] sm:$0xff]
        %v2627 = vld [vmem:[%s2224 + $0x151] sm:$0xff]
        %v2628 = vld [vmem:[%s2224 + $0x161] sm:$0xff]
        %v2629 = vld [vmem:[%s2224 + $0x171] sm:$0xff]
        %v2630 = vld [vmem:[%s2224 + $0x181] sm:$0xff]
        %v2631 = vld [vmem:[%s2224 + $0x191] sm:$0xff]
        %v2632 = vld [vmem:[%s2224 + $0x1a1] sm:$0xff]
        %v2633 = vld [vmem:[%s2224 + $0x1b1] sm:$0xff]
        %v2634 = vld [vmem:[%s2224 + $0x1e1] sm:$0xff]
        %v2635 = vld [vmem:[%s2224 + $0x1f1] sm:$0xff]
        %v2636 = vld [vmem:[%s2224 + $0x201] sm:$0xff]
        %v2637 = vld [vmem:[%s2224 + $0x211] sm:$0xff]
        %v2638 = vld [vmem:[%s2224 + $0x221] sm:$0xff]
        %v2639 = vld [vmem:[%s2224 + $0x231] sm:$0xff]
        %v2640 = vld [vmem:[%s2224 + $0x241] sm:$0xff]
        %v2641 = vld [vmem:[%s2224 + $0x251] sm:$0xff]
        %v2642 = vld [vmem:[%s2224 + $0x281] sm:$0xff]
        %v2643 = vld [vmem:[%s2224 + $0x291] sm:$0xff]
        %v2644 = vld [vmem:[%s2224 + $0x2a1] sm:$0xff]
        %v2645 = vld [vmem:[%s2224 + $0x2b1] sm:$0xff]
        %v2646 = vld [vmem:[%s2224 + $0x2c1] sm:$0xff]
        %v2647 = vld [vmem:[%s2224 + $0x2d1] sm:$0xff]
        %v2648 = vld [vmem:[%s2224 + $0x2e1] sm:$0xff]
        %v2649 = vld [vmem:[%s2224 + $0x2f1] sm:$0xff]
        %v2650 = vld [vmem:[%s2224 + $0x321] sm:$0xff]
        %v2651 = vld [vmem:[%s2224 + $0x331] sm:$0xff]
        %v2652 = vld [vmem:[%s2224 + $0x341] sm:$0xff]
        %v2653 = vld [vmem:[%s2224 + $0x351] sm:$0xff]
        %v2654 = vld [vmem:[%s2224 + $0x361] sm:$0xff]
        %v2655 = vld [vmem:[%s2224 + $0x371] sm:$0xff]
        %v2656 = vld [vmem:[%s2224 + $0x381] sm:$0xff]
        %v2657 = vld [vmem:[%s2224 + $0x391] sm:$0xff]
        %v2658 = vld [vmem:[%s2224 + $0x3c1] sm:$0xff]
        %v2659 = vld [vmem:[%s2224 + $0x3d1] sm:$0xff]
        %v2660 = vld [vmem:[%s2224 + $0x3e1] sm:$0xff]
        %v2661 = vld [vmem:[%s2224 + $0x3f1] sm:$0xff]
        %v2662 = vld [vmem:[%s2224 + $0x401] sm:$0xff]
        %v2663 = vld [vmem:[%s2224 + $0x411] sm:$0xff]
        %v2664 = vld [vmem:[%s2224 + $0x421] sm:$0xff]
        %v2665 = vld [vmem:[%s2224 + $0x431] sm:$0xff]
        %v2666 = vld [vmem:[%s2224 + $0x461] sm:$0xff]
        %v2667 = vld [vmem:[%s2224 + $0x471] sm:$0xff]
        %v2668 = vld [vmem:[%s2224 + $0x481] sm:$0xff]
        %v2669 = vld [vmem:[%s2224 + $0x491] sm:$0xff]
        %v2670 = vld [vmem:[%s2224 + $0x4a1] sm:$0xff]
        %v2671 = vld [vmem:[%s2224 + $0x4b1] sm:$0xff]
        %v2672 = vld [vmem:[%s2224 + $0x4c1] sm:$0xff]
        %v2673 = vld [vmem:[%s2224 + $0x4d1] sm:$0xff]
        %2738 = vrot.lane.b32.xlu0 %v2610, 28
        %v2739 = vpop.permute.xlu0 %2738
        %2740 = vrot.lane.b32.xlu0 %v2611, 28
        %v2741 = vpop.permute.xlu0 %2740
        %2742 = vrot.lane.b32.xlu0 %v2612, 28
        %v2743 = vpop.permute.xlu0 %2742
        %2744 = vrot.lane.b32.xlu0 %v2613, 28
        %v2745 = vpop.permute.xlu0 %2744
        %2746 = vrot.lane.b32.xlu0 %v2614, 28
        %v2747 = vpop.permute.xlu0 %2746
        %2748 = vrot.lane.b32.xlu0 %v2615, 28
        %v2749 = vpop.permute.xlu0 %2748
        %2750 = vrot.lane.b32.xlu0 %v2616, 28
        %v2751 = vpop.permute.xlu0 %2750
        %2752 = vrot.lane.b32.xlu0 %v2617, 28
        %v2753 = vpop.permute.xlu0 %2752
        %2754 = vrot.lane.b32.xlu0 %v2618, 28
        %v2755 = vpop.permute.xlu0 %2754
        %2756 = vrot.lane.b32.xlu0 %v2619, 28
        %v2757 = vpop.permute.xlu0 %2756
        %2758 = vrot.lane.b32.xlu0 %v2620, 28
        %v2759 = vpop.permute.xlu0 %2758
        %2760 = vrot.lane.b32.xlu0 %v2621, 28
        %v2761 = vpop.permute.xlu0 %2760
        %2762 = vrot.lane.b32.xlu0 %v2622, 28
        %v2763 = vpop.permute.xlu0 %2762
        %2764 = vrot.lane.b32.xlu0 %v2623, 28
        %v2765 = vpop.permute.xlu0 %2764
        %2766 = vrot.lane.b32.xlu0 %v2624, 28
        %v2767 = vpop.permute.xlu0 %2766
        %2768 = vrot.lane.b32.xlu0 %v2625, 28
        %v2769 = vpop.permute.xlu0 %2768
        %2770 = vrot.lane.b32.xlu0 %v2626, 28
        %v2771 = vpop.permute.xlu0 %2770
        %2772 = vrot.lane.b32.xlu0 %v2627, 28
        %v2773 = vpop.permute.xlu0 %2772
        %2774 = vrot.lane.b32.xlu0 %v2628, 28
        %v2775 = vpop.permute.xlu0 %2774
        %2776 = vrot.lane.b32.xlu0 %v2629, 28
        %v2777 = vpop.permute.xlu0 %2776
        %2778 = vrot.lane.b32.xlu0 %v2630, 28
        %v2779 = vpop.permute.xlu0 %2778
        %2780 = vrot.lane.b32.xlu0 %v2631, 28
        %v2781 = vpop.permute.xlu0 %2780
        %2782 = vrot.lane.b32.xlu0 %v2632, 28
        %v2783 = vpop.permute.xlu0 %2782
        %2784 = vrot.lane.b32.xlu0 %v2633, 28
        %v2785 = vpop.permute.xlu0 %2784
        %2786 = vrot.lane.b32.xlu0 %v2634, 28
        %v2787 = vpop.permute.xlu0 %2786
        %2788 = vrot.lane.b32.xlu0 %v2635, 28
        %v2789 = vpop.permute.xlu0 %2788
        %2790 = vrot.lane.b32.xlu0 %v2636, 28
        %v2791 = vpop.permute.xlu0 %2790
        %2792 = vrot.lane.b32.xlu0 %v2637, 28
        %v2793 = vpop.permute.xlu0 %2792
        %2794 = vrot.lane.b32.xlu0 %v2638, 28
        %v2795 = vpop.permute.xlu0 %2794
        %2796 = vrot.lane.b32.xlu0 %v2639, 28
        %v2797 = vpop.permute.xlu0 %2796
        %2798 = vrot.lane.b32.xlu0 %v2640, 28
        %v2799 = vpop.permute.xlu0 %2798
        %2800 = vrot.lane.b32.xlu0 %v2641, 28
        %v2801 = vpop.permute.xlu0 %2800
        %2802 = vrot.lane.b32.xlu0 %v2642, 28
        %v2803 = vpop.permute.xlu0 %2802
        %2804 = vrot.lane.b32.xlu0 %v2643, 28
        %v2805 = vpop.permute.xlu0 %2804
        %2806 = vrot.lane.b32.xlu0 %v2644, 28
        %v2807 = vpop.permute.xlu0 %2806
        %2808 = vrot.lane.b32.xlu0 %v2645, 28
        %v2809 = vpop.permute.xlu0 %2808
        %2810 = vrot.lane.b32.xlu0 %v2646, 28
        %v2811 = vpop.permute.xlu0 %2810
        %2812 = vrot.lane.b32.xlu0 %v2647, 28
        %v2813 = vpop.permute.xlu0 %2812
        %2814 = vrot.lane.b32.xlu0 %v2648, 28
        %v2815 = vpop.permute.xlu0 %2814
        %2816 = vrot.lane.b32.xlu0 %v2649, 28
        %v2817 = vpop.permute.xlu0 %2816
        %2818 = vrot.lane.b32.xlu0 %v2650, 28
        %v2819 = vpop.permute.xlu0 %2818
        %2820 = vrot.lane.b32.xlu0 %v2651, 28
        %v2821 = vpop.permute.xlu0 %2820
        %2822 = vrot.lane.b32.xlu0 %v2652, 28
        %v2823 = vpop.permute.xlu0 %2822
        %2824 = vrot.lane.b32.xlu0 %v2653, 28
        %v2825 = vpop.permute.xlu0 %2824
        %2826 = vrot.lane.b32.xlu0 %v2654, 28
        %v2827 = vpop.permute.xlu0 %2826
        %2828 = vrot.lane.b32.xlu0 %v2655, 28
        %v2829 = vpop.permute.xlu0 %2828
        %2830 = vrot.lane.b32.xlu0 %v2656, 28
        %v2831 = vpop.permute.xlu0 %2830
        %2832 = vrot.lane.b32.xlu0 %v2657, 28
        %v2833 = vpop.permute.xlu0 %2832
        %2834 = vrot.lane.b32.xlu0 %v2658, 28
        %v2835 = vpop.permute.xlu0 %2834
        %2836 = vrot.lane.b32.xlu0 %v2659, 28
        %v2837 = vpop.permute.xlu0 %2836
        %2838 = vrot.lane.b32.xlu0 %v2660, 28
        %v2839 = vpop.permute.xlu0 %2838
        %2840 = vrot.lane.b32.xlu0 %v2661, 28
        %v2841 = vpop.permute.xlu0 %2840
        %2842 = vrot.lane.b32.xlu0 %v2662, 28
        %v2843 = vpop.permute.xlu0 %2842
        %2844 = vrot.lane.b32.xlu0 %v2663, 28
        %v2845 = vpop.permute.xlu0 %2844
        %2846 = vrot.lane.b32.xlu0 %v2664, 28
        %v2847 = vpop.permute.xlu0 %2846
        %2848 = vrot.lane.b32.xlu0 %v2665, 28
        %v2849 = vpop.permute.xlu0 %2848
        %2850 = vrot.lane.b32.xlu0 %v2666, 28
        %v2851 = vpop.permute.xlu0 %2850
        %2852 = vrot.lane.b32.xlu0 %v2667, 28
        %v2853 = vpop.permute.xlu0 %2852
        %2854 = vrot.lane.b32.xlu0 %v2668, 28
        %v2855 = vpop.permute.xlu0 %2854
        %2856 = vrot.lane.b32.xlu0 %v2669, 28
        %v2857 = vpop.permute.xlu0 %2856
        %2858 = vrot.lane.b32.xlu0 %v2670, 28
        %v2859 = vpop.permute.xlu0 %2858
        %2860 = vrot.lane.b32.xlu0 %v2671, 28
        %v2861 = vpop.permute.xlu0 %2860
        %2862 = vrot.lane.b32.xlu0 %v2672, 28
        %v2863 = vpop.permute.xlu0 %2862
        %2864 = vrot.lane.b32.xlu0 %v2673, 28
        %v2865 = vpop.permute.xlu0 %2864
        %vm2930 = vcmask 261344
        %2931 = vst.msk [vmem:[#allocation2] sm:$0xff] %vm2930, %v2739
        %2932 = vst.msk [vmem:[#allocation2 + $0x8] sm:$0xff] %vm2930, %v2741
        %2933 = vst.msk [vmem:[#allocation2 + $0x10] sm:$0xff] %vm2930, %v2743
        %2934 = vst.msk [vmem:[#allocation2 + $0x18] sm:$0xff] %vm2930, %v2745
        %2935 = vst.msk [vmem:[#allocation2 + $0x20] sm:$0xff] %vm2930, %v2747
        %2936 = vst.msk [vmem:[#allocation2 + $0x28] sm:$0xff] %vm2930, %v2749
        %2937 = vst.msk [vmem:[#allocation2 + $0x30] sm:$0xff] %vm2930, %v2751
        %2938 = vst.msk [vmem:[#allocation2 + $0x38] sm:$0xff] %vm2930, %v2753
        %2939 = vst.msk [vmem:[#allocation2 + $0x40] sm:$0xff] %vm2930, %v2755
        %2940 = vst.msk [vmem:[#allocation2 + $0x48] sm:$0xff] %vm2930, %v2757
        %2941 = vst.msk [vmem:[#allocation2 + $0x50] sm:$0xff] %vm2930, %v2759
        %2942 = vst.msk [vmem:[#allocation2 + $0x58] sm:$0xff] %vm2930, %v2761
        %2943 = vst.msk [vmem:[#allocation2 + $0x60] sm:$0xff] %vm2930, %v2763
        %2944 = vst.msk [vmem:[#allocation2 + $0x68] sm:$0xff] %vm2930, %v2765
        %2945 = vst.msk [vmem:[#allocation2 + $0x70] sm:$0xff] %vm2930, %v2767
        %2946 = vst.msk [vmem:[#allocation2 + $0x78] sm:$0xff] %vm2930, %v2769
        %2947 = vst.msk [vmem:[#allocation2 + $0x80] sm:$0xff] %vm2930, %v2771
        %2948 = vst.msk [vmem:[#allocation2 + $0x88] sm:$0xff] %vm2930, %v2773
        %2949 = vst.msk [vmem:[#allocation2 + $0x90] sm:$0xff] %vm2930, %v2775
        %2950 = vst.msk [vmem:[#allocation2 + $0x98] sm:$0xff] %vm2930, %v2777
        %2951 = vst.msk [vmem:[#allocation2 + $0xa0] sm:$0xff] %vm2930, %v2779
        %2952 = vst.msk [vmem:[#allocation2 + $0xa8] sm:$0xff] %vm2930, %v2781
        %2953 = vst.msk [vmem:[#allocation2 + $0xb0] sm:$0xff] %vm2930, %v2783
        %2954 = vst.msk [vmem:[#allocation2 + $0xb8] sm:$0xff] %vm2930, %v2785
        %2955 = vst.msk [vmem:[#allocation2 + $0xc0] sm:$0xff] %vm2930, %v2787
        %2956 = vst.msk [vmem:[#allocation2 + $0xc8] sm:$0xff] %vm2930, %v2789
        %2957 = vst.msk [vmem:[#allocation2 + $0xd0] sm:$0xff] %vm2930, %v2791
        %2958 = vst.msk [vmem:[#allocation2 + $0xd8] sm:$0xff] %vm2930, %v2793
        %2959 = vst.msk [vmem:[#allocation2 + $0xe0] sm:$0xff] %vm2930, %v2795
        %2960 = vst.msk [vmem:[#allocation2 + $0xe8] sm:$0xff] %vm2930, %v2797
        %2961 = vst.msk [vmem:[#allocation2 + $0xf0] sm:$0xff] %vm2930, %v2799
        %2962 = vst.msk [vmem:[#allocation2 + $0xf8] sm:$0xff] %vm2930, %v2801
        %2963 = vst.msk [vmem:[#allocation2 + $0x100] sm:$0xff] %vm2930, %v2803
        %2964 = vst.msk [vmem:[#allocation2 + $0x108] sm:$0xff] %vm2930, %v2805
        %2965 = vst.msk [vmem:[#allocation2 + $0x110] sm:$0xff] %vm2930, %v2807
        %2966 = vst.msk [vmem:[#allocation2 + $0x118] sm:$0xff] %vm2930, %v2809
        %2967 = vst.msk [vmem:[#allocation2 + $0x120] sm:$0xff] %vm2930, %v2811
        %2968 = vst.msk [vmem:[#allocation2 + $0x128] sm:$0xff] %vm2930, %v2813
        %2969 = vst.msk [vmem:[#allocation2 + $0x130] sm:$0xff] %vm2930, %v2815
        %2970 = vst.msk [vmem:[#allocation2 + $0x138] sm:$0xff] %vm2930, %v2817
        %2971 = vst.msk [vmem:[#allocation2 + $0x140] sm:$0xff] %vm2930, %v2819
        %2972 = vst.msk [vmem:[#allocation2 + $0x148] sm:$0xff] %vm2930, %v2821
        %2973 = vst.msk [vmem:[#allocation2 + $0x150] sm:$0xff] %vm2930, %v2823
        %2974 = vst.msk [vmem:[#allocation2 + $0x158] sm:$0xff] %vm2930, %v2825
        %2975 = vst.msk [vmem:[#allocation2 + $0x160] sm:$0xff] %vm2930, %v2827
        %2976 = vst.msk [vmem:[#allocation2 + $0x168] sm:$0xff] %vm2930, %v2829
        %2977 = vst.msk [vmem:[#allocation2 + $0x170] sm:$0xff] %vm2930, %v2831
        %2978 = vst.msk [vmem:[#allocation2 + $0x178] sm:$0xff] %vm2930, %v2833
        %2979 = vst.msk [vmem:[#allocation2 + $0x180] sm:$0xff] %vm2930, %v2835
        %2980 = vst.msk [vmem:[#allocation2 + $0x188] sm:$0xff] %vm2930, %v2837
        %2981 = vst.msk [vmem:[#allocation2 + $0x190] sm:$0xff] %vm2930, %v2839
        %2982 = vst.msk [vmem:[#allocation2 + $0x198] sm:$0xff] %vm2930, %v2841
        %2983 = vst.msk [vmem:[#allocation2 + $0x1a0] sm:$0xff] %vm2930, %v2843
        %2984 = vst.msk [vmem:[#allocation2 + $0x1a8] sm:$0xff] %vm2930, %v2845
        %2985 = vst.msk [vmem:[#allocation2 + $0x1b0] sm:$0xff] %vm2930, %v2847
        %2986 = vst.msk [vmem:[#allocation2 + $0x1b8] sm:$0xff] %vm2930, %v2849
        %2987 = vst.msk [vmem:[#allocation2 + $0x1c0] sm:$0xff] %vm2930, %v2851
        %2988 = vst.msk [vmem:[#allocation2 + $0x1c8] sm:$0xff] %vm2930, %v2853
        %2989 = vst.msk [vmem:[#allocation2 + $0x1d0] sm:$0xff] %vm2930, %v2855
        %2990 = vst.msk [vmem:[#allocation2 + $0x1d8] sm:$0xff] %vm2930, %v2857
        %2991 = vst.msk [vmem:[#allocation2 + $0x1e0] sm:$0xff] %vm2930, %v2859
        %2992 = vst.msk [vmem:[#allocation2 + $0x1e8] sm:$0xff] %vm2930, %v2861
        %2993 = vst.msk [vmem:[#allocation2 + $0x1f0] sm:$0xff] %vm2930, %v2863
        %2994 = vst.msk [vmem:[#allocation2 + $0x1f8] sm:$0xff] %vm2930, %v2865
        %v2995 = vld [vmem:[%s2224 + $0x2] sm:$0xff]
        %v2996 = vld [vmem:[%s2224 + $0x12] sm:$0xff]
        %v2997 = vld [vmem:[%s2224 + $0x22] sm:$0xff]
        %v2998 = vld [vmem:[%s2224 + $0x32] sm:$0xff]
        %v2999 = vld [vmem:[%s2224 + $0x42] sm:$0xff]
        %v3000 = vld [vmem:[%s2224 + $0x52] sm:$0xff]
        %v3001 = vld [vmem:[%s2224 + $0x62] sm:$0xff]
        %v3002 = vld [vmem:[%s2224 + $0x72] sm:$0xff]
        %v3003 = vld [vmem:[%s2224 + $0xa2] sm:$0xff]
        %v3004 = vld [vmem:[%s2224 + $0xb2] sm:$0xff]
        %v3005 = vld [vmem:[%s2224 + $0xc2] sm:$0xff]
        %v3006 = vld [vmem:[%s2224 + $0xd2] sm:$0xff]
        %v3007 = vld [vmem:[%s2224 + $0xe2] sm:$0xff]
        %v3008 = vld [vmem:[%s2224 + $0xf2] sm:$0xff]
        %v3009 = vld [vmem:[%s2224 + $0x102] sm:$0xff]
        %v3010 = vld [vmem:[%s2224 + $0x112] sm:$0xff]
        %v3011 = vld [vmem:[%s2224 + $0x142] sm:$0xff]
        %v3012 = vld [vmem:[%s2224 + $0x152] sm:$0xff]
        %v3013 = vld [vmem:[%s2224 + $0x162] sm:$0xff]
        %v3014 = vld [vmem:[%s2224 + $0x172] sm:$0xff]
        %v3015 = vld [vmem:[%s2224 + $0x182] sm:$0xff]
        %v3016 = vld [vmem:[%s2224 + $0x192] sm:$0xff]
        %v3017 = vld [vmem:[%s2224 + $0x1a2] sm:$0xff]
        %v3018 = vld [vmem:[%s2224 + $0x1b2] sm:$0xff]
        %v3019 = vld [vmem:[%s2224 + $0x1e2] sm:$0xff]
        %v3020 = vld [vmem:[%s2224 + $0x1f2] sm:$0xff]
        %v3021 = vld [vmem:[%s2224 + $0x202] sm:$0xff]
        %v3022 = vld [vmem:[%s2224 + $0x212] sm:$0xff]
        %v3023 = vld [vmem:[%s2224 + $0x222] sm:$0xff]
        %v3024 = vld [vmem:[%s2224 + $0x232] sm:$0xff]
        %v3025 = vld [vmem:[%s2224 + $0x242] sm:$0xff]
        %v3026 = vld [vmem:[%s2224 + $0x252] sm:$0xff]
        %v3027 = vld [vmem:[%s2224 + $0x282] sm:$0xff]
        %v3028 = vld [vmem:[%s2224 + $0x292] sm:$0xff]
        %v3029 = vld [vmem:[%s2224 + $0x2a2] sm:$0xff]
        %v3030 = vld [vmem:[%s2224 + $0x2b2] sm:$0xff]
        %v3031 = vld [vmem:[%s2224 + $0x2c2] sm:$0xff]
        %v3032 = vld [vmem:[%s2224 + $0x2d2] sm:$0xff]
        %v3033 = vld [vmem:[%s2224 + $0x2e2] sm:$0xff]
        %v3034 = vld [vmem:[%s2224 + $0x2f2] sm:$0xff]
        %v3035 = vld [vmem:[%s2224 + $0x322] sm:$0xff]
        %v3036 = vld [vmem:[%s2224 + $0x332] sm:$0xff]
        %v3037 = vld [vmem:[%s2224 + $0x342] sm:$0xff]
        %v3038 = vld [vmem:[%s2224 + $0x352] sm:$0xff]
        %v3039 = vld [vmem:[%s2224 + $0x362] sm:$0xff]
        %v3040 = vld [vmem:[%s2224 + $0x372] sm:$0xff]
        %v3041 = vld [vmem:[%s2224 + $0x382] sm:$0xff]
        %v3042 = vld [vmem:[%s2224 + $0x392] sm:$0xff]
        %v3043 = vld [vmem:[%s2224 + $0x3c2] sm:$0xff]
        %v3044 = vld [vmem:[%s2224 + $0x3d2] sm:$0xff]
        %v3045 = vld [vmem:[%s2224 + $0x3e2] sm:$0xff]
        %v3046 = vld [vmem:[%s2224 + $0x3f2] sm:$0xff]
        %v3047 = vld [vmem:[%s2224 + $0x402] sm:$0xff]
        %v3048 = vld [vmem:[%s2224 + $0x412] sm:$0xff]
        %v3049 = vld [vmem:[%s2224 + $0x422] sm:$0xff]
        %v3050 = vld [vmem:[%s2224 + $0x432] sm:$0xff]
        %v3051 = vld [vmem:[%s2224 + $0x462] sm:$0xff]
        %v3052 = vld [vmem:[%s2224 + $0x472] sm:$0xff]
        %v3053 = vld [vmem:[%s2224 + $0x482] sm:$0xff]
        %v3054 = vld [vmem:[%s2224 + $0x492] sm:$0xff]
        %v3055 = vld [vmem:[%s2224 + $0x4a2] sm:$0xff]
        %v3056 = vld [vmem:[%s2224 + $0x4b2] sm:$0xff]
        %v3057 = vld [vmem:[%s2224 + $0x4c2] sm:$0xff]
        %v3058 = vld [vmem:[%s2224 + $0x4d2] sm:$0xff]
        %3123 = vrot.lane.b32.xlu0 %v2995, 32
        %v3124 = vpop.permute.xlu0 %3123
        %3125 = vrot.lane.b32.xlu0 %v2996, 32
        %v3126 = vpop.permute.xlu0 %3125
        %3127 = vrot.lane.b32.xlu0 %v2997, 32
        %v3128 = vpop.permute.xlu0 %3127
        %3129 = vrot.lane.b32.xlu0 %v2998, 32
        %v3130 = vpop.permute.xlu0 %3129
        %3131 = vrot.lane.b32.xlu0 %v2999, 32
        %v3132 = vpop.permute.xlu0 %3131
        %3133 = vrot.lane.b32.xlu0 %v3000, 32
        %v3134 = vpop.permute.xlu0 %3133
        %3135 = vrot.lane.b32.xlu0 %v3001, 32
        %v3136 = vpop.permute.xlu0 %3135
        %3137 = vrot.lane.b32.xlu0 %v3002, 32
        %v3138 = vpop.permute.xlu0 %3137
        %3139 = vrot.lane.b32.xlu0 %v3003, 32
        %v3140 = vpop.permute.xlu0 %3139
        %3141 = vrot.lane.b32.xlu0 %v3004, 32
        %v3142 = vpop.permute.xlu0 %3141
        %3143 = vrot.lane.b32.xlu0 %v3005, 32
        %v3144 = vpop.permute.xlu0 %3143
        %3145 = vrot.lane.b32.xlu0 %v3006, 32
        %v3146 = vpop.permute.xlu0 %3145
        %3147 = vrot.lane.b32.xlu0 %v3007, 32
        %v3148 = vpop.permute.xlu0 %3147
        %3149 = vrot.lane.b32.xlu0 %v3008, 32
        %v3150 = vpop.permute.xlu0 %3149
        %3151 = vrot.lane.b32.xlu0 %v3009, 32
        %v3152 = vpop.permute.xlu0 %3151
        %3153 = vrot.lane.b32.xlu0 %v3010, 32
        %v3154 = vpop.permute.xlu0 %3153
        %3155 = vrot.lane.b32.xlu0 %v3011, 32
        %v3156 = vpop.permute.xlu0 %3155
        %3157 = vrot.lane.b32.xlu0 %v3012, 32
        %v3158 = vpop.permute.xlu0 %3157
        %3159 = vrot.lane.b32.xlu0 %v3013, 32
        %v3160 = vpop.permute.xlu0 %3159
        %3161 = vrot.lane.b32.xlu0 %v3014, 32
        %v3162 = vpop.permute.xlu0 %3161
        %3163 = vrot.lane.b32.xlu0 %v3015, 32
        %v3164 = vpop.permute.xlu0 %3163
        %3165 = vrot.lane.b32.xlu0 %v3016, 32
        %v3166 = vpop.permute.xlu0 %3165
        %3167 = vrot.lane.b32.xlu0 %v3017, 32
        %v3168 = vpop.permute.xlu0 %3167
        %3169 = vrot.lane.b32.xlu0 %v3018, 32
        %v3170 = vpop.permute.xlu0 %3169
        %3171 = vrot.lane.b32.xlu0 %v3019, 32
        %v3172 = vpop.permute.xlu0 %3171
        %3173 = vrot.lane.b32.xlu0 %v3020, 32
        %v3174 = vpop.permute.xlu0 %3173
        %3175 = vrot.lane.b32.xlu0 %v3021, 32
        %v3176 = vpop.permute.xlu0 %3175
        %3177 = vrot.lane.b32.xlu0 %v3022, 32
        %v3178 = vpop.permute.xlu0 %3177
        %3179 = vrot.lane.b32.xlu0 %v3023, 32
        %v3180 = vpop.permute.xlu0 %3179
        %3181 = vrot.lane.b32.xlu0 %v3024, 32
        %v3182 = vpop.permute.xlu0 %3181
        %3183 = vrot.lane.b32.xlu0 %v3025, 32
        %v3184 = vpop.permute.xlu0 %3183
        %3185 = vrot.lane.b32.xlu0 %v3026, 32
        %v3186 = vpop.permute.xlu0 %3185
        %3187 = vrot.lane.b32.xlu0 %v3027, 32
        %v3188 = vpop.permute.xlu0 %3187
        %3189 = vrot.lane.b32.xlu0 %v3028, 32
        %v3190 = vpop.permute.xlu0 %3189
        %3191 = vrot.lane.b32.xlu0 %v3029, 32
        %v3192 = vpop.permute.xlu0 %3191
        %3193 = vrot.lane.b32.xlu0 %v3030, 32
        %v3194 = vpop.permute.xlu0 %3193
        %3195 = vrot.lane.b32.xlu0 %v3031, 32
        %v3196 = vpop.permute.xlu0 %3195
        %3197 = vrot.lane.b32.xlu0 %v3032, 32
        %v3198 = vpop.permute.xlu0 %3197
        %3199 = vrot.lane.b32.xlu0 %v3033, 32
        %v3200 = vpop.permute.xlu0 %3199
        %3201 = vrot.lane.b32.xlu0 %v3034, 32
        %v3202 = vpop.permute.xlu0 %3201
        %3203 = vrot.lane.b32.xlu0 %v3035, 32
        %v3204 = vpop.permute.xlu0 %3203
        %3205 = vrot.lane.b32.xlu0 %v3036, 32
        %v3206 = vpop.permute.xlu0 %3205
        %3207 = vrot.lane.b32.xlu0 %v3037, 32
        %v3208 = vpop.permute.xlu0 %3207
        %3209 = vrot.lane.b32.xlu0 %v3038, 32
        %v3210 = vpop.permute.xlu0 %3209
        %3211 = vrot.lane.b32.xlu0 %v3039, 32
        %v3212 = vpop.permute.xlu0 %3211
        %3213 = vrot.lane.b32.xlu0 %v3040, 32
        %v3214 = vpop.permute.xlu0 %3213
        %3215 = vrot.lane.b32.xlu0 %v3041, 32
        %v3216 = vpop.permute.xlu0 %3215
        %3217 = vrot.lane.b32.xlu0 %v3042, 32
        %v3218 = vpop.permute.xlu0 %3217
        %3219 = vrot.lane.b32.xlu0 %v3043, 32
        %v3220 = vpop.permute.xlu0 %3219
        %3221 = vrot.lane.b32.xlu0 %v3044, 32
        %v3222 = vpop.permute.xlu0 %3221
        %3223 = vrot.lane.b32.xlu0 %v3045, 32
        %v3224 = vpop.permute.xlu0 %3223
        %3225 = vrot.lane.b32.xlu0 %v3046, 32
        %v3226 = vpop.permute.xlu0 %3225
        %3227 = vrot.lane.b32.xlu0 %v3047, 32
        %v3228 = vpop.permute.xlu0 %3227
        %3229 = vrot.lane.b32.xlu0 %v3048, 32
        %v3230 = vpop.permute.xlu0 %3229
        %3231 = vrot.lane.b32.xlu0 %v3049, 32
        %v3232 = vpop.permute.xlu0 %3231
        %3233 = vrot.lane.b32.xlu0 %v3050, 32
        %v3234 = vpop.permute.xlu0 %3233
        %3235 = vrot.lane.b32.xlu0 %v3051, 32
        %v3236 = vpop.permute.xlu0 %3235
        %3237 = vrot.lane.b32.xlu0 %v3052, 32
        %v3238 = vpop.permute.xlu0 %3237
        %3239 = vrot.lane.b32.xlu0 %v3053, 32
        %v3240 = vpop.permute.xlu0 %3239
        %3241 = vrot.lane.b32.xlu0 %v3054, 32
        %v3242 = vpop.permute.xlu0 %3241
        %3243 = vrot.lane.b32.xlu0 %v3055, 32
        %v3244 = vpop.permute.xlu0 %3243
        %3245 = vrot.lane.b32.xlu0 %v3056, 32
        %v3246 = vpop.permute.xlu0 %3245
        %3247 = vrot.lane.b32.xlu0 %v3057, 32
        %v3248 = vpop.permute.xlu0 %3247
        %3249 = vrot.lane.b32.xlu0 %v3058, 32
        %v3250 = vpop.permute.xlu0 %3249
        %vm3315 = vcmask 294144
        %3316 = vst.msk [vmem:[#allocation2] sm:$0xff] %vm3315, %v3124
        %3317 = vst.msk [vmem:[#allocation2 + $0x8] sm:$0xff] %vm3315, %v3126
        %3318 = vst.msk [vmem:[#allocation2 + $0x10] sm:$0xff] %vm3315, %v3128
        %3319 = vst.msk [vmem:[#allocation2 + $0x18] sm:$0xff] %vm3315, %v3130
        %3320 = vst.msk [vmem:[#allocation2 + $0x20] sm:$0xff] %vm3315, %v3132
        %3321 = vst.msk [vmem:[#allocation2 + $0x28] sm:$0xff] %vm3315, %v3134
        %3322 = vst.msk [vmem:[#allocation2 + $0x30] sm:$0xff] %vm3315, %v3136
        %3323 = vst.msk [vmem:[#allocation2 + $0x38] sm:$0xff] %vm3315, %v3138
        %3324 = vst.msk [vmem:[#allocation2 + $0x40] sm:$0xff] %vm3315, %v3140
        %3325 = vst.msk [vmem:[#allocation2 + $0x48] sm:$0xff] %vm3315, %v3142
        %3326 = vst.msk [vmem:[#allocation2 + $0x50] sm:$0xff] %vm3315, %v3144
        %3327 = vst.msk [vmem:[#allocation2 + $0x58] sm:$0xff] %vm3315, %v3146
        %3328 = vst.msk [vmem:[#allocation2 + $0x60] sm:$0xff] %vm3315, %v3148
        %3329 = vst.msk [vmem:[#allocation2 + $0x68] sm:$0xff] %vm3315, %v3150
        %3330 = vst.msk [vmem:[#allocation2 + $0x70] sm:$0xff] %vm3315, %v3152
        %3331 = vst.msk [vmem:[#allocation2 + $0x78] sm:$0xff] %vm3315, %v3154
        %3332 = vst.msk [vmem:[#allocation2 + $0x80] sm:$0xff] %vm3315, %v3156
        %3333 = vst.msk [vmem:[#allocation2 + $0x88] sm:$0xff] %vm3315, %v3158
        %3334 = vst.msk [vmem:[#allocation2 + $0x90] sm:$0xff] %vm3315, %v3160
        %3335 = vst.msk [vmem:[#allocation2 + $0x98] sm:$0xff] %vm3315, %v3162
        %3336 = vst.msk [vmem:[#allocation2 + $0xa0] sm:$0xff] %vm3315, %v3164
        %3337 = vst.msk [vmem:[#allocation2 + $0xa8] sm:$0xff] %vm3315, %v3166
        %3338 = vst.msk [vmem:[#allocation2 + $0xb0] sm:$0xff] %vm3315, %v3168
        %3339 = vst.msk [vmem:[#allocation2 + $0xb8] sm:$0xff] %vm3315, %v3170
        %3340 = vst.msk [vmem:[#allocation2 + $0xc0] sm:$0xff] %vm3315, %v3172
        %3341 = vst.msk [vmem:[#allocation2 + $0xc8] sm:$0xff] %vm3315, %v3174
        %3342 = vst.msk [vmem:[#allocation2 + $0xd0] sm:$0xff] %vm3315, %v3176
        %3343 = vst.msk [vmem:[#allocation2 + $0xd8] sm:$0xff] %vm3315, %v3178
        %3344 = vst.msk [vmem:[#allocation2 + $0xe0] sm:$0xff] %vm3315, %v3180
        %3345 = vst.msk [vmem:[#allocation2 + $0xe8] sm:$0xff] %vm3315, %v3182
        %3346 = vst.msk [vmem:[#allocation2 + $0xf0] sm:$0xff] %vm3315, %v3184
        %3347 = vst.msk [vmem:[#allocation2 + $0xf8] sm:$0xff] %vm3315, %v3186
        %3348 = vst.msk [vmem:[#allocation2 + $0x100] sm:$0xff] %vm3315, %v3188
        %3349 = vst.msk [vmem:[#allocation2 + $0x108] sm:$0xff] %vm3315, %v3190
        %3350 = vst.msk [vmem:[#allocation2 + $0x110] sm:$0xff] %vm3315, %v3192
        %3351 = vst.msk [vmem:[#allocation2 + $0x118] sm:$0xff] %vm3315, %v3194
        %3352 = vst.msk [vmem:[#allocation2 + $0x120] sm:$0xff] %vm3315, %v3196
        %3353 = vst.msk [vmem:[#allocation2 + $0x128] sm:$0xff] %vm3315, %v3198
        %3354 = vst.msk [vmem:[#allocation2 + $0x130] sm:$0xff] %vm3315, %v3200
        %3355 = vst.msk [vmem:[#allocation2 + $0x138] sm:$0xff] %vm3315, %v3202
        %3356 = vst.msk [vmem:[#allocation2 + $0x140] sm:$0xff] %vm3315, %v3204
        %3357 = vst.msk [vmem:[#allocation2 + $0x148] sm:$0xff] %vm3315, %v3206
        %3358 = vst.msk [vmem:[#allocation2 + $0x150] sm:$0xff] %vm3315, %v3208
        %3359 = vst.msk [vmem:[#allocation2 + $0x158] sm:$0xff] %vm3315, %v3210
        %3360 = vst.msk [vmem:[#allocation2 + $0x160] sm:$0xff] %vm3315, %v3212
        %3361 = vst.msk [vmem:[#allocation2 + $0x168] sm:$0xff] %vm3315, %v3214
        %3362 = vst.msk [vmem:[#allocation2 + $0x170] sm:$0xff] %vm3315, %v3216
        %3363 = vst.msk [vmem:[#allocation2 + $0x178] sm:$0xff] %vm3315, %v3218
        %3364 = vst.msk [vmem:[#allocation2 + $0x180] sm:$0xff] %vm3315, %v3220
        %3365 = vst.msk [vmem:[#allocation2 + $0x188] sm:$0xff] %vm3315, %v3222
        %3366 = vst.msk [vmem:[#allocation2 + $0x190] sm:$0xff] %vm3315, %v3224
        %3367 = vst.msk [vmem:[#allocation2 + $0x198] sm:$0xff] %vm3315, %v3226
        %3368 = vst.msk [vmem:[#allocation2 + $0x1a0] sm:$0xff] %vm3315, %v3228
        %3369 = vst.msk [vmem:[#allocation2 + $0x1a8] sm:$0xff] %vm3315, %v3230
        %3370 = vst.msk [vmem:[#allocation2 + $0x1b0] sm:$0xff] %vm3315, %v3232
        %3371 = vst.msk [vmem:[#allocation2 + $0x1b8] sm:$0xff] %vm3315, %v3234
        %3372 = vst.msk [vmem:[#allocation2 + $0x1c0] sm:$0xff] %vm3315, %v3236
        %3373 = vst.msk [vmem:[#allocation2 + $0x1c8] sm:$0xff] %vm3315, %v3238
        %3374 = vst.msk [vmem:[#allocation2 + $0x1d0] sm:$0xff] %vm3315, %v3240
        %3375 = vst.msk [vmem:[#allocation2 + $0x1d8] sm:$0xff] %vm3315, %v3242
        %3376 = vst.msk [vmem:[#allocation2 + $0x1e0] sm:$0xff] %vm3315, %v3244
        %3377 = vst.msk [vmem:[#allocation2 + $0x1e8] sm:$0xff] %vm3315, %v3246
        %3378 = vst.msk [vmem:[#allocation2 + $0x1f0] sm:$0xff] %vm3315, %v3248
        %3379 = vst.msk [vmem:[#allocation2 + $0x1f8] sm:$0xff] %vm3315, %v3250
        %s3380 = scalar_lea.vmem %s168, 160
        %v3381 = vld [vmem:[%s3380] sm:$0xff]
        %v3382 = vld [vmem:[%s3380 + $0x10] sm:$0xff]
        %v3383 = vld [vmem:[%s3380 + $0x20] sm:$0xff]
        %v3384 = vld [vmem:[%s3380 + $0x30] sm:$0xff]
        %v3385 = vld [vmem:[%s3380 + $0x40] sm:$0xff]
        %v3386 = vld [vmem:[%s3380 + $0x50] sm:$0xff]
        %v3387 = vld [vmem:[%s3380 + $0x60] sm:$0xff]
        %v3388 = vld [vmem:[%s3380 + $0x70] sm:$0xff]
        %v3389 = vld [vmem:[%s3380 + $0xa0] sm:$0xff]
        %v3390 = vld [vmem:[%s3380 + $0xb0] sm:$0xff]
        %v3391 = vld [vmem:[%s3380 + $0xc0] sm:$0xff]
        %v3392 = vld [vmem:[%s3380 + $0xd0] sm:$0xff]
        %v3393 = vld [vmem:[%s3380 + $0xe0] sm:$0xff]
        %v3394 = vld [vmem:[%s3380 + $0xf0] sm:$0xff]
        %v3395 = vld [vmem:[%s3380 + $0x100] sm:$0xff]
        %v3396 = vld [vmem:[%s3380 + $0x110] sm:$0xff]
        %v3397 = vld [vmem:[%s3380 + $0x140] sm:$0xff]
        %v3398 = vld [vmem:[%s3380 + $0x150] sm:$0xff]
        %v3399 = vld [vmem:[%s3380 + $0x160] sm:$0xff]
        %v3400 = vld [vmem:[%s3380 + $0x170] sm:$0xff]
        %v3401 = vld [vmem:[%s3380 + $0x180] sm:$0xff]
        %v3402 = vld [vmem:[%s3380 + $0x190] sm:$0xff]
        %v3403 = vld [vmem:[%s3380 + $0x1a0] sm:$0xff]
        %v3404 = vld [vmem:[%s3380 + $0x1b0] sm:$0xff]
        %v3405 = vld [vmem:[%s3380 + $0x1e0] sm:$0xff]
        %v3406 = vld [vmem:[%s3380 + $0x1f0] sm:$0xff]
        %v3407 = vld [vmem:[%s3380 + $0x200] sm:$0xff]
        %v3408 = vld [vmem:[%s3380 + $0x210] sm:$0xff]
        %v3409 = vld [vmem:[%s3380 + $0x220] sm:$0xff]
        %v3410 = vld [vmem:[%s3380 + $0x230] sm:$0xff]
        %v3411 = vld [vmem:[%s3380 + $0x240] sm:$0xff]
        %v3412 = vld [vmem:[%s3380 + $0x250] sm:$0xff]
        %v3413 = vld [vmem:[%s3380 + $0x280] sm:$0xff]
        %v3414 = vld [vmem:[%s3380 + $0x290] sm:$0xff]
        %v3415 = vld [vmem:[%s3380 + $0x2a0] sm:$0xff]
        %v3416 = vld [vmem:[%s3380 + $0x2b0] sm:$0xff]
        %v3417 = vld [vmem:[%s3380 + $0x2c0] sm:$0xff]
        %v3418 = vld [vmem:[%s3380 + $0x2d0] sm:$0xff]
        %v3419 = vld [vmem:[%s3380 + $0x2e0] sm:$0xff]
        %v3420 = vld [vmem:[%s3380 + $0x2f0] sm:$0xff]
        %v3421 = vld [vmem:[%s3380 + $0x320] sm:$0xff]
        %v3422 = vld [vmem:[%s3380 + $0x330] sm:$0xff]
        %v3423 = vld [vmem:[%s3380 + $0x340] sm:$0xff]
        %v3424 = vld [vmem:[%s3380 + $0x350] sm:$0xff]
        %v3425 = vld [vmem:[%s3380 + $0x360] sm:$0xff]
        %v3426 = vld [vmem:[%s3380 + $0x370] sm:$0xff]
        %v3427 = vld [vmem:[%s3380 + $0x380] sm:$0xff]
        %v3428 = vld [vmem:[%s3380 + $0x390] sm:$0xff]
        %v3429 = vld [vmem:[%s3380 + $0x3c0] sm:$0xff]
        %v3430 = vld [vmem:[%s3380 + $0x3d0] sm:$0xff]
        %v3431 = vld [vmem:[%s3380 + $0x3e0] sm:$0xff]
        %v3432 = vld [vmem:[%s3380 + $0x3f0] sm:$0xff]
        %v3433 = vld [vmem:[%s3380 + $0x400] sm:$0xff]
        %v3434 = vld [vmem:[%s3380 + $0x410] sm:$0xff]
        %v3435 = vld [vmem:[%s3380 + $0x420] sm:$0xff]
        %v3436 = vld [vmem:[%s3380 + $0x430] sm:$0xff]
        %v3437 = vld [vmem:[%s3380 + $0x460] sm:$0xff]
        %v3438 = vld [vmem:[%s3380 + $0x470] sm:$0xff]
        %v3439 = vld [vmem:[%s3380 + $0x480] sm:$0xff]
        %v3440 = vld [vmem:[%s3380 + $0x490] sm:$0xff]
        %v3441 = vld [vmem:[%s3380 + $0x4a0] sm:$0xff]
        %v3442 = vld [vmem:[%s3380 + $0x4b0] sm:$0xff]
        %v3443 = vld [vmem:[%s3380 + $0x4c0] sm:$0xff]
        %v3444 = vld [vmem:[%s3380 + $0x4d0] sm:$0xff]
        %3509 = vrot.lane.b32.xlu0 %v3381, 36
        %v3510 = vpop.permute.xlu0 %3509
        %3511 = vrot.lane.b32.xlu0 %v3382, 36
        %v3512 = vpop.permute.xlu0 %3511
        %3513 = vrot.lane.b32.xlu0 %v3383, 36
        %v3514 = vpop.permute.xlu0 %3513
        %3515 = vrot.lane.b32.xlu0 %v3384, 36
        %v3516 = vpop.permute.xlu0 %3515
        %3517 = vrot.lane.b32.xlu0 %v3385, 36
        %v3518 = vpop.permute.xlu0 %3517
        %3519 = vrot.lane.b32.xlu0 %v3386, 36
        %v3520 = vpop.permute.xlu0 %3519
        %3521 = vrot.lane.b32.xlu0 %v3387, 36
        %v3522 = vpop.permute.xlu0 %3521
        %3523 = vrot.lane.b32.xlu0 %v3388, 36
        %v3524 = vpop.permute.xlu0 %3523
        %3525 = vrot.lane.b32.xlu0 %v3389, 36
        %v3526 = vpop.permute.xlu0 %3525
        %3527 = vrot.lane.b32.xlu0 %v3390, 36
        %v3528 = vpop.permute.xlu0 %3527
        %3529 = vrot.lane.b32.xlu0 %v3391, 36
        %v3530 = vpop.permute.xlu0 %3529
        %3531 = vrot.lane.b32.xlu0 %v3392, 36
        %v3532 = vpop.permute.xlu0 %3531
        %3533 = vrot.lane.b32.xlu0 %v3393, 36
        %v3534 = vpop.permute.xlu0 %3533
        %3535 = vrot.lane.b32.xlu0 %v3394, 36
        %v3536 = vpop.permute.xlu0 %3535
        %3537 = vrot.lane.b32.xlu0 %v3395, 36
        %v3538 = vpop.permute.xlu0 %3537
        %3539 = vrot.lane.b32.xlu0 %v3396, 36
        %v3540 = vpop.permute.xlu0 %3539
        %3541 = vrot.lane.b32.xlu0 %v3397, 36
        %v3542 = vpop.permute.xlu0 %3541
        %3543 = vrot.lane.b32.xlu0 %v3398, 36
        %v3544 = vpop.permute.xlu0 %3543
        %3545 = vrot.lane.b32.xlu0 %v3399, 36
        %v3546 = vpop.permute.xlu0 %3545
        %3547 = vrot.lane.b32.xlu0 %v3400, 36
        %v3548 = vpop.permute.xlu0 %3547
        %3549 = vrot.lane.b32.xlu0 %v3401, 36
        %v3550 = vpop.permute.xlu0 %3549
        %3551 = vrot.lane.b32.xlu0 %v3402, 36
        %v3552 = vpop.permute.xlu0 %3551
        %3553 = vrot.lane.b32.xlu0 %v3403, 36
        %v3554 = vpop.permute.xlu0 %3553
        %3555 = vrot.lane.b32.xlu0 %v3404, 36
        %v3556 = vpop.permute.xlu0 %3555
        %3557 = vrot.lane.b32.xlu0 %v3405, 36
        %v3558 = vpop.permute.xlu0 %3557
        %3559 = vrot.lane.b32.xlu0 %v3406, 36
        %v3560 = vpop.permute.xlu0 %3559
        %3561 = vrot.lane.b32.xlu0 %v3407, 36
        %v3562 = vpop.permute.xlu0 %3561
        %3563 = vrot.lane.b32.xlu0 %v3408, 36
        %v3564 = vpop.permute.xlu0 %3563
        %3565 = vrot.lane.b32.xlu0 %v3409, 36
        %v3566 = vpop.permute.xlu0 %3565
        %3567 = vrot.lane.b32.xlu0 %v3410, 36
        %v3568 = vpop.permute.xlu0 %3567
        %3569 = vrot.lane.b32.xlu0 %v3411, 36
        %v3570 = vpop.permute.xlu0 %3569
        %3571 = vrot.lane.b32.xlu0 %v3412, 36
        %v3572 = vpop.permute.xlu0 %3571
        %3573 = vrot.lane.b32.xlu0 %v3413, 36
        %v3574 = vpop.permute.xlu0 %3573
        %3575 = vrot.lane.b32.xlu0 %v3414, 36
        %v3576 = vpop.permute.xlu0 %3575
        %3577 = vrot.lane.b32.xlu0 %v3415, 36
        %v3578 = vpop.permute.xlu0 %3577
        %3579 = vrot.lane.b32.xlu0 %v3416, 36
        %v3580 = vpop.permute.xlu0 %3579
        %3581 = vrot.lane.b32.xlu0 %v3417, 36
        %v3582 = vpop.permute.xlu0 %3581
        %3583 = vrot.lane.b32.xlu0 %v3418, 36
        %v3584 = vpop.permute.xlu0 %3583
        %3585 = vrot.lane.b32.xlu0 %v3419, 36
        %v3586 = vpop.permute.xlu0 %3585
        %3587 = vrot.lane.b32.xlu0 %v3420, 36
        %v3588 = vpop.permute.xlu0 %3587
        %3589 = vrot.lane.b32.xlu0 %v3421, 36
        %v3590 = vpop.permute.xlu0 %3589
        %3591 = vrot.lane.b32.xlu0 %v3422, 36
        %v3592 = vpop.permute.xlu0 %3591
        %3593 = vrot.lane.b32.xlu0 %v3423, 36
        %v3594 = vpop.permute.xlu0 %3593
        %3595 = vrot.lane.b32.xlu0 %v3424, 36
        %v3596 = vpop.permute.xlu0 %3595
        %3597 = vrot.lane.b32.xlu0 %v3425, 36
        %v3598 = vpop.permute.xlu0 %3597
        %3599 = vrot.lane.b32.xlu0 %v3426, 36
        %v3600 = vpop.permute.xlu0 %3599
        %3601 = vrot.lane.b32.xlu0 %v3427, 36
        %v3602 = vpop.permute.xlu0 %3601
        %3603 = vrot.lane.b32.xlu0 %v3428, 36
        %v3604 = vpop.permute.xlu0 %3603
        %3605 = vrot.lane.b32.xlu0 %v3429, 36
        %v3606 = vpop.permute.xlu0 %3605
        %3607 = vrot.lane.b32.xlu0 %v3430, 36
        %v3608 = vpop.permute.xlu0 %3607
        %3609 = vrot.lane.b32.xlu0 %v3431, 36
        %v3610 = vpop.permute.xlu0 %3609
        %3611 = vrot.lane.b32.xlu0 %v3432, 36
        %v3612 = vpop.permute.xlu0 %3611
        %3613 = vrot.lane.b32.xlu0 %v3433, 36
        %v3614 = vpop.permute.xlu0 %3613
        %3615 = vrot.lane.b32.xlu0 %v3434, 36
        %v3616 = vpop.permute.xlu0 %3615
        %3617 = vrot.lane.b32.xlu0 %v3435, 36
        %v3618 = vpop.permute.xlu0 %3617
        %3619 = vrot.lane.b32.xlu0 %v3436, 36
        %v3620 = vpop.permute.xlu0 %3619
        %3621 = vrot.lane.b32.xlu0 %v3437, 36
        %v3622 = vpop.permute.xlu0 %3621
        %3623 = vrot.lane.b32.xlu0 %v3438, 36
        %v3624 = vpop.permute.xlu0 %3623
        %3625 = vrot.lane.b32.xlu0 %v3439, 36
        %v3626 = vpop.permute.xlu0 %3625
        %3627 = vrot.lane.b32.xlu0 %v3440, 36
        %v3628 = vpop.permute.xlu0 %3627
        %3629 = vrot.lane.b32.xlu0 %v3441, 36
        %v3630 = vpop.permute.xlu0 %3629
        %3631 = vrot.lane.b32.xlu0 %v3442, 36
        %v3632 = vpop.permute.xlu0 %3631
        %3633 = vrot.lane.b32.xlu0 %v3443, 36
        %v3634 = vpop.permute.xlu0 %3633
        %3635 = vrot.lane.b32.xlu0 %v3444, 36
        %v3636 = vpop.permute.xlu0 %3635
        %vm3701 = vcmask 326944
        %3702 = vst.msk [vmem:[#allocation2] sm:$0xff] %vm3701, %v3510
        %3703 = vst.msk [vmem:[#allocation2 + $0x8] sm:$0xff] %vm3701, %v3512
        %3704 = vst.msk [vmem:[#allocation2 + $0x10] sm:$0xff] %vm3701, %v3514
        %3705 = vst.msk [vmem:[#allocation2 + $0x18] sm:$0xff] %vm3701, %v3516
        %3706 = vst.msk [vmem:[#allocation2 + $0x20] sm:$0xff] %vm3701, %v3518
        %3707 = vst.msk [vmem:[#allocation2 + $0x28] sm:$0xff] %vm3701, %v3520
        %3708 = vst.msk [vmem:[#allocation2 + $0x30] sm:$0xff] %vm3701, %v3522
        %3709 = vst.msk [vmem:[#allocation2 + $0x38] sm:$0xff] %vm3701, %v3524
        %3710 = vst.msk [vmem:[#allocation2 + $0x40] sm:$0xff] %vm3701, %v3526
        %3711 = vst.msk [vmem:[#allocation2 + $0x48] sm:$0xff] %vm3701, %v3528
        %3712 = vst.msk [vmem:[#allocation2 + $0x50] sm:$0xff] %vm3701, %v3530
        %3713 = vst.msk [vmem:[#allocation2 + $0x58] sm:$0xff] %vm3701, %v3532
        %3714 = vst.msk [vmem:[#allocation2 + $0x60] sm:$0xff] %vm3701, %v3534
        %3715 = vst.msk [vmem:[#allocation2 + $0x68] sm:$0xff] %vm3701, %v3536
        %3716 = vst.msk [vmem:[#allocation2 + $0x70] sm:$0xff] %vm3701, %v3538
        %3717 = vst.msk [vmem:[#allocation2 + $0x78] sm:$0xff] %vm3701, %v3540
        %3718 = vst.msk [vmem:[#allocation2 + $0x80] sm:$0xff] %vm3701, %v3542
        %3719 = vst.msk [vmem:[#allocation2 + $0x88] sm:$0xff] %vm3701, %v3544
        %3720 = vst.msk [vmem:[#allocation2 + $0x90] sm:$0xff] %vm3701, %v3546
        %3721 = vst.msk [vmem:[#allocation2 + $0x98] sm:$0xff] %vm3701, %v3548
        %3722 = vst.msk [vmem:[#allocation2 + $0xa0] sm:$0xff] %vm3701, %v3550
        %3723 = vst.msk [vmem:[#allocation2 + $0xa8] sm:$0xff] %vm3701, %v3552
        %3724 = vst.msk [vmem:[#allocation2 + $0xb0] sm:$0xff] %vm3701, %v3554
        %3725 = vst.msk [vmem:[#allocation2 + $0xb8] sm:$0xff] %vm3701, %v3556
        %3726 = vst.msk [vmem:[#allocation2 + $0xc0] sm:$0xff] %vm3701, %v3558
        %3727 = vst.msk [vmem:[#allocation2 + $0xc8] sm:$0xff] %vm3701, %v3560
        %3728 = vst.msk [vmem:[#allocation2 + $0xd0] sm:$0xff] %vm3701, %v3562
        %3729 = vst.msk [vmem:[#allocation2 + $0xd8] sm:$0xff] %vm3701, %v3564
        %3730 = vst.msk [vmem:[#allocation2 + $0xe0] sm:$0xff] %vm3701, %v3566
        %3731 = vst.msk [vmem:[#allocation2 + $0xe8] sm:$0xff] %vm3701, %v3568
        %3732 = vst.msk [vmem:[#allocation2 + $0xf0] sm:$0xff] %vm3701, %v3570
        %3733 = vst.msk [vmem:[#allocation2 + $0xf8] sm:$0xff] %vm3701, %v3572
        %3734 = vst.msk [vmem:[#allocation2 + $0x100] sm:$0xff] %vm3701, %v3574
        %3735 = vst.msk [vmem:[#allocation2 + $0x108] sm:$0xff] %vm3701, %v3576
        %3736 = vst.msk [vmem:[#allocation2 + $0x110] sm:$0xff] %vm3701, %v3578
        %3737 = vst.msk [vmem:[#allocation2 + $0x118] sm:$0xff] %vm3701, %v3580
        %3738 = vst.msk [vmem:[#allocation2 + $0x120] sm:$0xff] %vm3701, %v3582
        %3739 = vst.msk [vmem:[#allocation2 + $0x128] sm:$0xff] %vm3701, %v3584
        %3740 = vst.msk [vmem:[#allocation2 + $0x130] sm:$0xff] %vm3701, %v3586
        %3741 = vst.msk [vmem:[#allocation2 + $0x138] sm:$0xff] %vm3701, %v3588
        %3742 = vst.msk [vmem:[#allocation2 + $0x140] sm:$0xff] %vm3701, %v3590
        %3743 = vst.msk [vmem:[#allocation2 + $0x148] sm:$0xff] %vm3701, %v3592
        %3744 = vst.msk [vmem:[#allocation2 + $0x150] sm:$0xff] %vm3701, %v3594
        %3745 = vst.msk [vmem:[#allocation2 + $0x158] sm:$0xff] %vm3701, %v3596
        %3746 = vst.msk [vmem:[#allocation2 + $0x160] sm:$0xff] %vm3701, %v3598
        %3747 = vst.msk [vmem:[#allocation2 + $0x168] sm:$0xff] %vm3701, %v3600
        %3748 = vst.msk [vmem:[#allocation2 + $0x170] sm:$0xff] %vm3701, %v3602
        %3749 = vst.msk [vmem:[#allocation2 + $0x178] sm:$0xff] %vm3701, %v3604
        %3750 = vst.msk [vmem:[#allocation2 + $0x180] sm:$0xff] %vm3701, %v3606
        %3751 = vst.msk [vmem:[#allocation2 + $0x188] sm:$0xff] %vm3701, %v3608
        %3752 = vst.msk [vmem:[#allocation2 + $0x190] sm:$0xff] %vm3701, %v3610
        %3753 = vst.msk [vmem:[#allocation2 + $0x198] sm:$0xff] %vm3701, %v3612
        %3754 = vst.msk [vmem:[#allocation2 + $0x1a0] sm:$0xff] %vm3701, %v3614
        %3755 = vst.msk [vmem:[#allocation2 + $0x1a8] sm:$0xff] %vm3701, %v3616
        %3756 = vst.msk [vmem:[#allocation2 + $0x1b0] sm:$0xff] %vm3701, %v3618
        %3757 = vst.msk [vmem:[#allocation2 + $0x1b8] sm:$0xff] %vm3701, %v3620
        %3758 = vst.msk [vmem:[#allocation2 + $0x1c0] sm:$0xff] %vm3701, %v3622
        %3759 = vst.msk [vmem:[#allocation2 + $0x1c8] sm:$0xff] %vm3701, %v3624
        %3760 = vst.msk [vmem:[#allocation2 + $0x1d0] sm:$0xff] %vm3701, %v3626
        %3761 = vst.msk [vmem:[#allocation2 + $0x1d8] sm:$0xff] %vm3701, %v3628
        %3762 = vst.msk [vmem:[#allocation2 + $0x1e0] sm:$0xff] %vm3701, %v3630
        %3763 = vst.msk [vmem:[#allocation2 + $0x1e8] sm:$0xff] %vm3701, %v3632
        %3764 = vst.msk [vmem:[#allocation2 + $0x1f0] sm:$0xff] %vm3701, %v3634
        %3765 = vst.msk [vmem:[#allocation2 + $0x1f8] sm:$0xff] %vm3701, %v3636
        %v3766 = vld [vmem:[%s3380 + $0x1] sm:$0xff]
        %v3767 = vld [vmem:[%s3380 + $0x11] sm:$0xff]
        %v3768 = vld [vmem:[%s3380 + $0x21] sm:$0xff]
        %v3769 = vld [vmem:[%s3380 + $0x31] sm:$0xff]
        %v3770 = vld [vmem:[%s3380 + $0x41] sm:$0xff]
        %v3771 = vld [vmem:[%s3380 + $0x51] sm:$0xff]
        %v3772 = vld [vmem:[%s3380 + $0x61] sm:$0xff]
        %v3773 = vld [vmem:[%s3380 + $0x71] sm:$0xff]
        %v3774 = vld [vmem:[%s3380 + $0xa1] sm:$0xff]
        %v3775 = vld [vmem:[%s3380 + $0xb1] sm:$0xff]
        %v3776 = vld [vmem:[%s3380 + $0xc1] sm:$0xff]
        %v3777 = vld [vmem:[%s3380 + $0xd1] sm:$0xff]
        %v3778 = vld [vmem:[%s3380 + $0xe1] sm:$0xff]
        %v3779 = vld [vmem:[%s3380 + $0xf1] sm:$0xff]
        %v3780 = vld [vmem:[%s3380 + $0x101] sm:$0xff]
        %v3781 = vld [vmem:[%s3380 + $0x111] sm:$0xff]
        %v3782 = vld [vmem:[%s3380 + $0x141] sm:$0xff]
        %v3783 = vld [vmem:[%s3380 + $0x151] sm:$0xff]
        %v3784 = vld [vmem:[%s3380 + $0x161] sm:$0xff]
        %v3785 = vld [vmem:[%s3380 + $0x171] sm:$0xff]
        %v3786 = vld [vmem:[%s3380 + $0x181] sm:$0xff]
        %v3787 = vld [vmem:[%s3380 + $0x191] sm:$0xff]
        %v3788 = vld [vmem:[%s3380 + $0x1a1] sm:$0xff]
        %v3789 = vld [vmem:[%s3380 + $0x1b1] sm:$0xff]
        %v3790 = vld [vmem:[%s3380 + $0x1e1] sm:$0xff]
        %v3791 = vld [vmem:[%s3380 + $0x1f1] sm:$0xff]
        %v3792 = vld [vmem:[%s3380 + $0x201] sm:$0xff]
        %v3793 = vld [vmem:[%s3380 + $0x211] sm:$0xff]
        %v3794 = vld [vmem:[%s3380 + $0x221] sm:$0xff]
        %v3795 = vld [vmem:[%s3380 + $0x231] sm:$0xff]
        %v3796 = vld [vmem:[%s3380 + $0x241] sm:$0xff]
        %v3797 = vld [vmem:[%s3380 + $0x251] sm:$0xff]
        %v3798 = vld [vmem:[%s3380 + $0x281] sm:$0xff]
        %v3799 = vld [vmem:[%s3380 + $0x291] sm:$0xff]
        %v3800 = vld [vmem:[%s3380 + $0x2a1] sm:$0xff]
        %v3801 = vld [vmem:[%s3380 + $0x2b1] sm:$0xff]
        %v3802 = vld [vmem:[%s3380 + $0x2c1] sm:$0xff]
        %v3803 = vld [vmem:[%s3380 + $0x2d1] sm:$0xff]
        %v3804 = vld [vmem:[%s3380 + $0x2e1] sm:$0xff]
        %v3805 = vld [vmem:[%s3380 + $0x2f1] sm:$0xff]
        %v3806 = vld [vmem:[%s3380 + $0x321] sm:$0xff]
        %v3807 = vld [vmem:[%s3380 + $0x331] sm:$0xff]
        %v3808 = vld [vmem:[%s3380 + $0x341] sm:$0xff]
        %v3809 = vld [vmem:[%s3380 + $0x351] sm:$0xff]
        %v3810 = vld [vmem:[%s3380 + $0x361] sm:$0xff]
        %v3811 = vld [vmem:[%s3380 + $0x371] sm:$0xff]
        %v3812 = vld [vmem:[%s3380 + $0x381] sm:$0xff]
        %v3813 = vld [vmem:[%s3380 + $0x391] sm:$0xff]
        %v3814 = vld [vmem:[%s3380 + $0x3c1] sm:$0xff]
        %v3815 = vld [vmem:[%s3380 + $0x3d1] sm:$0xff]
        %v3816 = vld [vmem:[%s3380 + $0x3e1] sm:$0xff]
        %v3817 = vld [vmem:[%s3380 + $0x3f1] sm:$0xff]
        %v3818 = vld [vmem:[%s3380 + $0x401] sm:$0xff]
        %v3819 = vld [vmem:[%s3380 + $0x411] sm:$0xff]
        %v3820 = vld [vmem:[%s3380 + $0x421] sm:$0xff]
        %v3821 = vld [vmem:[%s3380 + $0x431] sm:$0xff]
        %v3822 = vld [vmem:[%s3380 + $0x461] sm:$0xff]
        %v3823 = vld [vmem:[%s3380 + $0x471] sm:$0xff]
        %v3824 = vld [vmem:[%s3380 + $0x481] sm:$0xff]
        %v3825 = vld [vmem:[%s3380 + $0x491] sm:$0xff]
        %v3826 = vld [vmem:[%s3380 + $0x4a1] sm:$0xff]
        %v3827 = vld [vmem:[%s3380 + $0x4b1] sm:$0xff]
        %v3828 = vld [vmem:[%s3380 + $0x4c1] sm:$0xff]
        %v3829 = vld [vmem:[%s3380 + $0x4d1] sm:$0xff]
        %3894 = vrot.lane.b32.xlu0 %v3766, 40
        %v3895 = vpop.permute.xlu0 %3894
        %3896 = vrot.lane.b32.xlu0 %v3767, 40
        %v3897 = vpop.permute.xlu0 %3896
        %3898 = vrot.lane.b32.xlu0 %v3768, 40
        %v3899 = vpop.permute.xlu0 %3898
        %3900 = vrot.lane.b32.xlu0 %v3769, 40
        %v3901 = vpop.permute.xlu0 %3900
        %3902 = vrot.lane.b32.xlu0 %v3770, 40
        %v3903 = vpop.permute.xlu0 %3902
        %3904 = vrot.lane.b32.xlu0 %v3771, 40
        %v3905 = vpop.permute.xlu0 %3904
        %3906 = vrot.lane.b32.xlu0 %v3772, 40
        %v3907 = vpop.permute.xlu0 %3906
        %3908 = vrot.lane.b32.xlu0 %v3773, 40
        %v3909 = vpop.permute.xlu0 %3908
        %3910 = vrot.lane.b32.xlu0 %v3774, 40
        %v3911 = vpop.permute.xlu0 %3910
        %3912 = vrot.lane.b32.xlu0 %v3775, 40
        %v3913 = vpop.permute.xlu0 %3912
        %3914 = vrot.lane.b32.xlu0 %v3776, 40
        %v3915 = vpop.permute.xlu0 %3914
        %3916 = vrot.lane.b32.xlu0 %v3777, 40
        %v3917 = vpop.permute.xlu0 %3916
        %3918 = vrot.lane.b32.xlu0 %v3778, 40
        %v3919 = vpop.permute.xlu0 %3918
        %3920 = vrot.lane.b32.xlu0 %v3779, 40
        %v3921 = vpop.permute.xlu0 %3920
        %3922 = vrot.lane.b32.xlu0 %v3780, 40
        %v3923 = vpop.permute.xlu0 %3922
        %3924 = vrot.lane.b32.xlu0 %v3781, 40
        %v3925 = vpop.permute.xlu0 %3924
        %3926 = vrot.lane.b32.xlu0 %v3782, 40
        %v3927 = vpop.permute.xlu0 %3926
        %3928 = vrot.lane.b32.xlu0 %v3783, 40
        %v3929 = vpop.permute.xlu0 %3928
        %3930 = vrot.lane.b32.xlu0 %v3784, 40
        %v3931 = vpop.permute.xlu0 %3930
        %3932 = vrot.lane.b32.xlu0 %v3785, 40
        %v3933 = vpop.permute.xlu0 %3932
        %3934 = vrot.lane.b32.xlu0 %v3786, 40
        %v3935 = vpop.permute.xlu0 %3934
        %3936 = vrot.lane.b32.xlu0 %v3787, 40
        %v3937 = vpop.permute.xlu0 %3936
        %3938 = vrot.lane.b32.xlu0 %v3788, 40
        %v3939 = vpop.permute.xlu0 %3938
        %3940 = vrot.lane.b32.xlu0 %v3789, 40
        %v3941 = vpop.permute.xlu0 %3940
        %3942 = vrot.lane.b32.xlu0 %v3790, 40
        %v3943 = vpop.permute.xlu0 %3942
        %3944 = vrot.lane.b32.xlu0 %v3791, 40
        %v3945 = vpop.permute.xlu0 %3944
        %3946 = vrot.lane.b32.xlu0 %v3792, 40
        %v3947 = vpop.permute.xlu0 %3946
        %3948 = vrot.lane.b32.xlu0 %v3793, 40
        %v3949 = vpop.permute.xlu0 %3948
        %3950 = vrot.lane.b32.xlu0 %v3794, 40
        %v3951 = vpop.permute.xlu0 %3950
        %3952 = vrot.lane.b32.xlu0 %v3795, 40
        %v3953 = vpop.permute.xlu0 %3952
        %3954 = vrot.lane.b32.xlu0 %v3796, 40
        %v3955 = vpop.permute.xlu0 %3954
        %3956 = vrot.lane.b32.xlu0 %v3797, 40
        %v3957 = vpop.permute.xlu0 %3956
        %3958 = vrot.lane.b32.xlu0 %v3798, 40
        %v3959 = vpop.permute.xlu0 %3958
        %3960 = vrot.lane.b32.xlu0 %v3799, 40
        %v3961 = vpop.permute.xlu0 %3960
        %3962 = vrot.lane.b32.xlu0 %v3800, 40
        %v3963 = vpop.permute.xlu0 %3962
        %3964 = vrot.lane.b32.xlu0 %v3801, 40
        %v3965 = vpop.permute.xlu0 %3964
        %3966 = vrot.lane.b32.xlu0 %v3802, 40
        %v3967 = vpop.permute.xlu0 %3966
        %3968 = vrot.lane.b32.xlu0 %v3803, 40
        %v3969 = vpop.permute.xlu0 %3968
        %3970 = vrot.lane.b32.xlu0 %v3804, 40
        %v3971 = vpop.permute.xlu0 %3970
        %3972 = vrot.lane.b32.xlu0 %v3805, 40
        %v3973 = vpop.permute.xlu0 %3972
        %3974 = vrot.lane.b32.xlu0 %v3806, 40
        %v3975 = vpop.permute.xlu0 %3974
        %3976 = vrot.lane.b32.xlu0 %v3807, 40
        %v3977 = vpop.permute.xlu0 %3976
        %3978 = vrot.lane.b32.xlu0 %v3808, 40
        %v3979 = vpop.permute.xlu0 %3978
        %3980 = vrot.lane.b32.xlu0 %v3809, 40
        %v3981 = vpop.permute.xlu0 %3980
        %3982 = vrot.lane.b32.xlu0 %v3810, 40
        %v3983 = vpop.permute.xlu0 %3982
        %3984 = vrot.lane.b32.xlu0 %v3811, 40
        %v3985 = vpop.permute.xlu0 %3984
        %3986 = vrot.lane.b32.xlu0 %v3812, 40
        %v3987 = vpop.permute.xlu0 %3986
        %3988 = vrot.lane.b32.xlu0 %v3813, 40
        %v3989 = vpop.permute.xlu0 %3988
        %3990 = vrot.lane.b32.xlu0 %v3814, 40
        %v3991 = vpop.permute.xlu0 %3990
        %3992 = vrot.lane.b32.xlu0 %v3815, 40
        %v3993 = vpop.permute.xlu0 %3992
        %3994 = vrot.lane.b32.xlu0 %v3816, 40
        %v3995 = vpop.permute.xlu0 %3994
        %3996 = vrot.lane.b32.xlu0 %v3817, 40
        %v3997 = vpop.permute.xlu0 %3996
        %3998 = vrot.lane.b32.xlu0 %v3818, 40
        %v3999 = vpop.permute.xlu0 %3998
        %4000 = vrot.lane.b32.xlu0 %v3819, 40
        %v4001 = vpop.permute.xlu0 %4000
        %4002 = vrot.lane.b32.xlu0 %v3820, 40
        %v4003 = vpop.permute.xlu0 %4002
        %4004 = vrot.lane.b32.xlu0 %v3821, 40
        %v4005 = vpop.permute.xlu0 %4004
        %4006 = vrot.lane.b32.xlu0 %v3822, 40
        %v4007 = vpop.permute.xlu0 %4006
        %4008 = vrot.lane.b32.xlu0 %v3823, 40
        %v4009 = vpop.permute.xlu0 %4008
        %4010 = vrot.lane.b32.xlu0 %v3824, 40
        %v4011 = vpop.permute.xlu0 %4010
        %4012 = vrot.lane.b32.xlu0 %v3825, 40
        %v4013 = vpop.permute.xlu0 %4012
        %4014 = vrot.lane.b32.xlu0 %v3826, 40
        %v4015 = vpop.permute.xlu0 %4014
        %4016 = vrot.lane.b32.xlu0 %v3827, 40
        %v4017 = vpop.permute.xlu0 %4016
        %4018 = vrot.lane.b32.xlu0 %v3828, 40
        %v4019 = vpop.permute.xlu0 %4018
        %4020 = vrot.lane.b32.xlu0 %v3829, 40
        %v4021 = vpop.permute.xlu0 %4020
        %vm4086 = vcmask 359744
        %4087 = vst.msk [vmem:[#allocation2] sm:$0xff] %vm4086, %v3895
        %4088 = vst.msk [vmem:[#allocation2 + $0x8] sm:$0xff] %vm4086, %v3897
        %4089 = vst.msk [vmem:[#allocation2 + $0x10] sm:$0xff] %vm4086, %v3899
        %4090 = vst.msk [vmem:[#allocation2 + $0x18] sm:$0xff] %vm4086, %v3901
        %4091 = vst.msk [vmem:[#allocation2 + $0x20] sm:$0xff] %vm4086, %v3903
        %4092 = vst.msk [vmem:[#allocation2 + $0x28] sm:$0xff] %vm4086, %v3905
        %4093 = vst.msk [vmem:[#allocation2 + $0x30] sm:$0xff] %vm4086, %v3907
        %4094 = vst.msk [vmem:[#allocation2 + $0x38] sm:$0xff] %vm4086, %v3909
        %4095 = vst.msk [vmem:[#allocation2 + $0x40] sm:$0xff] %vm4086, %v3911
        %4096 = vst.msk [vmem:[#allocation2 + $0x48] sm:$0xff] %vm4086, %v3913
        %4097 = vst.msk [vmem:[#allocation2 + $0x50] sm:$0xff] %vm4086, %v3915
        %4098 = vst.msk [vmem:[#allocation2 + $0x58] sm:$0xff] %vm4086, %v3917
        %4099 = vst.msk [vmem:[#allocation2 + $0x60] sm:$0xff] %vm4086, %v3919
        %4100 = vst.msk [vmem:[#allocation2 + $0x68] sm:$0xff] %vm4086, %v3921
        %4101 = vst.msk [vmem:[#allocation2 + $0x70] sm:$0xff] %vm4086, %v3923
        %4102 = vst.msk [vmem:[#allocation2 + $0x78] sm:$0xff] %vm4086, %v3925
        %4103 = vst.msk [vmem:[#allocation2 + $0x80] sm:$0xff] %vm4086, %v3927
        %4104 = vst.msk [vmem:[#allocation2 + $0x88] sm:$0xff] %vm4086, %v3929
        %4105 = vst.msk [vmem:[#allocation2 + $0x90] sm:$0xff] %vm4086, %v3931
        %4106 = vst.msk [vmem:[#allocation2 + $0x98] sm:$0xff] %vm4086, %v3933
        %4107 = vst.msk [vmem:[#allocation2 + $0xa0] sm:$0xff] %vm4086, %v3935
        %4108 = vst.msk [vmem:[#allocation2 + $0xa8] sm:$0xff] %vm4086, %v3937
        %4109 = vst.msk [vmem:[#allocation2 + $0xb0] sm:$0xff] %vm4086, %v3939
        %4110 = vst.msk [vmem:[#allocation2 + $0xb8] sm:$0xff] %vm4086, %v3941
        %4111 = vst.msk [vmem:[#allocation2 + $0xc0] sm:$0xff] %vm4086, %v3943
        %4112 = vst.msk [vmem:[#allocation2 + $0xc8] sm:$0xff] %vm4086, %v3945
        %4113 = vst.msk [vmem:[#allocation2 + $0xd0] sm:$0xff] %vm4086, %v3947
        %4114 = vst.msk [vmem:[#allocation2 + $0xd8] sm:$0xff] %vm4086, %v3949
        %4115 = vst.msk [vmem:[#allocation2 + $0xe0] sm:$0xff] %vm4086, %v3951
        %4116 = vst.msk [vmem:[#allocation2 + $0xe8] sm:$0xff] %vm4086, %v3953
        %4117 = vst.msk [vmem:[#allocation2 + $0xf0] sm:$0xff] %vm4086, %v3955
        %4118 = vst.msk [vmem:[#allocation2 + $0xf8] sm:$0xff] %vm4086, %v3957
        %4119 = vst.msk [vmem:[#allocation2 + $0x100] sm:$0xff] %vm4086, %v3959
        %4120 = vst.msk [vmem:[#allocation2 + $0x108] sm:$0xff] %vm4086, %v3961
        %4121 = vst.msk [vmem:[#allocation2 + $0x110] sm:$0xff] %vm4086, %v3963
        %4122 = vst.msk [vmem:[#allocation2 + $0x118] sm:$0xff] %vm4086, %v3965
        %4123 = vst.msk [vmem:[#allocation2 + $0x120] sm:$0xff] %vm4086, %v3967
        %4124 = vst.msk [vmem:[#allocation2 + $0x128] sm:$0xff] %vm4086, %v3969
        %4125 = vst.msk [vmem:[#allocation2 + $0x130] sm:$0xff] %vm4086, %v3971
        %4126 = vst.msk [vmem:[#allocation2 + $0x138] sm:$0xff] %vm4086, %v3973
        %4127 = vst.msk [vmem:[#allocation2 + $0x140] sm:$0xff] %vm4086, %v3975
        %4128 = vst.msk [vmem:[#allocation2 + $0x148] sm:$0xff] %vm4086, %v3977
        %4129 = vst.msk [vmem:[#allocation2 + $0x150] sm:$0xff] %vm4086, %v3979
        %4130 = vst.msk [vmem:[#allocation2 + $0x158] sm:$0xff] %vm4086, %v3981
        %4131 = vst.msk [vmem:[#allocation2 + $0x160] sm:$0xff] %vm4086, %v3983
        %4132 = vst.msk [vmem:[#allocation2 + $0x168] sm:$0xff] %vm4086, %v3985
        %4133 = vst.msk [vmem:[#allocation2 + $0x170] sm:$0xff] %vm4086, %v3987
        %4134 = vst.msk [vmem:[#allocation2 + $0x178] sm:$0xff] %vm4086, %v3989
        %4135 = vst.msk [vmem:[#allocation2 + $0x180] sm:$0xff] %vm4086, %v3991
        %4136 = vst.msk [vmem:[#allocation2 + $0x188] sm:$0xff] %vm4086, %v3993
        %4137 = vst.msk [vmem:[#allocation2 + $0x190] sm:$0xff] %vm4086, %v3995
        %4138 = vst.msk [vmem:[#allocation2 + $0x198] sm:$0xff] %vm4086, %v3997
        %4139 = vst.msk [vmem:[#allocation2 + $0x1a0] sm:$0xff] %vm4086, %v3999
        %4140 = vst.msk [vmem:[#allocation2 + $0x1a8] sm:$0xff] %vm4086, %v4001
        %4141 = vst.msk [vmem:[#allocation2 + $0x1b0] sm:$0xff] %vm4086, %v4003
        %4142 = vst.msk [vmem:[#allocation2 + $0x1b8] sm:$0xff] %vm4086, %v4005
        %4143 = vst.msk [vmem:[#allocation2 + $0x1c0] sm:$0xff] %vm4086, %v4007
        %4144 = vst.msk [vmem:[#allocation2 + $0x1c8] sm:$0xff] %vm4086, %v4009
        %4145 = vst.msk [vmem:[#allocation2 + $0x1d0] sm:$0xff] %vm4086, %v4011
        %4146 = vst.msk [vmem:[#allocation2 + $0x1d8] sm:$0xff] %vm4086, %v4013
        %4147 = vst.msk [vmem:[#allocation2 + $0x1e0] sm:$0xff] %vm4086, %v4015
        %4148 = vst.msk [vmem:[#allocation2 + $0x1e8] sm:$0xff] %vm4086, %v4017
        %4149 = vst.msk [vmem:[#allocation2 + $0x1f0] sm:$0xff] %vm4086, %v4019
        %4150 = vst.msk [vmem:[#allocation2 + $0x1f8] sm:$0xff] %vm4086, %v4021
        %v4151 = vld [vmem:[%s3380 + $0x2] sm:$0xff]
        %v4152 = vld [vmem:[%s3380 + $0x12] sm:$0xff]
        %v4153 = vld [vmem:[%s3380 + $0x22] sm:$0xff]
        %v4154 = vld [vmem:[%s3380 + $0x32] sm:$0xff]
        %v4155 = vld [vmem:[%s3380 + $0x42] sm:$0xff]
        %v4156 = vld [vmem:[%s3380 + $0x52] sm:$0xff]
        %v4157 = vld [vmem:[%s3380 + $0x62] sm:$0xff]
        %v4158 = vld [vmem:[%s3380 + $0x72] sm:$0xff]
        %v4159 = vld [vmem:[%s3380 + $0xa2] sm:$0xff]
        %v4160 = vld [vmem:[%s3380 + $0xb2] sm:$0xff]
        %v4161 = vld [vmem:[%s3380 + $0xc2] sm:$0xff]
        %v4162 = vld [vmem:[%s3380 + $0xd2] sm:$0xff]
        %v4163 = vld [vmem:[%s3380 + $0xe2] sm:$0xff]
        %v4164 = vld [vmem:[%s3380 + $0xf2] sm:$0xff]
        %v4165 = vld [vmem:[%s3380 + $0x102] sm:$0xff]
        %v4166 = vld [vmem:[%s3380 + $0x112] sm:$0xff]
        %v4167 = vld [vmem:[%s3380 + $0x142] sm:$0xff]
        %v4168 = vld [vmem:[%s3380 + $0x152] sm:$0xff]
        %v4169 = vld [vmem:[%s3380 + $0x162] sm:$0xff]
        %v4170 = vld [vmem:[%s3380 + $0x172] sm:$0xff]
        %v4171 = vld [vmem:[%s3380 + $0x182] sm:$0xff]
        %v4172 = vld [vmem:[%s3380 + $0x192] sm:$0xff]
        %v4173 = vld [vmem:[%s3380 + $0x1a2] sm:$0xff]
        %v4174 = vld [vmem:[%s3380 + $0x1b2] sm:$0xff]
        %v4175 = vld [vmem:[%s3380 + $0x1e2] sm:$0xff]
        %v4176 = vld [vmem:[%s3380 + $0x1f2] sm:$0xff]
        %v4177 = vld [vmem:[%s3380 + $0x202] sm:$0xff]
        %v4178 = vld [vmem:[%s3380 + $0x212] sm:$0xff]
        %v4179 = vld [vmem:[%s3380 + $0x222] sm:$0xff]
        %v4180 = vld [vmem:[%s3380 + $0x232] sm:$0xff]
        %v4181 = vld [vmem:[%s3380 + $0x242] sm:$0xff]
        %v4182 = vld [vmem:[%s3380 + $0x252] sm:$0xff]
        %v4183 = vld [vmem:[%s3380 + $0x282] sm:$0xff]
        %v4184 = vld [vmem:[%s3380 + $0x292] sm:$0xff]
        %v4185 = vld [vmem:[%s3380 + $0x2a2] sm:$0xff]
        %v4186 = vld [vmem:[%s3380 + $0x2b2] sm:$0xff]
        %v4187 = vld [vmem:[%s3380 + $0x2c2] sm:$0xff]
        %v4188 = vld [vmem:[%s3380 + $0x2d2] sm:$0xff]
        %v4189 = vld [vmem:[%s3380 + $0x2e2] sm:$0xff]
        %v4190 = vld [vmem:[%s3380 + $0x2f2] sm:$0xff]
        %v4191 = vld [vmem:[%s3380 + $0x322] sm:$0xff]
        %v4192 = vld [vmem:[%s3380 + $0x332] sm:$0xff]
        %v4193 = vld [vmem:[%s3380 + $0x342] sm:$0xff]
        %v4194 = vld [vmem:[%s3380 + $0x352] sm:$0xff]
        %v4195 = vld [vmem:[%s3380 + $0x362] sm:$0xff]
        %v4196 = vld [vmem:[%s3380 + $0x372] sm:$0xff]
        %v4197 = vld [vmem:[%s3380 + $0x382] sm:$0xff]
        %v4198 = vld [vmem:[%s3380 + $0x392] sm:$0xff]
        %v4199 = vld [vmem:[%s3380 + $0x3c2] sm:$0xff]
        %v4200 = vld [vmem:[%s3380 + $0x3d2] sm:$0xff]
        %v4201 = vld [vmem:[%s3380 + $0x3e2] sm:$0xff]
        %v4202 = vld [vmem:[%s3380 + $0x3f2] sm:$0xff]
        %v4203 = vld [vmem:[%s3380 + $0x402] sm:$0xff]
        %v4204 = vld [vmem:[%s3380 + $0x412] sm:$0xff]
        %v4205 = vld [vmem:[%s3380 + $0x422] sm:$0xff]
        %v4206 = vld [vmem:[%s3380 + $0x432] sm:$0xff]
        %v4207 = vld [vmem:[%s3380 + $0x462] sm:$0xff]
        %v4208 = vld [vmem:[%s3380 + $0x472] sm:$0xff]
        %v4209 = vld [vmem:[%s3380 + $0x482] sm:$0xff]
        %v4210 = vld [vmem:[%s3380 + $0x492] sm:$0xff]
        %v4211 = vld [vmem:[%s3380 + $0x4a2] sm:$0xff]
        %v4212 = vld [vmem:[%s3380 + $0x4b2] sm:$0xff]
        %v4213 = vld [vmem:[%s3380 + $0x4c2] sm:$0xff]
        %v4214 = vld [vmem:[%s3380 + $0x4d2] sm:$0xff]
        %4279 = vrot.lane.b32.xlu0 %v4151, 44
        %v4280 = vpop.permute.xlu0 %4279
        %4281 = vrot.lane.b32.xlu0 %v4152, 44
        %v4282 = vpop.permute.xlu0 %4281
        %4283 = vrot.lane.b32.xlu0 %v4153, 44
        %v4284 = vpop.permute.xlu0 %4283
        %4285 = vrot.lane.b32.xlu0 %v4154, 44
        %v4286 = vpop.permute.xlu0 %4285
        %4287 = vrot.lane.b32.xlu0 %v4155, 44
        %v4288 = vpop.permute.xlu0 %4287
        %4289 = vrot.lane.b32.xlu0 %v4156, 44
        %v4290 = vpop.permute.xlu0 %4289
        %4291 = vrot.lane.b32.xlu0 %v4157, 44
        %v4292 = vpop.permute.xlu0 %4291
        %4293 = vrot.lane.b32.xlu0 %v4158, 44
        %v4294 = vpop.permute.xlu0 %4293
        %4295 = vrot.lane.b32.xlu0 %v4159, 44
        %v4296 = vpop.permute.xlu0 %4295
        %4297 = vrot.lane.b32.xlu0 %v4160, 44
        %v4298 = vpop.permute.xlu0 %4297
        %4299 = vrot.lane.b32.xlu0 %v4161, 44
        %v4300 = vpop.permute.xlu0 %4299
        %4301 = vrot.lane.b32.xlu0 %v4162, 44
        %v4302 = vpop.permute.xlu0 %4301
        %4303 = vrot.lane.b32.xlu0 %v4163, 44
        %v4304 = vpop.permute.xlu0 %4303
        %4305 = vrot.lane.b32.xlu0 %v4164, 44
        %v4306 = vpop.permute.xlu0 %4305
        %4307 = vrot.lane.b32.xlu0 %v4165, 44
        %v4308 = vpop.permute.xlu0 %4307
        %4309 = vrot.lane.b32.xlu0 %v4166, 44
        %v4310 = vpop.permute.xlu0 %4309
        %4311 = vrot.lane.b32.xlu0 %v4167, 44
        %v4312 = vpop.permute.xlu0 %4311
        %4313 = vrot.lane.b32.xlu0 %v4168, 44
        %v4314 = vpop.permute.xlu0 %4313
        %4315 = vrot.lane.b32.xlu0 %v4169, 44
        %v4316 = vpop.permute.xlu0 %4315
        %4317 = vrot.lane.b32.xlu0 %v4170, 44
        %v4318 = vpop.permute.xlu0 %4317
        %4319 = vrot.lane.b32.xlu0 %v4171, 44
        %v4320 = vpop.permute.xlu0 %4319
        %4321 = vrot.lane.b32.xlu0 %v4172, 44
        %v4322 = vpop.permute.xlu0 %4321
        %4323 = vrot.lane.b32.xlu0 %v4173, 44
        %v4324 = vpop.permute.xlu0 %4323
        %4325 = vrot.lane.b32.xlu0 %v4174, 44
        %v4326 = vpop.permute.xlu0 %4325
        %4327 = vrot.lane.b32.xlu0 %v4175, 44
        %v4328 = vpop.permute.xlu0 %4327
        %4329 = vrot.lane.b32.xlu0 %v4176, 44
        %v4330 = vpop.permute.xlu0 %4329
        %4331 = vrot.lane.b32.xlu0 %v4177, 44
        %v4332 = vpop.permute.xlu0 %4331
        %4333 = vrot.lane.b32.xlu0 %v4178, 44
        %v4334 = vpop.permute.xlu0 %4333
        %4335 = vrot.lane.b32.xlu0 %v4179, 44
        %v4336 = vpop.permute.xlu0 %4335
        %4337 = vrot.lane.b32.xlu0 %v4180, 44
        %v4338 = vpop.permute.xlu0 %4337
        %4339 = vrot.lane.b32.xlu0 %v4181, 44
        %v4340 = vpop.permute.xlu0 %4339
        %4341 = vrot.lane.b32.xlu0 %v4182, 44
        %v4342 = vpop.permute.xlu0 %4341
        %4343 = vrot.lane.b32.xlu0 %v4183, 44
        %v4344 = vpop.permute.xlu0 %4343
        %4345 = vrot.lane.b32.xlu0 %v4184, 44
        %v4346 = vpop.permute.xlu0 %4345
        %4347 = vrot.lane.b32.xlu0 %v4185, 44
        %v4348 = vpop.permute.xlu0 %4347
        %4349 = vrot.lane.b32.xlu0 %v4186, 44
        %v4350 = vpop.permute.xlu0 %4349
        %4351 = vrot.lane.b32.xlu0 %v4187, 44
        %v4352 = vpop.permute.xlu0 %4351
        %4353 = vrot.lane.b32.xlu0 %v4188, 44
        %v4354 = vpop.permute.xlu0 %4353
        %4355 = vrot.lane.b32.xlu0 %v4189, 44
        %v4356 = vpop.permute.xlu0 %4355
        %4357 = vrot.lane.b32.xlu0 %v4190, 44
        %v4358 = vpop.permute.xlu0 %4357
        %4359 = vrot.lane.b32.xlu0 %v4191, 44
        %v4360 = vpop.permute.xlu0 %4359
        %4361 = vrot.lane.b32.xlu0 %v4192, 44
        %v4362 = vpop.permute.xlu0 %4361
        %4363 = vrot.lane.b32.xlu0 %v4193, 44
        %v4364 = vpop.permute.xlu0 %4363
        %4365 = vrot.lane.b32.xlu0 %v4194, 44
        %v4366 = vpop.permute.xlu0 %4365
        %4367 = vrot.lane.b32.xlu0 %v4195, 44
        %v4368 = vpop.permute.xlu0 %4367
        %4369 = vrot.lane.b32.xlu0 %v4196, 44
        %v4370 = vpop.permute.xlu0 %4369
        %4371 = vrot.lane.b32.xlu0 %v4197, 44
        %v4372 = vpop.permute.xlu0 %4371
        %4373 = vrot.lane.b32.xlu0 %v4198, 44
        %v4374 = vpop.permute.xlu0 %4373
        %4375 = vrot.lane.b32.xlu0 %v4199, 44
        %v4376 = vpop.permute.xlu0 %4375
        %4377 = vrot.lane.b32.xlu0 %v4200, 44
        %v4378 = vpop.permute.xlu0 %4377
        %4379 = vrot.lane.b32.xlu0 %v4201, 44
        %v4380 = vpop.permute.xlu0 %4379
        %4381 = vrot.lane.b32.xlu0 %v4202, 44
        %v4382 = vpop.permute.xlu0 %4381
        %4383 = vrot.lane.b32.xlu0 %v4203, 44
        %v4384 = vpop.permute.xlu0 %4383
        %4385 = vrot.lane.b32.xlu0 %v4204, 44
        %v4386 = vpop.permute.xlu0 %4385
        %4387 = vrot.lane.b32.xlu0 %v4205, 44
        %v4388 = vpop.permute.xlu0 %4387
        %4389 = vrot.lane.b32.xlu0 %v4206, 44
        %v4390 = vpop.permute.xlu0 %4389
        %4391 = vrot.lane.b32.xlu0 %v4207, 44
        %v4392 = vpop.permute.xlu0 %4391
        %4393 = vrot.lane.b32.xlu0 %v4208, 44
        %v4394 = vpop.permute.xlu0 %4393
        %4395 = vrot.lane.b32.xlu0 %v4209, 44
        %v4396 = vpop.permute.xlu0 %4395
        %4397 = vrot.lane.b32.xlu0 %v4210, 44
        %v4398 = vpop.permute.xlu0 %4397
        %4399 = vrot.lane.b32.xlu0 %v4211, 44
        %v4400 = vpop.permute.xlu0 %4399
        %4401 = vrot.lane.b32.xlu0 %v4212, 44
        %v4402 = vpop.permute.xlu0 %4401
        %4403 = vrot.lane.b32.xlu0 %v4213, 44
        %v4404 = vpop.permute.xlu0 %4403
        %4405 = vrot.lane.b32.xlu0 %v4214, 44
        %v4406 = vpop.permute.xlu0 %4405
        %vm4471 = vcmask 392544
        %4472 = vst.msk [vmem:[#allocation2] sm:$0xff] %vm4471, %v4280
        %4473 = vst.msk [vmem:[#allocation2 + $0x8] sm:$0xff] %vm4471, %v4282
        %4474 = vst.msk [vmem:[#allocation2 + $0x10] sm:$0xff] %vm4471, %v4284
        %4475 = vst.msk [vmem:[#allocation2 + $0x18] sm:$0xff] %vm4471, %v4286
        %4476 = vst.msk [vmem:[#allocation2 + $0x20] sm:$0xff] %vm4471, %v4288
        %4477 = vst.msk [vmem:[#allocation2 + $0x28] sm:$0xff] %vm4471, %v4290
        %4478 = vst.msk [vmem:[#allocation2 + $0x30] sm:$0xff] %vm4471, %v4292
        %4479 = vst.msk [vmem:[#allocation2 + $0x38] sm:$0xff] %vm4471, %v4294
        %4480 = vst.msk [vmem:[#allocation2 + $0x40] sm:$0xff] %vm4471, %v4296
        %4481 = vst.msk [vmem:[#allocation2 + $0x48] sm:$0xff] %vm4471, %v4298
        %4482 = vst.msk [vmem:[#allocation2 + $0x50] sm:$0xff] %vm4471, %v4300
        %4483 = vst.msk [vmem:[#allocation2 + $0x58] sm:$0xff] %vm4471, %v4302
        %4484 = vst.msk [vmem:[#allocation2 + $0x60] sm:$0xff] %vm4471, %v4304
        %4485 = vst.msk [vmem:[#allocation2 + $0x68] sm:$0xff] %vm4471, %v4306
        %4486 = vst.msk [vmem:[#allocation2 + $0x70] sm:$0xff] %vm4471, %v4308
        %4487 = vst.msk [vmem:[#allocation2 + $0x78] sm:$0xff] %vm4471, %v4310
        %4488 = vst.msk [vmem:[#allocation2 + $0x80] sm:$0xff] %vm4471, %v4312
        %4489 = vst.msk [vmem:[#allocation2 + $0x88] sm:$0xff] %vm4471, %v4314
        %4490 = vst.msk [vmem:[#allocation2 + $0x90] sm:$0xff] %vm4471, %v4316
        %4491 = vst.msk [vmem:[#allocation2 + $0x98] sm:$0xff] %vm4471, %v4318
        %4492 = vst.msk [vmem:[#allocation2 + $0xa0] sm:$0xff] %vm4471, %v4320
        %4493 = vst.msk [vmem:[#allocation2 + $0xa8] sm:$0xff] %vm4471, %v4322
        %4494 = vst.msk [vmem:[#allocation2 + $0xb0] sm:$0xff] %vm4471, %v4324
        %4495 = vst.msk [vmem:[#allocation2 + $0xb8] sm:$0xff] %vm4471, %v4326
        %4496 = vst.msk [vmem:[#allocation2 + $0xc0] sm:$0xff] %vm4471, %v4328
        %4497 = vst.msk [vmem:[#allocation2 + $0xc8] sm:$0xff] %vm4471, %v4330
        %4498 = vst.msk [vmem:[#allocation2 + $0xd0] sm:$0xff] %vm4471, %v4332
        %4499 = vst.msk [vmem:[#allocation2 + $0xd8] sm:$0xff] %vm4471, %v4334
        %4500 = vst.msk [vmem:[#allocation2 + $0xe0] sm:$0xff] %vm4471, %v4336
        %4501 = vst.msk [vmem:[#allocation2 + $0xe8] sm:$0xff] %vm4471, %v4338
        %4502 = vst.msk [vmem:[#allocation2 + $0xf0] sm:$0xff] %vm4471, %v4340
        %4503 = vst.msk [vmem:[#allocation2 + $0xf8] sm:$0xff] %vm4471, %v4342
        %4504 = vst.msk [vmem:[#allocation2 + $0x100] sm:$0xff] %vm4471, %v4344
        %4505 = vst.msk [vmem:[#allocation2 + $0x108] sm:$0xff] %vm4471, %v4346
        %4506 = vst.msk [vmem:[#allocation2 + $0x110] sm:$0xff] %vm4471, %v4348
        %4507 = vst.msk [vmem:[#allocation2 + $0x118] sm:$0xff] %vm4471, %v4350
        %4508 = vst.msk [vmem:[#allocation2 + $0x120] sm:$0xff] %vm4471, %v4352
        %4509 = vst.msk [vmem:[#allocation2 + $0x128] sm:$0xff] %vm4471, %v4354
        %4510 = vst.msk [vmem:[#allocation2 + $0x130] sm:$0xff] %vm4471, %v4356
        %4511 = vst.msk [vmem:[#allocation2 + $0x138] sm:$0xff] %vm4471, %v4358
        %4512 = vst.msk [vmem:[#allocation2 + $0x140] sm:$0xff] %vm4471, %v4360
        %4513 = vst.msk [vmem:[#allocation2 + $0x148] sm:$0xff] %vm4471, %v4362
        %4514 = vst.msk [vmem:[#allocation2 + $0x150] sm:$0xff] %vm4471, %v4364
        %4515 = vst.msk [vmem:[#allocation2 + $0x158] sm:$0xff] %vm4471, %v4366
        %4516 = vst.msk [vmem:[#allocation2 + $0x160] sm:$0xff] %vm4471, %v4368
        %4517 = vst.msk [vmem:[#allocation2 + $0x168] sm:$0xff] %vm4471, %v4370
        %4518 = vst.msk [vmem:[#allocation2 + $0x170] sm:$0xff] %vm4471, %v4372
        %4519 = vst.msk [vmem:[#allocation2 + $0x178] sm:$0xff] %vm4471, %v4374
        %4520 = vst.msk [vmem:[#allocation2 + $0x180] sm:$0xff] %vm4471, %v4376
        %4521 = vst.msk [vmem:[#allocation2 + $0x188] sm:$0xff] %vm4471, %v4378
        %4522 = vst.msk [vmem:[#allocation2 + $0x190] sm:$0xff] %vm4471, %v4380
        %4523 = vst.msk [vmem:[#allocation2 + $0x198] sm:$0xff] %vm4471, %v4382
        %4524 = vst.msk [vmem:[#allocation2 + $0x1a0] sm:$0xff] %vm4471, %v4384
        %4525 = vst.msk [vmem:[#allocation2 + $0x1a8] sm:$0xff] %vm4471, %v4386
        %4526 = vst.msk [vmem:[#allocation2 + $0x1b0] sm:$0xff] %vm4471, %v4388
        %4527 = vst.msk [vmem:[#allocation2 + $0x1b8] sm:$0xff] %vm4471, %v4390
        %4528 = vst.msk [vmem:[#allocation2 + $0x1c0] sm:$0xff] %vm4471, %v4392
        %4529 = vst.msk [vmem:[#allocation2 + $0x1c8] sm:$0xff] %vm4471, %v4394
        %4530 = vst.msk [vmem:[#allocation2 + $0x1d0] sm:$0xff] %vm4471, %v4396
        %4531 = vst.msk [vmem:[#allocation2 + $0x1d8] sm:$0xff] %vm4471, %v4398
        %4532 = vst.msk [vmem:[#allocation2 + $0x1e0] sm:$0xff] %vm4471, %v4400
        %4533 = vst.msk [vmem:[#allocation2 + $0x1e8] sm:$0xff] %vm4471, %v4402
        %4534 = vst.msk [vmem:[#allocation2 + $0x1f0] sm:$0xff] %vm4471, %v4404
        %4535 = vst.msk [vmem:[#allocation2 + $0x1f8] sm:$0xff] %vm4471, %v4406
        %s4536 = scalar_lea.vmem %s168, 176
        %v4537 = vld [vmem:[%s4536] sm:$0xff]
        %v4538 = vld [vmem:[%s4536 + $0x10] sm:$0xff]
        %v4539 = vld [vmem:[%s4536 + $0x20] sm:$0xff]
        %v4540 = vld [vmem:[%s4536 + $0x30] sm:$0xff]
        %v4541 = vld [vmem:[%s4536 + $0x40] sm:$0xff]
        %v4542 = vld [vmem:[%s4536 + $0x50] sm:$0xff]
        %v4543 = vld [vmem:[%s4536 + $0x60] sm:$0xff]
        %v4544 = vld [vmem:[%s4536 + $0x70] sm:$0xff]
        %v4545 = vld [vmem:[%s4536 + $0xa0] sm:$0xff]
        %v4546 = vld [vmem:[%s4536 + $0xb0] sm:$0xff]
        %v4547 = vld [vmem:[%s4536 + $0xc0] sm:$0xff]
        %v4548 = vld [vmem:[%s4536 + $0xd0] sm:$0xff]
        %v4549 = vld [vmem:[%s4536 + $0xe0] sm:$0xff]
        %v4550 = vld [vmem:[%s4536 + $0xf0] sm:$0xff]
        %v4551 = vld [vmem:[%s4536 + $0x100] sm:$0xff]
        %v4552 = vld [vmem:[%s4536 + $0x110] sm:$0xff]
        %v4553 = vld [vmem:[%s4536 + $0x140] sm:$0xff]
        %v4554 = vld [vmem:[%s4536 + $0x150] sm:$0xff]
        %v4555 = vld [vmem:[%s4536 + $0x160] sm:$0xff]
        %v4556 = vld [vmem:[%s4536 + $0x170] sm:$0xff]
        %v4557 = vld [vmem:[%s4536 + $0x180] sm:$0xff]
        %v4558 = vld [vmem:[%s4536 + $0x190] sm:$0xff]
        %v4559 = vld [vmem:[%s4536 + $0x1a0] sm:$0xff]
        %v4560 = vld [vmem:[%s4536 + $0x1b0] sm:$0xff]
        %v4561 = vld [vmem:[%s4536 + $0x1e0] sm:$0xff]
        %v4562 = vld [vmem:[%s4536 + $0x1f0] sm:$0xff]
        %v4563 = vld [vmem:[%s4536 + $0x200] sm:$0xff]
        %v4564 = vld [vmem:[%s4536 + $0x210] sm:$0xff]
        %v4565 = vld [vmem:[%s4536 + $0x220] sm:$0xff]
        %v4566 = vld [vmem:[%s4536 + $0x230] sm:$0xff]
        %v4567 = vld [vmem:[%s4536 + $0x240] sm:$0xff]
        %v4568 = vld [vmem:[%s4536 + $0x250] sm:$0xff]
        %v4569 = vld [vmem:[%s4536 + $0x280] sm:$0xff]
        %v4570 = vld [vmem:[%s4536 + $0x290] sm:$0xff]
        %v4571 = vld [vmem:[%s4536 + $0x2a0] sm:$0xff]
        %v4572 = vld [vmem:[%s4536 + $0x2b0] sm:$0xff]
        %v4573 = vld [vmem:[%s4536 + $0x2c0] sm:$0xff]
        %v4574 = vld [vmem:[%s4536 + $0x2d0] sm:$0xff]
        %v4575 = vld [vmem:[%s4536 + $0x2e0] sm:$0xff]
        %v4576 = vld [vmem:[%s4536 + $0x2f0] sm:$0xff]
        %v4577 = vld [vmem:[%s4536 + $0x320] sm:$0xff]
        %v4578 = vld [vmem:[%s4536 + $0x330] sm:$0xff]
        %v4579 = vld [vmem:[%s4536 + $0x340] sm:$0xff]
        %v4580 = vld [vmem:[%s4536 + $0x350] sm:$0xff]
        %v4581 = vld [vmem:[%s4536 + $0x360] sm:$0xff]
        %v4582 = vld [vmem:[%s4536 + $0x370] sm:$0xff]
        %v4583 = vld [vmem:[%s4536 + $0x380] sm:$0xff]
        %v4584 = vld [vmem:[%s4536 + $0x390] sm:$0xff]
        %v4585 = vld [vmem:[%s4536 + $0x3c0] sm:$0xff]
        %v4586 = vld [vmem:[%s4536 + $0x3d0] sm:$0xff]
        %v4587 = vld [vmem:[%s4536 + $0x3e0] sm:$0xff]
        %v4588 = vld [vmem:[%s4536 + $0x3f0] sm:$0xff]
        %v4589 = vld [vmem:[%s4536 + $0x400] sm:$0xff]
        %v4590 = vld [vmem:[%s4536 + $0x410] sm:$0xff]
        %v4591 = vld [vmem:[%s4536 + $0x420] sm:$0xff]
        %v4592 = vld [vmem:[%s4536 + $0x430] sm:$0xff]
        %v4593 = vld [vmem:[%s4536 + $0x460] sm:$0xff]
        %v4594 = vld [vmem:[%s4536 + $0x470] sm:$0xff]
        %v4595 = vld [vmem:[%s4536 + $0x480] sm:$0xff]
        %v4596 = vld [vmem:[%s4536 + $0x490] sm:$0xff]
        %v4597 = vld [vmem:[%s4536 + $0x4a0] sm:$0xff]
        %v4598 = vld [vmem:[%s4536 + $0x4b0] sm:$0xff]
        %v4599 = vld [vmem:[%s4536 + $0x4c0] sm:$0xff]
        %v4600 = vld [vmem:[%s4536 + $0x4d0] sm:$0xff]
        %4665 = vrot.lane.b32.xlu0 %v4537, 48
        %v4666 = vpop.permute.xlu0 %4665
        %4667 = vrot.lane.b32.xlu0 %v4538, 48
        %v4668 = vpop.permute.xlu0 %4667
        %4669 = vrot.lane.b32.xlu0 %v4539, 48
        %v4670 = vpop.permute.xlu0 %4669
        %4671 = vrot.lane.b32.xlu0 %v4540, 48
        %v4672 = vpop.permute.xlu0 %4671
        %4673 = vrot.lane.b32.xlu0 %v4541, 48
        %v4674 = vpop.permute.xlu0 %4673
        %4675 = vrot.lane.b32.xlu0 %v4542, 48
        %v4676 = vpop.permute.xlu0 %4675
        %4677 = vrot.lane.b32.xlu0 %v4543, 48
        %v4678 = vpop.permute.xlu0 %4677
        %4679 = vrot.lane.b32.xlu0 %v4544, 48
        %v4680 = vpop.permute.xlu0 %4679
        %4681 = vrot.lane.b32.xlu0 %v4545, 48
        %v4682 = vpop.permute.xlu0 %4681
        %4683 = vrot.lane.b32.xlu0 %v4546, 48
        %v4684 = vpop.permute.xlu0 %4683
        %4685 = vrot.lane.b32.xlu0 %v4547, 48
        %v4686 = vpop.permute.xlu0 %4685
        %4687 = vrot.lane.b32.xlu0 %v4548, 48
        %v4688 = vpop.permute.xlu0 %4687
        %4689 = vrot.lane.b32.xlu0 %v4549, 48
        %v4690 = vpop.permute.xlu0 %4689
        %4691 = vrot.lane.b32.xlu0 %v4550, 48
        %v4692 = vpop.permute.xlu0 %4691
        %4693 = vrot.lane.b32.xlu0 %v4551, 48
        %v4694 = vpop.permute.xlu0 %4693
        %4695 = vrot.lane.b32.xlu0 %v4552, 48
        %v4696 = vpop.permute.xlu0 %4695
        %4697 = vrot.lane.b32.xlu0 %v4553, 48
        %v4698 = vpop.permute.xlu0 %4697
        %4699 = vrot.lane.b32.xlu0 %v4554, 48
        %v4700 = vpop.permute.xlu0 %4699
        %4701 = vrot.lane.b32.xlu0 %v4555, 48
        %v4702 = vpop.permute.xlu0 %4701
        %4703 = vrot.lane.b32.xlu0 %v4556, 48
        %v4704 = vpop.permute.xlu0 %4703
        %4705 = vrot.lane.b32.xlu0 %v4557, 48
        %v4706 = vpop.permute.xlu0 %4705
        %4707 = vrot.lane.b32.xlu0 %v4558, 48
        %v4708 = vpop.permute.xlu0 %4707
        %4709 = vrot.lane.b32.xlu0 %v4559, 48
        %v4710 = vpop.permute.xlu0 %4709
        %4711 = vrot.lane.b32.xlu0 %v4560, 48
        %v4712 = vpop.permute.xlu0 %4711
        %4713 = vrot.lane.b32.xlu0 %v4561, 48
        %v4714 = vpop.permute.xlu0 %4713
        %4715 = vrot.lane.b32.xlu0 %v4562, 48
        %v4716 = vpop.permute.xlu0 %4715
        %4717 = vrot.lane.b32.xlu0 %v4563, 48
        %v4718 = vpop.permute.xlu0 %4717
        %4719 = vrot.lane.b32.xlu0 %v4564, 48
        %v4720 = vpop.permute.xlu0 %4719
        %4721 = vrot.lane.b32.xlu0 %v4565, 48
        %v4722 = vpop.permute.xlu0 %4721
        %4723 = vrot.lane.b32.xlu0 %v4566, 48
        %v4724 = vpop.permute.xlu0 %4723
        %4725 = vrot.lane.b32.xlu0 %v4567, 48
        %v4726 = vpop.permute.xlu0 %4725
        %4727 = vrot.lane.b32.xlu0 %v4568, 48
        %v4728 = vpop.permute.xlu0 %4727
        %4729 = vrot.lane.b32.xlu0 %v4569, 48
        %v4730 = vpop.permute.xlu0 %4729
        %4731 = vrot.lane.b32.xlu0 %v4570, 48
        %v4732 = vpop.permute.xlu0 %4731
        %4733 = vrot.lane.b32.xlu0 %v4571, 48
        %v4734 = vpop.permute.xlu0 %4733
        %4735 = vrot.lane.b32.xlu0 %v4572, 48
        %v4736 = vpop.permute.xlu0 %4735
        %4737 = vrot.lane.b32.xlu0 %v4573, 48
        %v4738 = vpop.permute.xlu0 %4737
        %4739 = vrot.lane.b32.xlu0 %v4574, 48
        %v4740 = vpop.permute.xlu0 %4739
        %4741 = vrot.lane.b32.xlu0 %v4575, 48
        %v4742 = vpop.permute.xlu0 %4741
        %4743 = vrot.lane.b32.xlu0 %v4576, 48
        %v4744 = vpop.permute.xlu0 %4743
        %4745 = vrot.lane.b32.xlu0 %v4577, 48
        %v4746 = vpop.permute.xlu0 %4745
        %4747 = vrot.lane.b32.xlu0 %v4578, 48
        %v4748 = vpop.permute.xlu0 %4747
        %4749 = vrot.lane.b32.xlu0 %v4579, 48
        %v4750 = vpop.permute.xlu0 %4749
        %4751 = vrot.lane.b32.xlu0 %v4580, 48
        %v4752 = vpop.permute.xlu0 %4751
        %4753 = vrot.lane.b32.xlu0 %v4581, 48
        %v4754 = vpop.permute.xlu0 %4753
        %4755 = vrot.lane.b32.xlu0 %v4582, 48
        %v4756 = vpop.permute.xlu0 %4755
        %4757 = vrot.lane.b32.xlu0 %v4583, 48
        %v4758 = vpop.permute.xlu0 %4757
        %4759 = vrot.lane.b32.xlu0 %v4584, 48
        %v4760 = vpop.permute.xlu0 %4759
        %4761 = vrot.lane.b32.xlu0 %v4585, 48
        %v4762 = vpop.permute.xlu0 %4761
        %4763 = vrot.lane.b32.xlu0 %v4586, 48
        %v4764 = vpop.permute.xlu0 %4763
        %4765 = vrot.lane.b32.xlu0 %v4587, 48
        %v4766 = vpop.permute.xlu0 %4765
        %4767 = vrot.lane.b32.xlu0 %v4588, 48
        %v4768 = vpop.permute.xlu0 %4767
        %4769 = vrot.lane.b32.xlu0 %v4589, 48
        %v4770 = vpop.permute.xlu0 %4769
        %4771 = vrot.lane.b32.xlu0 %v4590, 48
        %v4772 = vpop.permute.xlu0 %4771
        %4773 = vrot.lane.b32.xlu0 %v4591, 48
        %v4774 = vpop.permute.xlu0 %4773
        %4775 = vrot.lane.b32.xlu0 %v4592, 48
        %v4776 = vpop.permute.xlu0 %4775
        %4777 = vrot.lane.b32.xlu0 %v4593, 48
        %v4778 = vpop.permute.xlu0 %4777
        %4779 = vrot.lane.b32.xlu0 %v4594, 48
        %v4780 = vpop.permute.xlu0 %4779
        %4781 = vrot.lane.b32.xlu0 %v4595, 48
        %v4782 = vpop.permute.xlu0 %4781
        %4783 = vrot.lane.b32.xlu0 %v4596, 48
        %v4784 = vpop.permute.xlu0 %4783
        %4785 = vrot.lane.b32.xlu0 %v4597, 48
        %v4786 = vpop.permute.xlu0 %4785
        %4787 = vrot.lane.b32.xlu0 %v4598, 48
        %v4788 = vpop.permute.xlu0 %4787
        %4789 = vrot.lane.b32.xlu0 %v4599, 48
        %v4790 = vpop.permute.xlu0 %4789
        %4791 = vrot.lane.b32.xlu0 %v4600, 48
        %v4792 = vpop.permute.xlu0 %4791
        %vm4857 = vcmask 425344
        %4858 = vst.msk [vmem:[#allocation2] sm:$0xff] %vm4857, %v4666
        %4859 = vst.msk [vmem:[#allocation2 + $0x8] sm:$0xff] %vm4857, %v4668
        %4860 = vst.msk [vmem:[#allocation2 + $0x10] sm:$0xff] %vm4857, %v4670
        %4861 = vst.msk [vmem:[#allocation2 + $0x18] sm:$0xff] %vm4857, %v4672
        %4862 = vst.msk [vmem:[#allocation2 + $0x20] sm:$0xff] %vm4857, %v4674
        %4863 = vst.msk [vmem:[#allocation2 + $0x28] sm:$0xff] %vm4857, %v4676
        %4864 = vst.msk [vmem:[#allocation2 + $0x30] sm:$0xff] %vm4857, %v4678
        %4865 = vst.msk [vmem:[#allocation2 + $0x38] sm:$0xff] %vm4857, %v4680
        %4866 = vst.msk [vmem:[#allocation2 + $0x40] sm:$0xff] %vm4857, %v4682
        %4867 = vst.msk [vmem:[#allocation2 + $0x48] sm:$0xff] %vm4857, %v4684
        %4868 = vst.msk [vmem:[#allocation2 + $0x50] sm:$0xff] %vm4857, %v4686
        %4869 = vst.msk [vmem:[#allocation2 + $0x58] sm:$0xff] %vm4857, %v4688
        %4870 = vst.msk [vmem:[#allocation2 + $0x60] sm:$0xff] %vm4857, %v4690
        %4871 = vst.msk [vmem:[#allocation2 + $0x68] sm:$0xff] %vm4857, %v4692
        %4872 = vst.msk [vmem:[#allocation2 + $0x70] sm:$0xff] %vm4857, %v4694
        %4873 = vst.msk [vmem:[#allocation2 + $0x78] sm:$0xff] %vm4857, %v4696
        %4874 = vst.msk [vmem:[#allocation2 + $0x80] sm:$0xff] %vm4857, %v4698
        %4875 = vst.msk [vmem:[#allocation2 + $0x88] sm:$0xff] %vm4857, %v4700
        %4876 = vst.msk [vmem:[#allocation2 + $0x90] sm:$0xff] %vm4857, %v4702
        %4877 = vst.msk [vmem:[#allocation2 + $0x98] sm:$0xff] %vm4857, %v4704
        %4878 = vst.msk [vmem:[#allocation2 + $0xa0] sm:$0xff] %vm4857, %v4706
        %4879 = vst.msk [vmem:[#allocation2 + $0xa8] sm:$0xff] %vm4857, %v4708
        %4880 = vst.msk [vmem:[#allocation2 + $0xb0] sm:$0xff] %vm4857, %v4710
        %4881 = vst.msk [vmem:[#allocation2 + $0xb8] sm:$0xff] %vm4857, %v4712
        %4882 = vst.msk [vmem:[#allocation2 + $0xc0] sm:$0xff] %vm4857, %v4714
        %4883 = vst.msk [vmem:[#allocation2 + $0xc8] sm:$0xff] %vm4857, %v4716
        %4884 = vst.msk [vmem:[#allocation2 + $0xd0] sm:$0xff] %vm4857, %v4718
        %4885 = vst.msk [vmem:[#allocation2 + $0xd8] sm:$0xff] %vm4857, %v4720
        %4886 = vst.msk [vmem:[#allocation2 + $0xe0] sm:$0xff] %vm4857, %v4722
        %4887 = vst.msk [vmem:[#allocation2 + $0xe8] sm:$0xff] %vm4857, %v4724
        %4888 = vst.msk [vmem:[#allocation2 + $0xf0] sm:$0xff] %vm4857, %v4726
        %4889 = vst.msk [vmem:[#allocation2 + $0xf8] sm:$0xff] %vm4857, %v4728
        %4890 = vst.msk [vmem:[#allocation2 + $0x100] sm:$0xff] %vm4857, %v4730
        %4891 = vst.msk [vmem:[#allocation2 + $0x108] sm:$0xff] %vm4857, %v4732
        %4892 = vst.msk [vmem:[#allocation2 + $0x110] sm:$0xff] %vm4857, %v4734
        %4893 = vst.msk [vmem:[#allocation2 + $0x118] sm:$0xff] %vm4857, %v4736
        %4894 = vst.msk [vmem:[#allocation2 + $0x120] sm:$0xff] %vm4857, %v4738
        %4895 = vst.msk [vmem:[#allocation2 + $0x128] sm:$0xff] %vm4857, %v4740
        %4896 = vst.msk [vmem:[#allocation2 + $0x130] sm:$0xff] %vm4857, %v4742
        %4897 = vst.msk [vmem:[#allocation2 + $0x138] sm:$0xff] %vm4857, %v4744
        %4898 = vst.msk [vmem:[#allocation2 + $0x140] sm:$0xff] %vm4857, %v4746
        %4899 = vst.msk [vmem:[#allocation2 + $0x148] sm:$0xff] %vm4857, %v4748
        %4900 = vst.msk [vmem:[#allocation2 + $0x150] sm:$0xff] %vm4857, %v4750
        %4901 = vst.msk [vmem:[#allocation2 + $0x158] sm:$0xff] %vm4857, %v4752
        %4902 = vst.msk [vmem:[#allocation2 + $0x160] sm:$0xff] %vm4857, %v4754
        %4903 = vst.msk [vmem:[#allocation2 + $0x168] sm:$0xff] %vm4857, %v4756
        %4904 = vst.msk [vmem:[#allocation2 + $0x170] sm:$0xff] %vm4857, %v4758
        %4905 = vst.msk [vmem:[#allocation2 + $0x178] sm:$0xff] %vm4857, %v4760
        %4906 = vst.msk [vmem:[#allocation2 + $0x180] sm:$0xff] %vm4857, %v4762
        %4907 = vst.msk [vmem:[#allocation2 + $0x188] sm:$0xff] %vm4857, %v4764
        %4908 = vst.msk [vmem:[#allocation2 + $0x190] sm:$0xff] %vm4857, %v4766
        %4909 = vst.msk [vmem:[#allocation2 + $0x198] sm:$0xff] %vm4857, %v4768
        %4910 = vst.msk [vmem:[#allocation2 + $0x1a0] sm:$0xff] %vm4857, %v4770
        %4911 = vst.msk [vmem:[#allocation2 + $0x1a8] sm:$0xff] %vm4857, %v4772
        %4912 = vst.msk [vmem:[#allocation2 + $0x1b0] sm:$0xff] %vm4857, %v4774
        %4913 = vst.msk [vmem:[#allocation2 + $0x1b8] sm:$0xff] %vm4857, %v4776
        %4914 = vst.msk [vmem:[#allocation2 + $0x1c0] sm:$0xff] %vm4857, %v4778
        %4915 = vst.msk [vmem:[#allocation2 + $0x1c8] sm:$0xff] %vm4857, %v4780
        %4916 = vst.msk [vmem:[#allocation2 + $0x1d0] sm:$0xff] %vm4857, %v4782
        %4917 = vst.msk [vmem:[#allocation2 + $0x1d8] sm:$0xff] %vm4857, %v4784
        %4918 = vst.msk [vmem:[#allocation2 + $0x1e0] sm:$0xff] %vm4857, %v4786
        %4919 = vst.msk [vmem:[#allocation2 + $0x1e8] sm:$0xff] %vm4857, %v4788
        %4920 = vst.msk [vmem:[#allocation2 + $0x1f0] sm:$0xff] %vm4857, %v4790
        %4921 = vst.msk [vmem:[#allocation2 + $0x1f8] sm:$0xff] %vm4857, %v4792
        %v4922 = vld [vmem:[%s4536 + $0x1] sm:$0xff]
        %v4923 = vld [vmem:[%s4536 + $0x11] sm:$0xff]
        %v4924 = vld [vmem:[%s4536 + $0x21] sm:$0xff]
        %v4925 = vld [vmem:[%s4536 + $0x31] sm:$0xff]
        %v4926 = vld [vmem:[%s4536 + $0x41] sm:$0xff]
        %v4927 = vld [vmem:[%s4536 + $0x51] sm:$0xff]
        %v4928 = vld [vmem:[%s4536 + $0x61] sm:$0xff]
        %v4929 = vld [vmem:[%s4536 + $0x71] sm:$0xff]
        %v4930 = vld [vmem:[%s4536 + $0xa1] sm:$0xff]
        %v4931 = vld [vmem:[%s4536 + $0xb1] sm:$0xff]
        %v4932 = vld [vmem:[%s4536 + $0xc1] sm:$0xff]
        %v4933 = vld [vmem:[%s4536 + $0xd1] sm:$0xff]
        %v4934 = vld [vmem:[%s4536 + $0xe1] sm:$0xff]
        %v4935 = vld [vmem:[%s4536 + $0xf1] sm:$0xff]
        %v4936 = vld [vmem:[%s4536 + $0x101] sm:$0xff]
        %v4937 = vld [vmem:[%s4536 + $0x111] sm:$0xff]
        %v4938 = vld [vmem:[%s4536 + $0x141] sm:$0xff]
        %v4939 = vld [vmem:[%s4536 + $0x151] sm:$0xff]
        %v4940 = vld [vmem:[%s4536 + $0x161] sm:$0xff]
        %v4941 = vld [vmem:[%s4536 + $0x171] sm:$0xff]
        %v4942 = vld [vmem:[%s4536 + $0x181] sm:$0xff]
        %v4943 = vld [vmem:[%s4536 + $0x191] sm:$0xff]
        %v4944 = vld [vmem:[%s4536 + $0x1a1] sm:$0xff]
        %v4945 = vld [vmem:[%s4536 + $0x1b1] sm:$0xff]
        %v4946 = vld [vmem:[%s4536 + $0x1e1] sm:$0xff]
        %v4947 = vld [vmem:[%s4536 + $0x1f1] sm:$0xff]
        %v4948 = vld [vmem:[%s4536 + $0x201] sm:$0xff]
        %v4949 = vld [vmem:[%s4536 + $0x211] sm:$0xff]
        %v4950 = vld [vmem:[%s4536 + $0x221] sm:$0xff]
        %v4951 = vld [vmem:[%s4536 + $0x231] sm:$0xff]
        %v4952 = vld [vmem:[%s4536 + $0x241] sm:$0xff]
        %v4953 = vld [vmem:[%s4536 + $0x251] sm:$0xff]
        %v4954 = vld [vmem:[%s4536 + $0x281] sm:$0xff]
        %v4955 = vld [vmem:[%s4536 + $0x291] sm:$0xff]
        %v4956 = vld [vmem:[%s4536 + $0x2a1] sm:$0xff]
        %v4957 = vld [vmem:[%s4536 + $0x2b1] sm:$0xff]
        %v4958 = vld [vmem:[%s4536 + $0x2c1] sm:$0xff]
        %v4959 = vld [vmem:[%s4536 + $0x2d1] sm:$0xff]
        %v4960 = vld [vmem:[%s4536 + $0x2e1] sm:$0xff]
        %v4961 = vld [vmem:[%s4536 + $0x2f1] sm:$0xff]
        %v4962 = vld [vmem:[%s4536 + $0x321] sm:$0xff]
        %v4963 = vld [vmem:[%s4536 + $0x331] sm:$0xff]
        %v4964 = vld [vmem:[%s4536 + $0x341] sm:$0xff]
        %v4965 = vld [vmem:[%s4536 + $0x351] sm:$0xff]
        %v4966 = vld [vmem:[%s4536 + $0x361] sm:$0xff]
        %v4967 = vld [vmem:[%s4536 + $0x371] sm:$0xff]
        %v4968 = vld [vmem:[%s4536 + $0x381] sm:$0xff]
        %v4969 = vld [vmem:[%s4536 + $0x391] sm:$0xff]
        %v4970 = vld [vmem:[%s4536 + $0x3c1] sm:$0xff]
        %v4971 = vld [vmem:[%s4536 + $0x3d1] sm:$0xff]
        %v4972 = vld [vmem:[%s4536 + $0x3e1] sm:$0xff]
        %v4973 = vld [vmem:[%s4536 + $0x3f1] sm:$0xff]
        %v4974 = vld [vmem:[%s4536 + $0x401] sm:$0xff]
        %v4975 = vld [vmem:[%s4536 + $0x411] sm:$0xff]
        %v4976 = vld [vmem:[%s4536 + $0x421] sm:$0xff]
        %v4977 = vld [vmem:[%s4536 + $0x431] sm:$0xff]
        %v4978 = vld [vmem:[%s4536 + $0x461] sm:$0xff]
        %v4979 = vld [vmem:[%s4536 + $0x471] sm:$0xff]
        %v4980 = vld [vmem:[%s4536 + $0x481] sm:$0xff]
        %v4981 = vld [vmem:[%s4536 + $0x491] sm:$0xff]
        %v4982 = vld [vmem:[%s4536 + $0x4a1] sm:$0xff]
        %v4983 = vld [vmem:[%s4536 + $0x4b1] sm:$0xff]
        %v4984 = vld [vmem:[%s4536 + $0x4c1] sm:$0xff]
        %v4985 = vld [vmem:[%s4536 + $0x4d1] sm:$0xff]
        %5050 = vrot.lane.b32.xlu0 %v4922, 52
        %v5051 = vpop.permute.xlu0 %5050
        %5052 = vrot.lane.b32.xlu0 %v4923, 52
        %v5053 = vpop.permute.xlu0 %5052
        %5054 = vrot.lane.b32.xlu0 %v4924, 52
        %v5055 = vpop.permute.xlu0 %5054
        %5056 = vrot.lane.b32.xlu0 %v4925, 52
        %v5057 = vpop.permute.xlu0 %5056
        %5058 = vrot.lane.b32.xlu0 %v4926, 52
        %v5059 = vpop.permute.xlu0 %5058
        %5060 = vrot.lane.b32.xlu0 %v4927, 52
        %v5061 = vpop.permute.xlu0 %5060
        %5062 = vrot.lane.b32.xlu0 %v4928, 52
        %v5063 = vpop.permute.xlu0 %5062
        %5064 = vrot.lane.b32.xlu0 %v4929, 52
        %v5065 = vpop.permute.xlu0 %5064
        %5066 = vrot.lane.b32.xlu0 %v4930, 52
        %v5067 = vpop.permute.xlu0 %5066
        %5068 = vrot.lane.b32.xlu0 %v4931, 52
        %v5069 = vpop.permute.xlu0 %5068
        %5070 = vrot.lane.b32.xlu0 %v4932, 52
        %v5071 = vpop.permute.xlu0 %5070
        %5072 = vrot.lane.b32.xlu0 %v4933, 52
        %v5073 = vpop.permute.xlu0 %5072
        %5074 = vrot.lane.b32.xlu0 %v4934, 52
        %v5075 = vpop.permute.xlu0 %5074
        %5076 = vrot.lane.b32.xlu0 %v4935, 52
        %v5077 = vpop.permute.xlu0 %5076
        %5078 = vrot.lane.b32.xlu0 %v4936, 52
        %v5079 = vpop.permute.xlu0 %5078
        %5080 = vrot.lane.b32.xlu0 %v4937, 52
        %v5081 = vpop.permute.xlu0 %5080
        %5082 = vrot.lane.b32.xlu0 %v4938, 52
        %v5083 = vpop.permute.xlu0 %5082
        %5084 = vrot.lane.b32.xlu0 %v4939, 52
        %v5085 = vpop.permute.xlu0 %5084
        %5086 = vrot.lane.b32.xlu0 %v4940, 52
        %v5087 = vpop.permute.xlu0 %5086
        %5088 = vrot.lane.b32.xlu0 %v4941, 52
        %v5089 = vpop.permute.xlu0 %5088
        %5090 = vrot.lane.b32.xlu0 %v4942, 52
        %v5091 = vpop.permute.xlu0 %5090
        %5092 = vrot.lane.b32.xlu0 %v4943, 52
        %v5093 = vpop.permute.xlu0 %5092
        %5094 = vrot.lane.b32.xlu0 %v4944, 52
        %v5095 = vpop.permute.xlu0 %5094
        %5096 = vrot.lane.b32.xlu0 %v4945, 52
        %v5097 = vpop.permute.xlu0 %5096
        %5098 = vrot.lane.b32.xlu0 %v4946, 52
        %v5099 = vpop.permute.xlu0 %5098
        %5100 = vrot.lane.b32.xlu0 %v4947, 52
        %v5101 = vpop.permute.xlu0 %5100
        %5102 = vrot.lane.b32.xlu0 %v4948, 52
        %v5103 = vpop.permute.xlu0 %5102
        %5104 = vrot.lane.b32.xlu0 %v4949, 52
        %v5105 = vpop.permute.xlu0 %5104
        %5106 = vrot.lane.b32.xlu0 %v4950, 52
        %v5107 = vpop.permute.xlu0 %5106
        %5108 = vrot.lane.b32.xlu0 %v4951, 52
        %v5109 = vpop.permute.xlu0 %5108
        %5110 = vrot.lane.b32.xlu0 %v4952, 52
        %v5111 = vpop.permute.xlu0 %5110
        %5112 = vrot.lane.b32.xlu0 %v4953, 52
        %v5113 = vpop.permute.xlu0 %5112
        %5114 = vrot.lane.b32.xlu0 %v4954, 52
        %v5115 = vpop.permute.xlu0 %5114
        %5116 = vrot.lane.b32.xlu0 %v4955, 52
        %v5117 = vpop.permute.xlu0 %5116
        %5118 = vrot.lane.b32.xlu0 %v4956, 52
        %v5119 = vpop.permute.xlu0 %5118
        %5120 = vrot.lane.b32.xlu0 %v4957, 52
        %v5121 = vpop.permute.xlu0 %5120
        %5122 = vrot.lane.b32.xlu0 %v4958, 52
        %v5123 = vpop.permute.xlu0 %5122
        %5124 = vrot.lane.b32.xlu0 %v4959, 52
        %v5125 = vpop.permute.xlu0 %5124
        %5126 = vrot.lane.b32.xlu0 %v4960, 52
        %v5127 = vpop.permute.xlu0 %5126
        %5128 = vrot.lane.b32.xlu0 %v4961, 52
        %v5129 = vpop.permute.xlu0 %5128
        %5130 = vrot.lane.b32.xlu0 %v4962, 52
        %v5131 = vpop.permute.xlu0 %5130
        %5132 = vrot.lane.b32.xlu0 %v4963, 52
        %v5133 = vpop.permute.xlu0 %5132
        %5134 = vrot.lane.b32.xlu0 %v4964, 52
        %v5135 = vpop.permute.xlu0 %5134
        %5136 = vrot.lane.b32.xlu0 %v4965, 52
        %v5137 = vpop.permute.xlu0 %5136
        %5138 = vrot.lane.b32.xlu0 %v4966, 52
        %v5139 = vpop.permute.xlu0 %5138
        %5140 = vrot.lane.b32.xlu0 %v4967, 52
        %v5141 = vpop.permute.xlu0 %5140
        %5142 = vrot.lane.b32.xlu0 %v4968, 52
        %v5143 = vpop.permute.xlu0 %5142
        %5144 = vrot.lane.b32.xlu0 %v4969, 52
        %v5145 = vpop.permute.xlu0 %5144
        %5146 = vrot.lane.b32.xlu0 %v4970, 52
        %v5147 = vpop.permute.xlu0 %5146
        %5148 = vrot.lane.b32.xlu0 %v4971, 52
        %v5149 = vpop.permute.xlu0 %5148
        %5150 = vrot.lane.b32.xlu0 %v4972, 52
        %v5151 = vpop.permute.xlu0 %5150
        %5152 = vrot.lane.b32.xlu0 %v4973, 52
        %v5153 = vpop.permute.xlu0 %5152
        %5154 = vrot.lane.b32.xlu0 %v4974, 52
        %v5155 = vpop.permute.xlu0 %5154
        %5156 = vrot.lane.b32.xlu0 %v4975, 52
        %v5157 = vpop.permute.xlu0 %5156
        %5158 = vrot.lane.b32.xlu0 %v4976, 52
        %v5159 = vpop.permute.xlu0 %5158
        %5160 = vrot.lane.b32.xlu0 %v4977, 52
        %v5161 = vpop.permute.xlu0 %5160
        %5162 = vrot.lane.b32.xlu0 %v4978, 52
        %v5163 = vpop.permute.xlu0 %5162
        %5164 = vrot.lane.b32.xlu0 %v4979, 52
        %v5165 = vpop.permute.xlu0 %5164
        %5166 = vrot.lane.b32.xlu0 %v4980, 52
        %v5167 = vpop.permute.xlu0 %5166
        %5168 = vrot.lane.b32.xlu0 %v4981, 52
        %v5169 = vpop.permute.xlu0 %5168
        %5170 = vrot.lane.b32.xlu0 %v4982, 52
        %v5171 = vpop.permute.xlu0 %5170
        %5172 = vrot.lane.b32.xlu0 %v4983, 52
        %v5173 = vpop.permute.xlu0 %5172
        %5174 = vrot.lane.b32.xlu0 %v4984, 52
        %v5175 = vpop.permute.xlu0 %5174
        %5176 = vrot.lane.b32.xlu0 %v4985, 52
        %v5177 = vpop.permute.xlu0 %5176
        %vm5242 = vcmask 458144
        %5243 = vst.msk [vmem:[#allocation2] sm:$0xff] %vm5242, %v5051
        %5244 = vst.msk [vmem:[#allocation2 + $0x8] sm:$0xff] %vm5242, %v5053
        %5245 = vst.msk [vmem:[#allocation2 + $0x10] sm:$0xff] %vm5242, %v5055
        %5246 = vst.msk [vmem:[#allocation2 + $0x18] sm:$0xff] %vm5242, %v5057
        %5247 = vst.msk [vmem:[#allocation2 + $0x20] sm:$0xff] %vm5242, %v5059
        %5248 = vst.msk [vmem:[#allocation2 + $0x28] sm:$0xff] %vm5242, %v5061
        %5249 = vst.msk [vmem:[#allocation2 + $0x30] sm:$0xff] %vm5242, %v5063
        %5250 = vst.msk [vmem:[#allocation2 + $0x38] sm:$0xff] %vm5242, %v5065
        %5251 = vst.msk [vmem:[#allocation2 + $0x40] sm:$0xff] %vm5242, %v5067
        %5252 = vst.msk [vmem:[#allocation2 + $0x48] sm:$0xff] %vm5242, %v5069
        %5253 = vst.msk [vmem:[#allocation2 + $0x50] sm:$0xff] %vm5242, %v5071
        %5254 = vst.msk [vmem:[#allocation2 + $0x58] sm:$0xff] %vm5242, %v5073
        %5255 = vst.msk [vmem:[#allocation2 + $0x60] sm:$0xff] %vm5242, %v5075
        %5256 = vst.msk [vmem:[#allocation2 + $0x68] sm:$0xff] %vm5242, %v5077
        %5257 = vst.msk [vmem:[#allocation2 + $0x70] sm:$0xff] %vm5242, %v5079
        %5258 = vst.msk [vmem:[#allocation2 + $0x78] sm:$0xff] %vm5242, %v5081
        %5259 = vst.msk [vmem:[#allocation2 + $0x80] sm:$0xff] %vm5242, %v5083
        %5260 = vst.msk [vmem:[#allocation2 + $0x88] sm:$0xff] %vm5242, %v5085
        %5261 = vst.msk [vmem:[#allocation2 + $0x90] sm:$0xff] %vm5242, %v5087
        %5262 = vst.msk [vmem:[#allocation2 + $0x98] sm:$0xff] %vm5242, %v5089
        %5263 = vst.msk [vmem:[#allocation2 + $0xa0] sm:$0xff] %vm5242, %v5091
        %5264 = vst.msk [vmem:[#allocation2 + $0xa8] sm:$0xff] %vm5242, %v5093
        %5265 = vst.msk [vmem:[#allocation2 + $0xb0] sm:$0xff] %vm5242, %v5095
        %5266 = vst.msk [vmem:[#allocation2 + $0xb8] sm:$0xff] %vm5242, %v5097
        %5267 = vst.msk [vmem:[#allocation2 + $0xc0] sm:$0xff] %vm5242, %v5099
        %5268 = vst.msk [vmem:[#allocation2 + $0xc8] sm:$0xff] %vm5242, %v5101
        %5269 = vst.msk [vmem:[#allocation2 + $0xd0] sm:$0xff] %vm5242, %v5103
        %5270 = vst.msk [vmem:[#allocation2 + $0xd8] sm:$0xff] %vm5242, %v5105
        %5271 = vst.msk [vmem:[#allocation2 + $0xe0] sm:$0xff] %vm5242, %v5107
        %5272 = vst.msk [vmem:[#allocation2 + $0xe8] sm:$0xff] %vm5242, %v5109
        %5273 = vst.msk [vmem:[#allocation2 + $0xf0] sm:$0xff] %vm5242, %v5111
        %5274 = vst.msk [vmem:[#allocation2 + $0xf8] sm:$0xff] %vm5242, %v5113
        %5275 = vst.msk [vmem:[#allocation2 + $0x100] sm:$0xff] %vm5242, %v5115
        %5276 = vst.msk [vmem:[#allocation2 + $0x108] sm:$0xff] %vm5242, %v5117
        %5277 = vst.msk [vmem:[#allocation2 + $0x110] sm:$0xff] %vm5242, %v5119
        %5278 = vst.msk [vmem:[#allocation2 + $0x118] sm:$0xff] %vm5242, %v5121
        %5279 = vst.msk [vmem:[#allocation2 + $0x120] sm:$0xff] %vm5242, %v5123
        %5280 = vst.msk [vmem:[#allocation2 + $0x128] sm:$0xff] %vm5242, %v5125
        %5281 = vst.msk [vmem:[#allocation2 + $0x130] sm:$0xff] %vm5242, %v5127
        %5282 = vst.msk [vmem:[#allocation2 + $0x138] sm:$0xff] %vm5242, %v5129
        %5283 = vst.msk [vmem:[#allocation2 + $0x140] sm:$0xff] %vm5242, %v5131
        %5284 = vst.msk [vmem:[#allocation2 + $0x148] sm:$0xff] %vm5242, %v5133
        %5285 = vst.msk [vmem:[#allocation2 + $0x150] sm:$0xff] %vm5242, %v5135
        %5286 = vst.msk [vmem:[#allocation2 + $0x158] sm:$0xff] %vm5242, %v5137
        %5287 = vst.msk [vmem:[#allocation2 + $0x160] sm:$0xff] %vm5242, %v5139
        %5288 = vst.msk [vmem:[#allocation2 + $0x168] sm:$0xff] %vm5242, %v5141
        %5289 = vst.msk [vmem:[#allocation2 + $0x170] sm:$0xff] %vm5242, %v5143
        %5290 = vst.msk [vmem:[#allocation2 + $0x178] sm:$0xff] %vm5242, %v5145
        %5291 = vst.msk [vmem:[#allocation2 + $0x180] sm:$0xff] %vm5242, %v5147
        %5292 = vst.msk [vmem:[#allocation2 + $0x188] sm:$0xff] %vm5242, %v5149
        %5293 = vst.msk [vmem:[#allocation2 + $0x190] sm:$0xff] %vm5242, %v5151
        %5294 = vst.msk [vmem:[#allocation2 + $0x198] sm:$0xff] %vm5242, %v5153
        %5295 = vst.msk [vmem:[#allocation2 + $0x1a0] sm:$0xff] %vm5242, %v5155
        %5296 = vst.msk [vmem:[#allocation2 + $0x1a8] sm:$0xff] %vm5242, %v5157
        %5297 = vst.msk [vmem:[#allocation2 + $0x1b0] sm:$0xff] %vm5242, %v5159
        %5298 = vst.msk [vmem:[#allocation2 + $0x1b8] sm:$0xff] %vm5242, %v5161
        %5299 = vst.msk [vmem:[#allocation2 + $0x1c0] sm:$0xff] %vm5242, %v5163
        %5300 = vst.msk [vmem:[#allocation2 + $0x1c8] sm:$0xff] %vm5242, %v5165
        %5301 = vst.msk [vmem:[#allocation2 + $0x1d0] sm:$0xff] %vm5242, %v5167
        %5302 = vst.msk [vmem:[#allocation2 + $0x1d8] sm:$0xff] %vm5242, %v5169
        %5303 = vst.msk [vmem:[#allocation2 + $0x1e0] sm:$0xff] %vm5242, %v5171
        %5304 = vst.msk [vmem:[#allocation2 + $0x1e8] sm:$0xff] %vm5242, %v5173
        %5305 = vst.msk [vmem:[#allocation2 + $0x1f0] sm:$0xff] %vm5242, %v5175
        %5306 = vst.msk [vmem:[#allocation2 + $0x1f8] sm:$0xff] %vm5242, %v5177
        %v5307 = vld [vmem:[%s4536 + $0x2] sm:$0xff]
        %v5308 = vld [vmem:[%s4536 + $0x12] sm:$0xff]
        %v5309 = vld [vmem:[%s4536 + $0x22] sm:$0xff]
        %v5310 = vld [vmem:[%s4536 + $0x32] sm:$0xff]
        %v5311 = vld [vmem:[%s4536 + $0x42] sm:$0xff]
        %v5312 = vld [vmem:[%s4536 + $0x52] sm:$0xff]
        %v5313 = vld [vmem:[%s4536 + $0x62] sm:$0xff]
        %v5314 = vld [vmem:[%s4536 + $0x72] sm:$0xff]
        %v5315 = vld [vmem:[%s4536 + $0xa2] sm:$0xff]
        %v5316 = vld [vmem:[%s4536 + $0xb2] sm:$0xff]
        %v5317 = vld [vmem:[%s4536 + $0xc2] sm:$0xff]
        %v5318 = vld [vmem:[%s4536 + $0xd2] sm:$0xff]
        %v5319 = vld [vmem:[%s4536 + $0xe2] sm:$0xff]
        %v5320 = vld [vmem:[%s4536 + $0xf2] sm:$0xff]
        %v5321 = vld [vmem:[%s4536 + $0x102] sm:$0xff]
        %v5322 = vld [vmem:[%s4536 + $0x112] sm:$0xff]
        %v5323 = vld [vmem:[%s4536 + $0x142] sm:$0xff]
        %v5324 = vld [vmem:[%s4536 + $0x152] sm:$0xff]
        %v5325 = vld [vmem:[%s4536 + $0x162] sm:$0xff]
        %v5326 = vld [vmem:[%s4536 + $0x172] sm:$0xff]
        %v5327 = vld [vmem:[%s4536 + $0x182] sm:$0xff]
        %v5328 = vld [vmem:[%s4536 + $0x192] sm:$0xff]
        %v5329 = vld [vmem:[%s4536 + $0x1a2] sm:$0xff]
        %v5330 = vld [vmem:[%s4536 + $0x1b2] sm:$0xff]
        %v5331 = vld [vmem:[%s4536 + $0x1e2] sm:$0xff]
        %v5332 = vld [vmem:[%s4536 + $0x1f2] sm:$0xff]
        %v5333 = vld [vmem:[%s4536 + $0x202] sm:$0xff]
        %v5334 = vld [vmem:[%s4536 + $0x212] sm:$0xff]
        %v5335 = vld [vmem:[%s4536 + $0x222] sm:$0xff]
        %v5336 = vld [vmem:[%s4536 + $0x232] sm:$0xff]
        %v5337 = vld [vmem:[%s4536 + $0x242] sm:$0xff]
        %v5338 = vld [vmem:[%s4536 + $0x252] sm:$0xff]
        %v5339 = vld [vmem:[%s4536 + $0x282] sm:$0xff]
        %v5340 = vld [vmem:[%s4536 + $0x292] sm:$0xff]
        %v5341 = vld [vmem:[%s4536 + $0x2a2] sm:$0xff]
        %v5342 = vld [vmem:[%s4536 + $0x2b2] sm:$0xff]
        %v5343 = vld [vmem:[%s4536 + $0x2c2] sm:$0xff]
        %v5344 = vld [vmem:[%s4536 + $0x2d2] sm:$0xff]
        %v5345 = vld [vmem:[%s4536 + $0x2e2] sm:$0xff]
        %v5346 = vld [vmem:[%s4536 + $0x2f2] sm:$0xff]
        %v5347 = vld [vmem:[%s4536 + $0x322] sm:$0xff]
        %v5348 = vld [vmem:[%s4536 + $0x332] sm:$0xff]
        %v5349 = vld [vmem:[%s4536 + $0x342] sm:$0xff]
        %v5350 = vld [vmem:[%s4536 + $0x352] sm:$0xff]
        %v5351 = vld [vmem:[%s4536 + $0x362] sm:$0xff]
        %v5352 = vld [vmem:[%s4536 + $0x372] sm:$0xff]
        %v5353 = vld [vmem:[%s4536 + $0x382] sm:$0xff]
        %v5354 = vld [vmem:[%s4536 + $0x392] sm:$0xff]
        %v5355 = vld [vmem:[%s4536 + $0x3c2] sm:$0xff]
        %v5356 = vld [vmem:[%s4536 + $0x3d2] sm:$0xff]
        %v5357 = vld [vmem:[%s4536 + $0x3e2] sm:$0xff]
        %v5358 = vld [vmem:[%s4536 + $0x3f2] sm:$0xff]
        %v5359 = vld [vmem:[%s4536 + $0x402] sm:$0xff]
        %v5360 = vld [vmem:[%s4536 + $0x412] sm:$0xff]
        %v5361 = vld [vmem:[%s4536 + $0x422] sm:$0xff]
        %v5362 = vld [vmem:[%s4536 + $0x432] sm:$0xff]
        %v5363 = vld [vmem:[%s4536 + $0x462] sm:$0xff]
        %v5364 = vld [vmem:[%s4536 + $0x472] sm:$0xff]
        %v5365 = vld [vmem:[%s4536 + $0x482] sm:$0xff]
        %v5366 = vld [vmem:[%s4536 + $0x492] sm:$0xff]
        %v5367 = vld [vmem:[%s4536 + $0x4a2] sm:$0xff]
        %v5368 = vld [vmem:[%s4536 + $0x4b2] sm:$0xff]
        %v5369 = vld [vmem:[%s4536 + $0x4c2] sm:$0xff]
        %v5370 = vld [vmem:[%s4536 + $0x4d2] sm:$0xff]
        %5435 = vrot.lane.b32.xlu0 %v5307, 56
        %v5436 = vpop.permute.xlu0 %5435
        %5437 = vrot.lane.b32.xlu0 %v5308, 56
        %v5438 = vpop.permute.xlu0 %5437
        %5439 = vrot.lane.b32.xlu0 %v5309, 56
        %v5440 = vpop.permute.xlu0 %5439
        %5441 = vrot.lane.b32.xlu0 %v5310, 56
        %v5442 = vpop.permute.xlu0 %5441
        %5443 = vrot.lane.b32.xlu0 %v5311, 56
        %v5444 = vpop.permute.xlu0 %5443
        %5445 = vrot.lane.b32.xlu0 %v5312, 56
        %v5446 = vpop.permute.xlu0 %5445
        %5447 = vrot.lane.b32.xlu0 %v5313, 56
        %v5448 = vpop.permute.xlu0 %5447
        %5449 = vrot.lane.b32.xlu0 %v5314, 56
        %v5450 = vpop.permute.xlu0 %5449
        %5451 = vrot.lane.b32.xlu0 %v5315, 56
        %v5452 = vpop.permute.xlu0 %5451
        %5453 = vrot.lane.b32.xlu0 %v5316, 56
        %v5454 = vpop.permute.xlu0 %5453
        %5455 = vrot.lane.b32.xlu0 %v5317, 56
        %v5456 = vpop.permute.xlu0 %5455
        %5457 = vrot.lane.b32.xlu0 %v5318, 56
        %v5458 = vpop.permute.xlu0 %5457
        %5459 = vrot.lane.b32.xlu0 %v5319, 56
        %v5460 = vpop.permute.xlu0 %5459
        %5461 = vrot.lane.b32.xlu0 %v5320, 56
        %v5462 = vpop.permute.xlu0 %5461
        %5463 = vrot.lane.b32.xlu0 %v5321, 56
        %v5464 = vpop.permute.xlu0 %5463
        %5465 = vrot.lane.b32.xlu0 %v5322, 56
        %v5466 = vpop.permute.xlu0 %5465
        %5467 = vrot.lane.b32.xlu0 %v5323, 56
        %v5468 = vpop.permute.xlu0 %5467
        %5469 = vrot.lane.b32.xlu0 %v5324, 56
        %v5470 = vpop.permute.xlu0 %5469
        %5471 = vrot.lane.b32.xlu0 %v5325, 56
        %v5472 = vpop.permute.xlu0 %5471
        %5473 = vrot.lane.b32.xlu0 %v5326, 56
        %v5474 = vpop.permute.xlu0 %5473
        %5475 = vrot.lane.b32.xlu0 %v5327, 56
        %v5476 = vpop.permute.xlu0 %5475
        %5477 = vrot.lane.b32.xlu0 %v5328, 56
        %v5478 = vpop.permute.xlu0 %5477
        %5479 = vrot.lane.b32.xlu0 %v5329, 56
        %v5480 = vpop.permute.xlu0 %5479
        %5481 = vrot.lane.b32.xlu0 %v5330, 56
        %v5482 = vpop.permute.xlu0 %5481
        %5483 = vrot.lane.b32.xlu0 %v5331, 56
        %v5484 = vpop.permute.xlu0 %5483
        %5485 = vrot.lane.b32.xlu0 %v5332, 56
        %v5486 = vpop.permute.xlu0 %5485
        %5487 = vrot.lane.b32.xlu0 %v5333, 56
        %v5488 = vpop.permute.xlu0 %5487
        %5489 = vrot.lane.b32.xlu0 %v5334, 56
        %v5490 = vpop.permute.xlu0 %5489
        %5491 = vrot.lane.b32.xlu0 %v5335, 56
        %v5492 = vpop.permute.xlu0 %5491
        %5493 = vrot.lane.b32.xlu0 %v5336, 56
        %v5494 = vpop.permute.xlu0 %5493
        %5495 = vrot.lane.b32.xlu0 %v5337, 56
        %v5496 = vpop.permute.xlu0 %5495
        %5497 = vrot.lane.b32.xlu0 %v5338, 56
        %v5498 = vpop.permute.xlu0 %5497
        %5499 = vrot.lane.b32.xlu0 %v5339, 56
        %v5500 = vpop.permute.xlu0 %5499
        %5501 = vrot.lane.b32.xlu0 %v5340, 56
        %v5502 = vpop.permute.xlu0 %5501
        %5503 = vrot.lane.b32.xlu0 %v5341, 56
        %v5504 = vpop.permute.xlu0 %5503
        %5505 = vrot.lane.b32.xlu0 %v5342, 56
        %v5506 = vpop.permute.xlu0 %5505
        %5507 = vrot.lane.b32.xlu0 %v5343, 56
        %v5508 = vpop.permute.xlu0 %5507
        %5509 = vrot.lane.b32.xlu0 %v5344, 56
        %v5510 = vpop.permute.xlu0 %5509
        %5511 = vrot.lane.b32.xlu0 %v5345, 56
        %v5512 = vpop.permute.xlu0 %5511
        %5513 = vrot.lane.b32.xlu0 %v5346, 56
        %v5514 = vpop.permute.xlu0 %5513
        %5515 = vrot.lane.b32.xlu0 %v5347, 56
        %v5516 = vpop.permute.xlu0 %5515
        %5517 = vrot.lane.b32.xlu0 %v5348, 56
        %v5518 = vpop.permute.xlu0 %5517
        %5519 = vrot.lane.b32.xlu0 %v5349, 56
        %v5520 = vpop.permute.xlu0 %5519
        %5521 = vrot.lane.b32.xlu0 %v5350, 56
        %v5522 = vpop.permute.xlu0 %5521
        %5523 = vrot.lane.b32.xlu0 %v5351, 56
        %v5524 = vpop.permute.xlu0 %5523
        %5525 = vrot.lane.b32.xlu0 %v5352, 56
        %v5526 = vpop.permute.xlu0 %5525
        %5527 = vrot.lane.b32.xlu0 %v5353, 56
        %v5528 = vpop.permute.xlu0 %5527
        %5529 = vrot.lane.b32.xlu0 %v5354, 56
        %v5530 = vpop.permute.xlu0 %5529
        %5531 = vrot.lane.b32.xlu0 %v5355, 56
        %v5532 = vpop.permute.xlu0 %5531
        %5533 = vrot.lane.b32.xlu0 %v5356, 56
        %v5534 = vpop.permute.xlu0 %5533
        %5535 = vrot.lane.b32.xlu0 %v5357, 56
        %v5536 = vpop.permute.xlu0 %5535
        %5537 = vrot.lane.b32.xlu0 %v5358, 56
        %v5538 = vpop.permute.xlu0 %5537
        %5539 = vrot.lane.b32.xlu0 %v5359, 56
        %v5540 = vpop.permute.xlu0 %5539
        %5541 = vrot.lane.b32.xlu0 %v5360, 56
        %v5542 = vpop.permute.xlu0 %5541
        %5543 = vrot.lane.b32.xlu0 %v5361, 56
        %v5544 = vpop.permute.xlu0 %5543
        %5545 = vrot.lane.b32.xlu0 %v5362, 56
        %v5546 = vpop.permute.xlu0 %5545
        %5547 = vrot.lane.b32.xlu0 %v5363, 56
        %v5548 = vpop.permute.xlu0 %5547
        %5549 = vrot.lane.b32.xlu0 %v5364, 56
        %v5550 = vpop.permute.xlu0 %5549
        %5551 = vrot.lane.b32.xlu0 %v5365, 56
        %v5552 = vpop.permute.xlu0 %5551
        %5553 = vrot.lane.b32.xlu0 %v5366, 56
        %v5554 = vpop.permute.xlu0 %5553
        %5555 = vrot.lane.b32.xlu0 %v5367, 56
        %v5556 = vpop.permute.xlu0 %5555
        %5557 = vrot.lane.b32.xlu0 %v5368, 56
        %v5558 = vpop.permute.xlu0 %5557
        %5559 = vrot.lane.b32.xlu0 %v5369, 56
        %v5560 = vpop.permute.xlu0 %5559
        %5561 = vrot.lane.b32.xlu0 %v5370, 56
        %v5562 = vpop.permute.xlu0 %5561
        %vm5627 = vcmask 490944
        %5628 = vst.msk [vmem:[#allocation2] sm:$0xff] %vm5627, %v5436
        %5629 = vst.msk [vmem:[#allocation2 + $0x8] sm:$0xff] %vm5627, %v5438
        %5630 = vst.msk [vmem:[#allocation2 + $0x10] sm:$0xff] %vm5627, %v5440
        %5631 = vst.msk [vmem:[#allocation2 + $0x18] sm:$0xff] %vm5627, %v5442
        %5632 = vst.msk [vmem:[#allocation2 + $0x20] sm:$0xff] %vm5627, %v5444
        %5633 = vst.msk [vmem:[#allocation2 + $0x28] sm:$0xff] %vm5627, %v5446
        %5634 = vst.msk [vmem:[#allocation2 + $0x30] sm:$0xff] %vm5627, %v5448
        %5635 = vst.msk [vmem:[#allocation2 + $0x38] sm:$0xff] %vm5627, %v5450
        %5636 = vst.msk [vmem:[#allocation2 + $0x40] sm:$0xff] %vm5627, %v5452
        %5637 = vst.msk [vmem:[#allocation2 + $0x48] sm:$0xff] %vm5627, %v5454
        %5638 = vst.msk [vmem:[#allocation2 + $0x50] sm:$0xff] %vm5627, %v5456
        %5639 = vst.msk [vmem:[#allocation2 + $0x58] sm:$0xff] %vm5627, %v5458
        %5640 = vst.msk [vmem:[#allocation2 + $0x60] sm:$0xff] %vm5627, %v5460
        %5641 = vst.msk [vmem:[#allocation2 + $0x68] sm:$0xff] %vm5627, %v5462
        %5642 = vst.msk [vmem:[#allocation2 + $0x70] sm:$0xff] %vm5627, %v5464
        %5643 = vst.msk [vmem:[#allocation2 + $0x78] sm:$0xff] %vm5627, %v5466
        %5644 = vst.msk [vmem:[#allocation2 + $0x80] sm:$0xff] %vm5627, %v5468
        %5645 = vst.msk [vmem:[#allocation2 + $0x88] sm:$0xff] %vm5627, %v5470
        %5646 = vst.msk [vmem:[#allocation2 + $0x90] sm:$0xff] %vm5627, %v5472
        %5647 = vst.msk [vmem:[#allocation2 + $0x98] sm:$0xff] %vm5627, %v5474
        %5648 = vst.msk [vmem:[#allocation2 + $0xa0] sm:$0xff] %vm5627, %v5476
        %5649 = vst.msk [vmem:[#allocation2 + $0xa8] sm:$0xff] %vm5627, %v5478
        %5650 = vst.msk [vmem:[#allocation2 + $0xb0] sm:$0xff] %vm5627, %v5480
        %5651 = vst.msk [vmem:[#allocation2 + $0xb8] sm:$0xff] %vm5627, %v5482
        %5652 = vst.msk [vmem:[#allocation2 + $0xc0] sm:$0xff] %vm5627, %v5484
        %5653 = vst.msk [vmem:[#allocation2 + $0xc8] sm:$0xff] %vm5627, %v5486
        %5654 = vst.msk [vmem:[#allocation2 + $0xd0] sm:$0xff] %vm5627, %v5488
        %5655 = vst.msk [vmem:[#allocation2 + $0xd8] sm:$0xff] %vm5627, %v5490
        %5656 = vst.msk [vmem:[#allocation2 + $0xe0] sm:$0xff] %vm5627, %v5492
        %5657 = vst.msk [vmem:[#allocation2 + $0xe8] sm:$0xff] %vm5627, %v5494
        %5658 = vst.msk [vmem:[#allocation2 + $0xf0] sm:$0xff] %vm5627, %v5496
        %5659 = vst.msk [vmem:[#allocation2 + $0xf8] sm:$0xff] %vm5627, %v5498
        %5660 = vst.msk [vmem:[#allocation2 + $0x100] sm:$0xff] %vm5627, %v5500
        %5661 = vst.msk [vmem:[#allocation2 + $0x108] sm:$0xff] %vm5627, %v5502
        %5662 = vst.msk [vmem:[#allocation2 + $0x110] sm:$0xff] %vm5627, %v5504
        %5663 = vst.msk [vmem:[#allocation2 + $0x118] sm:$0xff] %vm5627, %v5506
        %5664 = vst.msk [vmem:[#allocation2 + $0x120] sm:$0xff] %vm5627, %v5508
        %5665 = vst.msk [vmem:[#allocation2 + $0x128] sm:$0xff] %vm5627, %v5510
        %5666 = vst.msk [vmem:[#allocation2 + $0x130] sm:$0xff] %vm5627, %v5512
        %5667 = vst.msk [vmem:[#allocation2 + $0x138] sm:$0xff] %vm5627, %v5514
        %5668 = vst.msk [vmem:[#allocation2 + $0x140] sm:$0xff] %vm5627, %v5516
        %5669 = vst.msk [vmem:[#allocation2 + $0x148] sm:$0xff] %vm5627, %v5518
        %5670 = vst.msk [vmem:[#allocation2 + $0x150] sm:$0xff] %vm5627, %v5520
        %5671 = vst.msk [vmem:[#allocation2 + $0x158] sm:$0xff] %vm5627, %v5522
        %5672 = vst.msk [vmem:[#allocation2 + $0x160] sm:$0xff] %vm5627, %v5524
        %5673 = vst.msk [vmem:[#allocation2 + $0x168] sm:$0xff] %vm5627, %v5526
        %5674 = vst.msk [vmem:[#allocation2 + $0x170] sm:$0xff] %vm5627, %v5528
        %5675 = vst.msk [vmem:[#allocation2 + $0x178] sm:$0xff] %vm5627, %v5530
        %5676 = vst.msk [vmem:[#allocation2 + $0x180] sm:$0xff] %vm5627, %v5532
        %5677 = vst.msk [vmem:[#allocation2 + $0x188] sm:$0xff] %vm5627, %v5534
        %5678 = vst.msk [vmem:[#allocation2 + $0x190] sm:$0xff] %vm5627, %v5536
        %5679 = vst.msk [vmem:[#allocation2 + $0x198] sm:$0xff] %vm5627, %v5538
        %5680 = vst.msk [vmem:[#allocation2 + $0x1a0] sm:$0xff] %vm5627, %v5540
        %5681 = vst.msk [vmem:[#allocation2 + $0x1a8] sm:$0xff] %vm5627, %v5542
        %5682 = vst.msk [vmem:[#allocation2 + $0x1b0] sm:$0xff] %vm5627, %v5544
        %5683 = vst.msk [vmem:[#allocation2 + $0x1b8] sm:$0xff] %vm5627, %v5546
        %5684 = vst.msk [vmem:[#allocation2 + $0x1c0] sm:$0xff] %vm5627, %v5548
        %5685 = vst.msk [vmem:[#allocation2 + $0x1c8] sm:$0xff] %vm5627, %v5550
        %5686 = vst.msk [vmem:[#allocation2 + $0x1d0] sm:$0xff] %vm5627, %v5552
        %5687 = vst.msk [vmem:[#allocation2 + $0x1d8] sm:$0xff] %vm5627, %v5554
        %5688 = vst.msk [vmem:[#allocation2 + $0x1e0] sm:$0xff] %vm5627, %v5556
        %5689 = vst.msk [vmem:[#allocation2 + $0x1e8] sm:$0xff] %vm5627, %v5558
        %5690 = vst.msk [vmem:[#allocation2 + $0x1f0] sm:$0xff] %vm5627, %v5560
        %5691 = vst.msk [vmem:[#allocation2 + $0x1f8] sm:$0xff] %vm5627, %v5562
        %s5692 = scalar_lea.vmem %s168, 192
        %v5693 = vld [vmem:[%s5692] sm:$0xff]
        %v5694 = vld [vmem:[%s5692 + $0x10] sm:$0xff]
        %v5695 = vld [vmem:[%s5692 + $0x20] sm:$0xff]
        %v5696 = vld [vmem:[%s5692 + $0x30] sm:$0xff]
        %v5697 = vld [vmem:[%s5692 + $0x40] sm:$0xff]
        %v5698 = vld [vmem:[%s5692 + $0x50] sm:$0xff]
        %v5699 = vld [vmem:[%s5692 + $0x60] sm:$0xff]
        %v5700 = vld [vmem:[%s5692 + $0x70] sm:$0xff]
        %v5701 = vld [vmem:[%s5692 + $0xa0] sm:$0xff]
        %v5702 = vld [vmem:[%s5692 + $0xb0] sm:$0xff]
        %v5703 = vld [vmem:[%s5692 + $0xc0] sm:$0xff]
        %v5704 = vld [vmem:[%s5692 + $0xd0] sm:$0xff]
        %v5705 = vld [vmem:[%s5692 + $0xe0] sm:$0xff]
        %v5706 = vld [vmem:[%s5692 + $0xf0] sm:$0xff]
        %v5707 = vld [vmem:[%s5692 + $0x100] sm:$0xff]
        %v5708 = vld [vmem:[%s5692 + $0x110] sm:$0xff]
        %v5709 = vld [vmem:[%s5692 + $0x140] sm:$0xff]
        %v5710 = vld [vmem:[%s5692 + $0x150] sm:$0xff]
        %v5711 = vld [vmem:[%s5692 + $0x160] sm:$0xff]
        %v5712 = vld [vmem:[%s5692 + $0x170] sm:$0xff]
        %v5713 = vld [vmem:[%s5692 + $0x180] sm:$0xff]
        %v5714 = vld [vmem:[%s5692 + $0x190] sm:$0xff]
        %v5715 = vld [vmem:[%s5692 + $0x1a0] sm:$0xff]
        %v5716 = vld [vmem:[%s5692 + $0x1b0] sm:$0xff]
        %v5717 = vld [vmem:[%s5692 + $0x1e0] sm:$0xff]
        %v5718 = vld [vmem:[%s5692 + $0x1f0] sm:$0xff]
        %v5719 = vld [vmem:[%s5692 + $0x200] sm:$0xff]
        %v5720 = vld [vmem:[%s5692 + $0x210] sm:$0xff]
        %v5721 = vld [vmem:[%s5692 + $0x220] sm:$0xff]
        %v5722 = vld [vmem:[%s5692 + $0x230] sm:$0xff]
        %v5723 = vld [vmem:[%s5692 + $0x240] sm:$0xff]
        %v5724 = vld [vmem:[%s5692 + $0x250] sm:$0xff]
        %v5725 = vld [vmem:[%s5692 + $0x280] sm:$0xff]
        %v5726 = vld [vmem:[%s5692 + $0x290] sm:$0xff]
        %v5727 = vld [vmem:[%s5692 + $0x2a0] sm:$0xff]
        %v5728 = vld [vmem:[%s5692 + $0x2b0] sm:$0xff]
        %v5729 = vld [vmem:[%s5692 + $0x2c0] sm:$0xff]
        %v5730 = vld [vmem:[%s5692 + $0x2d0] sm:$0xff]
        %v5731 = vld [vmem:[%s5692 + $0x2e0] sm:$0xff]
        %v5732 = vld [vmem:[%s5692 + $0x2f0] sm:$0xff]
        %v5733 = vld [vmem:[%s5692 + $0x320] sm:$0xff]
        %v5734 = vld [vmem:[%s5692 + $0x330] sm:$0xff]
        %v5735 = vld [vmem:[%s5692 + $0x340] sm:$0xff]
        %v5736 = vld [vmem:[%s5692 + $0x350] sm:$0xff]
        %v5737 = vld [vmem:[%s5692 + $0x360] sm:$0xff]
        %v5738 = vld [vmem:[%s5692 + $0x370] sm:$0xff]
        %v5739 = vld [vmem:[%s5692 + $0x380] sm:$0xff]
        %v5740 = vld [vmem:[%s5692 + $0x390] sm:$0xff]
        %v5741 = vld [vmem:[%s5692 + $0x3c0] sm:$0xff]
        %v5742 = vld [vmem:[%s5692 + $0x3d0] sm:$0xff]
        %v5743 = vld [vmem:[%s5692 + $0x3e0] sm:$0xff]
        %v5744 = vld [vmem:[%s5692 + $0x3f0] sm:$0xff]
        %v5745 = vld [vmem:[%s5692 + $0x400] sm:$0xff]
        %v5746 = vld [vmem:[%s5692 + $0x410] sm:$0xff]
        %v5747 = vld [vmem:[%s5692 + $0x420] sm:$0xff]
        %v5748 = vld [vmem:[%s5692 + $0x430] sm:$0xff]
        %v5749 = vld [vmem:[%s5692 + $0x460] sm:$0xff]
        %v5750 = vld [vmem:[%s5692 + $0x470] sm:$0xff]
        %v5751 = vld [vmem:[%s5692 + $0x480] sm:$0xff]
        %v5752 = vld [vmem:[%s5692 + $0x490] sm:$0xff]
        %v5753 = vld [vmem:[%s5692 + $0x4a0] sm:$0xff]
        %v5754 = vld [vmem:[%s5692 + $0x4b0] sm:$0xff]
        %v5755 = vld [vmem:[%s5692 + $0x4c0] sm:$0xff]
        %v5756 = vld [vmem:[%s5692 + $0x4d0] sm:$0xff]
        %5821 = vrot.lane.b32.xlu0 %v5693, 60
        %v5822 = vpop.permute.xlu0 %5821
        %5823 = vrot.lane.b32.xlu0 %v5694, 60
        %v5824 = vpop.permute.xlu0 %5823
        %5825 = vrot.lane.b32.xlu0 %v5695, 60
        %v5826 = vpop.permute.xlu0 %5825
        %5827 = vrot.lane.b32.xlu0 %v5696, 60
        %v5828 = vpop.permute.xlu0 %5827
        %5829 = vrot.lane.b32.xlu0 %v5697, 60
        %v5830 = vpop.permute.xlu0 %5829
        %5831 = vrot.lane.b32.xlu0 %v5698, 60
        %v5832 = vpop.permute.xlu0 %5831
        %5833 = vrot.lane.b32.xlu0 %v5699, 60
        %v5834 = vpop.permute.xlu0 %5833
        %5835 = vrot.lane.b32.xlu0 %v5700, 60
        %v5836 = vpop.permute.xlu0 %5835
        %5837 = vrot.lane.b32.xlu0 %v5701, 60
        %v5838 = vpop.permute.xlu0 %5837
        %5839 = vrot.lane.b32.xlu0 %v5702, 60
        %v5840 = vpop.permute.xlu0 %5839
        %5841 = vrot.lane.b32.xlu0 %v5703, 60
        %v5842 = vpop.permute.xlu0 %5841
        %5843 = vrot.lane.b32.xlu0 %v5704, 60
        %v5844 = vpop.permute.xlu0 %5843
        %5845 = vrot.lane.b32.xlu0 %v5705, 60
        %v5846 = vpop.permute.xlu0 %5845
        %5847 = vrot.lane.b32.xlu0 %v5706, 60
        %v5848 = vpop.permute.xlu0 %5847
        %5849 = vrot.lane.b32.xlu0 %v5707, 60
        %v5850 = vpop.permute.xlu0 %5849
        %5851 = vrot.lane.b32.xlu0 %v5708, 60
        %v5852 = vpop.permute.xlu0 %5851
        %5853 = vrot.lane.b32.xlu0 %v5709, 60
        %v5854 = vpop.permute.xlu0 %5853
        %5855 = vrot.lane.b32.xlu0 %v5710, 60
        %v5856 = vpop.permute.xlu0 %5855
        %5857 = vrot.lane.b32.xlu0 %v5711, 60
        %v5858 = vpop.permute.xlu0 %5857
        %5859 = vrot.lane.b32.xlu0 %v5712, 60
        %v5860 = vpop.permute.xlu0 %5859
        %5861 = vrot.lane.b32.xlu0 %v5713, 60
        %v5862 = vpop.permute.xlu0 %5861
        %5863 = vrot.lane.b32.xlu0 %v5714, 60
        %v5864 = vpop.permute.xlu0 %5863
        %5865 = vrot.lane.b32.xlu0 %v5715, 60
        %v5866 = vpop.permute.xlu0 %5865
        %5867 = vrot.lane.b32.xlu0 %v5716, 60
        %v5868 = vpop.permute.xlu0 %5867
        %5869 = vrot.lane.b32.xlu0 %v5717, 60
        %v5870 = vpop.permute.xlu0 %5869
        %5871 = vrot.lane.b32.xlu0 %v5718, 60
        %v5872 = vpop.permute.xlu0 %5871
        %5873 = vrot.lane.b32.xlu0 %v5719, 60
        %v5874 = vpop.permute.xlu0 %5873
        %5875 = vrot.lane.b32.xlu0 %v5720, 60
        %v5876 = vpop.permute.xlu0 %5875
        %5877 = vrot.lane.b32.xlu0 %v5721, 60
        %v5878 = vpop.permute.xlu0 %5877
        %5879 = vrot.lane.b32.xlu0 %v5722, 60
        %v5880 = vpop.permute.xlu0 %5879
        %5881 = vrot.lane.b32.xlu0 %v5723, 60
        %v5882 = vpop.permute.xlu0 %5881
        %5883 = vrot.lane.b32.xlu0 %v5724, 60
        %v5884 = vpop.permute.xlu0 %5883
        %5885 = vrot.lane.b32.xlu0 %v5725, 60
        %v5886 = vpop.permute.xlu0 %5885
        %5887 = vrot.lane.b32.xlu0 %v5726, 60
        %v5888 = vpop.permute.xlu0 %5887
        %5889 = vrot.lane.b32.xlu0 %v5727, 60
        %v5890 = vpop.permute.xlu0 %5889
        %5891 = vrot.lane.b32.xlu0 %v5728, 60
        %v5892 = vpop.permute.xlu0 %5891
        %5893 = vrot.lane.b32.xlu0 %v5729, 60
        %v5894 = vpop.permute.xlu0 %5893
        %5895 = vrot.lane.b32.xlu0 %v5730, 60
        %v5896 = vpop.permute.xlu0 %5895
        %5897 = vrot.lane.b32.xlu0 %v5731, 60
        %v5898 = vpop.permute.xlu0 %5897
        %5899 = vrot.lane.b32.xlu0 %v5732, 60
        %v5900 = vpop.permute.xlu0 %5899
        %5901 = vrot.lane.b32.xlu0 %v5733, 60
        %v5902 = vpop.permute.xlu0 %5901
        %5903 = vrot.lane.b32.xlu0 %v5734, 60
        %v5904 = vpop.permute.xlu0 %5903
        %5905 = vrot.lane.b32.xlu0 %v5735, 60
        %v5906 = vpop.permute.xlu0 %5905
        %5907 = vrot.lane.b32.xlu0 %v5736, 60
        %v5908 = vpop.permute.xlu0 %5907
        %5909 = vrot.lane.b32.xlu0 %v5737, 60
        %v5910 = vpop.permute.xlu0 %5909
        %5911 = vrot.lane.b32.xlu0 %v5738, 60
        %v5912 = vpop.permute.xlu0 %5911
        %5913 = vrot.lane.b32.xlu0 %v5739, 60
        %v5914 = vpop.permute.xlu0 %5913
        %5915 = vrot.lane.b32.xlu0 %v5740, 60
        %v5916 = vpop.permute.xlu0 %5915
        %5917 = vrot.lane.b32.xlu0 %v5741, 60
        %v5918 = vpop.permute.xlu0 %5917
        %5919 = vrot.lane.b32.xlu0 %v5742, 60
        %v5920 = vpop.permute.xlu0 %5919
        %5921 = vrot.lane.b32.xlu0 %v5743, 60
        %v5922 = vpop.permute.xlu0 %5921
        %5923 = vrot.lane.b32.xlu0 %v5744, 60
        %v5924 = vpop.permute.xlu0 %5923
        %5925 = vrot.lane.b32.xlu0 %v5745, 60
        %v5926 = vpop.permute.xlu0 %5925
        %5927 = vrot.lane.b32.xlu0 %v5746, 60
        %v5928 = vpop.permute.xlu0 %5927
        %5929 = vrot.lane.b32.xlu0 %v5747, 60
        %v5930 = vpop.permute.xlu0 %5929
        %5931 = vrot.lane.b32.xlu0 %v5748, 60
        %v5932 = vpop.permute.xlu0 %5931
        %5933 = vrot.lane.b32.xlu0 %v5749, 60
        %v5934 = vpop.permute.xlu0 %5933
        %5935 = vrot.lane.b32.xlu0 %v5750, 60
        %v5936 = vpop.permute.xlu0 %5935
        %5937 = vrot.lane.b32.xlu0 %v5751, 60
        %v5938 = vpop.permute.xlu0 %5937
        %5939 = vrot.lane.b32.xlu0 %v5752, 60
        %v5940 = vpop.permute.xlu0 %5939
        %5941 = vrot.lane.b32.xlu0 %v5753, 60
        %v5942 = vpop.permute.xlu0 %5941
        %5943 = vrot.lane.b32.xlu0 %v5754, 60
        %v5944 = vpop.permute.xlu0 %5943
        %5945 = vrot.lane.b32.xlu0 %v5755, 60
        %v5946 = vpop.permute.xlu0 %5945
        %5947 = vrot.lane.b32.xlu0 %v5756, 60
        %v5948 = vpop.permute.xlu0 %5947
        %vm6013 = vcmask 523744
        %6014 = vst.msk [vmem:[#allocation2] sm:$0xff] %vm6013, %v5822
        %6015 = vst.msk [vmem:[#allocation2 + $0x8] sm:$0xff] %vm6013, %v5824
        %6016 = vst.msk [vmem:[#allocation2 + $0x10] sm:$0xff] %vm6013, %v5826
        %6017 = vst.msk [vmem:[#allocation2 + $0x18] sm:$0xff] %vm6013, %v5828
        %6018 = vst.msk [vmem:[#allocation2 + $0x20] sm:$0xff] %vm6013, %v5830
        %6019 = vst.msk [vmem:[#allocation2 + $0x28] sm:$0xff] %vm6013, %v5832
        %6020 = vst.msk [vmem:[#allocation2 + $0x30] sm:$0xff] %vm6013, %v5834
        %6021 = vst.msk [vmem:[#allocation2 + $0x38] sm:$0xff] %vm6013, %v5836
        %6022 = vst.msk [vmem:[#allocation2 + $0x40] sm:$0xff] %vm6013, %v5838
        %6023 = vst.msk [vmem:[#allocation2 + $0x48] sm:$0xff] %vm6013, %v5840
        %6024 = vst.msk [vmem:[#allocation2 + $0x50] sm:$0xff] %vm6013, %v5842
        %6025 = vst.msk [vmem:[#allocation2 + $0x58] sm:$0xff] %vm6013, %v5844
        %6026 = vst.msk [vmem:[#allocation2 + $0x60] sm:$0xff] %vm6013, %v5846
        %6027 = vst.msk [vmem:[#allocation2 + $0x68] sm:$0xff] %vm6013, %v5848
        %6028 = vst.msk [vmem:[#allocation2 + $0x70] sm:$0xff] %vm6013, %v5850
        %6029 = vst.msk [vmem:[#allocation2 + $0x78] sm:$0xff] %vm6013, %v5852
        %6030 = vst.msk [vmem:[#allocation2 + $0x80] sm:$0xff] %vm6013, %v5854
        %6031 = vst.msk [vmem:[#allocation2 + $0x88] sm:$0xff] %vm6013, %v5856
        %6032 = vst.msk [vmem:[#allocation2 + $0x90] sm:$0xff] %vm6013, %v5858
        %6033 = vst.msk [vmem:[#allocation2 + $0x98] sm:$0xff] %vm6013, %v5860
        %6034 = vst.msk [vmem:[#allocation2 + $0xa0] sm:$0xff] %vm6013, %v5862
        %6035 = vst.msk [vmem:[#allocation2 + $0xa8] sm:$0xff] %vm6013, %v5864
        %6036 = vst.msk [vmem:[#allocation2 + $0xb0] sm:$0xff] %vm6013, %v5866
        %6037 = vst.msk [vmem:[#allocation2 + $0xb8] sm:$0xff] %vm6013, %v5868
        %6038 = vst.msk [vmem:[#allocation2 + $0xc0] sm:$0xff] %vm6013, %v5870
        %6039 = vst.msk [vmem:[#allocation2 + $0xc8] sm:$0xff] %vm6013, %v5872
        %6040 = vst.msk [vmem:[#allocation2 + $0xd0] sm:$0xff] %vm6013, %v5874
        %6041 = vst.msk [vmem:[#allocation2 + $0xd8] sm:$0xff] %vm6013, %v5876
        %6042 = vst.msk [vmem:[#allocation2 + $0xe0] sm:$0xff] %vm6013, %v5878
        %6043 = vst.msk [vmem:[#allocation2 + $0xe8] sm:$0xff] %vm6013, %v5880
        %6044 = vst.msk [vmem:[#allocation2 + $0xf0] sm:$0xff] %vm6013, %v5882
        %6045 = vst.msk [vmem:[#allocation2 + $0xf8] sm:$0xff] %vm6013, %v5884
        %6046 = vst.msk [vmem:[#allocation2 + $0x100] sm:$0xff] %vm6013, %v5886
        %6047 = vst.msk [vmem:[#allocation2 + $0x108] sm:$0xff] %vm6013, %v5888
        %6048 = vst.msk [vmem:[#allocation2 + $0x110] sm:$0xff] %vm6013, %v5890
        %6049 = vst.msk [vmem:[#allocation2 + $0x118] sm:$0xff] %vm6013, %v5892
        %6050 = vst.msk [vmem:[#allocation2 + $0x120] sm:$0xff] %vm6013, %v5894
        %6051 = vst.msk [vmem:[#allocation2 + $0x128] sm:$0xff] %vm6013, %v5896
        %6052 = vst.msk [vmem:[#allocation2 + $0x130] sm:$0xff] %vm6013, %v5898
        %6053 = vst.msk [vmem:[#allocation2 + $0x138] sm:$0xff] %vm6013, %v5900
        %6054 = vst.msk [vmem:[#allocation2 + $0x140] sm:$0xff] %vm6013, %v5902
        %6055 = vst.msk [vmem:[#allocation2 + $0x148] sm:$0xff] %vm6013, %v5904
        %6056 = vst.msk [vmem:[#allocation2 + $0x150] sm:$0xff] %vm6013, %v5906
        %6057 = vst.msk [vmem:[#allocation2 + $0x158] sm:$0xff] %vm6013, %v5908
        %6058 = vst.msk [vmem:[#allocation2 + $0x160] sm:$0xff] %vm6013, %v5910
        %6059 = vst.msk [vmem:[#allocation2 + $0x168] sm:$0xff] %vm6013, %v5912
        %6060 = vst.msk [vmem:[#allocation2 + $0x170] sm:$0xff] %vm6013, %v5914
        %6061 = vst.msk [vmem:[#allocation2 + $0x178] sm:$0xff] %vm6013, %v5916
        %6062 = vst.msk [vmem:[#allocation2 + $0x180] sm:$0xff] %vm6013, %v5918
        %6063 = vst.msk [vmem:[#allocation2 + $0x188] sm:$0xff] %vm6013, %v5920
        %6064 = vst.msk [vmem:[#allocation2 + $0x190] sm:$0xff] %vm6013, %v5922
        %6065 = vst.msk [vmem:[#allocation2 + $0x198] sm:$0xff] %vm6013, %v5924
        %6066 = vst.msk [vmem:[#allocation2 + $0x1a0] sm:$0xff] %vm6013, %v5926
        %6067 = vst.msk [vmem:[#allocation2 + $0x1a8] sm:$0xff] %vm6013, %v5928
        %6068 = vst.msk [vmem:[#allocation2 + $0x1b0] sm:$0xff] %vm6013, %v5930
        %6069 = vst.msk [vmem:[#allocation2 + $0x1b8] sm:$0xff] %vm6013, %v5932
        %6070 = vst.msk [vmem:[#allocation2 + $0x1c0] sm:$0xff] %vm6013, %v5934
        %6071 = vst.msk [vmem:[#allocation2 + $0x1c8] sm:$0xff] %vm6013, %v5936
        %6072 = vst.msk [vmem:[#allocation2 + $0x1d0] sm:$0xff] %vm6013, %v5938
        %6073 = vst.msk [vmem:[#allocation2 + $0x1d8] sm:$0xff] %vm6013, %v5940
        %6074 = vst.msk [vmem:[#allocation2 + $0x1e0] sm:$0xff] %vm6013, %v5942
        %6075 = vst.msk [vmem:[#allocation2 + $0x1e8] sm:$0xff] %vm6013, %v5944
        %6076 = vst.msk [vmem:[#allocation2 + $0x1f0] sm:$0xff] %vm6013, %v5946
        %6077 = vst.msk [vmem:[#allocation2 + $0x1f8] sm:$0xff] %vm6013, %v5948
        %v6078 = vld [vmem:[%s5692 + $0x1] sm:$0xff]
        %v6079 = vld [vmem:[%s5692 + $0x11] sm:$0xff]
        %v6080 = vld [vmem:[%s5692 + $0x21] sm:$0xff]
        %v6081 = vld [vmem:[%s5692 + $0x31] sm:$0xff]
        %v6082 = vld [vmem:[%s5692 + $0x41] sm:$0xff]
        %v6083 = vld [vmem:[%s5692 + $0x51] sm:$0xff]
        %v6084 = vld [vmem:[%s5692 + $0x61] sm:$0xff]
        %v6085 = vld [vmem:[%s5692 + $0x71] sm:$0xff]
        %v6086 = vld [vmem:[%s5692 + $0xa1] sm:$0xff]
        %v6087 = vld [vmem:[%s5692 + $0xb1] sm:$0xff]
        %v6088 = vld [vmem:[%s5692 + $0xc1] sm:$0xff]
        %v6089 = vld [vmem:[%s5692 + $0xd1] sm:$0xff]
        %v6090 = vld [vmem:[%s5692 + $0xe1] sm:$0xff]
        %v6091 = vld [vmem:[%s5692 + $0xf1] sm:$0xff]
        %v6092 = vld [vmem:[%s5692 + $0x101] sm:$0xff]
        %v6093 = vld [vmem:[%s5692 + $0x111] sm:$0xff]
        %v6094 = vld [vmem:[%s5692 + $0x141] sm:$0xff]
        %v6095 = vld [vmem:[%s5692 + $0x151] sm:$0xff]
        %v6096 = vld [vmem:[%s5692 + $0x161] sm:$0xff]
        %v6097 = vld [vmem:[%s5692 + $0x171] sm:$0xff]
        %v6098 = vld [vmem:[%s5692 + $0x181] sm:$0xff]
        %v6099 = vld [vmem:[%s5692 + $0x191] sm:$0xff]
        %v6100 = vld [vmem:[%s5692 + $0x1a1] sm:$0xff]
        %v6101 = vld [vmem:[%s5692 + $0x1b1] sm:$0xff]
        %v6102 = vld [vmem:[%s5692 + $0x1e1] sm:$0xff]
        %v6103 = vld [vmem:[%s5692 + $0x1f1] sm:$0xff]
        %v6104 = vld [vmem:[%s5692 + $0x201] sm:$0xff]
        %v6105 = vld [vmem:[%s5692 + $0x211] sm:$0xff]
        %v6106 = vld [vmem:[%s5692 + $0x221] sm:$0xff]
        %v6107 = vld [vmem:[%s5692 + $0x231] sm:$0xff]
        %v6108 = vld [vmem:[%s5692 + $0x241] sm:$0xff]
        %v6109 = vld [vmem:[%s5692 + $0x251] sm:$0xff]
        %v6110 = vld [vmem:[%s5692 + $0x281] sm:$0xff]
        %v6111 = vld [vmem:[%s5692 + $0x291] sm:$0xff]
        %v6112 = vld [vmem:[%s5692 + $0x2a1] sm:$0xff]
        %v6113 = vld [vmem:[%s5692 + $0x2b1] sm:$0xff]
        %v6114 = vld [vmem:[%s5692 + $0x2c1] sm:$0xff]
        %v6115 = vld [vmem:[%s5692 + $0x2d1] sm:$0xff]
        %v6116 = vld [vmem:[%s5692 + $0x2e1] sm:$0xff]
        %v6117 = vld [vmem:[%s5692 + $0x2f1] sm:$0xff]
        %v6118 = vld [vmem:[%s5692 + $0x321] sm:$0xff]
        %v6119 = vld [vmem:[%s5692 + $0x331] sm:$0xff]
        %v6120 = vld [vmem:[%s5692 + $0x341] sm:$0xff]
        %v6121 = vld [vmem:[%s5692 + $0x351] sm:$0xff]
        %v6122 = vld [vmem:[%s5692 + $0x361] sm:$0xff]
        %v6123 = vld [vmem:[%s5692 + $0x371] sm:$0xff]
        %v6124 = vld [vmem:[%s5692 + $0x381] sm:$0xff]
        %v6125 = vld [vmem:[%s5692 + $0x391] sm:$0xff]
        %v6126 = vld [vmem:[%s5692 + $0x3c1] sm:$0xff]
        %v6127 = vld [vmem:[%s5692 + $0x3d1] sm:$0xff]
        %v6128 = vld [vmem:[%s5692 + $0x3e1] sm:$0xff]
        %v6129 = vld [vmem:[%s5692 + $0x3f1] sm:$0xff]
        %v6130 = vld [vmem:[%s5692 + $0x401] sm:$0xff]
        %v6131 = vld [vmem:[%s5692 + $0x411] sm:$0xff]
        %v6132 = vld [vmem:[%s5692 + $0x421] sm:$0xff]
        %v6133 = vld [vmem:[%s5692 + $0x431] sm:$0xff]
        %v6134 = vld [vmem:[%s5692 + $0x461] sm:$0xff]
        %v6135 = vld [vmem:[%s5692 + $0x471] sm:$0xff]
        %v6136 = vld [vmem:[%s5692 + $0x481] sm:$0xff]
        %v6137 = vld [vmem:[%s5692 + $0x491] sm:$0xff]
        %v6138 = vld [vmem:[%s5692 + $0x4a1] sm:$0xff]
        %v6139 = vld [vmem:[%s5692 + $0x4b1] sm:$0xff]
        %v6140 = vld [vmem:[%s5692 + $0x4c1] sm:$0xff]
        %v6141 = vld [vmem:[%s5692 + $0x4d1] sm:$0xff]
        %6206 = vrot.lane.b32.xlu0 %v6078, 64
        %v6207 = vpop.permute.xlu0 %6206
        %6208 = vrot.lane.b32.xlu0 %v6079, 64
        %v6209 = vpop.permute.xlu0 %6208
        %6210 = vrot.lane.b32.xlu0 %v6080, 64
        %v6211 = vpop.permute.xlu0 %6210
        %6212 = vrot.lane.b32.xlu0 %v6081, 64
        %v6213 = vpop.permute.xlu0 %6212
        %6214 = vrot.lane.b32.xlu0 %v6082, 64
        %v6215 = vpop.permute.xlu0 %6214
        %6216 = vrot.lane.b32.xlu0 %v6083, 64
        %v6217 = vpop.permute.xlu0 %6216
        %6218 = vrot.lane.b32.xlu0 %v6084, 64
        %v6219 = vpop.permute.xlu0 %6218
        %6220 = vrot.lane.b32.xlu0 %v6085, 64
        %v6221 = vpop.permute.xlu0 %6220
        %6222 = vrot.lane.b32.xlu0 %v6086, 64
        %v6223 = vpop.permute.xlu0 %6222
        %6224 = vrot.lane.b32.xlu0 %v6087, 64
        %v6225 = vpop.permute.xlu0 %6224
        %6226 = vrot.lane.b32.xlu0 %v6088, 64
        %v6227 = vpop.permute.xlu0 %6226
        %6228 = vrot.lane.b32.xlu0 %v6089, 64
        %v6229 = vpop.permute.xlu0 %6228
        %6230 = vrot.lane.b32.xlu0 %v6090, 64
        %v6231 = vpop.permute.xlu0 %6230
        %6232 = vrot.lane.b32.xlu0 %v6091, 64
        %v6233 = vpop.permute.xlu0 %6232
        %6234 = vrot.lane.b32.xlu0 %v6092, 64
        %v6235 = vpop.permute.xlu0 %6234
        %6236 = vrot.lane.b32.xlu0 %v6093, 64
        %v6237 = vpop.permute.xlu0 %6236
        %6238 = vrot.lane.b32.xlu0 %v6094, 64
        %v6239 = vpop.permute.xlu0 %6238
        %6240 = vrot.lane.b32.xlu0 %v6095, 64
        %v6241 = vpop.permute.xlu0 %6240
        %6242 = vrot.lane.b32.xlu0 %v6096, 64
        %v6243 = vpop.permute.xlu0 %6242
        %6244 = vrot.lane.b32.xlu0 %v6097, 64
        %v6245 = vpop.permute.xlu0 %6244
        %6246 = vrot.lane.b32.xlu0 %v6098, 64
        %v6247 = vpop.permute.xlu0 %6246
        %6248 = vrot.lane.b32.xlu0 %v6099, 64
        %v6249 = vpop.permute.xlu0 %6248
        %6250 = vrot.lane.b32.xlu0 %v6100, 64
        %v6251 = vpop.permute.xlu0 %6250
        %6252 = vrot.lane.b32.xlu0 %v6101, 64
        %v6253 = vpop.permute.xlu0 %6252
        %6254 = vrot.lane.b32.xlu0 %v6102, 64
        %v6255 = vpop.permute.xlu0 %6254
        %6256 = vrot.lane.b32.xlu0 %v6103, 64
        %v6257 = vpop.permute.xlu0 %6256
        %6258 = vrot.lane.b32.xlu0 %v6104, 64
        %v6259 = vpop.permute.xlu0 %6258
        %6260 = vrot.lane.b32.xlu0 %v6105, 64
        %v6261 = vpop.permute.xlu0 %6260
        %6262 = vrot.lane.b32.xlu0 %v6106, 64
        %v6263 = vpop.permute.xlu0 %6262
        %6264 = vrot.lane.b32.xlu0 %v6107, 64
        %v6265 = vpop.permute.xlu0 %6264
        %6266 = vrot.lane.b32.xlu0 %v6108, 64
        %v6267 = vpop.permute.xlu0 %6266
        %6268 = vrot.lane.b32.xlu0 %v6109, 64
        %v6269 = vpop.permute.xlu0 %6268
        %6270 = vrot.lane.b32.xlu0 %v6110, 64
        %v6271 = vpop.permute.xlu0 %6270
        %6272 = vrot.lane.b32.xlu0 %v6111, 64
        %v6273 = vpop.permute.xlu0 %6272
        %6274 = vrot.lane.b32.xlu0 %v6112, 64
        %v6275 = vpop.permute.xlu0 %6274
        %6276 = vrot.lane.b32.xlu0 %v6113, 64
        %v6277 = vpop.permute.xlu0 %6276
        %6278 = vrot.lane.b32.xlu0 %v6114, 64
        %v6279 = vpop.permute.xlu0 %6278
        %6280 = vrot.lane.b32.xlu0 %v6115, 64
        %v6281 = vpop.permute.xlu0 %6280
        %6282 = vrot.lane.b32.xlu0 %v6116, 64
        %v6283 = vpop.permute.xlu0 %6282
        %6284 = vrot.lane.b32.xlu0 %v6117, 64
        %v6285 = vpop.permute.xlu0 %6284
        %6286 = vrot.lane.b32.xlu0 %v6118, 64
        %v6287 = vpop.permute.xlu0 %6286
        %6288 = vrot.lane.b32.xlu0 %v6119, 64
        %v6289 = vpop.permute.xlu0 %6288
        %6290 = vrot.lane.b32.xlu0 %v6120, 64
        %v6291 = vpop.permute.xlu0 %6290
        %6292 = vrot.lane.b32.xlu0 %v6121, 64
        %v6293 = vpop.permute.xlu0 %6292
        %6294 = vrot.lane.b32.xlu0 %v6122, 64
        %v6295 = vpop.permute.xlu0 %6294
        %6296 = vrot.lane.b32.xlu0 %v6123, 64
        %v6297 = vpop.permute.xlu0 %6296
        %6298 = vrot.lane.b32.xlu0 %v6124, 64
        %v6299 = vpop.permute.xlu0 %6298
        %6300 = vrot.lane.b32.xlu0 %v6125, 64
        %v6301 = vpop.permute.xlu0 %6300
        %6302 = vrot.lane.b32.xlu0 %v6126, 64
        %v6303 = vpop.permute.xlu0 %6302
        %6304 = vrot.lane.b32.xlu0 %v6127, 64
        %v6305 = vpop.permute.xlu0 %6304
        %6306 = vrot.lane.b32.xlu0 %v6128, 64
        %v6307 = vpop.permute.xlu0 %6306
        %6308 = vrot.lane.b32.xlu0 %v6129, 64
        %v6309 = vpop.permute.xlu0 %6308
        %6310 = vrot.lane.b32.xlu0 %v6130, 64
        %v6311 = vpop.permute.xlu0 %6310
        %6312 = vrot.lane.b32.xlu0 %v6131, 64
        %v6313 = vpop.permute.xlu0 %6312
        %6314 = vrot.lane.b32.xlu0 %v6132, 64
        %v6315 = vpop.permute.xlu0 %6314
        %6316 = vrot.lane.b32.xlu0 %v6133, 64
        %v6317 = vpop.permute.xlu0 %6316
        %6318 = vrot.lane.b32.xlu0 %v6134, 64
        %v6319 = vpop.permute.xlu0 %6318
        %6320 = vrot.lane.b32.xlu0 %v6135, 64
        %v6321 = vpop.permute.xlu0 %6320
        %6322 = vrot.lane.b32.xlu0 %v6136, 64
        %v6323 = vpop.permute.xlu0 %6322
        %6324 = vrot.lane.b32.xlu0 %v6137, 64
        %v6325 = vpop.permute.xlu0 %6324
        %6326 = vrot.lane.b32.xlu0 %v6138, 64
        %v6327 = vpop.permute.xlu0 %6326
        %6328 = vrot.lane.b32.xlu0 %v6139, 64
        %v6329 = vpop.permute.xlu0 %6328
        %6330 = vrot.lane.b32.xlu0 %v6140, 64
        %v6331 = vpop.permute.xlu0 %6330
        %6332 = vrot.lane.b32.xlu0 %v6141, 64
        %v6333 = vpop.permute.xlu0 %6332
        %vm6398 = vcmask 556544
        %6399 = vst.msk [vmem:[#allocation2] sm:$0xff] %vm6398, %v6207
        %6400 = vst.msk [vmem:[#allocation2 + $0x8] sm:$0xff] %vm6398, %v6209
        %6401 = vst.msk [vmem:[#allocation2 + $0x10] sm:$0xff] %vm6398, %v6211
        %6402 = vst.msk [vmem:[#allocation2 + $0x18] sm:$0xff] %vm6398, %v6213
        %6403 = vst.msk [vmem:[#allocation2 + $0x20] sm:$0xff] %vm6398, %v6215
        %6404 = vst.msk [vmem:[#allocation2 + $0x28] sm:$0xff] %vm6398, %v6217
        %6405 = vst.msk [vmem:[#allocation2 + $0x30] sm:$0xff] %vm6398, %v6219
        %6406 = vst.msk [vmem:[#allocation2 + $0x38] sm:$0xff] %vm6398, %v6221
        %6407 = vst.msk [vmem:[#allocation2 + $0x40] sm:$0xff] %vm6398, %v6223
        %6408 = vst.msk [vmem:[#allocation2 + $0x48] sm:$0xff] %vm6398, %v6225
        %6409 = vst.msk [vmem:[#allocation2 + $0x50] sm:$0xff] %vm6398, %v6227
        %6410 = vst.msk [vmem:[#allocation2 + $0x58] sm:$0xff] %vm6398, %v6229
        %6411 = vst.msk [vmem:[#allocation2 + $0x60] sm:$0xff] %vm6398, %v6231
        %6412 = vst.msk [vmem:[#allocation2 + $0x68] sm:$0xff] %vm6398, %v6233
        %6413 = vst.msk [vmem:[#allocation2 + $0x70] sm:$0xff] %vm6398, %v6235
        %6414 = vst.msk [vmem:[#allocation2 + $0x78] sm:$0xff] %vm6398, %v6237
        %6415 = vst.msk [vmem:[#allocation2 + $0x80] sm:$0xff] %vm6398, %v6239
        %6416 = vst.msk [vmem:[#allocation2 + $0x88] sm:$0xff] %vm6398, %v6241
        %6417 = vst.msk [vmem:[#allocation2 + $0x90] sm:$0xff] %vm6398, %v6243
        %6418 = vst.msk [vmem:[#allocation2 + $0x98] sm:$0xff] %vm6398, %v6245
        %6419 = vst.msk [vmem:[#allocation2 + $0xa0] sm:$0xff] %vm6398, %v6247
        %6420 = vst.msk [vmem:[#allocation2 + $0xa8] sm:$0xff] %vm6398, %v6249
        %6421 = vst.msk [vmem:[#allocation2 + $0xb0] sm:$0xff] %vm6398, %v6251
        %6422 = vst.msk [vmem:[#allocation2 + $0xb8] sm:$0xff] %vm6398, %v6253
        %6423 = vst.msk [vmem:[#allocation2 + $0xc0] sm:$0xff] %vm6398, %v6255
        %6424 = vst.msk [vmem:[#allocation2 + $0xc8] sm:$0xff] %vm6398, %v6257
        %6425 = vst.msk [vmem:[#allocation2 + $0xd0] sm:$0xff] %vm6398, %v6259
        %6426 = vst.msk [vmem:[#allocation2 + $0xd8] sm:$0xff] %vm6398, %v6261
        %6427 = vst.msk [vmem:[#allocation2 + $0xe0] sm:$0xff] %vm6398, %v6263
        %6428 = vst.msk [vmem:[#allocation2 + $0xe8] sm:$0xff] %vm6398, %v6265
        %6429 = vst.msk [vmem:[#allocation2 + $0xf0] sm:$0xff] %vm6398, %v6267
        %6430 = vst.msk [vmem:[#allocation2 + $0xf8] sm:$0xff] %vm6398, %v6269
        %6431 = vst.msk [vmem:[#allocation2 + $0x100] sm:$0xff] %vm6398, %v6271
        %6432 = vst.msk [vmem:[#allocation2 + $0x108] sm:$0xff] %vm6398, %v6273
        %6433 = vst.msk [vmem:[#allocation2 + $0x110] sm:$0xff] %vm6398, %v6275
        %6434 = vst.msk [vmem:[#allocation2 + $0x118] sm:$0xff] %vm6398, %v6277
        %6435 = vst.msk [vmem:[#allocation2 + $0x120] sm:$0xff] %vm6398, %v6279
        %6436 = vst.msk [vmem:[#allocation2 + $0x128] sm:$0xff] %vm6398, %v6281
        %6437 = vst.msk [vmem:[#allocation2 + $0x130] sm:$0xff] %vm6398, %v6283
        %6438 = vst.msk [vmem:[#allocation2 + $0x138] sm:$0xff] %vm6398, %v6285
        %6439 = vst.msk [vmem:[#allocation2 + $0x140] sm:$0xff] %vm6398, %v6287
        %6440 = vst.msk [vmem:[#allocation2 + $0x148] sm:$0xff] %vm6398, %v6289
        %6441 = vst.msk [vmem:[#allocation2 + $0x150] sm:$0xff] %vm6398, %v6291
        %6442 = vst.msk [vmem:[#allocation2 + $0x158] sm:$0xff] %vm6398, %v6293
        %6443 = vst.msk [vmem:[#allocation2 + $0x160] sm:$0xff] %vm6398, %v6295
        %6444 = vst.msk [vmem:[#allocation2 + $0x168] sm:$0xff] %vm6398, %v6297
        %6445 = vst.msk [vmem:[#allocation2 + $0x170] sm:$0xff] %vm6398, %v6299
        %6446 = vst.msk [vmem:[#allocation2 + $0x178] sm:$0xff] %vm6398, %v6301
        %6447 = vst.msk [vmem:[#allocation2 + $0x180] sm:$0xff] %vm6398, %v6303
        %6448 = vst.msk [vmem:[#allocation2 + $0x188] sm:$0xff] %vm6398, %v6305
        %6449 = vst.msk [vmem:[#allocation2 + $0x190] sm:$0xff] %vm6398, %v6307
        %6450 = vst.msk [vmem:[#allocation2 + $0x198] sm:$0xff] %vm6398, %v6309
        %6451 = vst.msk [vmem:[#allocation2 + $0x1a0] sm:$0xff] %vm6398, %v6311
        %6452 = vst.msk [vmem:[#allocation2 + $0x1a8] sm:$0xff] %vm6398, %v6313
        %6453 = vst.msk [vmem:[#allocation2 + $0x1b0] sm:$0xff] %vm6398, %v6315
        %6454 = vst.msk [vmem:[#allocation2 + $0x1b8] sm:$0xff] %vm6398, %v6317
        %6455 = vst.msk [vmem:[#allocation2 + $0x1c0] sm:$0xff] %vm6398, %v6319
        %6456 = vst.msk [vmem:[#allocation2 + $0x1c8] sm:$0xff] %vm6398, %v6321
        %6457 = vst.msk [vmem:[#allocation2 + $0x1d0] sm:$0xff] %vm6398, %v6323
        %6458 = vst.msk [vmem:[#allocation2 + $0x1d8] sm:$0xff] %vm6398, %v6325
        %6459 = vst.msk [vmem:[#allocation2 + $0x1e0] sm:$0xff] %vm6398, %v6327
        %6460 = vst.msk [vmem:[#allocation2 + $0x1e8] sm:$0xff] %vm6398, %v6329
        %6461 = vst.msk [vmem:[#allocation2 + $0x1f0] sm:$0xff] %vm6398, %v6331
        %6462 = vst.msk [vmem:[#allocation2 + $0x1f8] sm:$0xff] %vm6398, %v6333
        %v6463 = vld [vmem:[%s5692 + $0x2] sm:$0xff]
        %v6464 = vld [vmem:[%s5692 + $0x12] sm:$0xff]
        %v6465 = vld [vmem:[%s5692 + $0x22] sm:$0xff]
        %v6466 = vld [vmem:[%s5692 + $0x32] sm:$0xff]
        %v6467 = vld [vmem:[%s5692 + $0x42] sm:$0xff]
        %v6468 = vld [vmem:[%s5692 + $0x52] sm:$0xff]
        %v6469 = vld [vmem:[%s5692 + $0x62] sm:$0xff]
        %v6470 = vld [vmem:[%s5692 + $0x72] sm:$0xff]
        %v6471 = vld [vmem:[%s5692 + $0xa2] sm:$0xff]
        %v6472 = vld [vmem:[%s5692 + $0xb2] sm:$0xff]
        %v6473 = vld [vmem:[%s5692 + $0xc2] sm:$0xff]
        %v6474 = vld [vmem:[%s5692 + $0xd2] sm:$0xff]
        %v6475 = vld [vmem:[%s5692 + $0xe2] sm:$0xff]
        %v6476 = vld [vmem:[%s5692 + $0xf2] sm:$0xff]
        %v6477 = vld [vmem:[%s5692 + $0x102] sm:$0xff]
        %v6478 = vld [vmem:[%s5692 + $0x112] sm:$0xff]
        %v6479 = vld [vmem:[%s5692 + $0x142] sm:$0xff]
        %v6480 = vld [vmem:[%s5692 + $0x152] sm:$0xff]
        %v6481 = vld [vmem:[%s5692 + $0x162] sm:$0xff]
        %v6482 = vld [vmem:[%s5692 + $0x172] sm:$0xff]
        %v6483 = vld [vmem:[%s5692 + $0x182] sm:$0xff]
        %v6484 = vld [vmem:[%s5692 + $0x192] sm:$0xff]
        %v6485 = vld [vmem:[%s5692 + $0x1a2] sm:$0xff]
        %v6486 = vld [vmem:[%s5692 + $0x1b2] sm:$0xff]
        %v6487 = vld [vmem:[%s5692 + $0x1e2] sm:$0xff]
        %v6488 = vld [vmem:[%s5692 + $0x1f2] sm:$0xff]
        %v6489 = vld [vmem:[%s5692 + $0x202] sm:$0xff]
        %v6490 = vld [vmem:[%s5692 + $0x212] sm:$0xff]
        %v6491 = vld [vmem:[%s5692 + $0x222] sm:$0xff]
        %v6492 = vld [vmem:[%s5692 + $0x232] sm:$0xff]
        %v6493 = vld [vmem:[%s5692 + $0x242] sm:$0xff]
        %v6494 = vld [vmem:[%s5692 + $0x252] sm:$0xff]
        %v6495 = vld [vmem:[%s5692 + $0x282] sm:$0xff]
        %v6496 = vld [vmem:[%s5692 + $0x292] sm:$0xff]
        %v6497 = vld [vmem:[%s5692 + $0x2a2] sm:$0xff]
        %v6498 = vld [vmem:[%s5692 + $0x2b2] sm:$0xff]
        %v6499 = vld [vmem:[%s5692 + $0x2c2] sm:$0xff]
        %v6500 = vld [vmem:[%s5692 + $0x2d2] sm:$0xff]
        %v6501 = vld [vmem:[%s5692 + $0x2e2] sm:$0xff]
        %v6502 = vld [vmem:[%s5692 + $0x2f2] sm:$0xff]
        %v6503 = vld [vmem:[%s5692 + $0x322] sm:$0xff]
        %v6504 = vld [vmem:[%s5692 + $0x332] sm:$0xff]
        %v6505 = vld [vmem:[%s5692 + $0x342] sm:$0xff]
        %v6506 = vld [vmem:[%s5692 + $0x352] sm:$0xff]
        %v6507 = vld [vmem:[%s5692 + $0x362] sm:$0xff]
        %v6508 = vld [vmem:[%s5692 + $0x372] sm:$0xff]
        %v6509 = vld [vmem:[%s5692 + $0x382] sm:$0xff]
        %v6510 = vld [vmem:[%s5692 + $0x392] sm:$0xff]
        %v6511 = vld [vmem:[%s5692 + $0x3c2] sm:$0xff]
        %v6512 = vld [vmem:[%s5692 + $0x3d2] sm:$0xff]
        %v6513 = vld [vmem:[%s5692 + $0x3e2] sm:$0xff]
        %v6514 = vld [vmem:[%s5692 + $0x3f2] sm:$0xff]
        %v6515 = vld [vmem:[%s5692 + $0x402] sm:$0xff]
        %v6516 = vld [vmem:[%s5692 + $0x412] sm:$0xff]
        %v6517 = vld [vmem:[%s5692 + $0x422] sm:$0xff]
        %v6518 = vld [vmem:[%s5692 + $0x432] sm:$0xff]
        %v6519 = vld [vmem:[%s5692 + $0x462] sm:$0xff]
        %v6520 = vld [vmem:[%s5692 + $0x472] sm:$0xff]
        %v6521 = vld [vmem:[%s5692 + $0x482] sm:$0xff]
        %v6522 = vld [vmem:[%s5692 + $0x492] sm:$0xff]
        %v6523 = vld [vmem:[%s5692 + $0x4a2] sm:$0xff]
        %v6524 = vld [vmem:[%s5692 + $0x4b2] sm:$0xff]
        %v6525 = vld [vmem:[%s5692 + $0x4c2] sm:$0xff]
        %v6526 = vld [vmem:[%s5692 + $0x4d2] sm:$0xff]
        %6591 = vrot.lane.b32.xlu0 %v6463, 68
        %v6592 = vpop.permute.xlu0 %6591
        %6593 = vrot.lane.b32.xlu0 %v6464, 68
        %v6594 = vpop.permute.xlu0 %6593
        %6595 = vrot.lane.b32.xlu0 %v6465, 68
        %v6596 = vpop.permute.xlu0 %6595
        %6597 = vrot.lane.b32.xlu0 %v6466, 68
        %v6598 = vpop.permute.xlu0 %6597
        %6599 = vrot.lane.b32.xlu0 %v6467, 68
        %v6600 = vpop.permute.xlu0 %6599
        %6601 = vrot.lane.b32.xlu0 %v6468, 68
        %v6602 = vpop.permute.xlu0 %6601
        %6603 = vrot.lane.b32.xlu0 %v6469, 68
        %v6604 = vpop.permute.xlu0 %6603
        %6605 = vrot.lane.b32.xlu0 %v6470, 68
        %v6606 = vpop.permute.xlu0 %6605
        %6607 = vrot.lane.b32.xlu0 %v6471, 68
        %v6608 = vpop.permute.xlu0 %6607
        %6609 = vrot.lane.b32.xlu0 %v6472, 68
        %v6610 = vpop.permute.xlu0 %6609
        %6611 = vrot.lane.b32.xlu0 %v6473, 68
        %v6612 = vpop.permute.xlu0 %6611
        %6613 = vrot.lane.b32.xlu0 %v6474, 68
        %v6614 = vpop.permute.xlu0 %6613
        %6615 = vrot.lane.b32.xlu0 %v6475, 68
        %v6616 = vpop.permute.xlu0 %6615
        %6617 = vrot.lane.b32.xlu0 %v6476, 68
        %v6618 = vpop.permute.xlu0 %6617
        %6619 = vrot.lane.b32.xlu0 %v6477, 68
        %v6620 = vpop.permute.xlu0 %6619
        %6621 = vrot.lane.b32.xlu0 %v6478, 68
        %v6622 = vpop.permute.xlu0 %6621
        %6623 = vrot.lane.b32.xlu0 %v6479, 68
        %v6624 = vpop.permute.xlu0 %6623
        %6625 = vrot.lane.b32.xlu0 %v6480, 68
        %v6626 = vpop.permute.xlu0 %6625
        %6627 = vrot.lane.b32.xlu0 %v6481, 68
        %v6628 = vpop.permute.xlu0 %6627
        %6629 = vrot.lane.b32.xlu0 %v6482, 68
        %v6630 = vpop.permute.xlu0 %6629
        %6631 = vrot.lane.b32.xlu0 %v6483, 68
        %v6632 = vpop.permute.xlu0 %6631
        %6633 = vrot.lane.b32.xlu0 %v6484, 68
        %v6634 = vpop.permute.xlu0 %6633
        %6635 = vrot.lane.b32.xlu0 %v6485, 68
        %v6636 = vpop.permute.xlu0 %6635
        %6637 = vrot.lane.b32.xlu0 %v6486, 68
        %v6638 = vpop.permute.xlu0 %6637
        %6639 = vrot.lane.b32.xlu0 %v6487, 68
        %v6640 = vpop.permute.xlu0 %6639
        %6641 = vrot.lane.b32.xlu0 %v6488, 68
        %v6642 = vpop.permute.xlu0 %6641
        %6643 = vrot.lane.b32.xlu0 %v6489, 68
        %v6644 = vpop.permute.xlu0 %6643
        %6645 = vrot.lane.b32.xlu0 %v6490, 68
        %v6646 = vpop.permute.xlu0 %6645
        %6647 = vrot.lane.b32.xlu0 %v6491, 68
        %v6648 = vpop.permute.xlu0 %6647
        %6649 = vrot.lane.b32.xlu0 %v6492, 68
        %v6650 = vpop.permute.xlu0 %6649
        %6651 = vrot.lane.b32.xlu0 %v6493, 68
        %v6652 = vpop.permute.xlu0 %6651
        %6653 = vrot.lane.b32.xlu0 %v6494, 68
        %v6654 = vpop.permute.xlu0 %6653
        %6655 = vrot.lane.b32.xlu0 %v6495, 68
        %v6656 = vpop.permute.xlu0 %6655
        %6657 = vrot.lane.b32.xlu0 %v6496, 68
        %v6658 = vpop.permute.xlu0 %6657
        %6659 = vrot.lane.b32.xlu0 %v6497, 68
        %v6660 = vpop.permute.xlu0 %6659
        %6661 = vrot.lane.b32.xlu0 %v6498, 68
        %v6662 = vpop.permute.xlu0 %6661
        %6663 = vrot.lane.b32.xlu0 %v6499, 68
        %v6664 = vpop.permute.xlu0 %6663
        %6665 = vrot.lane.b32.xlu0 %v6500, 68
        %v6666 = vpop.permute.xlu0 %6665
        %6667 = vrot.lane.b32.xlu0 %v6501, 68
        %v6668 = vpop.permute.xlu0 %6667
        %6669 = vrot.lane.b32.xlu0 %v6502, 68
        %v6670 = vpop.permute.xlu0 %6669
        %6671 = vrot.lane.b32.xlu0 %v6503, 68
        %v6672 = vpop.permute.xlu0 %6671
        %6673 = vrot.lane.b32.xlu0 %v6504, 68
        %v6674 = vpop.permute.xlu0 %6673
        %6675 = vrot.lane.b32.xlu0 %v6505, 68
        %v6676 = vpop.permute.xlu0 %6675
        %6677 = vrot.lane.b32.xlu0 %v6506, 68
        %v6678 = vpop.permute.xlu0 %6677
        %6679 = vrot.lane.b32.xlu0 %v6507, 68
        %v6680 = vpop.permute.xlu0 %6679
        %6681 = vrot.lane.b32.xlu0 %v6508, 68
        %v6682 = vpop.permute.xlu0 %6681
        %6683 = vrot.lane.b32.xlu0 %v6509, 68
        %v6684 = vpop.permute.xlu0 %6683
        %6685 = vrot.lane.b32.xlu0 %v6510, 68
        %v6686 = vpop.permute.xlu0 %6685
        %6687 = vrot.lane.b32.xlu0 %v6511, 68
        %v6688 = vpop.permute.xlu0 %6687
        %6689 = vrot.lane.b32.xlu0 %v6512, 68
        %v6690 = vpop.permute.xlu0 %6689
        %6691 = vrot.lane.b32.xlu0 %v6513, 68
        %v6692 = vpop.permute.xlu0 %6691
        %6693 = vrot.lane.b32.xlu0 %v6514, 68
        %v6694 = vpop.permute.xlu0 %6693
        %6695 = vrot.lane.b32.xlu0 %v6515, 68
        %v6696 = vpop.permute.xlu0 %6695
        %6697 = vrot.lane.b32.xlu0 %v6516, 68
        %v6698 = vpop.permute.xlu0 %6697
        %6699 = vrot.lane.b32.xlu0 %v6517, 68
        %v6700 = vpop.permute.xlu0 %6699
        %6701 = vrot.lane.b32.xlu0 %v6518, 68
        %v6702 = vpop.permute.xlu0 %6701
        %6703 = vrot.lane.b32.xlu0 %v6519, 68
        %v6704 = vpop.permute.xlu0 %6703
        %6705 = vrot.lane.b32.xlu0 %v6520, 68
        %v6706 = vpop.permute.xlu0 %6705
        %6707 = vrot.lane.b32.xlu0 %v6521, 68
        %v6708 = vpop.permute.xlu0 %6707
        %6709 = vrot.lane.b32.xlu0 %v6522, 68
        %v6710 = vpop.permute.xlu0 %6709
        %6711 = vrot.lane.b32.xlu0 %v6523, 68
        %v6712 = vpop.permute.xlu0 %6711
        %6713 = vrot.lane.b32.xlu0 %v6524, 68
        %v6714 = vpop.permute.xlu0 %6713
        %6715 = vrot.lane.b32.xlu0 %v6525, 68
        %v6716 = vpop.permute.xlu0 %6715
        %6717 = vrot.lane.b32.xlu0 %v6526, 68
        %v6718 = vpop.permute.xlu0 %6717
        %vm6783 = vcmask 589344
        %6784 = vst.msk [vmem:[#allocation2] sm:$0xff] %vm6783, %v6592
        %6785 = vst.msk [vmem:[#allocation2 + $0x8] sm:$0xff] %vm6783, %v6594
        %6786 = vst.msk [vmem:[#allocation2 + $0x10] sm:$0xff] %vm6783, %v6596
        %6787 = vst.msk [vmem:[#allocation2 + $0x18] sm:$0xff] %vm6783, %v6598
        %6788 = vst.msk [vmem:[#allocation2 + $0x20] sm:$0xff] %vm6783, %v6600
        %6789 = vst.msk [vmem:[#allocation2 + $0x28] sm:$0xff] %vm6783, %v6602
        %6790 = vst.msk [vmem:[#allocation2 + $0x30] sm:$0xff] %vm6783, %v6604
        %6791 = vst.msk [vmem:[#allocation2 + $0x38] sm:$0xff] %vm6783, %v6606
        %6792 = vst.msk [vmem:[#allocation2 + $0x40] sm:$0xff] %vm6783, %v6608
        %6793 = vst.msk [vmem:[#allocation2 + $0x48] sm:$0xff] %vm6783, %v6610
        %6794 = vst.msk [vmem:[#allocation2 + $0x50] sm:$0xff] %vm6783, %v6612
        %6795 = vst.msk [vmem:[#allocation2 + $0x58] sm:$0xff] %vm6783, %v6614
        %6796 = vst.msk [vmem:[#allocation2 + $0x60] sm:$0xff] %vm6783, %v6616
        %6797 = vst.msk [vmem:[#allocation2 + $0x68] sm:$0xff] %vm6783, %v6618
        %6798 = vst.msk [vmem:[#allocation2 + $0x70] sm:$0xff] %vm6783, %v6620
        %6799 = vst.msk [vmem:[#allocation2 + $0x78] sm:$0xff] %vm6783, %v6622
        %6800 = vst.msk [vmem:[#allocation2 + $0x80] sm:$0xff] %vm6783, %v6624
        %6801 = vst.msk [vmem:[#allocation2 + $0x88] sm:$0xff] %vm6783, %v6626
        %6802 = vst.msk [vmem:[#allocation2 + $0x90] sm:$0xff] %vm6783, %v6628
        %6803 = vst.msk [vmem:[#allocation2 + $0x98] sm:$0xff] %vm6783, %v6630
        %6804 = vst.msk [vmem:[#allocation2 + $0xa0] sm:$0xff] %vm6783, %v6632
        %6805 = vst.msk [vmem:[#allocation2 + $0xa8] sm:$0xff] %vm6783, %v6634
        %6806 = vst.msk [vmem:[#allocation2 + $0xb0] sm:$0xff] %vm6783, %v6636
        %6807 = vst.msk [vmem:[#allocation2 + $0xb8] sm:$0xff] %vm6783, %v6638
        %6808 = vst.msk [vmem:[#allocation2 + $0xc0] sm:$0xff] %vm6783, %v6640
        %6809 = vst.msk [vmem:[#allocation2 + $0xc8] sm:$0xff] %vm6783, %v6642
        %6810 = vst.msk [vmem:[#allocation2 + $0xd0] sm:$0xff] %vm6783, %v6644
        %6811 = vst.msk [vmem:[#allocation2 + $0xd8] sm:$0xff] %vm6783, %v6646
        %6812 = vst.msk [vmem:[#allocation2 + $0xe0] sm:$0xff] %vm6783, %v6648
        %6813 = vst.msk [vmem:[#allocation2 + $0xe8] sm:$0xff] %vm6783, %v6650
        %6814 = vst.msk [vmem:[#allocation2 + $0xf0] sm:$0xff] %vm6783, %v6652
        %6815 = vst.msk [vmem:[#allocation2 + $0xf8] sm:$0xff] %vm6783, %v6654
        %6816 = vst.msk [vmem:[#allocation2 + $0x100] sm:$0xff] %vm6783, %v6656
        %6817 = vst.msk [vmem:[#allocation2 + $0x108] sm:$0xff] %vm6783, %v6658
        %6818 = vst.msk [vmem:[#allocation2 + $0x110] sm:$0xff] %vm6783, %v6660
        %6819 = vst.msk [vmem:[#allocation2 + $0x118] sm:$0xff] %vm6783, %v6662
        %6820 = vst.msk [vmem:[#allocation2 + $0x120] sm:$0xff] %vm6783, %v6664
        %6821 = vst.msk [vmem:[#allocation2 + $0x128] sm:$0xff] %vm6783, %v6666
        %6822 = vst.msk [vmem:[#allocation2 + $0x130] sm:$0xff] %vm6783, %v6668
        %6823 = vst.msk [vmem:[#allocation2 + $0x138] sm:$0xff] %vm6783, %v6670
        %6824 = vst.msk [vmem:[#allocation2 + $0x140] sm:$0xff] %vm6783, %v6672
        %6825 = vst.msk [vmem:[#allocation2 + $0x148] sm:$0xff] %vm6783, %v6674
        %6826 = vst.msk [vmem:[#allocation2 + $0x150] sm:$0xff] %vm6783, %v6676
        %6827 = vst.msk [vmem:[#allocation2 + $0x158] sm:$0xff] %vm6783, %v6678
        %6828 = vst.msk [vmem:[#allocation2 + $0x160] sm:$0xff] %vm6783, %v6680
        %6829 = vst.msk [vmem:[#allocation2 + $0x168] sm:$0xff] %vm6783, %v6682
        %6830 = vst.msk [vmem:[#allocation2 + $0x170] sm:$0xff] %vm6783, %v6684
        %6831 = vst.msk [vmem:[#allocation2 + $0x178] sm:$0xff] %vm6783, %v6686
        %6832 = vst.msk [vmem:[#allocation2 + $0x180] sm:$0xff] %vm6783, %v6688
        %6833 = vst.msk [vmem:[#allocation2 + $0x188] sm:$0xff] %vm6783, %v6690
        %6834 = vst.msk [vmem:[#allocation2 + $0x190] sm:$0xff] %vm6783, %v6692
        %6835 = vst.msk [vmem:[#allocation2 + $0x198] sm:$0xff] %vm6783, %v6694
        %6836 = vst.msk [vmem:[#allocation2 + $0x1a0] sm:$0xff] %vm6783, %v6696
        %6837 = vst.msk [vmem:[#allocation2 + $0x1a8] sm:$0xff] %vm6783, %v6698
        %6838 = vst.msk [vmem:[#allocation2 + $0x1b0] sm:$0xff] %vm6783, %v6700
        %6839 = vst.msk [vmem:[#allocation2 + $0x1b8] sm:$0xff] %vm6783, %v6702
        %6840 = vst.msk [vmem:[#allocation2 + $0x1c0] sm:$0xff] %vm6783, %v6704
        %6841 = vst.msk [vmem:[#allocation2 + $0x1c8] sm:$0xff] %vm6783, %v6706
        %6842 = vst.msk [vmem:[#allocation2 + $0x1d0] sm:$0xff] %vm6783, %v6708
        %6843 = vst.msk [vmem:[#allocation2 + $0x1d8] sm:$0xff] %vm6783, %v6710
        %6844 = vst.msk [vmem:[#allocation2 + $0x1e0] sm:$0xff] %vm6783, %v6712
        %6845 = vst.msk [vmem:[#allocation2 + $0x1e8] sm:$0xff] %vm6783, %v6714
        %6846 = vst.msk [vmem:[#allocation2 + $0x1f0] sm:$0xff] %vm6783, %v6716
        %6847 = vst.msk [vmem:[#allocation2 + $0x1f8] sm:$0xff] %vm6783, %v6718
        %s6848 = scalar_lea.vmem %s168, 320
        %v6849 = vld [vmem:[%s6848] sm:$0xff]
        %v6850 = vld [vmem:[%s6848 + $0x10] sm:$0xff]
        %v6851 = vld [vmem:[%s6848 + $0x20] sm:$0xff]
        %v6852 = vld [vmem:[%s6848 + $0x30] sm:$0xff]
        %v6853 = vld [vmem:[%s6848 + $0x40] sm:$0xff]
        %v6854 = vld [vmem:[%s6848 + $0x50] sm:$0xff]
        %v6855 = vld [vmem:[%s6848 + $0x60] sm:$0xff]
        %v6856 = vld [vmem:[%s6848 + $0x70] sm:$0xff]
        %v6857 = vld [vmem:[%s6848 + $0xa0] sm:$0xff]
        %v6858 = vld [vmem:[%s6848 + $0xb0] sm:$0xff]
        %v6859 = vld [vmem:[%s6848 + $0xc0] sm:$0xff]
        %v6860 = vld [vmem:[%s6848 + $0xd0] sm:$0xff]
        %v6861 = vld [vmem:[%s6848 + $0xe0] sm:$0xff]
        %v6862 = vld [vmem:[%s6848 + $0xf0] sm:$0xff]
        %v6863 = vld [vmem:[%s6848 + $0x100] sm:$0xff]
        %v6864 = vld [vmem:[%s6848 + $0x110] sm:$0xff]
        %v6865 = vld [vmem:[%s6848 + $0x140] sm:$0xff]
        %v6866 = vld [vmem:[%s6848 + $0x150] sm:$0xff]
        %v6867 = vld [vmem:[%s6848 + $0x160] sm:$0xff]
        %v6868 = vld [vmem:[%s6848 + $0x170] sm:$0xff]
        %v6869 = vld [vmem:[%s6848 + $0x180] sm:$0xff]
        %v6870 = vld [vmem:[%s6848 + $0x190] sm:$0xff]
        %v6871 = vld [vmem:[%s6848 + $0x1a0] sm:$0xff]
        %v6872 = vld [vmem:[%s6848 + $0x1b0] sm:$0xff]
        %v6873 = vld [vmem:[%s6848 + $0x1e0] sm:$0xff]
        %v6874 = vld [vmem:[%s6848 + $0x1f0] sm:$0xff]
        %v6875 = vld [vmem:[%s6848 + $0x200] sm:$0xff]
        %v6876 = vld [vmem:[%s6848 + $0x210] sm:$0xff]
        %v6877 = vld [vmem:[%s6848 + $0x220] sm:$0xff]
        %v6878 = vld [vmem:[%s6848 + $0x230] sm:$0xff]
        %v6879 = vld [vmem:[%s6848 + $0x240] sm:$0xff]
        %v6880 = vld [vmem:[%s6848 + $0x250] sm:$0xff]
        %v6881 = vld [vmem:[%s6848 + $0x280] sm:$0xff]
        %v6882 = vld [vmem:[%s6848 + $0x290] sm:$0xff]
        %v6883 = vld [vmem:[%s6848 + $0x2a0] sm:$0xff]
        %v6884 = vld [vmem:[%s6848 + $0x2b0] sm:$0xff]
        %v6885 = vld [vmem:[%s6848 + $0x2c0] sm:$0xff]
        %v6886 = vld [vmem:[%s6848 + $0x2d0] sm:$0xff]
        %v6887 = vld [vmem:[%s6848 + $0x2e0] sm:$0xff]
        %v6888 = vld [vmem:[%s6848 + $0x2f0] sm:$0xff]
        %v6889 = vld [vmem:[%s6848 + $0x320] sm:$0xff]
        %v6890 = vld [vmem:[%s6848 + $0x330] sm:$0xff]
        %v6891 = vld [vmem:[%s6848 + $0x340] sm:$0xff]
        %v6892 = vld [vmem:[%s6848 + $0x350] sm:$0xff]
        %v6893 = vld [vmem:[%s6848 + $0x360] sm:$0xff]
        %v6894 = vld [vmem:[%s6848 + $0x370] sm:$0xff]
        %v6895 = vld [vmem:[%s6848 + $0x380] sm:$0xff]
        %v6896 = vld [vmem:[%s6848 + $0x390] sm:$0xff]
        %v6897 = vld [vmem:[%s6848 + $0x3c0] sm:$0xff]
        %v6898 = vld [vmem:[%s6848 + $0x3d0] sm:$0xff]
        %v6899 = vld [vmem:[%s6848 + $0x3e0] sm:$0xff]
        %v6900 = vld [vmem:[%s6848 + $0x3f0] sm:$0xff]
        %v6901 = vld [vmem:[%s6848 + $0x400] sm:$0xff]
        %v6902 = vld [vmem:[%s6848 + $0x410] sm:$0xff]
        %v6903 = vld [vmem:[%s6848 + $0x420] sm:$0xff]
        %v6904 = vld [vmem:[%s6848 + $0x430] sm:$0xff]
        %v6905 = vld [vmem:[%s6848 + $0x460] sm:$0xff]
        %v6906 = vld [vmem:[%s6848 + $0x470] sm:$0xff]
        %v6907 = vld [vmem:[%s6848 + $0x480] sm:$0xff]
        %v6908 = vld [vmem:[%s6848 + $0x490] sm:$0xff]
        %v6909 = vld [vmem:[%s6848 + $0x4a0] sm:$0xff]
        %v6910 = vld [vmem:[%s6848 + $0x4b0] sm:$0xff]
        %v6911 = vld [vmem:[%s6848 + $0x4c0] sm:$0xff]
        %v6912 = vld [vmem:[%s6848 + $0x4d0] sm:$0xff]
        %6977 = vrot.lane.b32.xlu0 %v6849, 72
        %v6978 = vpop.permute.xlu0 %6977
        %6979 = vrot.lane.b32.xlu0 %v6850, 72
        %v6980 = vpop.permute.xlu0 %6979
        %6981 = vrot.lane.b32.xlu0 %v6851, 72
        %v6982 = vpop.permute.xlu0 %6981
        %6983 = vrot.lane.b32.xlu0 %v6852, 72
        %v6984 = vpop.permute.xlu0 %6983
        %6985 = vrot.lane.b32.xlu0 %v6853, 72
        %v6986 = vpop.permute.xlu0 %6985
        %6987 = vrot.lane.b32.xlu0 %v6854, 72
        %v6988 = vpop.permute.xlu0 %6987
        %6989 = vrot.lane.b32.xlu0 %v6855, 72
        %v6990 = vpop.permute.xlu0 %6989
        %6991 = vrot.lane.b32.xlu0 %v6856, 72
        %v6992 = vpop.permute.xlu0 %6991
        %6993 = vrot.lane.b32.xlu0 %v6857, 72
        %v6994 = vpop.permute.xlu0 %6993
        %6995 = vrot.lane.b32.xlu0 %v6858, 72
        %v6996 = vpop.permute.xlu0 %6995
        %6997 = vrot.lane.b32.xlu0 %v6859, 72
        %v6998 = vpop.permute.xlu0 %6997
        %6999 = vrot.lane.b32.xlu0 %v6860, 72
        %v7000 = vpop.permute.xlu0 %6999
        %7001 = vrot.lane.b32.xlu0 %v6861, 72
        %v7002 = vpop.permute.xlu0 %7001
        %7003 = vrot.lane.b32.xlu0 %v6862, 72
        %v7004 = vpop.permute.xlu0 %7003
        %7005 = vrot.lane.b32.xlu0 %v6863, 72
        %v7006 = vpop.permute.xlu0 %7005
        %7007 = vrot.lane.b32.xlu0 %v6864, 72
        %v7008 = vpop.permute.xlu0 %7007
        %7009 = vrot.lane.b32.xlu0 %v6865, 72
        %v7010 = vpop.permute.xlu0 %7009
        %7011 = vrot.lane.b32.xlu0 %v6866, 72
        %v7012 = vpop.permute.xlu0 %7011
        %7013 = vrot.lane.b32.xlu0 %v6867, 72
        %v7014 = vpop.permute.xlu0 %7013
        %7015 = vrot.lane.b32.xlu0 %v6868, 72
        %v7016 = vpop.permute.xlu0 %7015
        %7017 = vrot.lane.b32.xlu0 %v6869, 72
        %v7018 = vpop.permute.xlu0 %7017
        %7019 = vrot.lane.b32.xlu0 %v6870, 72
        %v7020 = vpop.permute.xlu0 %7019
        %7021 = vrot.lane.b32.xlu0 %v6871, 72
        %v7022 = vpop.permute.xlu0 %7021
        %7023 = vrot.lane.b32.xlu0 %v6872, 72
        %v7024 = vpop.permute.xlu0 %7023
        %7025 = vrot.lane.b32.xlu0 %v6873, 72
        %v7026 = vpop.permute.xlu0 %7025
        %7027 = vrot.lane.b32.xlu0 %v6874, 72
        %v7028 = vpop.permute.xlu0 %7027
        %7029 = vrot.lane.b32.xlu0 %v6875, 72
        %v7030 = vpop.permute.xlu0 %7029
        %7031 = vrot.lane.b32.xlu0 %v6876, 72
        %v7032 = vpop.permute.xlu0 %7031
        %7033 = vrot.lane.b32.xlu0 %v6877, 72
        %v7034 = vpop.permute.xlu0 %7033
        %7035 = vrot.lane.b32.xlu0 %v6878, 72
        %v7036 = vpop.permute.xlu0 %7035
        %7037 = vrot.lane.b32.xlu0 %v6879, 72
        %v7038 = vpop.permute.xlu0 %7037
        %7039 = vrot.lane.b32.xlu0 %v6880, 72
        %v7040 = vpop.permute.xlu0 %7039
        %7041 = vrot.lane.b32.xlu0 %v6881, 72
        %v7042 = vpop.permute.xlu0 %7041
        %7043 = vrot.lane.b32.xlu0 %v6882, 72
        %v7044 = vpop.permute.xlu0 %7043
        %7045 = vrot.lane.b32.xlu0 %v6883, 72
        %v7046 = vpop.permute.xlu0 %7045
        %7047 = vrot.lane.b32.xlu0 %v6884, 72
        %v7048 = vpop.permute.xlu0 %7047
        %7049 = vrot.lane.b32.xlu0 %v6885, 72
        %v7050 = vpop.permute.xlu0 %7049
        %7051 = vrot.lane.b32.xlu0 %v6886, 72
        %v7052 = vpop.permute.xlu0 %7051
        %7053 = vrot.lane.b32.xlu0 %v6887, 72
        %v7054 = vpop.permute.xlu0 %7053
        %7055 = vrot.lane.b32.xlu0 %v6888, 72
        %v7056 = vpop.permute.xlu0 %7055
        %7057 = vrot.lane.b32.xlu0 %v6889, 72
        %v7058 = vpop.permute.xlu0 %7057
        %7059 = vrot.lane.b32.xlu0 %v6890, 72
        %v7060 = vpop.permute.xlu0 %7059
        %7061 = vrot.lane.b32.xlu0 %v6891, 72
        %v7062 = vpop.permute.xlu0 %7061
        %7063 = vrot.lane.b32.xlu0 %v6892, 72
        %v7064 = vpop.permute.xlu0 %7063
        %7065 = vrot.lane.b32.xlu0 %v6893, 72
        %v7066 = vpop.permute.xlu0 %7065
        %7067 = vrot.lane.b32.xlu0 %v6894, 72
        %v7068 = vpop.permute.xlu0 %7067
        %7069 = vrot.lane.b32.xlu0 %v6895, 72
        %v7070 = vpop.permute.xlu0 %7069
        %7071 = vrot.lane.b32.xlu0 %v6896, 72
        %v7072 = vpop.permute.xlu0 %7071
        %7073 = vrot.lane.b32.xlu0 %v6897, 72
        %v7074 = vpop.permute.xlu0 %7073
        %7075 = vrot.lane.b32.xlu0 %v6898, 72
        %v7076 = vpop.permute.xlu0 %7075
        %7077 = vrot.lane.b32.xlu0 %v6899, 72
        %v7078 = vpop.permute.xlu0 %7077
        %7079 = vrot.lane.b32.xlu0 %v6900, 72
        %v7080 = vpop.permute.xlu0 %7079
        %7081 = vrot.lane.b32.xlu0 %v6901, 72
        %v7082 = vpop.permute.xlu0 %7081
        %7083 = vrot.lane.b32.xlu0 %v6902, 72
        %v7084 = vpop.permute.xlu0 %7083
        %7085 = vrot.lane.b32.xlu0 %v6903, 72
        %v7086 = vpop.permute.xlu0 %7085
        %7087 = vrot.lane.b32.xlu0 %v6904, 72
        %v7088 = vpop.permute.xlu0 %7087
        %7089 = vrot.lane.b32.xlu0 %v6905, 72
        %v7090 = vpop.permute.xlu0 %7089
        %7091 = vrot.lane.b32.xlu0 %v6906, 72
        %v7092 = vpop.permute.xlu0 %7091
        %7093 = vrot.lane.b32.xlu0 %v6907, 72
        %v7094 = vpop.permute.xlu0 %7093
        %7095 = vrot.lane.b32.xlu0 %v6908, 72
        %v7096 = vpop.permute.xlu0 %7095
        %7097 = vrot.lane.b32.xlu0 %v6909, 72
        %v7098 = vpop.permute.xlu0 %7097
        %7099 = vrot.lane.b32.xlu0 %v6910, 72
        %v7100 = vpop.permute.xlu0 %7099
        %7101 = vrot.lane.b32.xlu0 %v6911, 72
        %v7102 = vpop.permute.xlu0 %7101
        %7103 = vrot.lane.b32.xlu0 %v6912, 72
        %v7104 = vpop.permute.xlu0 %7103
        %vm7169 = vcmask 622144
        %7170 = vst.msk [vmem:[#allocation2] sm:$0xff] %vm7169, %v6978
        %7171 = vst.msk [vmem:[#allocation2 + $0x8] sm:$0xff] %vm7169, %v6980
        %7172 = vst.msk [vmem:[#allocation2 + $0x10] sm:$0xff] %vm7169, %v6982
        %7173 = vst.msk [vmem:[#allocation2 + $0x18] sm:$0xff] %vm7169, %v6984
        %7174 = vst.msk [vmem:[#allocation2 + $0x20] sm:$0xff] %vm7169, %v6986
        %7175 = vst.msk [vmem:[#allocation2 + $0x28] sm:$0xff] %vm7169, %v6988
        %7176 = vst.msk [vmem:[#allocation2 + $0x30] sm:$0xff] %vm7169, %v6990
        %7177 = vst.msk [vmem:[#allocation2 + $0x38] sm:$0xff] %vm7169, %v6992
        %7178 = vst.msk [vmem:[#allocation2 + $0x40] sm:$0xff] %vm7169, %v6994
        %7179 = vst.msk [vmem:[#allocation2 + $0x48] sm:$0xff] %vm7169, %v6996
        %7180 = vst.msk [vmem:[#allocation2 + $0x50] sm:$0xff] %vm7169, %v6998
        %7181 = vst.msk [vmem:[#allocation2 + $0x58] sm:$0xff] %vm7169, %v7000
        %7182 = vst.msk [vmem:[#allocation2 + $0x60] sm:$0xff] %vm7169, %v7002
        %7183 = vst.msk [vmem:[#allocation2 + $0x68] sm:$0xff] %vm7169, %v7004
        %7184 = vst.msk [vmem:[#allocation2 + $0x70] sm:$0xff] %vm7169, %v7006
        %7185 = vst.msk [vmem:[#allocation2 + $0x78] sm:$0xff] %vm7169, %v7008
        %7186 = vst.msk [vmem:[#allocation2 + $0x80] sm:$0xff] %vm7169, %v7010
        %7187 = vst.msk [vmem:[#allocation2 + $0x88] sm:$0xff] %vm7169, %v7012
        %7188 = vst.msk [vmem:[#allocation2 + $0x90] sm:$0xff] %vm7169, %v7014
        %7189 = vst.msk [vmem:[#allocation2 + $0x98] sm:$0xff] %vm7169, %v7016
        %7190 = vst.msk [vmem:[#allocation2 + $0xa0] sm:$0xff] %vm7169, %v7018
        %7191 = vst.msk [vmem:[#allocation2 + $0xa8] sm:$0xff] %vm7169, %v7020
        %7192 = vst.msk [vmem:[#allocation2 + $0xb0] sm:$0xff] %vm7169, %v7022
        %7193 = vst.msk [vmem:[#allocation2 + $0xb8] sm:$0xff] %vm7169, %v7024
        %7194 = vst.msk [vmem:[#allocation2 + $0xc0] sm:$0xff] %vm7169, %v7026
        %7195 = vst.msk [vmem:[#allocation2 + $0xc8] sm:$0xff] %vm7169, %v7028
        %7196 = vst.msk [vmem:[#allocation2 + $0xd0] sm:$0xff] %vm7169, %v7030
        %7197 = vst.msk [vmem:[#allocation2 + $0xd8] sm:$0xff] %vm7169, %v7032
        %7198 = vst.msk [vmem:[#allocation2 + $0xe0] sm:$0xff] %vm7169, %v7034
        %7199 = vst.msk [vmem:[#allocation2 + $0xe8] sm:$0xff] %vm7169, %v7036
        %7200 = vst.msk [vmem:[#allocation2 + $0xf0] sm:$0xff] %vm7169, %v7038
        %7201 = vst.msk [vmem:[#allocation2 + $0xf8] sm:$0xff] %vm7169, %v7040
        %7202 = vst.msk [vmem:[#allocation2 + $0x100] sm:$0xff] %vm7169, %v7042
        %7203 = vst.msk [vmem:[#allocation2 + $0x108] sm:$0xff] %vm7169, %v7044
        %7204 = vst.msk [vmem:[#allocation2 + $0x110] sm:$0xff] %vm7169, %v7046
        %7205 = vst.msk [vmem:[#allocation2 + $0x118] sm:$0xff] %vm7169, %v7048
        %7206 = vst.msk [vmem:[#allocation2 + $0x120] sm:$0xff] %vm7169, %v7050
        %7207 = vst.msk [vmem:[#allocation2 + $0x128] sm:$0xff] %vm7169, %v7052
        %7208 = vst.msk [vmem:[#allocation2 + $0x130] sm:$0xff] %vm7169, %v7054
        %7209 = vst.msk [vmem:[#allocation2 + $0x138] sm:$0xff] %vm7169, %v7056
        %7210 = vst.msk [vmem:[#allocation2 + $0x140] sm:$0xff] %vm7169, %v7058
        %7211 = vst.msk [vmem:[#allocation2 + $0x148] sm:$0xff] %vm7169, %v7060
        %7212 = vst.msk [vmem:[#allocation2 + $0x150] sm:$0xff] %vm7169, %v7062
        %7213 = vst.msk [vmem:[#allocation2 + $0x158] sm:$0xff] %vm7169, %v7064
        %7214 = vst.msk [vmem:[#allocation2 + $0x160] sm:$0xff] %vm7169, %v7066
        %7215 = vst.msk [vmem:[#allocation2 + $0x168] sm:$0xff] %vm7169, %v7068
        %7216 = vst.msk [vmem:[#allocation2 + $0x170] sm:$0xff] %vm7169, %v7070
        %7217 = vst.msk [vmem:[#allocation2 + $0x178] sm:$0xff] %vm7169, %v7072
        %7218 = vst.msk [vmem:[#allocation2 + $0x180] sm:$0xff] %vm7169, %v7074
        %7219 = vst.msk [vmem:[#allocation2 + $0x188] sm:$0xff] %vm7169, %v7076
        %7220 = vst.msk [vmem:[#allocation2 + $0x190] sm:$0xff] %vm7169, %v7078
        %7221 = vst.msk [vmem:[#allocation2 + $0x198] sm:$0xff] %vm7169, %v7080
        %7222 = vst.msk [vmem:[#allocation2 + $0x1a0] sm:$0xff] %vm7169, %v7082
        %7223 = vst.msk [vmem:[#allocation2 + $0x1a8] sm:$0xff] %vm7169, %v7084
        %7224 = vst.msk [vmem:[#allocation2 + $0x1b0] sm:$0xff] %vm7169, %v7086
        %7225 = vst.msk [vmem:[#allocation2 + $0x1b8] sm:$0xff] %vm7169, %v7088
        %7226 = vst.msk [vmem:[#allocation2 + $0x1c0] sm:$0xff] %vm7169, %v7090
        %7227 = vst.msk [vmem:[#allocation2 + $0x1c8] sm:$0xff] %vm7169, %v7092
        %7228 = vst.msk [vmem:[#allocation2 + $0x1d0] sm:$0xff] %vm7169, %v7094
        %7229 = vst.msk [vmem:[#allocation2 + $0x1d8] sm:$0xff] %vm7169, %v7096
        %7230 = vst.msk [vmem:[#allocation2 + $0x1e0] sm:$0xff] %vm7169, %v7098
        %7231 = vst.msk [vmem:[#allocation2 + $0x1e8] sm:$0xff] %vm7169, %v7100
        %7232 = vst.msk [vmem:[#allocation2 + $0x1f0] sm:$0xff] %vm7169, %v7102
        %7233 = vst.msk [vmem:[#allocation2 + $0x1f8] sm:$0xff] %vm7169, %v7104
        %v7234 = vld [vmem:[%s6848 + $0x1] sm:$0xff]
        %v7235 = vld [vmem:[%s6848 + $0x11] sm:$0xff]
        %v7236 = vld [vmem:[%s6848 + $0x21] sm:$0xff]
        %v7237 = vld [vmem:[%s6848 + $0x31] sm:$0xff]
        %v7238 = vld [vmem:[%s6848 + $0x41] sm:$0xff]
        %v7239 = vld [vmem:[%s6848 + $0x51] sm:$0xff]
        %v7240 = vld [vmem:[%s6848 + $0x61] sm:$0xff]
        %v7241 = vld [vmem:[%s6848 + $0x71] sm:$0xff]
        %v7242 = vld [vmem:[%s6848 + $0xa1] sm:$0xff]
        %v7243 = vld [vmem:[%s6848 + $0xb1] sm:$0xff]
        %v7244 = vld [vmem:[%s6848 + $0xc1] sm:$0xff]
        %v7245 = vld [vmem:[%s6848 + $0xd1] sm:$0xff]
        %v7246 = vld [vmem:[%s6848 + $0xe1] sm:$0xff]
        %v7247 = vld [vmem:[%s6848 + $0xf1] sm:$0xff]
        %v7248 = vld [vmem:[%s6848 + $0x101] sm:$0xff]
        %v7249 = vld [vmem:[%s6848 + $0x111] sm:$0xff]
        %v7250 = vld [vmem:[%s6848 + $0x141] sm:$0xff]
        %v7251 = vld [vmem:[%s6848 + $0x151] sm:$0xff]
        %v7252 = vld [vmem:[%s6848 + $0x161] sm:$0xff]
        %v7253 = vld [vmem:[%s6848 + $0x171] sm:$0xff]
        %v7254 = vld [vmem:[%s6848 + $0x181] sm:$0xff]
        %v7255 = vld [vmem:[%s6848 + $0x191] sm:$0xff]
        %v7256 = vld [vmem:[%s6848 + $0x1a1] sm:$0xff]
        %v7257 = vld [vmem:[%s6848 + $0x1b1] sm:$0xff]
        %v7258 = vld [vmem:[%s6848 + $0x1e1] sm:$0xff]
        %v7259 = vld [vmem:[%s6848 + $0x1f1] sm:$0xff]
        %v7260 = vld [vmem:[%s6848 + $0x201] sm:$0xff]
        %v7261 = vld [vmem:[%s6848 + $0x211] sm:$0xff]
        %v7262 = vld [vmem:[%s6848 + $0x221] sm:$0xff]
        %v7263 = vld [vmem:[%s6848 + $0x231] sm:$0xff]
        %v7264 = vld [vmem:[%s6848 + $0x241] sm:$0xff]
        %v7265 = vld [vmem:[%s6848 + $0x251] sm:$0xff]
        %v7266 = vld [vmem:[%s6848 + $0x281] sm:$0xff]
        %v7267 = vld [vmem:[%s6848 + $0x291] sm:$0xff]
        %v7268 = vld [vmem:[%s6848 + $0x2a1] sm:$0xff]
        %v7269 = vld [vmem:[%s6848 + $0x2b1] sm:$0xff]
        %v7270 = vld [vmem:[%s6848 + $0x2c1] sm:$0xff]
        %v7271 = vld [vmem:[%s6848 + $0x2d1] sm:$0xff]
        %v7272 = vld [vmem:[%s6848 + $0x2e1] sm:$0xff]
        %v7273 = vld [vmem:[%s6848 + $0x2f1] sm:$0xff]
        %v7274 = vld [vmem:[%s6848 + $0x321] sm:$0xff]
        %v7275 = vld [vmem:[%s6848 + $0x331] sm:$0xff]
        %v7276 = vld [vmem:[%s6848 + $0x341] sm:$0xff]
        %v7277 = vld [vmem:[%s6848 + $0x351] sm:$0xff]
        %v7278 = vld [vmem:[%s6848 + $0x361] sm:$0xff]
        %v7279 = vld [vmem:[%s6848 + $0x371] sm:$0xff]
        %v7280 = vld [vmem:[%s6848 + $0x381] sm:$0xff]
        %v7281 = vld [vmem:[%s6848 + $0x391] sm:$0xff]
        %v7282 = vld [vmem:[%s6848 + $0x3c1] sm:$0xff]
        %v7283 = vld [vmem:[%s6848 + $0x3d1] sm:$0xff]
        %v7284 = vld [vmem:[%s6848 + $0x3e1] sm:$0xff]
        %v7285 = vld [vmem:[%s6848 + $0x3f1] sm:$0xff]
        %v7286 = vld [vmem:[%s6848 + $0x401] sm:$0xff]
        %v7287 = vld [vmem:[%s6848 + $0x411] sm:$0xff]
        %v7288 = vld [vmem:[%s6848 + $0x421] sm:$0xff]
        %v7289 = vld [vmem:[%s6848 + $0x431] sm:$0xff]
        %v7290 = vld [vmem:[%s6848 + $0x461] sm:$0xff]
        %v7291 = vld [vmem:[%s6848 + $0x471] sm:$0xff]
        %v7292 = vld [vmem:[%s6848 + $0x481] sm:$0xff]
        %v7293 = vld [vmem:[%s6848 + $0x491] sm:$0xff]
        %v7294 = vld [vmem:[%s6848 + $0x4a1] sm:$0xff]
        %v7295 = vld [vmem:[%s6848 + $0x4b1] sm:$0xff]
        %v7296 = vld [vmem:[%s6848 + $0x4c1] sm:$0xff]
        %v7297 = vld [vmem:[%s6848 + $0x4d1] sm:$0xff]
        %7362 = vrot.lane.b32.xlu0 %v7234, 76
        %v7363 = vpop.permute.xlu0 %7362
        %7364 = vrot.lane.b32.xlu0 %v7235, 76
        %v7365 = vpop.permute.xlu0 %7364
        %7366 = vrot.lane.b32.xlu0 %v7236, 76
        %v7367 = vpop.permute.xlu0 %7366
        %7368 = vrot.lane.b32.xlu0 %v7237, 76
        %v7369 = vpop.permute.xlu0 %7368
        %7370 = vrot.lane.b32.xlu0 %v7238, 76
        %v7371 = vpop.permute.xlu0 %7370
        %7372 = vrot.lane.b32.xlu0 %v7239, 76
        %v7373 = vpop.permute.xlu0 %7372
        %7374 = vrot.lane.b32.xlu0 %v7240, 76
        %v7375 = vpop.permute.xlu0 %7374
        %7376 = vrot.lane.b32.xlu0 %v7241, 76
        %v7377 = vpop.permute.xlu0 %7376
        %7378 = vrot.lane.b32.xlu0 %v7242, 76
        %v7379 = vpop.permute.xlu0 %7378
        %7380 = vrot.lane.b32.xlu0 %v7243, 76
        %v7381 = vpop.permute.xlu0 %7380
        %7382 = vrot.lane.b32.xlu0 %v7244, 76
        %v7383 = vpop.permute.xlu0 %7382
        %7384 = vrot.lane.b32.xlu0 %v7245, 76
        %v7385 = vpop.permute.xlu0 %7384
        %7386 = vrot.lane.b32.xlu0 %v7246, 76
        %v7387 = vpop.permute.xlu0 %7386
        %7388 = vrot.lane.b32.xlu0 %v7247, 76
        %v7389 = vpop.permute.xlu0 %7388
        %7390 = vrot.lane.b32.xlu0 %v7248, 76
        %v7391 = vpop.permute.xlu0 %7390
        %7392 = vrot.lane.b32.xlu0 %v7249, 76
        %v7393 = vpop.permute.xlu0 %7392
        %7394 = vrot.lane.b32.xlu0 %v7250, 76
        %v7395 = vpop.permute.xlu0 %7394
        %7396 = vrot.lane.b32.xlu0 %v7251, 76
        %v7397 = vpop.permute.xlu0 %7396
        %7398 = vrot.lane.b32.xlu0 %v7252, 76
        %v7399 = vpop.permute.xlu0 %7398
        %7400 = vrot.lane.b32.xlu0 %v7253, 76
        %v7401 = vpop.permute.xlu0 %7400
        %7402 = vrot.lane.b32.xlu0 %v7254, 76
        %v7403 = vpop.permute.xlu0 %7402
        %7404 = vrot.lane.b32.xlu0 %v7255, 76
        %v7405 = vpop.permute.xlu0 %7404
        %7406 = vrot.lane.b32.xlu0 %v7256, 76
        %v7407 = vpop.permute.xlu0 %7406
        %7408 = vrot.lane.b32.xlu0 %v7257, 76
        %v7409 = vpop.permute.xlu0 %7408
        %7410 = vrot.lane.b32.xlu0 %v7258, 76
        %v7411 = vpop.permute.xlu0 %7410
        %7412 = vrot.lane.b32.xlu0 %v7259, 76
        %v7413 = vpop.permute.xlu0 %7412
        %7414 = vrot.lane.b32.xlu0 %v7260, 76
        %v7415 = vpop.permute.xlu0 %7414
        %7416 = vrot.lane.b32.xlu0 %v7261, 76
        %v7417 = vpop.permute.xlu0 %7416
        %7418 = vrot.lane.b32.xlu0 %v7262, 76
        %v7419 = vpop.permute.xlu0 %7418
        %7420 = vrot.lane.b32.xlu0 %v7263, 76
        %v7421 = vpop.permute.xlu0 %7420
        %7422 = vrot.lane.b32.xlu0 %v7264, 76
        %v7423 = vpop.permute.xlu0 %7422
        %7424 = vrot.lane.b32.xlu0 %v7265, 76
        %v7425 = vpop.permute.xlu0 %7424
        %7426 = vrot.lane.b32.xlu0 %v7266, 76
        %v7427 = vpop.permute.xlu0 %7426
        %7428 = vrot.lane.b32.xlu0 %v7267, 76
        %v7429 = vpop.permute.xlu0 %7428
        %7430 = vrot.lane.b32.xlu0 %v7268, 76
        %v7431 = vpop.permute.xlu0 %7430
        %7432 = vrot.lane.b32.xlu0 %v7269, 76
        %v7433 = vpop.permute.xlu0 %7432
        %7434 = vrot.lane.b32.xlu0 %v7270, 76
        %v7435 = vpop.permute.xlu0 %7434
        %7436 = vrot.lane.b32.xlu0 %v7271, 76
        %v7437 = vpop.permute.xlu0 %7436
        %7438 = vrot.lane.b32.xlu0 %v7272, 76
        %v7439 = vpop.permute.xlu0 %7438
        %7440 = vrot.lane.b32.xlu0 %v7273, 76
        %v7441 = vpop.permute.xlu0 %7440
        %7442 = vrot.lane.b32.xlu0 %v7274, 76
        %v7443 = vpop.permute.xlu0 %7442
        %7444 = vrot.lane.b32.xlu0 %v7275, 76
        %v7445 = vpop.permute.xlu0 %7444
        %7446 = vrot.lane.b32.xlu0 %v7276, 76
        %v7447 = vpop.permute.xlu0 %7446
        %7448 = vrot.lane.b32.xlu0 %v7277, 76
        %v7449 = vpop.permute.xlu0 %7448
        %7450 = vrot.lane.b32.xlu0 %v7278, 76
        %v7451 = vpop.permute.xlu0 %7450
        %7452 = vrot.lane.b32.xlu0 %v7279, 76
        %v7453 = vpop.permute.xlu0 %7452
        %7454 = vrot.lane.b32.xlu0 %v7280, 76
        %v7455 = vpop.permute.xlu0 %7454
        %7456 = vrot.lane.b32.xlu0 %v7281, 76
        %v7457 = vpop.permute.xlu0 %7456
        %7458 = vrot.lane.b32.xlu0 %v7282, 76
        %v7459 = vpop.permute.xlu0 %7458
        %7460 = vrot.lane.b32.xlu0 %v7283, 76
        %v7461 = vpop.permute.xlu0 %7460
        %7462 = vrot.lane.b32.xlu0 %v7284, 76
        %v7463 = vpop.permute.xlu0 %7462
        %7464 = vrot.lane.b32.xlu0 %v7285, 76
        %v7465 = vpop.permute.xlu0 %7464
        %7466 = vrot.lane.b32.xlu0 %v7286, 76
        %v7467 = vpop.permute.xlu0 %7466
        %7468 = vrot.lane.b32.xlu0 %v7287, 76
        %v7469 = vpop.permute.xlu0 %7468
        %7470 = vrot.lane.b32.xlu0 %v7288, 76
        %v7471 = vpop.permute.xlu0 %7470
        %7472 = vrot.lane.b32.xlu0 %v7289, 76
        %v7473 = vpop.permute.xlu0 %7472
        %7474 = vrot.lane.b32.xlu0 %v7290, 76
        %v7475 = vpop.permute.xlu0 %7474
        %7476 = vrot.lane.b32.xlu0 %v7291, 76
        %v7477 = vpop.permute.xlu0 %7476
        %7478 = vrot.lane.b32.xlu0 %v7292, 76
        %v7479 = vpop.permute.xlu0 %7478
        %7480 = vrot.lane.b32.xlu0 %v7293, 76
        %v7481 = vpop.permute.xlu0 %7480
        %7482 = vrot.lane.b32.xlu0 %v7294, 76
        %v7483 = vpop.permute.xlu0 %7482
        %7484 = vrot.lane.b32.xlu0 %v7295, 76
        %v7485 = vpop.permute.xlu0 %7484
        %7486 = vrot.lane.b32.xlu0 %v7296, 76
        %v7487 = vpop.permute.xlu0 %7486
        %7488 = vrot.lane.b32.xlu0 %v7297, 76
        %v7489 = vpop.permute.xlu0 %7488
        %vm7554 = vcmask 654944
        %7555 = vst.msk [vmem:[#allocation2] sm:$0xff] %vm7554, %v7363
        %7556 = vst.msk [vmem:[#allocation2 + $0x8] sm:$0xff] %vm7554, %v7365
        %7557 = vst.msk [vmem:[#allocation2 + $0x10] sm:$0xff] %vm7554, %v7367
        %7558 = vst.msk [vmem:[#allocation2 + $0x18] sm:$0xff] %vm7554, %v7369
        %7559 = vst.msk [vmem:[#allocation2 + $0x20] sm:$0xff] %vm7554, %v7371
        %7560 = vst.msk [vmem:[#allocation2 + $0x28] sm:$0xff] %vm7554, %v7373
        %7561 = vst.msk [vmem:[#allocation2 + $0x30] sm:$0xff] %vm7554, %v7375
        %7562 = vst.msk [vmem:[#allocation2 + $0x38] sm:$0xff] %vm7554, %v7377
        %7563 = vst.msk [vmem:[#allocation2 + $0x40] sm:$0xff] %vm7554, %v7379
        %7564 = vst.msk [vmem:[#allocation2 + $0x48] sm:$0xff] %vm7554, %v7381
        %7565 = vst.msk [vmem:[#allocation2 + $0x50] sm:$0xff] %vm7554, %v7383
        %7566 = vst.msk [vmem:[#allocation2 + $0x58] sm:$0xff] %vm7554, %v7385
        %7567 = vst.msk [vmem:[#allocation2 + $0x60] sm:$0xff] %vm7554, %v7387
        %7568 = vst.msk [vmem:[#allocation2 + $0x68] sm:$0xff] %vm7554, %v7389
        %7569 = vst.msk [vmem:[#allocation2 + $0x70] sm:$0xff] %vm7554, %v7391
        %7570 = vst.msk [vmem:[#allocation2 + $0x78] sm:$0xff] %vm7554, %v7393
        %7571 = vst.msk [vmem:[#allocation2 + $0x80] sm:$0xff] %vm7554, %v7395
        %7572 = vst.msk [vmem:[#allocation2 + $0x88] sm:$0xff] %vm7554, %v7397
        %7573 = vst.msk [vmem:[#allocation2 + $0x90] sm:$0xff] %vm7554, %v7399
        %7574 = vst.msk [vmem:[#allocation2 + $0x98] sm:$0xff] %vm7554, %v7401
        %7575 = vst.msk [vmem:[#allocation2 + $0xa0] sm:$0xff] %vm7554, %v7403
        %7576 = vst.msk [vmem:[#allocation2 + $0xa8] sm:$0xff] %vm7554, %v7405
        %7577 = vst.msk [vmem:[#allocation2 + $0xb0] sm:$0xff] %vm7554, %v7407
        %7578 = vst.msk [vmem:[#allocation2 + $0xb8] sm:$0xff] %vm7554, %v7409
        %7579 = vst.msk [vmem:[#allocation2 + $0xc0] sm:$0xff] %vm7554, %v7411
        %7580 = vst.msk [vmem:[#allocation2 + $0xc8] sm:$0xff] %vm7554, %v7413
        %7581 = vst.msk [vmem:[#allocation2 + $0xd0] sm:$0xff] %vm7554, %v7415
        %7582 = vst.msk [vmem:[#allocation2 + $0xd8] sm:$0xff] %vm7554, %v7417
        %7583 = vst.msk [vmem:[#allocation2 + $0xe0] sm:$0xff] %vm7554, %v7419
        %7584 = vst.msk [vmem:[#allocation2 + $0xe8] sm:$0xff] %vm7554, %v7421
        %7585 = vst.msk [vmem:[#allocation2 + $0xf0] sm:$0xff] %vm7554, %v7423
        %7586 = vst.msk [vmem:[#allocation2 + $0xf8] sm:$0xff] %vm7554, %v7425
        %7587 = vst.msk [vmem:[#allocation2 + $0x100] sm:$0xff] %vm7554, %v7427
        %7588 = vst.msk [vmem:[#allocation2 + $0x108] sm:$0xff] %vm7554, %v7429
        %7589 = vst.msk [vmem:[#allocation2 + $0x110] sm:$0xff] %vm7554, %v7431
        %7590 = vst.msk [vmem:[#allocation2 + $0x118] sm:$0xff] %vm7554, %v7433
        %7591 = vst.msk [vmem:[#allocation2 + $0x120] sm:$0xff] %vm7554, %v7435
        %7592 = vst.msk [vmem:[#allocation2 + $0x128] sm:$0xff] %vm7554, %v7437
        %7593 = vst.msk [vmem:[#allocation2 + $0x130] sm:$0xff] %vm7554, %v7439
        %7594 = vst.msk [vmem:[#allocation2 + $0x138] sm:$0xff] %vm7554, %v7441
        %7595 = vst.msk [vmem:[#allocation2 + $0x140] sm:$0xff] %vm7554, %v7443
        %7596 = vst.msk [vmem:[#allocation2 + $0x148] sm:$0xff] %vm7554, %v7445
        %7597 = vst.msk [vmem:[#allocation2 + $0x150] sm:$0xff] %vm7554, %v7447
        %7598 = vst.msk [vmem:[#allocation2 + $0x158] sm:$0xff] %vm7554, %v7449
        %7599 = vst.msk [vmem:[#allocation2 + $0x160] sm:$0xff] %vm7554, %v7451
        %7600 = vst.msk [vmem:[#allocation2 + $0x168] sm:$0xff] %vm7554, %v7453
        %7601 = vst.msk [vmem:[#allocation2 + $0x170] sm:$0xff] %vm7554, %v7455
        %7602 = vst.msk [vmem:[#allocation2 + $0x178] sm:$0xff] %vm7554, %v7457
        %7603 = vst.msk [vmem:[#allocation2 + $0x180] sm:$0xff] %vm7554, %v7459
        %7604 = vst.msk [vmem:[#allocation2 + $0x188] sm:$0xff] %vm7554, %v7461
        %7605 = vst.msk [vmem:[#allocation2 + $0x190] sm:$0xff] %vm7554, %v7463
        %7606 = vst.msk [vmem:[#allocation2 + $0x198] sm:$0xff] %vm7554, %v7465
        %7607 = vst.msk [vmem:[#allocation2 + $0x1a0] sm:$0xff] %vm7554, %v7467
        %7608 = vst.msk [vmem:[#allocation2 + $0x1a8] sm:$0xff] %vm7554, %v7469
        %7609 = vst.msk [vmem:[#allocation2 + $0x1b0] sm:$0xff] %vm7554, %v7471
        %7610 = vst.msk [vmem:[#allocation2 + $0x1b8] sm:$0xff] %vm7554, %v7473
        %7611 = vst.msk [vmem:[#allocation2 + $0x1c0] sm:$0xff] %vm7554, %v7475
        %7612 = vst.msk [vmem:[#allocation2 + $0x1c8] sm:$0xff] %vm7554, %v7477
        %7613 = vst.msk [vmem:[#allocation2 + $0x1d0] sm:$0xff] %vm7554, %v7479
        %7614 = vst.msk [vmem:[#allocation2 + $0x1d8] sm:$0xff] %vm7554, %v7481
        %7615 = vst.msk [vmem:[#allocation2 + $0x1e0] sm:$0xff] %vm7554, %v7483
        %7616 = vst.msk [vmem:[#allocation2 + $0x1e8] sm:$0xff] %vm7554, %v7485
        %7617 = vst.msk [vmem:[#allocation2 + $0x1f0] sm:$0xff] %vm7554, %v7487
        %7618 = vst.msk [vmem:[#allocation2 + $0x1f8] sm:$0xff] %vm7554, %v7489
        %v7619 = vld [vmem:[%s6848 + $0x2] sm:$0xff]
        %v7620 = vld [vmem:[%s6848 + $0x12] sm:$0xff]
        %v7621 = vld [vmem:[%s6848 + $0x22] sm:$0xff]
        %v7622 = vld [vmem:[%s6848 + $0x32] sm:$0xff]
        %v7623 = vld [vmem:[%s6848 + $0x42] sm:$0xff]
        %v7624 = vld [vmem:[%s6848 + $0x52] sm:$0xff]
        %v7625 = vld [vmem:[%s6848 + $0x62] sm:$0xff]
        %v7626 = vld [vmem:[%s6848 + $0x72] sm:$0xff]
        %v7627 = vld [vmem:[%s6848 + $0xa2] sm:$0xff]
        %v7628 = vld [vmem:[%s6848 + $0xb2] sm:$0xff]
        %v7629 = vld [vmem:[%s6848 + $0xc2] sm:$0xff]
        %v7630 = vld [vmem:[%s6848 + $0xd2] sm:$0xff]
        %v7631 = vld [vmem:[%s6848 + $0xe2] sm:$0xff]
        %v7632 = vld [vmem:[%s6848 + $0xf2] sm:$0xff]
        %v7633 = vld [vmem:[%s6848 + $0x102] sm:$0xff]
        %v7634 = vld [vmem:[%s6848 + $0x112] sm:$0xff]
        %v7635 = vld [vmem:[%s6848 + $0x142] sm:$0xff]
        %v7636 = vld [vmem:[%s6848 + $0x152] sm:$0xff]
        %v7637 = vld [vmem:[%s6848 + $0x162] sm:$0xff]
        %v7638 = vld [vmem:[%s6848 + $0x172] sm:$0xff]
        %v7639 = vld [vmem:[%s6848 + $0x182] sm:$0xff]
        %v7640 = vld [vmem:[%s6848 + $0x192] sm:$0xff]
        %v7641 = vld [vmem:[%s6848 + $0x1a2] sm:$0xff]
        %v7642 = vld [vmem:[%s6848 + $0x1b2] sm:$0xff]
        %v7643 = vld [vmem:[%s6848 + $0x1e2] sm:$0xff]
        %v7644 = vld [vmem:[%s6848 + $0x1f2] sm:$0xff]
        %v7645 = vld [vmem:[%s6848 + $0x202] sm:$0xff]
        %v7646 = vld [vmem:[%s6848 + $0x212] sm:$0xff]
        %v7647 = vld [vmem:[%s6848 + $0x222] sm:$0xff]
        %v7648 = vld [vmem:[%s6848 + $0x232] sm:$0xff]
        %v7649 = vld [vmem:[%s6848 + $0x242] sm:$0xff]
        %v7650 = vld [vmem:[%s6848 + $0x252] sm:$0xff]
        %v7651 = vld [vmem:[%s6848 + $0x282] sm:$0xff]
        %v7652 = vld [vmem:[%s6848 + $0x292] sm:$0xff]
        %v7653 = vld [vmem:[%s6848 + $0x2a2] sm:$0xff]
        %v7654 = vld [vmem:[%s6848 + $0x2b2] sm:$0xff]
        %v7655 = vld [vmem:[%s6848 + $0x2c2] sm:$0xff]
        %v7656 = vld [vmem:[%s6848 + $0x2d2] sm:$0xff]
        %v7657 = vld [vmem:[%s6848 + $0x2e2] sm:$0xff]
        %v7658 = vld [vmem:[%s6848 + $0x2f2] sm:$0xff]
        %v7659 = vld [vmem:[%s6848 + $0x322] sm:$0xff]
        %v7660 = vld [vmem:[%s6848 + $0x332] sm:$0xff]
        %v7661 = vld [vmem:[%s6848 + $0x342] sm:$0xff]
        %v7662 = vld [vmem:[%s6848 + $0x352] sm:$0xff]
        %v7663 = vld [vmem:[%s6848 + $0x362] sm:$0xff]
        %v7664 = vld [vmem:[%s6848 + $0x372] sm:$0xff]
        %v7665 = vld [vmem:[%s6848 + $0x382] sm:$0xff]
        %v7666 = vld [vmem:[%s6848 + $0x392] sm:$0xff]
        %v7667 = vld [vmem:[%s6848 + $0x3c2] sm:$0xff]
        %v7668 = vld [vmem:[%s6848 + $0x3d2] sm:$0xff]
        %v7669 = vld [vmem:[%s6848 + $0x3e2] sm:$0xff]
        %v7670 = vld [vmem:[%s6848 + $0x3f2] sm:$0xff]
        %v7671 = vld [vmem:[%s6848 + $0x402] sm:$0xff]
        %v7672 = vld [vmem:[%s6848 + $0x412] sm:$0xff]
        %v7673 = vld [vmem:[%s6848 + $0x422] sm:$0xff]
        %v7674 = vld [vmem:[%s6848 + $0x432] sm:$0xff]
        %v7675 = vld [vmem:[%s6848 + $0x462] sm:$0xff]
        %v7676 = vld [vmem:[%s6848 + $0x472] sm:$0xff]
        %v7677 = vld [vmem:[%s6848 + $0x482] sm:$0xff]
        %v7678 = vld [vmem:[%s6848 + $0x492] sm:$0xff]
        %v7679 = vld [vmem:[%s6848 + $0x4a2] sm:$0xff]
        %v7680 = vld [vmem:[%s6848 + $0x4b2] sm:$0xff]
        %v7681 = vld [vmem:[%s6848 + $0x4c2] sm:$0xff]
        %v7682 = vld [vmem:[%s6848 + $0x4d2] sm:$0xff]
        %7747 = vrot.lane.b32.xlu0 %v7619, 80
        %v7748 = vpop.permute.xlu0 %7747
        %7749 = vrot.lane.b32.xlu0 %v7620, 80
        %v7750 = vpop.permute.xlu0 %7749
        %7751 = vrot.lane.b32.xlu0 %v7621, 80
        %v7752 = vpop.permute.xlu0 %7751
        %7753 = vrot.lane.b32.xlu0 %v7622, 80
        %v7754 = vpop.permute.xlu0 %7753
        %7755 = vrot.lane.b32.xlu0 %v7623, 80
        %v7756 = vpop.permute.xlu0 %7755
        %7757 = vrot.lane.b32.xlu0 %v7624, 80
        %v7758 = vpop.permute.xlu0 %7757
        %7759 = vrot.lane.b32.xlu0 %v7625, 80
        %v7760 = vpop.permute.xlu0 %7759
        %7761 = vrot.lane.b32.xlu0 %v7626, 80
        %v7762 = vpop.permute.xlu0 %7761
        %7763 = vrot.lane.b32.xlu0 %v7627, 80
        %v7764 = vpop.permute.xlu0 %7763
        %7765 = vrot.lane.b32.xlu0 %v7628, 80
        %v7766 = vpop.permute.xlu0 %7765
        %7767 = vrot.lane.b32.xlu0 %v7629, 80
        %v7768 = vpop.permute.xlu0 %7767
        %7769 = vrot.lane.b32.xlu0 %v7630, 80
        %v7770 = vpop.permute.xlu0 %7769
        %7771 = vrot.lane.b32.xlu0 %v7631, 80
        %v7772 = vpop.permute.xlu0 %7771
        %7773 = vrot.lane.b32.xlu0 %v7632, 80
        %v7774 = vpop.permute.xlu0 %7773
        %7775 = vrot.lane.b32.xlu0 %v7633, 80
        %v7776 = vpop.permute.xlu0 %7775
        %7777 = vrot.lane.b32.xlu0 %v7634, 80
        %v7778 = vpop.permute.xlu0 %7777
        %7779 = vrot.lane.b32.xlu0 %v7635, 80
        %v7780 = vpop.permute.xlu0 %7779
        %7781 = vrot.lane.b32.xlu0 %v7636, 80
        %v7782 = vpop.permute.xlu0 %7781
        %7783 = vrot.lane.b32.xlu0 %v7637, 80
        %v7784 = vpop.permute.xlu0 %7783
        %7785 = vrot.lane.b32.xlu0 %v7638, 80
        %v7786 = vpop.permute.xlu0 %7785
        %7787 = vrot.lane.b32.xlu0 %v7639, 80
        %v7788 = vpop.permute.xlu0 %7787
        %7789 = vrot.lane.b32.xlu0 %v7640, 80
        %v7790 = vpop.permute.xlu0 %7789
        %7791 = vrot.lane.b32.xlu0 %v7641, 80
        %v7792 = vpop.permute.xlu0 %7791
        %7793 = vrot.lane.b32.xlu0 %v7642, 80
        %v7794 = vpop.permute.xlu0 %7793
        %7795 = vrot.lane.b32.xlu0 %v7643, 80
        %v7796 = vpop.permute.xlu0 %7795
        %7797 = vrot.lane.b32.xlu0 %v7644, 80
        %v7798 = vpop.permute.xlu0 %7797
        %7799 = vrot.lane.b32.xlu0 %v7645, 80
        %v7800 = vpop.permute.xlu0 %7799
        %7801 = vrot.lane.b32.xlu0 %v7646, 80
        %v7802 = vpop.permute.xlu0 %7801
        %7803 = vrot.lane.b32.xlu0 %v7647, 80
        %v7804 = vpop.permute.xlu0 %7803
        %7805 = vrot.lane.b32.xlu0 %v7648, 80
        %v7806 = vpop.permute.xlu0 %7805
        %7807 = vrot.lane.b32.xlu0 %v7649, 80
        %v7808 = vpop.permute.xlu0 %7807
        %7809 = vrot.lane.b32.xlu0 %v7650, 80
        %v7810 = vpop.permute.xlu0 %7809
        %7811 = vrot.lane.b32.xlu0 %v7651, 80
        %v7812 = vpop.permute.xlu0 %7811
        %7813 = vrot.lane.b32.xlu0 %v7652, 80
        %v7814 = vpop.permute.xlu0 %7813
        %7815 = vrot.lane.b32.xlu0 %v7653, 80
        %v7816 = vpop.permute.xlu0 %7815
        %7817 = vrot.lane.b32.xlu0 %v7654, 80
        %v7818 = vpop.permute.xlu0 %7817
        %7819 = vrot.lane.b32.xlu0 %v7655, 80
        %v7820 = vpop.permute.xlu0 %7819
        %7821 = vrot.lane.b32.xlu0 %v7656, 80
        %v7822 = vpop.permute.xlu0 %7821
        %7823 = vrot.lane.b32.xlu0 %v7657, 80
        %v7824 = vpop.permute.xlu0 %7823
        %7825 = vrot.lane.b32.xlu0 %v7658, 80
        %v7826 = vpop.permute.xlu0 %7825
        %7827 = vrot.lane.b32.xlu0 %v7659, 80
        %v7828 = vpop.permute.xlu0 %7827
        %7829 = vrot.lane.b32.xlu0 %v7660, 80
        %v7830 = vpop.permute.xlu0 %7829
        %7831 = vrot.lane.b32.xlu0 %v7661, 80
        %v7832 = vpop.permute.xlu0 %7831
        %7833 = vrot.lane.b32.xlu0 %v7662, 80
        %v7834 = vpop.permute.xlu0 %7833
        %7835 = vrot.lane.b32.xlu0 %v7663, 80
        %v7836 = vpop.permute.xlu0 %7835
        %7837 = vrot.lane.b32.xlu0 %v7664, 80
        %v7838 = vpop.permute.xlu0 %7837
        %7839 = vrot.lane.b32.xlu0 %v7665, 80
        %v7840 = vpop.permute.xlu0 %7839
        %7841 = vrot.lane.b32.xlu0 %v7666, 80
        %v7842 = vpop.permute.xlu0 %7841
        %7843 = vrot.lane.b32.xlu0 %v7667, 80
        %v7844 = vpop.permute.xlu0 %7843
        %7845 = vrot.lane.b32.xlu0 %v7668, 80
        %v7846 = vpop.permute.xlu0 %7845
        %7847 = vrot.lane.b32.xlu0 %v7669, 80
        %v7848 = vpop.permute.xlu0 %7847
        %7849 = vrot.lane.b32.xlu0 %v7670, 80
        %v7850 = vpop.permute.xlu0 %7849
        %7851 = vrot.lane.b32.xlu0 %v7671, 80
        %v7852 = vpop.permute.xlu0 %7851
        %7853 = vrot.lane.b32.xlu0 %v7672, 80
        %v7854 = vpop.permute.xlu0 %7853
        %7855 = vrot.lane.b32.xlu0 %v7673, 80
        %v7856 = vpop.permute.xlu0 %7855
        %7857 = vrot.lane.b32.xlu0 %v7674, 80
        %v7858 = vpop.permute.xlu0 %7857
        %7859 = vrot.lane.b32.xlu0 %v7675, 80
        %v7860 = vpop.permute.xlu0 %7859
        %7861 = vrot.lane.b32.xlu0 %v7676, 80
        %v7862 = vpop.permute.xlu0 %7861
        %7863 = vrot.lane.b32.xlu0 %v7677, 80
        %v7864 = vpop.permute.xlu0 %7863
        %7865 = vrot.lane.b32.xlu0 %v7678, 80
        %v7866 = vpop.permute.xlu0 %7865
        %7867 = vrot.lane.b32.xlu0 %v7679, 80
        %v7868 = vpop.permute.xlu0 %7867
        %7869 = vrot.lane.b32.xlu0 %v7680, 80
        %v7870 = vpop.permute.xlu0 %7869
        %7871 = vrot.lane.b32.xlu0 %v7681, 80
        %v7872 = vpop.permute.xlu0 %7871
        %7873 = vrot.lane.b32.xlu0 %v7682, 80
        %v7874 = vpop.permute.xlu0 %7873
        %vm7939 = vcmask 687744
        %7940 = vst.msk [vmem:[#allocation2] sm:$0xff] %vm7939, %v7748
        %7941 = vst.msk [vmem:[#allocation2 + $0x8] sm:$0xff] %vm7939, %v7750
        %7942 = vst.msk [vmem:[#allocation2 + $0x10] sm:$0xff] %vm7939, %v7752
        %7943 = vst.msk [vmem:[#allocation2 + $0x18] sm:$0xff] %vm7939, %v7754
        %7944 = vst.msk [vmem:[#allocation2 + $0x20] sm:$0xff] %vm7939, %v7756
        %7945 = vst.msk [vmem:[#allocation2 + $0x28] sm:$0xff] %vm7939, %v7758
        %7946 = vst.msk [vmem:[#allocation2 + $0x30] sm:$0xff] %vm7939, %v7760
        %7947 = vst.msk [vmem:[#allocation2 + $0x38] sm:$0xff] %vm7939, %v7762
        %7948 = vst.msk [vmem:[#allocation2 + $0x40] sm:$0xff] %vm7939, %v7764
        %7949 = vst.msk [vmem:[#allocation2 + $0x48] sm:$0xff] %vm7939, %v7766
        %7950 = vst.msk [vmem:[#allocation2 + $0x50] sm:$0xff] %vm7939, %v7768
        %7951 = vst.msk [vmem:[#allocation2 + $0x58] sm:$0xff] %vm7939, %v7770
        %7952 = vst.msk [vmem:[#allocation2 + $0x60] sm:$0xff] %vm7939, %v7772
        %7953 = vst.msk [vmem:[#allocation2 + $0x68] sm:$0xff] %vm7939, %v7774
        %7954 = vst.msk [vmem:[#allocation2 + $0x70] sm:$0xff] %vm7939, %v7776
        %7955 = vst.msk [vmem:[#allocation2 + $0x78] sm:$0xff] %vm7939, %v7778
        %7956 = vst.msk [vmem:[#allocation2 + $0x80] sm:$0xff] %vm7939, %v7780
        %7957 = vst.msk [vmem:[#allocation2 + $0x88] sm:$0xff] %vm7939, %v7782
        %7958 = vst.msk [vmem:[#allocation2 + $0x90] sm:$0xff] %vm7939, %v7784
        %7959 = vst.msk [vmem:[#allocation2 + $0x98] sm:$0xff] %vm7939, %v7786
        %7960 = vst.msk [vmem:[#allocation2 + $0xa0] sm:$0xff] %vm7939, %v7788
        %7961 = vst.msk [vmem:[#allocation2 + $0xa8] sm:$0xff] %vm7939, %v7790
        %7962 = vst.msk [vmem:[#allocation2 + $0xb0] sm:$0xff] %vm7939, %v7792
        %7963 = vst.msk [vmem:[#allocation2 + $0xb8] sm:$0xff] %vm7939, %v7794
        %7964 = vst.msk [vmem:[#allocation2 + $0xc0] sm:$0xff] %vm7939, %v7796
        %7965 = vst.msk [vmem:[#allocation2 + $0xc8] sm:$0xff] %vm7939, %v7798
        %7966 = vst.msk [vmem:[#allocation2 + $0xd0] sm:$0xff] %vm7939, %v7800
        %7967 = vst.msk [vmem:[#allocation2 + $0xd8] sm:$0xff] %vm7939, %v7802
        %7968 = vst.msk [vmem:[#allocation2 + $0xe0] sm:$0xff] %vm7939, %v7804
        %7969 = vst.msk [vmem:[#allocation2 + $0xe8] sm:$0xff] %vm7939, %v7806
        %7970 = vst.msk [vmem:[#allocation2 + $0xf0] sm:$0xff] %vm7939, %v7808
        %7971 = vst.msk [vmem:[#allocation2 + $0xf8] sm:$0xff] %vm7939, %v7810
        %7972 = vst.msk [vmem:[#allocation2 + $0x100] sm:$0xff] %vm7939, %v7812
        %7973 = vst.msk [vmem:[#allocation2 + $0x108] sm:$0xff] %vm7939, %v7814
        %7974 = vst.msk [vmem:[#allocation2 + $0x110] sm:$0xff] %vm7939, %v7816
        %7975 = vst.msk [vmem:[#allocation2 + $0x118] sm:$0xff] %vm7939, %v7818
        %7976 = vst.msk [vmem:[#allocation2 + $0x120] sm:$0xff] %vm7939, %v7820
        %7977 = vst.msk [vmem:[#allocation2 + $0x128] sm:$0xff] %vm7939, %v7822
        %7978 = vst.msk [vmem:[#allocation2 + $0x130] sm:$0xff] %vm7939, %v7824
        %7979 = vst.msk [vmem:[#allocation2 + $0x138] sm:$0xff] %vm7939, %v7826
        %7980 = vst.msk [vmem:[#allocation2 + $0x140] sm:$0xff] %vm7939, %v7828
        %7981 = vst.msk [vmem:[#allocation2 + $0x148] sm:$0xff] %vm7939, %v7830
        %7982 = vst.msk [vmem:[#allocation2 + $0x150] sm:$0xff] %vm7939, %v7832
        %7983 = vst.msk [vmem:[#allocation2 + $0x158] sm:$0xff] %vm7939, %v7834
        %7984 = vst.msk [vmem:[#allocation2 + $0x160] sm:$0xff] %vm7939, %v7836
        %7985 = vst.msk [vmem:[#allocation2 + $0x168] sm:$0xff] %vm7939, %v7838
        %7986 = vst.msk [vmem:[#allocation2 + $0x170] sm:$0xff] %vm7939, %v7840
        %7987 = vst.msk [vmem:[#allocation2 + $0x178] sm:$0xff] %vm7939, %v7842
        %7988 = vst.msk [vmem:[#allocation2 + $0x180] sm:$0xff] %vm7939, %v7844
        %7989 = vst.msk [vmem:[#allocation2 + $0x188] sm:$0xff] %vm7939, %v7846
        %7990 = vst.msk [vmem:[#allocation2 + $0x190] sm:$0xff] %vm7939, %v7848
        %7991 = vst.msk [vmem:[#allocation2 + $0x198] sm:$0xff] %vm7939, %v7850
        %7992 = vst.msk [vmem:[#allocation2 + $0x1a0] sm:$0xff] %vm7939, %v7852
        %7993 = vst.msk [vmem:[#allocation2 + $0x1a8] sm:$0xff] %vm7939, %v7854
        %7994 = vst.msk [vmem:[#allocation2 + $0x1b0] sm:$0xff] %vm7939, %v7856
        %7995 = vst.msk [vmem:[#allocation2 + $0x1b8] sm:$0xff] %vm7939, %v7858
        %7996 = vst.msk [vmem:[#allocation2 + $0x1c0] sm:$0xff] %vm7939, %v7860
        %7997 = vst.msk [vmem:[#allocation2 + $0x1c8] sm:$0xff] %vm7939, %v7862
        %7998 = vst.msk [vmem:[#allocation2 + $0x1d0] sm:$0xff] %vm7939, %v7864
        %7999 = vst.msk [vmem:[#allocation2 + $0x1d8] sm:$0xff] %vm7939, %v7866
        %8000 = vst.msk [vmem:[#allocation2 + $0x1e0] sm:$0xff] %vm7939, %v7868
        %8001 = vst.msk [vmem:[#allocation2 + $0x1e8] sm:$0xff] %vm7939, %v7870
        %8002 = vst.msk [vmem:[#allocation2 + $0x1f0] sm:$0xff] %vm7939, %v7872
        %8003 = vst.msk [vmem:[#allocation2 + $0x1f8] sm:$0xff] %vm7939, %v7874
        %s8004 = scalar_lea.vmem %s168, 336
        %v8005 = vld [vmem:[%s8004] sm:$0xff]
        %v8006 = vld [vmem:[%s8004 + $0x10] sm:$0xff]
        %v8007 = vld [vmem:[%s8004 + $0x20] sm:$0xff]
        %v8008 = vld [vmem:[%s8004 + $0x30] sm:$0xff]
        %v8009 = vld [vmem:[%s8004 + $0x40] sm:$0xff]
        %v8010 = vld [vmem:[%s8004 + $0x50] sm:$0xff]
        %v8011 = vld [vmem:[%s8004 + $0x60] sm:$0xff]
        %v8012 = vld [vmem:[%s8004 + $0x70] sm:$0xff]
        %v8013 = vld [vmem:[%s8004 + $0xa0] sm:$0xff]
        %v8014 = vld [vmem:[%s8004 + $0xb0] sm:$0xff]
        %v8015 = vld [vmem:[%s8004 + $0xc0] sm:$0xff]
        %v8016 = vld [vmem:[%s8004 + $0xd0] sm:$0xff]
        %v8017 = vld [vmem:[%s8004 + $0xe0] sm:$0xff]
        %v8018 = vld [vmem:[%s8004 + $0xf0] sm:$0xff]
        %v8019 = vld [vmem:[%s8004 + $0x100] sm:$0xff]
        %v8020 = vld [vmem:[%s8004 + $0x110] sm:$0xff]
        %v8021 = vld [vmem:[%s8004 + $0x140] sm:$0xff]
        %v8022 = vld [vmem:[%s8004 + $0x150] sm:$0xff]
        %v8023 = vld [vmem:[%s8004 + $0x160] sm:$0xff]
        %v8024 = vld [vmem:[%s8004 + $0x170] sm:$0xff]
        %v8025 = vld [vmem:[%s8004 + $0x180] sm:$0xff]
        %v8026 = vld [vmem:[%s8004 + $0x190] sm:$0xff]
        %v8027 = vld [vmem:[%s8004 + $0x1a0] sm:$0xff]
        %v8028 = vld [vmem:[%s8004 + $0x1b0] sm:$0xff]
        %v8029 = vld [vmem:[%s8004 + $0x1e0] sm:$0xff]
        %v8030 = vld [vmem:[%s8004 + $0x1f0] sm:$0xff]
        %v8031 = vld [vmem:[%s8004 + $0x200] sm:$0xff]
        %v8032 = vld [vmem:[%s8004 + $0x210] sm:$0xff]
        %v8033 = vld [vmem:[%s8004 + $0x220] sm:$0xff]
        %v8034 = vld [vmem:[%s8004 + $0x230] sm:$0xff]
        %v8035 = vld [vmem:[%s8004 + $0x240] sm:$0xff]
        %v8036 = vld [vmem:[%s8004 + $0x250] sm:$0xff]
        %v8037 = vld [vmem:[%s8004 + $0x280] sm:$0xff]
        %v8038 = vld [vmem:[%s8004 + $0x290] sm:$0xff]
        %v8039 = vld [vmem:[%s8004 + $0x2a0] sm:$0xff]
        %v8040 = vld [vmem:[%s8004 + $0x2b0] sm:$0xff]
        %v8041 = vld [vmem:[%s8004 + $0x2c0] sm:$0xff]
        %v8042 = vld [vmem:[%s8004 + $0x2d0] sm:$0xff]
        %v8043 = vld [vmem:[%s8004 + $0x2e0] sm:$0xff]
        %v8044 = vld [vmem:[%s8004 + $0x2f0] sm:$0xff]
        %v8045 = vld [vmem:[%s8004 + $0x320] sm:$0xff]
        %v8046 = vld [vmem:[%s8004 + $0x330] sm:$0xff]
        %v8047 = vld [vmem:[%s8004 + $0x340] sm:$0xff]
        %v8048 = vld [vmem:[%s8004 + $0x350] sm:$0xff]
        %v8049 = vld [vmem:[%s8004 + $0x360] sm:$0xff]
        %v8050 = vld [vmem:[%s8004 + $0x370] sm:$0xff]
        %v8051 = vld [vmem:[%s8004 + $0x380] sm:$0xff]
        %v8052 = vld [vmem:[%s8004 + $0x390] sm:$0xff]
        %v8053 = vld [vmem:[%s8004 + $0x3c0] sm:$0xff]
        %v8054 = vld [vmem:[%s8004 + $0x3d0] sm:$0xff]
        %v8055 = vld [vmem:[%s8004 + $0x3e0] sm:$0xff]
        %v8056 = vld [vmem:[%s8004 + $0x3f0] sm:$0xff]
        %v8057 = vld [vmem:[%s8004 + $0x400] sm:$0xff]
        %v8058 = vld [vmem:[%s8004 + $0x410] sm:$0xff]
        %v8059 = vld [vmem:[%s8004 + $0x420] sm:$0xff]
        %v8060 = vld [vmem:[%s8004 + $0x430] sm:$0xff]
        %v8061 = vld [vmem:[%s8004 + $0x460] sm:$0xff]
        %v8062 = vld [vmem:[%s8004 + $0x470] sm:$0xff]
        %v8063 = vld [vmem:[%s8004 + $0x480] sm:$0xff]
        %v8064 = vld [vmem:[%s8004 + $0x490] sm:$0xff]
        %v8065 = vld [vmem:[%s8004 + $0x4a0] sm:$0xff]
        %v8066 = vld [vmem:[%s8004 + $0x4b0] sm:$0xff]
        %v8067 = vld [vmem:[%s8004 + $0x4c0] sm:$0xff]
        %v8068 = vld [vmem:[%s8004 + $0x4d0] sm:$0xff]
        %8133 = vrot.lane.b32.xlu0 %v8005, 84
        %v8134 = vpop.permute.xlu0 %8133
        %8135 = vrot.lane.b32.xlu0 %v8006, 84
        %v8136 = vpop.permute.xlu0 %8135
        %8137 = vrot.lane.b32.xlu0 %v8007, 84
        %v8138 = vpop.permute.xlu0 %8137
        %8139 = vrot.lane.b32.xlu0 %v8008, 84
        %v8140 = vpop.permute.xlu0 %8139
        %8141 = vrot.lane.b32.xlu0 %v8009, 84
        %v8142 = vpop.permute.xlu0 %8141
        %8143 = vrot.lane.b32.xlu0 %v8010, 84
        %v8144 = vpop.permute.xlu0 %8143
        %8145 = vrot.lane.b32.xlu0 %v8011, 84
        %v8146 = vpop.permute.xlu0 %8145
        %8147 = vrot.lane.b32.xlu0 %v8012, 84
        %v8148 = vpop.permute.xlu0 %8147
        %8149 = vrot.lane.b32.xlu0 %v8013, 84
        %v8150 = vpop.permute.xlu0 %8149
        %8151 = vrot.lane.b32.xlu0 %v8014, 84
        %v8152 = vpop.permute.xlu0 %8151
        %8153 = vrot.lane.b32.xlu0 %v8015, 84
        %v8154 = vpop.permute.xlu0 %8153
        %8155 = vrot.lane.b32.xlu0 %v8016, 84
        %v8156 = vpop.permute.xlu0 %8155
        %8157 = vrot.lane.b32.xlu0 %v8017, 84
        %v8158 = vpop.permute.xlu0 %8157
        %8159 = vrot.lane.b32.xlu0 %v8018, 84
        %v8160 = vpop.permute.xlu0 %8159
        %8161 = vrot.lane.b32.xlu0 %v8019, 84
        %v8162 = vpop.permute.xlu0 %8161
        %8163 = vrot.lane.b32.xlu0 %v8020, 84
        %v8164 = vpop.permute.xlu0 %8163
        %8165 = vrot.lane.b32.xlu0 %v8021, 84
        %v8166 = vpop.permute.xlu0 %8165
        %8167 = vrot.lane.b32.xlu0 %v8022, 84
        %v8168 = vpop.permute.xlu0 %8167
        %8169 = vrot.lane.b32.xlu0 %v8023, 84
        %v8170 = vpop.permute.xlu0 %8169
        %8171 = vrot.lane.b32.xlu0 %v8024, 84
        %v8172 = vpop.permute.xlu0 %8171
        %8173 = vrot.lane.b32.xlu0 %v8025, 84
        %v8174 = vpop.permute.xlu0 %8173
        %8175 = vrot.lane.b32.xlu0 %v8026, 84
        %v8176 = vpop.permute.xlu0 %8175
        %8177 = vrot.lane.b32.xlu0 %v8027, 84
        %v8178 = vpop.permute.xlu0 %8177
        %8179 = vrot.lane.b32.xlu0 %v8028, 84
        %v8180 = vpop.permute.xlu0 %8179
        %8181 = vrot.lane.b32.xlu0 %v8029, 84
        %v8182 = vpop.permute.xlu0 %8181
        %8183 = vrot.lane.b32.xlu0 %v8030, 84
        %v8184 = vpop.permute.xlu0 %8183
        %8185 = vrot.lane.b32.xlu0 %v8031, 84
        %v8186 = vpop.permute.xlu0 %8185
        %8187 = vrot.lane.b32.xlu0 %v8032, 84
        %v8188 = vpop.permute.xlu0 %8187
        %8189 = vrot.lane.b32.xlu0 %v8033, 84
        %v8190 = vpop.permute.xlu0 %8189
        %8191 = vrot.lane.b32.xlu0 %v8034, 84
        %v8192 = vpop.permute.xlu0 %8191
        %8193 = vrot.lane.b32.xlu0 %v8035, 84
        %v8194 = vpop.permute.xlu0 %8193
        %8195 = vrot.lane.b32.xlu0 %v8036, 84
        %v8196 = vpop.permute.xlu0 %8195
        %8197 = vrot.lane.b32.xlu0 %v8037, 84
        %v8198 = vpop.permute.xlu0 %8197
        %8199 = vrot.lane.b32.xlu0 %v8038, 84
        %v8200 = vpop.permute.xlu0 %8199
        %8201 = vrot.lane.b32.xlu0 %v8039, 84
        %v8202 = vpop.permute.xlu0 %8201
        %8203 = vrot.lane.b32.xlu0 %v8040, 84
        %v8204 = vpop.permute.xlu0 %8203
        %8205 = vrot.lane.b32.xlu0 %v8041, 84
        %v8206 = vpop.permute.xlu0 %8205
        %8207 = vrot.lane.b32.xlu0 %v8042, 84
        %v8208 = vpop.permute.xlu0 %8207
        %8209 = vrot.lane.b32.xlu0 %v8043, 84
        %v8210 = vpop.permute.xlu0 %8209
        %8211 = vrot.lane.b32.xlu0 %v8044, 84
        %v8212 = vpop.permute.xlu0 %8211
        %8213 = vrot.lane.b32.xlu0 %v8045, 84
        %v8214 = vpop.permute.xlu0 %8213
        %8215 = vrot.lane.b32.xlu0 %v8046, 84
        %v8216 = vpop.permute.xlu0 %8215
        %8217 = vrot.lane.b32.xlu0 %v8047, 84
        %v8218 = vpop.permute.xlu0 %8217
        %8219 = vrot.lane.b32.xlu0 %v8048, 84
        %v8220 = vpop.permute.xlu0 %8219
        %8221 = vrot.lane.b32.xlu0 %v8049, 84
        %v8222 = vpop.permute.xlu0 %8221
        %8223 = vrot.lane.b32.xlu0 %v8050, 84
        %v8224 = vpop.permute.xlu0 %8223
        %8225 = vrot.lane.b32.xlu0 %v8051, 84
        %v8226 = vpop.permute.xlu0 %8225
        %8227 = vrot.lane.b32.xlu0 %v8052, 84
        %v8228 = vpop.permute.xlu0 %8227
        %8229 = vrot.lane.b32.xlu0 %v8053, 84
        %v8230 = vpop.permute.xlu0 %8229
        %8231 = vrot.lane.b32.xlu0 %v8054, 84
        %v8232 = vpop.permute.xlu0 %8231
        %8233 = vrot.lane.b32.xlu0 %v8055, 84
        %v8234 = vpop.permute.xlu0 %8233
        %8235 = vrot.lane.b32.xlu0 %v8056, 84
        %v8236 = vpop.permute.xlu0 %8235
        %8237 = vrot.lane.b32.xlu0 %v8057, 84
        %v8238 = vpop.permute.xlu0 %8237
        %8239 = vrot.lane.b32.xlu0 %v8058, 84
        %v8240 = vpop.permute.xlu0 %8239
        %8241 = vrot.lane.b32.xlu0 %v8059, 84
        %v8242 = vpop.permute.xlu0 %8241
        %8243 = vrot.lane.b32.xlu0 %v8060, 84
        %v8244 = vpop.permute.xlu0 %8243
        %8245 = vrot.lane.b32.xlu0 %v8061, 84
        %v8246 = vpop.permute.xlu0 %8245
        %8247 = vrot.lane.b32.xlu0 %v8062, 84
        %v8248 = vpop.permute.xlu0 %8247
        %8249 = vrot.lane.b32.xlu0 %v8063, 84
        %v8250 = vpop.permute.xlu0 %8249
        %8251 = vrot.lane.b32.xlu0 %v8064, 84
        %v8252 = vpop.permute.xlu0 %8251
        %8253 = vrot.lane.b32.xlu0 %v8065, 84
        %v8254 = vpop.permute.xlu0 %8253
        %8255 = vrot.lane.b32.xlu0 %v8066, 84
        %v8256 = vpop.permute.xlu0 %8255
        %8257 = vrot.lane.b32.xlu0 %v8067, 84
        %v8258 = vpop.permute.xlu0 %8257
        %8259 = vrot.lane.b32.xlu0 %v8068, 84
        %v8260 = vpop.permute.xlu0 %8259
        %vm8325 = vcmask 720544
        %8326 = vst.msk [vmem:[#allocation2] sm:$0xff] %vm8325, %v8134
        %8327 = vst.msk [vmem:[#allocation2 + $0x8] sm:$0xff] %vm8325, %v8136
        %8328 = vst.msk [vmem:[#allocation2 + $0x10] sm:$0xff] %vm8325, %v8138
        %8329 = vst.msk [vmem:[#allocation2 + $0x18] sm:$0xff] %vm8325, %v8140
        %8330 = vst.msk [vmem:[#allocation2 + $0x20] sm:$0xff] %vm8325, %v8142
        %8331 = vst.msk [vmem:[#allocation2 + $0x28] sm:$0xff] %vm8325, %v8144
        %8332 = vst.msk [vmem:[#allocation2 + $0x30] sm:$0xff] %vm8325, %v8146
        %8333 = vst.msk [vmem:[#allocation2 + $0x38] sm:$0xff] %vm8325, %v8148
        %8334 = vst.msk [vmem:[#allocation2 + $0x40] sm:$0xff] %vm8325, %v8150
        %8335 = vst.msk [vmem:[#allocation2 + $0x48] sm:$0xff] %vm8325, %v8152
        %8336 = vst.msk [vmem:[#allocation2 + $0x50] sm:$0xff] %vm8325, %v8154
        %8337 = vst.msk [vmem:[#allocation2 + $0x58] sm:$0xff] %vm8325, %v8156
        %8338 = vst.msk [vmem:[#allocation2 + $0x60] sm:$0xff] %vm8325, %v8158
        %8339 = vst.msk [vmem:[#allocation2 + $0x68] sm:$0xff] %vm8325, %v8160
        %8340 = vst.msk [vmem:[#allocation2 + $0x70] sm:$0xff] %vm8325, %v8162
        %8341 = vst.msk [vmem:[#allocation2 + $0x78] sm:$0xff] %vm8325, %v8164
        %8342 = vst.msk [vmem:[#allocation2 + $0x80] sm:$0xff] %vm8325, %v8166
        %8343 = vst.msk [vmem:[#allocation2 + $0x88] sm:$0xff] %vm8325, %v8168
        %8344 = vst.msk [vmem:[#allocation2 + $0x90] sm:$0xff] %vm8325, %v8170
        %8345 = vst.msk [vmem:[#allocation2 + $0x98] sm:$0xff] %vm8325, %v8172
        %8346 = vst.msk [vmem:[#allocation2 + $0xa0] sm:$0xff] %vm8325, %v8174
        %8347 = vst.msk [vmem:[#allocation2 + $0xa8] sm:$0xff] %vm8325, %v8176
        %8348 = vst.msk [vmem:[#allocation2 + $0xb0] sm:$0xff] %vm8325, %v8178
        %8349 = vst.msk [vmem:[#allocation2 + $0xb8] sm:$0xff] %vm8325, %v8180
        %8350 = vst.msk [vmem:[#allocation2 + $0xc0] sm:$0xff] %vm8325, %v8182
        %8351 = vst.msk [vmem:[#allocation2 + $0xc8] sm:$0xff] %vm8325, %v8184
        %8352 = vst.msk [vmem:[#allocation2 + $0xd0] sm:$0xff] %vm8325, %v8186
        %8353 = vst.msk [vmem:[#allocation2 + $0xd8] sm:$0xff] %vm8325, %v8188
        %8354 = vst.msk [vmem:[#allocation2 + $0xe0] sm:$0xff] %vm8325, %v8190
        %8355 = vst.msk [vmem:[#allocation2 + $0xe8] sm:$0xff] %vm8325, %v8192
        %8356 = vst.msk [vmem:[#allocation2 + $0xf0] sm:$0xff] %vm8325, %v8194
        %8357 = vst.msk [vmem:[#allocation2 + $0xf8] sm:$0xff] %vm8325, %v8196
        %8358 = vst.msk [vmem:[#allocation2 + $0x100] sm:$0xff] %vm8325, %v8198
        %8359 = vst.msk [vmem:[#allocation2 + $0x108] sm:$0xff] %vm8325, %v8200
        %8360 = vst.msk [vmem:[#allocation2 + $0x110] sm:$0xff] %vm8325, %v8202
        %8361 = vst.msk [vmem:[#allocation2 + $0x118] sm:$0xff] %vm8325, %v8204
        %8362 = vst.msk [vmem:[#allocation2 + $0x120] sm:$0xff] %vm8325, %v8206
        %8363 = vst.msk [vmem:[#allocation2 + $0x128] sm:$0xff] %vm8325, %v8208
        %8364 = vst.msk [vmem:[#allocation2 + $0x130] sm:$0xff] %vm8325, %v8210
        %8365 = vst.msk [vmem:[#allocation2 + $0x138] sm:$0xff] %vm8325, %v8212
        %8366 = vst.msk [vmem:[#allocation2 + $0x140] sm:$0xff] %vm8325, %v8214
        %8367 = vst.msk [vmem:[#allocation2 + $0x148] sm:$0xff] %vm8325, %v8216
        %8368 = vst.msk [vmem:[#allocation2 + $0x150] sm:$0xff] %vm8325, %v8218
        %8369 = vst.msk [vmem:[#allocation2 + $0x158] sm:$0xff] %vm8325, %v8220
        %8370 = vst.msk [vmem:[#allocation2 + $0x160] sm:$0xff] %vm8325, %v8222
        %8371 = vst.msk [vmem:[#allocation2 + $0x168] sm:$0xff] %vm8325, %v8224
        %8372 = vst.msk [vmem:[#allocation2 + $0x170] sm:$0xff] %vm8325, %v8226
        %8373 = vst.msk [vmem:[#allocation2 + $0x178] sm:$0xff] %vm8325, %v8228
        %8374 = vst.msk [vmem:[#allocation2 + $0x180] sm:$0xff] %vm8325, %v8230
        %8375 = vst.msk [vmem:[#allocation2 + $0x188] sm:$0xff] %vm8325, %v8232
        %8376 = vst.msk [vmem:[#allocation2 + $0x190] sm:$0xff] %vm8325, %v8234
        %8377 = vst.msk [vmem:[#allocation2 + $0x198] sm:$0xff] %vm8325, %v8236
        %8378 = vst.msk [vmem:[#allocation2 + $0x1a0] sm:$0xff] %vm8325, %v8238
        %8379 = vst.msk [vmem:[#allocation2 + $0x1a8] sm:$0xff] %vm8325, %v8240
        %8380 = vst.msk [vmem:[#allocation2 + $0x1b0] sm:$0xff] %vm8325, %v8242
        %8381 = vst.msk [vmem:[#allocation2 + $0x1b8] sm:$0xff] %vm8325, %v8244
        %8382 = vst.msk [vmem:[#allocation2 + $0x1c0] sm:$0xff] %vm8325, %v8246
        %8383 = vst.msk [vmem:[#allocation2 + $0x1c8] sm:$0xff] %vm8325, %v8248
        %8384 = vst.msk [vmem:[#allocation2 + $0x1d0] sm:$0xff] %vm8325, %v8250
        %8385 = vst.msk [vmem:[#allocation2 + $0x1d8] sm:$0xff] %vm8325, %v8252
        %8386 = vst.msk [vmem:[#allocation2 + $0x1e0] sm:$0xff] %vm8325, %v8254
        %8387 = vst.msk [vmem:[#allocation2 + $0x1e8] sm:$0xff] %vm8325, %v8256
        %8388 = vst.msk [vmem:[#allocation2 + $0x1f0] sm:$0xff] %vm8325, %v8258
        %8389 = vst.msk [vmem:[#allocation2 + $0x1f8] sm:$0xff] %vm8325, %v8260
        %v8390 = vld [vmem:[%s8004 + $0x1] sm:$0xff]
        %v8391 = vld [vmem:[%s8004 + $0x11] sm:$0xff]
        %v8392 = vld [vmem:[%s8004 + $0x21] sm:$0xff]
        %v8393 = vld [vmem:[%s8004 + $0x31] sm:$0xff]
        %v8394 = vld [vmem:[%s8004 + $0x41] sm:$0xff]
        %v8395 = vld [vmem:[%s8004 + $0x51] sm:$0xff]
        %v8396 = vld [vmem:[%s8004 + $0x61] sm:$0xff]
        %v8397 = vld [vmem:[%s8004 + $0x71] sm:$0xff]
        %v8398 = vld [vmem:[%s8004 + $0xa1] sm:$0xff]
        %v8399 = vld [vmem:[%s8004 + $0xb1] sm:$0xff]
        %v8400 = vld [vmem:[%s8004 + $0xc1] sm:$0xff]
        %v8401 = vld [vmem:[%s8004 + $0xd1] sm:$0xff]
        %v8402 = vld [vmem:[%s8004 + $0xe1] sm:$0xff]
        %v8403 = vld [vmem:[%s8004 + $0xf1] sm:$0xff]
        %v8404 = vld [vmem:[%s8004 + $0x101] sm:$0xff]
        %v8405 = vld [vmem:[%s8004 + $0x111] sm:$0xff]
        %v8406 = vld [vmem:[%s8004 + $0x141] sm:$0xff]
        %v8407 = vld [vmem:[%s8004 + $0x151] sm:$0xff]
        %v8408 = vld [vmem:[%s8004 + $0x161] sm:$0xff]
        %v8409 = vld [vmem:[%s8004 + $0x171] sm:$0xff]
        %v8410 = vld [vmem:[%s8004 + $0x181] sm:$0xff]
        %v8411 = vld [vmem:[%s8004 + $0x191] sm:$0xff]
        %v8412 = vld [vmem:[%s8004 + $0x1a1] sm:$0xff]
        %v8413 = vld [vmem:[%s8004 + $0x1b1] sm:$0xff]
        %v8414 = vld [vmem:[%s8004 + $0x1e1] sm:$0xff]
        %v8415 = vld [vmem:[%s8004 + $0x1f1] sm:$0xff]
        %v8416 = vld [vmem:[%s8004 + $0x201] sm:$0xff]
        %v8417 = vld [vmem:[%s8004 + $0x211] sm:$0xff]
        %v8418 = vld [vmem:[%s8004 + $0x221] sm:$0xff]
        %v8419 = vld [vmem:[%s8004 + $0x231] sm:$0xff]
        %v8420 = vld [vmem:[%s8004 + $0x241] sm:$0xff]
        %v8421 = vld [vmem:[%s8004 + $0x251] sm:$0xff]
        %v8422 = vld [vmem:[%s8004 + $0x281] sm:$0xff]
        %v8423 = vld [vmem:[%s8004 + $0x291] sm:$0xff]
        %v8424 = vld [vmem:[%s8004 + $0x2a1] sm:$0xff]
        %v8425 = vld [vmem:[%s8004 + $0x2b1] sm:$0xff]
        %v8426 = vld [vmem:[%s8004 + $0x2c1] sm:$0xff]
        %v8427 = vld [vmem:[%s8004 + $0x2d1] sm:$0xff]
        %v8428 = vld [vmem:[%s8004 + $0x2e1] sm:$0xff]
        %v8429 = vld [vmem:[%s8004 + $0x2f1] sm:$0xff]
        %v8430 = vld [vmem:[%s8004 + $0x321] sm:$0xff]
        %v8431 = vld [vmem:[%s8004 + $0x331] sm:$0xff]
        %v8432 = vld [vmem:[%s8004 + $0x341] sm:$0xff]
        %v8433 = vld [vmem:[%s8004 + $0x351] sm:$0xff]
        %v8434 = vld [vmem:[%s8004 + $0x361] sm:$0xff]
        %v8435 = vld [vmem:[%s8004 + $0x371] sm:$0xff]
        %v8436 = vld [vmem:[%s8004 + $0x381] sm:$0xff]
        %v8437 = vld [vmem:[%s8004 + $0x391] sm:$0xff]
        %v8438 = vld [vmem:[%s8004 + $0x3c1] sm:$0xff]
        %v8439 = vld [vmem:[%s8004 + $0x3d1] sm:$0xff]
        %v8440 = vld [vmem:[%s8004 + $0x3e1] sm:$0xff]
        %v8441 = vld [vmem:[%s8004 + $0x3f1] sm:$0xff]
        %v8442 = vld [vmem:[%s8004 + $0x401] sm:$0xff]
        %v8443 = vld [vmem:[%s8004 + $0x411] sm:$0xff]
        %v8444 = vld [vmem:[%s8004 + $0x421] sm:$0xff]
        %v8445 = vld [vmem:[%s8004 + $0x431] sm:$0xff]
        %v8446 = vld [vmem:[%s8004 + $0x461] sm:$0xff]
        %v8447 = vld [vmem:[%s8004 + $0x471] sm:$0xff]
        %v8448 = vld [vmem:[%s8004 + $0x481] sm:$0xff]
        %v8449 = vld [vmem:[%s8004 + $0x491] sm:$0xff]
        %v8450 = vld [vmem:[%s8004 + $0x4a1] sm:$0xff]
        %v8451 = vld [vmem:[%s8004 + $0x4b1] sm:$0xff]
        %v8452 = vld [vmem:[%s8004 + $0x4c1] sm:$0xff]
        %v8453 = vld [vmem:[%s8004 + $0x4d1] sm:$0xff]
        %8518 = vrot.lane.b32.xlu0 %v8390, 88
        %v8519 = vpop.permute.xlu0 %8518
        %8520 = vrot.lane.b32.xlu0 %v8391, 88
        %v8521 = vpop.permute.xlu0 %8520
        %8522 = vrot.lane.b32.xlu0 %v8392, 88
        %v8523 = vpop.permute.xlu0 %8522
        %8524 = vrot.lane.b32.xlu0 %v8393, 88
        %v8525 = vpop.permute.xlu0 %8524
        %8526 = vrot.lane.b32.xlu0 %v8394, 88
        %v8527 = vpop.permute.xlu0 %8526
        %8528 = vrot.lane.b32.xlu0 %v8395, 88
        %v8529 = vpop.permute.xlu0 %8528
        %8530 = vrot.lane.b32.xlu0 %v8396, 88
        %v8531 = vpop.permute.xlu0 %8530
        %8532 = vrot.lane.b32.xlu0 %v8397, 88
        %v8533 = vpop.permute.xlu0 %8532
        %8534 = vrot.lane.b32.xlu0 %v8398, 88
        %v8535 = vpop.permute.xlu0 %8534
        %8536 = vrot.lane.b32.xlu0 %v8399, 88
        %v8537 = vpop.permute.xlu0 %8536
        %8538 = vrot.lane.b32.xlu0 %v8400, 88
        %v8539 = vpop.permute.xlu0 %8538
        %8540 = vrot.lane.b32.xlu0 %v8401, 88
        %v8541 = vpop.permute.xlu0 %8540
        %8542 = vrot.lane.b32.xlu0 %v8402, 88
        %v8543 = vpop.permute.xlu0 %8542
        %8544 = vrot.lane.b32.xlu0 %v8403, 88
        %v8545 = vpop.permute.xlu0 %8544
        %8546 = vrot.lane.b32.xlu0 %v8404, 88
        %v8547 = vpop.permute.xlu0 %8546
        %8548 = vrot.lane.b32.xlu0 %v8405, 88
        %v8549 = vpop.permute.xlu0 %8548
        %8550 = vrot.lane.b32.xlu0 %v8406, 88
        %v8551 = vpop.permute.xlu0 %8550
        %8552 = vrot.lane.b32.xlu0 %v8407, 88
        %v8553 = vpop.permute.xlu0 %8552
        %8554 = vrot.lane.b32.xlu0 %v8408, 88
        %v8555 = vpop.permute.xlu0 %8554
        %8556 = vrot.lane.b32.xlu0 %v8409, 88
        %v8557 = vpop.permute.xlu0 %8556
        %8558 = vrot.lane.b32.xlu0 %v8410, 88
        %v8559 = vpop.permute.xlu0 %8558
        %8560 = vrot.lane.b32.xlu0 %v8411, 88
        %v8561 = vpop.permute.xlu0 %8560
        %8562 = vrot.lane.b32.xlu0 %v8412, 88
        %v8563 = vpop.permute.xlu0 %8562
        %8564 = vrot.lane.b32.xlu0 %v8413, 88
        %v8565 = vpop.permute.xlu0 %8564
        %8566 = vrot.lane.b32.xlu0 %v8414, 88
        %v8567 = vpop.permute.xlu0 %8566
        %8568 = vrot.lane.b32.xlu0 %v8415, 88
        %v8569 = vpop.permute.xlu0 %8568
        %8570 = vrot.lane.b32.xlu0 %v8416, 88
        %v8571 = vpop.permute.xlu0 %8570
        %8572 = vrot.lane.b32.xlu0 %v8417, 88
        %v8573 = vpop.permute.xlu0 %8572
        %8574 = vrot.lane.b32.xlu0 %v8418, 88
        %v8575 = vpop.permute.xlu0 %8574
        %8576 = vrot.lane.b32.xlu0 %v8419, 88
        %v8577 = vpop.permute.xlu0 %8576
        %8578 = vrot.lane.b32.xlu0 %v8420, 88
        %v8579 = vpop.permute.xlu0 %8578
        %8580 = vrot.lane.b32.xlu0 %v8421, 88
        %v8581 = vpop.permute.xlu0 %8580
        %8582 = vrot.lane.b32.xlu0 %v8422, 88
        %v8583 = vpop.permute.xlu0 %8582
        %8584 = vrot.lane.b32.xlu0 %v8423, 88
        %v8585 = vpop.permute.xlu0 %8584
        %8586 = vrot.lane.b32.xlu0 %v8424, 88
        %v8587 = vpop.permute.xlu0 %8586
        %8588 = vrot.lane.b32.xlu0 %v8425, 88
        %v8589 = vpop.permute.xlu0 %8588
        %8590 = vrot.lane.b32.xlu0 %v8426, 88
        %v8591 = vpop.permute.xlu0 %8590
        %8592 = vrot.lane.b32.xlu0 %v8427, 88
        %v8593 = vpop.permute.xlu0 %8592
        %8594 = vrot.lane.b32.xlu0 %v8428, 88
        %v8595 = vpop.permute.xlu0 %8594
        %8596 = vrot.lane.b32.xlu0 %v8429, 88
        %v8597 = vpop.permute.xlu0 %8596
        %8598 = vrot.lane.b32.xlu0 %v8430, 88
        %v8599 = vpop.permute.xlu0 %8598
        %8600 = vrot.lane.b32.xlu0 %v8431, 88
        %v8601 = vpop.permute.xlu0 %8600
        %8602 = vrot.lane.b32.xlu0 %v8432, 88
        %v8603 = vpop.permute.xlu0 %8602
        %8604 = vrot.lane.b32.xlu0 %v8433, 88
        %v8605 = vpop.permute.xlu0 %8604
        %8606 = vrot.lane.b32.xlu0 %v8434, 88
        %v8607 = vpop.permute.xlu0 %8606
        %8608 = vrot.lane.b32.xlu0 %v8435, 88
        %v8609 = vpop.permute.xlu0 %8608
        %8610 = vrot.lane.b32.xlu0 %v8436, 88
        %v8611 = vpop.permute.xlu0 %8610
        %8612 = vrot.lane.b32.xlu0 %v8437, 88
        %v8613 = vpop.permute.xlu0 %8612
        %8614 = vrot.lane.b32.xlu0 %v8438, 88
        %v8615 = vpop.permute.xlu0 %8614
        %8616 = vrot.lane.b32.xlu0 %v8439, 88
        %v8617 = vpop.permute.xlu0 %8616
        %8618 = vrot.lane.b32.xlu0 %v8440, 88
        %v8619 = vpop.permute.xlu0 %8618
        %8620 = vrot.lane.b32.xlu0 %v8441, 88
        %v8621 = vpop.permute.xlu0 %8620
        %8622 = vrot.lane.b32.xlu0 %v8442, 88
        %v8623 = vpop.permute.xlu0 %8622
        %8624 = vrot.lane.b32.xlu0 %v8443, 88
        %v8625 = vpop.permute.xlu0 %8624
        %8626 = vrot.lane.b32.xlu0 %v8444, 88
        %v8627 = vpop.permute.xlu0 %8626
        %8628 = vrot.lane.b32.xlu0 %v8445, 88
        %v8629 = vpop.permute.xlu0 %8628
        %8630 = vrot.lane.b32.xlu0 %v8446, 88
        %v8631 = vpop.permute.xlu0 %8630
        %8632 = vrot.lane.b32.xlu0 %v8447, 88
        %v8633 = vpop.permute.xlu0 %8632
        %8634 = vrot.lane.b32.xlu0 %v8448, 88
        %v8635 = vpop.permute.xlu0 %8634
        %8636 = vrot.lane.b32.xlu0 %v8449, 88
        %v8637 = vpop.permute.xlu0 %8636
        %8638 = vrot.lane.b32.xlu0 %v8450, 88
        %v8639 = vpop.permute.xlu0 %8638
        %8640 = vrot.lane.b32.xlu0 %v8451, 88
        %v8641 = vpop.permute.xlu0 %8640
        %8642 = vrot.lane.b32.xlu0 %v8452, 88
        %v8643 = vpop.permute.xlu0 %8642
        %8644 = vrot.lane.b32.xlu0 %v8453, 88
        %v8645 = vpop.permute.xlu0 %8644
        %vm8710 = vcmask 753344
        %8711 = vst.msk [vmem:[#allocation2] sm:$0xff] %vm8710, %v8519
        %8712 = vst.msk [vmem:[#allocation2 + $0x8] sm:$0xff] %vm8710, %v8521
        %8713 = vst.msk [vmem:[#allocation2 + $0x10] sm:$0xff] %vm8710, %v8523
        %8714 = vst.msk [vmem:[#allocation2 + $0x18] sm:$0xff] %vm8710, %v8525
        %8715 = vst.msk [vmem:[#allocation2 + $0x20] sm:$0xff] %vm8710, %v8527
        %8716 = vst.msk [vmem:[#allocation2 + $0x28] sm:$0xff] %vm8710, %v8529
        %8717 = vst.msk [vmem:[#allocation2 + $0x30] sm:$0xff] %vm8710, %v8531
        %8718 = vst.msk [vmem:[#allocation2 + $0x38] sm:$0xff] %vm8710, %v8533
        %8719 = vst.msk [vmem:[#allocation2 + $0x40] sm:$0xff] %vm8710, %v8535
        %8720 = vst.msk [vmem:[#allocation2 + $0x48] sm:$0xff] %vm8710, %v8537
        %8721 = vst.msk [vmem:[#allocation2 + $0x50] sm:$0xff] %vm8710, %v8539
        %8722 = vst.msk [vmem:[#allocation2 + $0x58] sm:$0xff] %vm8710, %v8541
        %8723 = vst.msk [vmem:[#allocation2 + $0x60] sm:$0xff] %vm8710, %v8543
        %8724 = vst.msk [vmem:[#allocation2 + $0x68] sm:$0xff] %vm8710, %v8545
        %8725 = vst.msk [vmem:[#allocation2 + $0x70] sm:$0xff] %vm8710, %v8547
        %8726 = vst.msk [vmem:[#allocation2 + $0x78] sm:$0xff] %vm8710, %v8549
        %8727 = vst.msk [vmem:[#allocation2 + $0x80] sm:$0xff] %vm8710, %v8551
        %8728 = vst.msk [vmem:[#allocation2 + $0x88] sm:$0xff] %vm8710, %v8553
        %8729 = vst.msk [vmem:[#allocation2 + $0x90] sm:$0xff] %vm8710, %v8555
        %8730 = vst.msk [vmem:[#allocation2 + $0x98] sm:$0xff] %vm8710, %v8557
        %8731 = vst.msk [vmem:[#allocation2 + $0xa0] sm:$0xff] %vm8710, %v8559
        %8732 = vst.msk [vmem:[#allocation2 + $0xa8] sm:$0xff] %vm8710, %v8561
        %8733 = vst.msk [vmem:[#allocation2 + $0xb0] sm:$0xff] %vm8710, %v8563
        %8734 = vst.msk [vmem:[#allocation2 + $0xb8] sm:$0xff] %vm8710, %v8565
        %8735 = vst.msk [vmem:[#allocation2 + $0xc0] sm:$0xff] %vm8710, %v8567
        %8736 = vst.msk [vmem:[#allocation2 + $0xc8] sm:$0xff] %vm8710, %v8569
        %8737 = vst.msk [vmem:[#allocation2 + $0xd0] sm:$0xff] %vm8710, %v8571
        %8738 = vst.msk [vmem:[#allocation2 + $0xd8] sm:$0xff] %vm8710, %v8573
        %8739 = vst.msk [vmem:[#allocation2 + $0xe0] sm:$0xff] %vm8710, %v8575
        %8740 = vst.msk [vmem:[#allocation2 + $0xe8] sm:$0xff] %vm8710, %v8577
        %8741 = vst.msk [vmem:[#allocation2 + $0xf0] sm:$0xff] %vm8710, %v8579
        %8742 = vst.msk [vmem:[#allocation2 + $0xf8] sm:$0xff] %vm8710, %v8581
        %8743 = vst.msk [vmem:[#allocation2 + $0x100] sm:$0xff] %vm8710, %v8583
        %8744 = vst.msk [vmem:[#allocation2 + $0x108] sm:$0xff] %vm8710, %v8585
        %8745 = vst.msk [vmem:[#allocation2 + $0x110] sm:$0xff] %vm8710, %v8587
        %8746 = vst.msk [vmem:[#allocation2 + $0x118] sm:$0xff] %vm8710, %v8589
        %8747 = vst.msk [vmem:[#allocation2 + $0x120] sm:$0xff] %vm8710, %v8591
        %8748 = vst.msk [vmem:[#allocation2 + $0x128] sm:$0xff] %vm8710, %v8593
        %8749 = vst.msk [vmem:[#allocation2 + $0x130] sm:$0xff] %vm8710, %v8595
        %8750 = vst.msk [vmem:[#allocation2 + $0x138] sm:$0xff] %vm8710, %v8597
        %8751 = vst.msk [vmem:[#allocation2 + $0x140] sm:$0xff] %vm8710, %v8599
        %8752 = vst.msk [vmem:[#allocation2 + $0x148] sm:$0xff] %vm8710, %v8601
        %8753 = vst.msk [vmem:[#allocation2 + $0x150] sm:$0xff] %vm8710, %v8603
        %8754 = vst.msk [vmem:[#allocation2 + $0x158] sm:$0xff] %vm8710, %v8605
        %8755 = vst.msk [vmem:[#allocation2 + $0x160] sm:$0xff] %vm8710, %v8607
        %8756 = vst.msk [vmem:[#allocation2 + $0x168] sm:$0xff] %vm8710, %v8609
        %8757 = vst.msk [vmem:[#allocation2 + $0x170] sm:$0xff] %vm8710, %v8611
        %8758 = vst.msk [vmem:[#allocation2 + $0x178] sm:$0xff] %vm8710, %v8613
        %8759 = vst.msk [vmem:[#allocation2 + $0x180] sm:$0xff] %vm8710, %v8615
        %8760 = vst.msk [vmem:[#allocation2 + $0x188] sm:$0xff] %vm8710, %v8617
        %8761 = vst.msk [vmem:[#allocation2 + $0x190] sm:$0xff] %vm8710, %v8619
        %8762 = vst.msk [vmem:[#allocation2 + $0x198] sm:$0xff] %vm8710, %v8621
        %8763 = vst.msk [vmem:[#allocation2 + $0x1a0] sm:$0xff] %vm8710, %v8623
        %8764 = vst.msk [vmem:[#allocation2 + $0x1a8] sm:$0xff] %vm8710, %v8625
        %8765 = vst.msk [vmem:[#allocation2 + $0x1b0] sm:$0xff] %vm8710, %v8627
        %8766 = vst.msk [vmem:[#allocation2 + $0x1b8] sm:$0xff] %vm8710, %v8629
        %8767 = vst.msk [vmem:[#allocation2 + $0x1c0] sm:$0xff] %vm8710, %v8631
        %8768 = vst.msk [vmem:[#allocation2 + $0x1c8] sm:$0xff] %vm8710, %v8633
        %8769 = vst.msk [vmem:[#allocation2 + $0x1d0] sm:$0xff] %vm8710, %v8635
        %8770 = vst.msk [vmem:[#allocation2 + $0x1d8] sm:$0xff] %vm8710, %v8637
        %8771 = vst.msk [vmem:[#allocation2 + $0x1e0] sm:$0xff] %vm8710, %v8639
        %8772 = vst.msk [vmem:[#allocation2 + $0x1e8] sm:$0xff] %vm8710, %v8641
        %8773 = vst.msk [vmem:[#allocation2 + $0x1f0] sm:$0xff] %vm8710, %v8643
        %8774 = vst.msk [vmem:[#allocation2 + $0x1f8] sm:$0xff] %vm8710, %v8645
        %v8775 = vld [vmem:[%s8004 + $0x2] sm:$0xff]
        %v8776 = vld [vmem:[%s8004 + $0x12] sm:$0xff]
        %v8777 = vld [vmem:[%s8004 + $0x22] sm:$0xff]
        %v8778 = vld [vmem:[%s8004 + $0x32] sm:$0xff]
        %v8779 = vld [vmem:[%s8004 + $0x42] sm:$0xff]
        %v8780 = vld [vmem:[%s8004 + $0x52] sm:$0xff]
        %v8781 = vld [vmem:[%s8004 + $0x62] sm:$0xff]
        %v8782 = vld [vmem:[%s8004 + $0x72] sm:$0xff]
        %v8783 = vld [vmem:[%s8004 + $0xa2] sm:$0xff]
        %v8784 = vld [vmem:[%s8004 + $0xb2] sm:$0xff]
        %v8785 = vld [vmem:[%s8004 + $0xc2] sm:$0xff]
        %v8786 = vld [vmem:[%s8004 + $0xd2] sm:$0xff]
        %v8787 = vld [vmem:[%s8004 + $0xe2] sm:$0xff]
        %v8788 = vld [vmem:[%s8004 + $0xf2] sm:$0xff]
        %v8789 = vld [vmem:[%s8004 + $0x102] sm:$0xff]
        %v8790 = vld [vmem:[%s8004 + $0x112] sm:$0xff]
        %v8791 = vld [vmem:[%s8004 + $0x142] sm:$0xff]
        %v8792 = vld [vmem:[%s8004 + $0x152] sm:$0xff]
        %v8793 = vld [vmem:[%s8004 + $0x162] sm:$0xff]
        %v8794 = vld [vmem:[%s8004 + $0x172] sm:$0xff]
        %v8795 = vld [vmem:[%s8004 + $0x182] sm:$0xff]
        %v8796 = vld [vmem:[%s8004 + $0x192] sm:$0xff]
        %v8797 = vld [vmem:[%s8004 + $0x1a2] sm:$0xff]
        %v8798 = vld [vmem:[%s8004 + $0x1b2] sm:$0xff]
        %v8799 = vld [vmem:[%s8004 + $0x1e2] sm:$0xff]
        %v8800 = vld [vmem:[%s8004 + $0x1f2] sm:$0xff]
        %v8801 = vld [vmem:[%s8004 + $0x202] sm:$0xff]
        %v8802 = vld [vmem:[%s8004 + $0x212] sm:$0xff]
        %v8803 = vld [vmem:[%s8004 + $0x222] sm:$0xff]
        %v8804 = vld [vmem:[%s8004 + $0x232] sm:$0xff]
        %v8805 = vld [vmem:[%s8004 + $0x242] sm:$0xff]
        %v8806 = vld [vmem:[%s8004 + $0x252] sm:$0xff]
        %v8807 = vld [vmem:[%s8004 + $0x282] sm:$0xff]
        %v8808 = vld [vmem:[%s8004 + $0x292] sm:$0xff]
        %v8809 = vld [vmem:[%s8004 + $0x2a2] sm:$0xff]
        %v8810 = vld [vmem:[%s8004 + $0x2b2] sm:$0xff]
        %v8811 = vld [vmem:[%s8004 + $0x2c2] sm:$0xff]
        %v8812 = vld [vmem:[%s8004 + $0x2d2] sm:$0xff]
        %v8813 = vld [vmem:[%s8004 + $0x2e2] sm:$0xff]
        %v8814 = vld [vmem:[%s8004 + $0x2f2] sm:$0xff]
        %v8815 = vld [vmem:[%s8004 + $0x322] sm:$0xff]
        %v8816 = vld [vmem:[%s8004 + $0x332] sm:$0xff]
        %v8817 = vld [vmem:[%s8004 + $0x342] sm:$0xff]
        %v8818 = vld [vmem:[%s8004 + $0x352] sm:$0xff]
        %v8819 = vld [vmem:[%s8004 + $0x362] sm:$0xff]
        %v8820 = vld [vmem:[%s8004 + $0x372] sm:$0xff]
        %v8821 = vld [vmem:[%s8004 + $0x382] sm:$0xff]
        %v8822 = vld [vmem:[%s8004 + $0x392] sm:$0xff]
        %v8823 = vld [vmem:[%s8004 + $0x3c2] sm:$0xff]
        %v8824 = vld [vmem:[%s8004 + $0x3d2] sm:$0xff]
        %v8825 = vld [vmem:[%s8004 + $0x3e2] sm:$0xff]
        %v8826 = vld [vmem:[%s8004 + $0x3f2] sm:$0xff]
        %v8827 = vld [vmem:[%s8004 + $0x402] sm:$0xff]
        %v8828 = vld [vmem:[%s8004 + $0x412] sm:$0xff]
        %v8829 = vld [vmem:[%s8004 + $0x422] sm:$0xff]
        %v8830 = vld [vmem:[%s8004 + $0x432] sm:$0xff]
        %v8831 = vld [vmem:[%s8004 + $0x462] sm:$0xff]
        %v8832 = vld [vmem:[%s8004 + $0x472] sm:$0xff]
        %v8833 = vld [vmem:[%s8004 + $0x482] sm:$0xff]
        %v8834 = vld [vmem:[%s8004 + $0x492] sm:$0xff]
        %v8835 = vld [vmem:[%s8004 + $0x4a2] sm:$0xff]
        %v8836 = vld [vmem:[%s8004 + $0x4b2] sm:$0xff]
        %v8837 = vld [vmem:[%s8004 + $0x4c2] sm:$0xff]
        %v8838 = vld [vmem:[%s8004 + $0x4d2] sm:$0xff]
        %8903 = vrot.lane.b32.xlu0 %v8775, 92
        %v8904 = vpop.permute.xlu0 %8903
        %8905 = vrot.lane.b32.xlu0 %v8776, 92
        %v8906 = vpop.permute.xlu0 %8905
        %8907 = vrot.lane.b32.xlu0 %v8777, 92
        %v8908 = vpop.permute.xlu0 %8907
        %8909 = vrot.lane.b32.xlu0 %v8778, 92
        %v8910 = vpop.permute.xlu0 %8909
        %8911 = vrot.lane.b32.xlu0 %v8779, 92
        %v8912 = vpop.permute.xlu0 %8911
        %8913 = vrot.lane.b32.xlu0 %v8780, 92
        %v8914 = vpop.permute.xlu0 %8913
        %8915 = vrot.lane.b32.xlu0 %v8781, 92
        %v8916 = vpop.permute.xlu0 %8915
        %8917 = vrot.lane.b32.xlu0 %v8782, 92
        %v8918 = vpop.permute.xlu0 %8917
        %8919 = vrot.lane.b32.xlu0 %v8783, 92
        %v8920 = vpop.permute.xlu0 %8919
        %8921 = vrot.lane.b32.xlu0 %v8784, 92
        %v8922 = vpop.permute.xlu0 %8921
        %8923 = vrot.lane.b32.xlu0 %v8785, 92
        %v8924 = vpop.permute.xlu0 %8923
        %8925 = vrot.lane.b32.xlu0 %v8786, 92
        %v8926 = vpop.permute.xlu0 %8925
        %8927 = vrot.lane.b32.xlu0 %v8787, 92
        %v8928 = vpop.permute.xlu0 %8927
        %8929 = vrot.lane.b32.xlu0 %v8788, 92
        %v8930 = vpop.permute.xlu0 %8929
        %8931 = vrot.lane.b32.xlu0 %v8789, 92
        %v8932 = vpop.permute.xlu0 %8931
        %8933 = vrot.lane.b32.xlu0 %v8790, 92
        %v8934 = vpop.permute.xlu0 %8933
        %8935 = vrot.lane.b32.xlu0 %v8791, 92
        %v8936 = vpop.permute.xlu0 %8935
        %8937 = vrot.lane.b32.xlu0 %v8792, 92
        %v8938 = vpop.permute.xlu0 %8937
        %8939 = vrot.lane.b32.xlu0 %v8793, 92
        %v8940 = vpop.permute.xlu0 %8939
        %8941 = vrot.lane.b32.xlu0 %v8794, 92
        %v8942 = vpop.permute.xlu0 %8941
        %8943 = vrot.lane.b32.xlu0 %v8795, 92
        %v8944 = vpop.permute.xlu0 %8943
        %8945 = vrot.lane.b32.xlu0 %v8796, 92
        %v8946 = vpop.permute.xlu0 %8945
        %8947 = vrot.lane.b32.xlu0 %v8797, 92
        %v8948 = vpop.permute.xlu0 %8947
        %8949 = vrot.lane.b32.xlu0 %v8798, 92
        %v8950 = vpop.permute.xlu0 %8949
        %8951 = vrot.lane.b32.xlu0 %v8799, 92
        %v8952 = vpop.permute.xlu0 %8951
        %8953 = vrot.lane.b32.xlu0 %v8800, 92
        %v8954 = vpop.permute.xlu0 %8953
        %8955 = vrot.lane.b32.xlu0 %v8801, 92
        %v8956 = vpop.permute.xlu0 %8955
        %8957 = vrot.lane.b32.xlu0 %v8802, 92
        %v8958 = vpop.permute.xlu0 %8957
        %8959 = vrot.lane.b32.xlu0 %v8803, 92
        %v8960 = vpop.permute.xlu0 %8959
        %8961 = vrot.lane.b32.xlu0 %v8804, 92
        %v8962 = vpop.permute.xlu0 %8961
        %8963 = vrot.lane.b32.xlu0 %v8805, 92
        %v8964 = vpop.permute.xlu0 %8963
        %8965 = vrot.lane.b32.xlu0 %v8806, 92
        %v8966 = vpop.permute.xlu0 %8965
        %8967 = vrot.lane.b32.xlu0 %v8807, 92
        %v8968 = vpop.permute.xlu0 %8967
        %8969 = vrot.lane.b32.xlu0 %v8808, 92
        %v8970 = vpop.permute.xlu0 %8969
        %8971 = vrot.lane.b32.xlu0 %v8809, 92
        %v8972 = vpop.permute.xlu0 %8971
        %8973 = vrot.lane.b32.xlu0 %v8810, 92
        %v8974 = vpop.permute.xlu0 %8973
        %8975 = vrot.lane.b32.xlu0 %v8811, 92
        %v8976 = vpop.permute.xlu0 %8975
        %8977 = vrot.lane.b32.xlu0 %v8812, 92
        %v8978 = vpop.permute.xlu0 %8977
        %8979 = vrot.lane.b32.xlu0 %v8813, 92
        %v8980 = vpop.permute.xlu0 %8979
        %8981 = vrot.lane.b32.xlu0 %v8814, 92
        %v8982 = vpop.permute.xlu0 %8981
        %8983 = vrot.lane.b32.xlu0 %v8815, 92
        %v8984 = vpop.permute.xlu0 %8983
        %8985 = vrot.lane.b32.xlu0 %v8816, 92
        %v8986 = vpop.permute.xlu0 %8985
        %8987 = vrot.lane.b32.xlu0 %v8817, 92
        %v8988 = vpop.permute.xlu0 %8987
        %8989 = vrot.lane.b32.xlu0 %v8818, 92
        %v8990 = vpop.permute.xlu0 %8989
        %8991 = vrot.lane.b32.xlu0 %v8819, 92
        %v8992 = vpop.permute.xlu0 %8991
        %8993 = vrot.lane.b32.xlu0 %v8820, 92
        %v8994 = vpop.permute.xlu0 %8993
        %8995 = vrot.lane.b32.xlu0 %v8821, 92
        %v8996 = vpop.permute.xlu0 %8995
        %8997 = vrot.lane.b32.xlu0 %v8822, 92
        %v8998 = vpop.permute.xlu0 %8997
        %8999 = vrot.lane.b32.xlu0 %v8823, 92
        %v9000 = vpop.permute.xlu0 %8999
        %9001 = vrot.lane.b32.xlu0 %v8824, 92
        %v9002 = vpop.permute.xlu0 %9001
        %9003 = vrot.lane.b32.xlu0 %v8825, 92
        %v9004 = vpop.permute.xlu0 %9003
        %9005 = vrot.lane.b32.xlu0 %v8826, 92
        %v9006 = vpop.permute.xlu0 %9005
        %9007 = vrot.lane.b32.xlu0 %v8827, 92
        %v9008 = vpop.permute.xlu0 %9007
        %9009 = vrot.lane.b32.xlu0 %v8828, 92
        %v9010 = vpop.permute.xlu0 %9009
        %9011 = vrot.lane.b32.xlu0 %v8829, 92
        %v9012 = vpop.permute.xlu0 %9011
        %9013 = vrot.lane.b32.xlu0 %v8830, 92
        %v9014 = vpop.permute.xlu0 %9013
        %9015 = vrot.lane.b32.xlu0 %v8831, 92
        %v9016 = vpop.permute.xlu0 %9015
        %9017 = vrot.lane.b32.xlu0 %v8832, 92
        %v9018 = vpop.permute.xlu0 %9017
        %9019 = vrot.lane.b32.xlu0 %v8833, 92
        %v9020 = vpop.permute.xlu0 %9019
        %9021 = vrot.lane.b32.xlu0 %v8834, 92
        %v9022 = vpop.permute.xlu0 %9021
        %9023 = vrot.lane.b32.xlu0 %v8835, 92
        %v9024 = vpop.permute.xlu0 %9023
        %9025 = vrot.lane.b32.xlu0 %v8836, 92
        %v9026 = vpop.permute.xlu0 %9025
        %9027 = vrot.lane.b32.xlu0 %v8837, 92
        %v9028 = vpop.permute.xlu0 %9027
        %9029 = vrot.lane.b32.xlu0 %v8838, 92
        %v9030 = vpop.permute.xlu0 %9029
        %vm9095 = vcmask 786144
        %9096 = vst.msk [vmem:[#allocation2] sm:$0xff] %vm9095, %v8904
        %9097 = vst.msk [vmem:[#allocation2 + $0x8] sm:$0xff] %vm9095, %v8906
        %9098 = vst.msk [vmem:[#allocation2 + $0x10] sm:$0xff] %vm9095, %v8908
        %9099 = vst.msk [vmem:[#allocation2 + $0x18] sm:$0xff] %vm9095, %v8910
        %9100 = vst.msk [vmem:[#allocation2 + $0x20] sm:$0xff] %vm9095, %v8912
        %9101 = vst.msk [vmem:[#allocation2 + $0x28] sm:$0xff] %vm9095, %v8914
        %9102 = vst.msk [vmem:[#allocation2 + $0x30] sm:$0xff] %vm9095, %v8916
        %9103 = vst.msk [vmem:[#allocation2 + $0x38] sm:$0xff] %vm9095, %v8918
        %9104 = vst.msk [vmem:[#allocation2 + $0x40] sm:$0xff] %vm9095, %v8920
        %9105 = vst.msk [vmem:[#allocation2 + $0x48] sm:$0xff] %vm9095, %v8922
        %9106 = vst.msk [vmem:[#allocation2 + $0x50] sm:$0xff] %vm9095, %v8924
        %9107 = vst.msk [vmem:[#allocation2 + $0x58] sm:$0xff] %vm9095, %v8926
        %9108 = vst.msk [vmem:[#allocation2 + $0x60] sm:$0xff] %vm9095, %v8928
        %9109 = vst.msk [vmem:[#allocation2 + $0x68] sm:$0xff] %vm9095, %v8930
        %9110 = vst.msk [vmem:[#allocation2 + $0x70] sm:$0xff] %vm9095, %v8932
        %9111 = vst.msk [vmem:[#allocation2 + $0x78] sm:$0xff] %vm9095, %v8934
        %9112 = vst.msk [vmem:[#allocation2 + $0x80] sm:$0xff] %vm9095, %v8936
        %9113 = vst.msk [vmem:[#allocation2 + $0x88] sm:$0xff] %vm9095, %v8938
        %9114 = vst.msk [vmem:[#allocation2 + $0x90] sm:$0xff] %vm9095, %v8940
        %9115 = vst.msk [vmem:[#allocation2 + $0x98] sm:$0xff] %vm9095, %v8942
        %9116 = vst.msk [vmem:[#allocation2 + $0xa0] sm:$0xff] %vm9095, %v8944
        %9117 = vst.msk [vmem:[#allocation2 + $0xa8] sm:$0xff] %vm9095, %v8946
        %9118 = vst.msk [vmem:[#allocation2 + $0xb0] sm:$0xff] %vm9095, %v8948
        %9119 = vst.msk [vmem:[#allocation2 + $0xb8] sm:$0xff] %vm9095, %v8950
        %9120 = vst.msk [vmem:[#allocation2 + $0xc0] sm:$0xff] %vm9095, %v8952
        %9121 = vst.msk [vmem:[#allocation2 + $0xc8] sm:$0xff] %vm9095, %v8954
        %9122 = vst.msk [vmem:[#allocation2 + $0xd0] sm:$0xff] %vm9095, %v8956
        %9123 = vst.msk [vmem:[#allocation2 + $0xd8] sm:$0xff] %vm9095, %v8958
        %9124 = vst.msk [vmem:[#allocation2 + $0xe0] sm:$0xff] %vm9095, %v8960
        %9125 = vst.msk [vmem:[#allocation2 + $0xe8] sm:$0xff] %vm9095, %v8962
        %9126 = vst.msk [vmem:[#allocation2 + $0xf0] sm:$0xff] %vm9095, %v8964
        %9127 = vst.msk [vmem:[#allocation2 + $0xf8] sm:$0xff] %vm9095, %v8966
        %9128 = vst.msk [vmem:[#allocation2 + $0x100] sm:$0xff] %vm9095, %v8968
        %9129 = vst.msk [vmem:[#allocation2 + $0x108] sm:$0xff] %vm9095, %v8970
        %9130 = vst.msk [vmem:[#allocation2 + $0x110] sm:$0xff] %vm9095, %v8972
        %9131 = vst.msk [vmem:[#allocation2 + $0x118] sm:$0xff] %vm9095, %v8974
        %9132 = vst.msk [vmem:[#allocation2 + $0x120] sm:$0xff] %vm9095, %v8976
        %9133 = vst.msk [vmem:[#allocation2 + $0x128] sm:$0xff] %vm9095, %v8978
        %9134 = vst.msk [vmem:[#allocation2 + $0x130] sm:$0xff] %vm9095, %v8980
        %9135 = vst.msk [vmem:[#allocation2 + $0x138] sm:$0xff] %vm9095, %v8982
        %9136 = vst.msk [vmem:[#allocation2 + $0x140] sm:$0xff] %vm9095, %v8984
        %9137 = vst.msk [vmem:[#allocation2 + $0x148] sm:$0xff] %vm9095, %v8986
        %9138 = vst.msk [vmem:[#allocation2 + $0x150] sm:$0xff] %vm9095, %v8988
        %9139 = vst.msk [vmem:[#allocation2 + $0x158] sm:$0xff] %vm9095, %v8990
        %9140 = vst.msk [vmem:[#allocation2 + $0x160] sm:$0xff] %vm9095, %v8992
        %9141 = vst.msk [vmem:[#allocation2 + $0x168] sm:$0xff] %vm9095, %v8994
        %9142 = vst.msk [vmem:[#allocation2 + $0x170] sm:$0xff] %vm9095, %v8996
        %9143 = vst.msk [vmem:[#allocation2 + $0x178] sm:$0xff] %vm9095, %v8998
        %9144 = vst.msk [vmem:[#allocation2 + $0x180] sm:$0xff] %vm9095, %v9000
        %9145 = vst.msk [vmem:[#allocation2 + $0x188] sm:$0xff] %vm9095, %v9002
        %9146 = vst.msk [vmem:[#allocation2 + $0x190] sm:$0xff] %vm9095, %v9004
        %9147 = vst.msk [vmem:[#allocation2 + $0x198] sm:$0xff] %vm9095, %v9006
        %9148 = vst.msk [vmem:[#allocation2 + $0x1a0] sm:$0xff] %vm9095, %v9008
        %9149 = vst.msk [vmem:[#allocation2 + $0x1a8] sm:$0xff] %vm9095, %v9010
        %9150 = vst.msk [vmem:[#allocation2 + $0x1b0] sm:$0xff] %vm9095, %v9012
        %9151 = vst.msk [vmem:[#allocation2 + $0x1b8] sm:$0xff] %vm9095, %v9014
        %9152 = vst.msk [vmem:[#allocation2 + $0x1c0] sm:$0xff] %vm9095, %v9016
        %9153 = vst.msk [vmem:[#allocation2 + $0x1c8] sm:$0xff] %vm9095, %v9018
        %9154 = vst.msk [vmem:[#allocation2 + $0x1d0] sm:$0xff] %vm9095, %v9020
        %9155 = vst.msk [vmem:[#allocation2 + $0x1d8] sm:$0xff] %vm9095, %v9022
        %9156 = vst.msk [vmem:[#allocation2 + $0x1e0] sm:$0xff] %vm9095, %v9024
        %9157 = vst.msk [vmem:[#allocation2 + $0x1e8] sm:$0xff] %vm9095, %v9026
        %9158 = vst.msk [vmem:[#allocation2 + $0x1f0] sm:$0xff] %vm9095, %v9028
        %9159 = vst.msk [vmem:[#allocation2 + $0x1f8] sm:$0xff] %vm9095, %v9030
        %s9160 = scalar_lea.vmem %s168, 352
        %v9161 = vld [vmem:[%s9160] sm:$0xff]
        %v9162 = vld [vmem:[%s9160 + $0x10] sm:$0xff]
        %v9163 = vld [vmem:[%s9160 + $0x20] sm:$0xff]
        %v9164 = vld [vmem:[%s9160 + $0x30] sm:$0xff]
        %v9165 = vld [vmem:[%s9160 + $0x40] sm:$0xff]
        %v9166 = vld [vmem:[%s9160 + $0x50] sm:$0xff]
        %v9167 = vld [vmem:[%s9160 + $0x60] sm:$0xff]
        %v9168 = vld [vmem:[%s9160 + $0x70] sm:$0xff]
        %v9169 = vld [vmem:[%s9160 + $0xa0] sm:$0xff]
        %v9170 = vld [vmem:[%s9160 + $0xb0] sm:$0xff]
        %v9171 = vld [vmem:[%s9160 + $0xc0] sm:$0xff]
        %v9172 = vld [vmem:[%s9160 + $0xd0] sm:$0xff]
        %v9173 = vld [vmem:[%s9160 + $0xe0] sm:$0xff]
        %v9174 = vld [vmem:[%s9160 + $0xf0] sm:$0xff]
        %v9175 = vld [vmem:[%s9160 + $0x100] sm:$0xff]
        %v9176 = vld [vmem:[%s9160 + $0x110] sm:$0xff]
        %v9177 = vld [vmem:[%s9160 + $0x140] sm:$0xff]
        %v9178 = vld [vmem:[%s9160 + $0x150] sm:$0xff]
        %v9179 = vld [vmem:[%s9160 + $0x160] sm:$0xff]
        %v9180 = vld [vmem:[%s9160 + $0x170] sm:$0xff]
        %v9181 = vld [vmem:[%s9160 + $0x180] sm:$0xff]
        %v9182 = vld [vmem:[%s9160 + $0x190] sm:$0xff]
        %v9183 = vld [vmem:[%s9160 + $0x1a0] sm:$0xff]
        %v9184 = vld [vmem:[%s9160 + $0x1b0] sm:$0xff]
        %v9185 = vld [vmem:[%s9160 + $0x1e0] sm:$0xff]
        %v9186 = vld [vmem:[%s9160 + $0x1f0] sm:$0xff]
        %v9187 = vld [vmem:[%s9160 + $0x200] sm:$0xff]
        %v9188 = vld [vmem:[%s9160 + $0x210] sm:$0xff]
        %v9189 = vld [vmem:[%s9160 + $0x220] sm:$0xff]
        %v9190 = vld [vmem:[%s9160 + $0x230] sm:$0xff]
        %v9191 = vld [vmem:[%s9160 + $0x240] sm:$0xff]
        %v9192 = vld [vmem:[%s9160 + $0x250] sm:$0xff]
        %v9193 = vld [vmem:[%s9160 + $0x280] sm:$0xff]
        %v9194 = vld [vmem:[%s9160 + $0x290] sm:$0xff]
        %v9195 = vld [vmem:[%s9160 + $0x2a0] sm:$0xff]
        %v9196 = vld [vmem:[%s9160 + $0x2b0] sm:$0xff]
        %v9197 = vld [vmem:[%s9160 + $0x2c0] sm:$0xff]
        %v9198 = vld [vmem:[%s9160 + $0x2d0] sm:$0xff]
        %v9199 = vld [vmem:[%s9160 + $0x2e0] sm:$0xff]
        %v9200 = vld [vmem:[%s9160 + $0x2f0] sm:$0xff]
        %v9201 = vld [vmem:[%s9160 + $0x320] sm:$0xff]
        %v9202 = vld [vmem:[%s9160 + $0x330] sm:$0xff]
        %v9203 = vld [vmem:[%s9160 + $0x340] sm:$0xff]
        %v9204 = vld [vmem:[%s9160 + $0x350] sm:$0xff]
        %v9205 = vld [vmem:[%s9160 + $0x360] sm:$0xff]
        %v9206 = vld [vmem:[%s9160 + $0x370] sm:$0xff]
        %v9207 = vld [vmem:[%s9160 + $0x380] sm:$0xff]
        %v9208 = vld [vmem:[%s9160 + $0x390] sm:$0xff]
        %v9209 = vld [vmem:[%s9160 + $0x3c0] sm:$0xff]
        %v9210 = vld [vmem:[%s9160 + $0x3d0] sm:$0xff]
        %v9211 = vld [vmem:[%s9160 + $0x3e0] sm:$0xff]
        %v9212 = vld [vmem:[%s9160 + $0x3f0] sm:$0xff]
        %v9213 = vld [vmem:[%s9160 + $0x400] sm:$0xff]
        %v9214 = vld [vmem:[%s9160 + $0x410] sm:$0xff]
        %v9215 = vld [vmem:[%s9160 + $0x420] sm:$0xff]
        %v9216 = vld [vmem:[%s9160 + $0x430] sm:$0xff]
        %v9217 = vld [vmem:[%s9160 + $0x460] sm:$0xff]
        %v9218 = vld [vmem:[%s9160 + $0x470] sm:$0xff]
        %v9219 = vld [vmem:[%s9160 + $0x480] sm:$0xff]
        %v9220 = vld [vmem:[%s9160 + $0x490] sm:$0xff]
        %v9221 = vld [vmem:[%s9160 + $0x4a0] sm:$0xff]
        %v9222 = vld [vmem:[%s9160 + $0x4b0] sm:$0xff]
        %v9223 = vld [vmem:[%s9160 + $0x4c0] sm:$0xff]
        %v9224 = vld [vmem:[%s9160 + $0x4d0] sm:$0xff]
        %9289 = vrot.lane.b32.xlu0 %v9161, 96
        %v9290 = vpop.permute.xlu0 %9289
        %9291 = vrot.lane.b32.xlu0 %v9162, 96
        %v9292 = vpop.permute.xlu0 %9291
        %9293 = vrot.lane.b32.xlu0 %v9163, 96
        %v9294 = vpop.permute.xlu0 %9293
        %9295 = vrot.lane.b32.xlu0 %v9164, 96
        %v9296 = vpop.permute.xlu0 %9295
        %9297 = vrot.lane.b32.xlu0 %v9165, 96
        %v9298 = vpop.permute.xlu0 %9297
        %9299 = vrot.lane.b32.xlu0 %v9166, 96
        %v9300 = vpop.permute.xlu0 %9299
        %9301 = vrot.lane.b32.xlu0 %v9167, 96
        %v9302 = vpop.permute.xlu0 %9301
        %9303 = vrot.lane.b32.xlu0 %v9168, 96
        %v9304 = vpop.permute.xlu0 %9303
        %9305 = vrot.lane.b32.xlu0 %v9169, 96
        %v9306 = vpop.permute.xlu0 %9305
        %9307 = vrot.lane.b32.xlu0 %v9170, 96
        %v9308 = vpop.permute.xlu0 %9307
        %9309 = vrot.lane.b32.xlu0 %v9171, 96
        %v9310 = vpop.permute.xlu0 %9309
        %9311 = vrot.lane.b32.xlu0 %v9172, 96
        %v9312 = vpop.permute.xlu0 %9311
        %9313 = vrot.lane.b32.xlu0 %v9173, 96
        %v9314 = vpop.permute.xlu0 %9313
        %9315 = vrot.lane.b32.xlu0 %v9174, 96
        %v9316 = vpop.permute.xlu0 %9315
        %9317 = vrot.lane.b32.xlu0 %v9175, 96
        %v9318 = vpop.permute.xlu0 %9317
        %9319 = vrot.lane.b32.xlu0 %v9176, 96
        %v9320 = vpop.permute.xlu0 %9319
        %9321 = vrot.lane.b32.xlu0 %v9177, 96
        %v9322 = vpop.permute.xlu0 %9321
        %9323 = vrot.lane.b32.xlu0 %v9178, 96
        %v9324 = vpop.permute.xlu0 %9323
        %9325 = vrot.lane.b32.xlu0 %v9179, 96
        %v9326 = vpop.permute.xlu0 %9325
        %9327 = vrot.lane.b32.xlu0 %v9180, 96
        %v9328 = vpop.permute.xlu0 %9327
        %9329 = vrot.lane.b32.xlu0 %v9181, 96
        %v9330 = vpop.permute.xlu0 %9329
        %9331 = vrot.lane.b32.xlu0 %v9182, 96
        %v9332 = vpop.permute.xlu0 %9331
        %9333 = vrot.lane.b32.xlu0 %v9183, 96
        %v9334 = vpop.permute.xlu0 %9333
        %9335 = vrot.lane.b32.xlu0 %v9184, 96
        %v9336 = vpop.permute.xlu0 %9335
        %9337 = vrot.lane.b32.xlu0 %v9185, 96
        %v9338 = vpop.permute.xlu0 %9337
        %9339 = vrot.lane.b32.xlu0 %v9186, 96
        %v9340 = vpop.permute.xlu0 %9339
        %9341 = vrot.lane.b32.xlu0 %v9187, 96
        %v9342 = vpop.permute.xlu0 %9341
        %9343 = vrot.lane.b32.xlu0 %v9188, 96
        %v9344 = vpop.permute.xlu0 %9343
        %9345 = vrot.lane.b32.xlu0 %v9189, 96
        %v9346 = vpop.permute.xlu0 %9345
        %9347 = vrot.lane.b32.xlu0 %v9190, 96
        %v9348 = vpop.permute.xlu0 %9347
        %9349 = vrot.lane.b32.xlu0 %v9191, 96
        %v9350 = vpop.permute.xlu0 %9349
        %9351 = vrot.lane.b32.xlu0 %v9192, 96
        %v9352 = vpop.permute.xlu0 %9351
        %9353 = vrot.lane.b32.xlu0 %v9193, 96
        %v9354 = vpop.permute.xlu0 %9353
        %9355 = vrot.lane.b32.xlu0 %v9194, 96
        %v9356 = vpop.permute.xlu0 %9355
        %9357 = vrot.lane.b32.xlu0 %v9195, 96
        %v9358 = vpop.permute.xlu0 %9357
        %9359 = vrot.lane.b32.xlu0 %v9196, 96
        %v9360 = vpop.permute.xlu0 %9359
        %9361 = vrot.lane.b32.xlu0 %v9197, 96
        %v9362 = vpop.permute.xlu0 %9361
        %9363 = vrot.lane.b32.xlu0 %v9198, 96
        %v9364 = vpop.permute.xlu0 %9363
        %9365 = vrot.lane.b32.xlu0 %v9199, 96
        %v9366 = vpop.permute.xlu0 %9365
        %9367 = vrot.lane.b32.xlu0 %v9200, 96
        %v9368 = vpop.permute.xlu0 %9367
        %9369 = vrot.lane.b32.xlu0 %v9201, 96
        %v9370 = vpop.permute.xlu0 %9369
        %9371 = vrot.lane.b32.xlu0 %v9202, 96
        %v9372 = vpop.permute.xlu0 %9371
        %9373 = vrot.lane.b32.xlu0 %v9203, 96
        %v9374 = vpop.permute.xlu0 %9373
        %9375 = vrot.lane.b32.xlu0 %v9204, 96
        %v9376 = vpop.permute.xlu0 %9375
        %9377 = vrot.lane.b32.xlu0 %v9205, 96
        %v9378 = vpop.permute.xlu0 %9377
        %9379 = vrot.lane.b32.xlu0 %v9206, 96
        %v9380 = vpop.permute.xlu0 %9379
        %9381 = vrot.lane.b32.xlu0 %v9207, 96
        %v9382 = vpop.permute.xlu0 %9381
        %9383 = vrot.lane.b32.xlu0 %v9208, 96
        %v9384 = vpop.permute.xlu0 %9383
        %9385 = vrot.lane.b32.xlu0 %v9209, 96
        %v9386 = vpop.permute.xlu0 %9385
        %9387 = vrot.lane.b32.xlu0 %v9210, 96
        %v9388 = vpop.permute.xlu0 %9387
        %9389 = vrot.lane.b32.xlu0 %v9211, 96
        %v9390 = vpop.permute.xlu0 %9389
        %9391 = vrot.lane.b32.xlu0 %v9212, 96
        %v9392 = vpop.permute.xlu0 %9391
        %9393 = vrot.lane.b32.xlu0 %v9213, 96
        %v9394 = vpop.permute.xlu0 %9393
        %9395 = vrot.lane.b32.xlu0 %v9214, 96
        %v9396 = vpop.permute.xlu0 %9395
        %9397 = vrot.lane.b32.xlu0 %v9215, 96
        %v9398 = vpop.permute.xlu0 %9397
        %9399 = vrot.lane.b32.xlu0 %v9216, 96
        %v9400 = vpop.permute.xlu0 %9399
        %9401 = vrot.lane.b32.xlu0 %v9217, 96
        %v9402 = vpop.permute.xlu0 %9401
        %9403 = vrot.lane.b32.xlu0 %v9218, 96
        %v9404 = vpop.permute.xlu0 %9403
        %9405 = vrot.lane.b32.xlu0 %v9219, 96
        %v9406 = vpop.permute.xlu0 %9405
        %9407 = vrot.lane.b32.xlu0 %v9220, 96
        %v9408 = vpop.permute.xlu0 %9407
        %9409 = vrot.lane.b32.xlu0 %v9221, 96
        %v9410 = vpop.permute.xlu0 %9409
        %9411 = vrot.lane.b32.xlu0 %v9222, 96
        %v9412 = vpop.permute.xlu0 %9411
        %9413 = vrot.lane.b32.xlu0 %v9223, 96
        %v9414 = vpop.permute.xlu0 %9413
        %9415 = vrot.lane.b32.xlu0 %v9224, 96
        %v9416 = vpop.permute.xlu0 %9415
        %vm9481 = vcmask 818944
        %9482 = vst.msk [vmem:[#allocation2] sm:$0xff] %vm9481, %v9290
        %9483 = vst.msk [vmem:[#allocation2 + $0x8] sm:$0xff] %vm9481, %v9292
        %9484 = vst.msk [vmem:[#allocation2 + $0x10] sm:$0xff] %vm9481, %v9294
        %9485 = vst.msk [vmem:[#allocation2 + $0x18] sm:$0xff] %vm9481, %v9296
        %9486 = vst.msk [vmem:[#allocation2 + $0x20] sm:$0xff] %vm9481, %v9298
        %9487 = vst.msk [vmem:[#allocation2 + $0x28] sm:$0xff] %vm9481, %v9300
        %9488 = vst.msk [vmem:[#allocation2 + $0x30] sm:$0xff] %vm9481, %v9302
        %9489 = vst.msk [vmem:[#allocation2 + $0x38] sm:$0xff] %vm9481, %v9304
        %9490 = vst.msk [vmem:[#allocation2 + $0x40] sm:$0xff] %vm9481, %v9306
        %9491 = vst.msk [vmem:[#allocation2 + $0x48] sm:$0xff] %vm9481, %v9308
        %9492 = vst.msk [vmem:[#allocation2 + $0x50] sm:$0xff] %vm9481, %v9310
        %9493 = vst.msk [vmem:[#allocation2 + $0x58] sm:$0xff] %vm9481, %v9312
        %9494 = vst.msk [vmem:[#allocation2 + $0x60] sm:$0xff] %vm9481, %v9314
        %9495 = vst.msk [vmem:[#allocation2 + $0x68] sm:$0xff] %vm9481, %v9316
        %9496 = vst.msk [vmem:[#allocation2 + $0x70] sm:$0xff] %vm9481, %v9318
        %9497 = vst.msk [vmem:[#allocation2 + $0x78] sm:$0xff] %vm9481, %v9320
        %9498 = vst.msk [vmem:[#allocation2 + $0x80] sm:$0xff] %vm9481, %v9322
        %9499 = vst.msk [vmem:[#allocation2 + $0x88] sm:$0xff] %vm9481, %v9324
        %9500 = vst.msk [vmem:[#allocation2 + $0x90] sm:$0xff] %vm9481, %v9326
        %9501 = vst.msk [vmem:[#allocation2 + $0x98] sm:$0xff] %vm9481, %v9328
        %9502 = vst.msk [vmem:[#allocation2 + $0xa0] sm:$0xff] %vm9481, %v9330
        %9503 = vst.msk [vmem:[#allocation2 + $0xa8] sm:$0xff] %vm9481, %v9332
        %9504 = vst.msk [vmem:[#allocation2 + $0xb0] sm:$0xff] %vm9481, %v9334
        %9505 = vst.msk [vmem:[#allocation2 + $0xb8] sm:$0xff] %vm9481, %v9336
        %9506 = vst.msk [vmem:[#allocation2 + $0xc0] sm:$0xff] %vm9481, %v9338
        %9507 = vst.msk [vmem:[#allocation2 + $0xc8] sm:$0xff] %vm9481, %v9340
        %9508 = vst.msk [vmem:[#allocation2 + $0xd0] sm:$0xff] %vm9481, %v9342
        %9509 = vst.msk [vmem:[#allocation2 + $0xd8] sm:$0xff] %vm9481, %v9344
        %9510 = vst.msk [vmem:[#allocation2 + $0xe0] sm:$0xff] %vm9481, %v9346
        %9511 = vst.msk [vmem:[#allocation2 + $0xe8] sm:$0xff] %vm9481, %v9348
        %9512 = vst.msk [vmem:[#allocation2 + $0xf0] sm:$0xff] %vm9481, %v9350
        %9513 = vst.msk [vmem:[#allocation2 + $0xf8] sm:$0xff] %vm9481, %v9352
        %9514 = vst.msk [vmem:[#allocation2 + $0x100] sm:$0xff] %vm9481, %v9354
        %9515 = vst.msk [vmem:[#allocation2 + $0x108] sm:$0xff] %vm9481, %v9356
        %9516 = vst.msk [vmem:[#allocation2 + $0x110] sm:$0xff] %vm9481, %v9358
        %9517 = vst.msk [vmem:[#allocation2 + $0x118] sm:$0xff] %vm9481, %v9360
        %9518 = vst.msk [vmem:[#allocation2 + $0x120] sm:$0xff] %vm9481, %v9362
        %9519 = vst.msk [vmem:[#allocation2 + $0x128] sm:$0xff] %vm9481, %v9364
        %9520 = vst.msk [vmem:[#allocation2 + $0x130] sm:$0xff] %vm9481, %v9366
        %9521 = vst.msk [vmem:[#allocation2 + $0x138] sm:$0xff] %vm9481, %v9368
        %9522 = vst.msk [vmem:[#allocation2 + $0x140] sm:$0xff] %vm9481, %v9370
        %9523 = vst.msk [vmem:[#allocation2 + $0x148] sm:$0xff] %vm9481, %v9372
        %9524 = vst.msk [vmem:[#allocation2 + $0x150] sm:$0xff] %vm9481, %v9374
        %9525 = vst.msk [vmem:[#allocation2 + $0x158] sm:$0xff] %vm9481, %v9376
        %9526 = vst.msk [vmem:[#allocation2 + $0x160] sm:$0xff] %vm9481, %v9378
        %9527 = vst.msk [vmem:[#allocation2 + $0x168] sm:$0xff] %vm9481, %v9380
        %9528 = vst.msk [vmem:[#allocation2 + $0x170] sm:$0xff] %vm9481, %v9382
        %9529 = vst.msk [vmem:[#allocation2 + $0x178] sm:$0xff] %vm9481, %v9384
        %9530 = vst.msk [vmem:[#allocation2 + $0x180] sm:$0xff] %vm9481, %v9386
        %9531 = vst.msk [vmem:[#allocation2 + $0x188] sm:$0xff] %vm9481, %v9388
        %9532 = vst.msk [vmem:[#allocation2 + $0x190] sm:$0xff] %vm9481, %v9390
        %9533 = vst.msk [vmem:[#allocation2 + $0x198] sm:$0xff] %vm9481, %v9392
        %9534 = vst.msk [vmem:[#allocation2 + $0x1a0] sm:$0xff] %vm9481, %v9394
        %9535 = vst.msk [vmem:[#allocation2 + $0x1a8] sm:$0xff] %vm9481, %v9396
        %9536 = vst.msk [vmem:[#allocation2 + $0x1b0] sm:$0xff] %vm9481, %v9398
        %9537 = vst.msk [vmem:[#allocation2 + $0x1b8] sm:$0xff] %vm9481, %v9400
        %9538 = vst.msk [vmem:[#allocation2 + $0x1c0] sm:$0xff] %vm9481, %v9402
        %9539 = vst.msk [vmem:[#allocation2 + $0x1c8] sm:$0xff] %vm9481, %v9404
        %9540 = vst.msk [vmem:[#allocation2 + $0x1d0] sm:$0xff] %vm9481, %v9406
        %9541 = vst.msk [vmem:[#allocation2 + $0x1d8] sm:$0xff] %vm9481, %v9408
        %9542 = vst.msk [vmem:[#allocation2 + $0x1e0] sm:$0xff] %vm9481, %v9410
        %9543 = vst.msk [vmem:[#allocation2 + $0x1e8] sm:$0xff] %vm9481, %v9412
        %9544 = vst.msk [vmem:[#allocation2 + $0x1f0] sm:$0xff] %vm9481, %v9414
        %9545 = vst.msk [vmem:[#allocation2 + $0x1f8] sm:$0xff] %vm9481, %v9416
        %v9546 = vld [vmem:[%s9160 + $0x1] sm:$0xff]
        %v9547 = vld [vmem:[%s9160 + $0x11] sm:$0xff]
        %v9548 = vld [vmem:[%s9160 + $0x21] sm:$0xff]
        %v9549 = vld [vmem:[%s9160 + $0x31] sm:$0xff]
        %v9550 = vld [vmem:[%s9160 + $0x41] sm:$0xff]
        %v9551 = vld [vmem:[%s9160 + $0x51] sm:$0xff]
        %v9552 = vld [vmem:[%s9160 + $0x61] sm:$0xff]
        %v9553 = vld [vmem:[%s9160 + $0x71] sm:$0xff]
        %v9554 = vld [vmem:[%s9160 + $0xa1] sm:$0xff]
        %v9555 = vld [vmem:[%s9160 + $0xb1] sm:$0xff]
        %v9556 = vld [vmem:[%s9160 + $0xc1] sm:$0xff]
        %v9557 = vld [vmem:[%s9160 + $0xd1] sm:$0xff]
        %v9558 = vld [vmem:[%s9160 + $0xe1] sm:$0xff]
        %v9559 = vld [vmem:[%s9160 + $0xf1] sm:$0xff]
        %v9560 = vld [vmem:[%s9160 + $0x101] sm:$0xff]
        %v9561 = vld [vmem:[%s9160 + $0x111] sm:$0xff]
        %v9562 = vld [vmem:[%s9160 + $0x141] sm:$0xff]
        %v9563 = vld [vmem:[%s9160 + $0x151] sm:$0xff]
        %v9564 = vld [vmem:[%s9160 + $0x161] sm:$0xff]
        %v9565 = vld [vmem:[%s9160 + $0x171] sm:$0xff]
        %v9566 = vld [vmem:[%s9160 + $0x181] sm:$0xff]
        %v9567 = vld [vmem:[%s9160 + $0x191] sm:$0xff]
        %v9568 = vld [vmem:[%s9160 + $0x1a1] sm:$0xff]
        %v9569 = vld [vmem:[%s9160 + $0x1b1] sm:$0xff]
        %v9570 = vld [vmem:[%s9160 + $0x1e1] sm:$0xff]
        %v9571 = vld [vmem:[%s9160 + $0x1f1] sm:$0xff]
        %v9572 = vld [vmem:[%s9160 + $0x201] sm:$0xff]
        %v9573 = vld [vmem:[%s9160 + $0x211] sm:$0xff]
        %v9574 = vld [vmem:[%s9160 + $0x221] sm:$0xff]
        %v9575 = vld [vmem:[%s9160 + $0x231] sm:$0xff]
        %v9576 = vld [vmem:[%s9160 + $0x241] sm:$0xff]
        %v9577 = vld [vmem:[%s9160 + $0x251] sm:$0xff]
        %v9578 = vld [vmem:[%s9160 + $0x281] sm:$0xff]
        %v9579 = vld [vmem:[%s9160 + $0x291] sm:$0xff]
        %v9580 = vld [vmem:[%s9160 + $0x2a1] sm:$0xff]
        %v9581 = vld [vmem:[%s9160 + $0x2b1] sm:$0xff]
        %v9582 = vld [vmem:[%s9160 + $0x2c1] sm:$0xff]
        %v9583 = vld [vmem:[%s9160 + $0x2d1] sm:$0xff]
        %v9584 = vld [vmem:[%s9160 + $0x2e1] sm:$0xff]
        %v9585 = vld [vmem:[%s9160 + $0x2f1] sm:$0xff]
        %v9586 = vld [vmem:[%s9160 + $0x321] sm:$0xff]
        %v9587 = vld [vmem:[%s9160 + $0x331] sm:$0xff]
        %v9588 = vld [vmem:[%s9160 + $0x341] sm:$0xff]
        %v9589 = vld [vmem:[%s9160 + $0x351] sm:$0xff]
        %v9590 = vld [vmem:[%s9160 + $0x361] sm:$0xff]
        %v9591 = vld [vmem:[%s9160 + $0x371] sm:$0xff]
        %v9592 = vld [vmem:[%s9160 + $0x381] sm:$0xff]
        %v9593 = vld [vmem:[%s9160 + $0x391] sm:$0xff]
        %v9594 = vld [vmem:[%s9160 + $0x3c1] sm:$0xff]
        %v9595 = vld [vmem:[%s9160 + $0x3d1] sm:$0xff]
        %v9596 = vld [vmem:[%s9160 + $0x3e1] sm:$0xff]
        %v9597 = vld [vmem:[%s9160 + $0x3f1] sm:$0xff]
        %v9598 = vld [vmem:[%s9160 + $0x401] sm:$0xff]
        %v9599 = vld [vmem:[%s9160 + $0x411] sm:$0xff]
        %v9600 = vld [vmem:[%s9160 + $0x421] sm:$0xff]
        %v9601 = vld [vmem:[%s9160 + $0x431] sm:$0xff]
        %v9602 = vld [vmem:[%s9160 + $0x461] sm:$0xff]
        %v9603 = vld [vmem:[%s9160 + $0x471] sm:$0xff]
        %v9604 = vld [vmem:[%s9160 + $0x481] sm:$0xff]
        %v9605 = vld [vmem:[%s9160 + $0x491] sm:$0xff]
        %v9606 = vld [vmem:[%s9160 + $0x4a1] sm:$0xff]
        %v9607 = vld [vmem:[%s9160 + $0x4b1] sm:$0xff]
        %v9608 = vld [vmem:[%s9160 + $0x4c1] sm:$0xff]
        %v9609 = vld [vmem:[%s9160 + $0x4d1] sm:$0xff]
        %9674 = vrot.lane.b32.xlu0 %v9546, 100
        %v9675 = vpop.permute.xlu0 %9674
        %9676 = vrot.lane.b32.xlu0 %v9547, 100
        %v9677 = vpop.permute.xlu0 %9676
        %9678 = vrot.lane.b32.xlu0 %v9548, 100
        %v9679 = vpop.permute.xlu0 %9678
        %9680 = vrot.lane.b32.xlu0 %v9549, 100
        %v9681 = vpop.permute.xlu0 %9680
        %9682 = vrot.lane.b32.xlu0 %v9550, 100
        %v9683 = vpop.permute.xlu0 %9682
        %9684 = vrot.lane.b32.xlu0 %v9551, 100
        %v9685 = vpop.permute.xlu0 %9684
        %9686 = vrot.lane.b32.xlu0 %v9552, 100
        %v9687 = vpop.permute.xlu0 %9686
        %9688 = vrot.lane.b32.xlu0 %v9553, 100
        %v9689 = vpop.permute.xlu0 %9688
        %9690 = vrot.lane.b32.xlu0 %v9554, 100
        %v9691 = vpop.permute.xlu0 %9690
        %9692 = vrot.lane.b32.xlu0 %v9555, 100
        %v9693 = vpop.permute.xlu0 %9692
        %9694 = vrot.lane.b32.xlu0 %v9556, 100
        %v9695 = vpop.permute.xlu0 %9694
        %9696 = vrot.lane.b32.xlu0 %v9557, 100
        %v9697 = vpop.permute.xlu0 %9696
        %9698 = vrot.lane.b32.xlu0 %v9558, 100
        %v9699 = vpop.permute.xlu0 %9698
        %9700 = vrot.lane.b32.xlu0 %v9559, 100
        %v9701 = vpop.permute.xlu0 %9700
        %9702 = vrot.lane.b32.xlu0 %v9560, 100
        %v9703 = vpop.permute.xlu0 %9702
        %9704 = vrot.lane.b32.xlu0 %v9561, 100
        %v9705 = vpop.permute.xlu0 %9704
        %9706 = vrot.lane.b32.xlu0 %v9562, 100
        %v9707 = vpop.permute.xlu0 %9706
        %9708 = vrot.lane.b32.xlu0 %v9563, 100
        %v9709 = vpop.permute.xlu0 %9708
        %9710 = vrot.lane.b32.xlu0 %v9564, 100
        %v9711 = vpop.permute.xlu0 %9710
        %9712 = vrot.lane.b32.xlu0 %v9565, 100
        %v9713 = vpop.permute.xlu0 %9712
        %9714 = vrot.lane.b32.xlu0 %v9566, 100
        %v9715 = vpop.permute.xlu0 %9714
        %9716 = vrot.lane.b32.xlu0 %v9567, 100
        %v9717 = vpop.permute.xlu0 %9716
        %9718 = vrot.lane.b32.xlu0 %v9568, 100
        %v9719 = vpop.permute.xlu0 %9718
        %9720 = vrot.lane.b32.xlu0 %v9569, 100
        %v9721 = vpop.permute.xlu0 %9720
        %9722 = vrot.lane.b32.xlu0 %v9570, 100
        %v9723 = vpop.permute.xlu0 %9722
        %9724 = vrot.lane.b32.xlu0 %v9571, 100
        %v9725 = vpop.permute.xlu0 %9724
        %9726 = vrot.lane.b32.xlu0 %v9572, 100
        %v9727 = vpop.permute.xlu0 %9726
        %9728 = vrot.lane.b32.xlu0 %v9573, 100
        %v9729 = vpop.permute.xlu0 %9728
        %9730 = vrot.lane.b32.xlu0 %v9574, 100
        %v9731 = vpop.permute.xlu0 %9730
        %9732 = vrot.lane.b32.xlu0 %v9575, 100
        %v9733 = vpop.permute.xlu0 %9732
        %9734 = vrot.lane.b32.xlu0 %v9576, 100
        %v9735 = vpop.permute.xlu0 %9734
        %9736 = vrot.lane.b32.xlu0 %v9577, 100
        %v9737 = vpop.permute.xlu0 %9736
        %9738 = vrot.lane.b32.xlu0 %v9578, 100
        %v9739 = vpop.permute.xlu0 %9738
        %9740 = vrot.lane.b32.xlu0 %v9579, 100
        %v9741 = vpop.permute.xlu0 %9740
        %9742 = vrot.lane.b32.xlu0 %v9580, 100
        %v9743 = vpop.permute.xlu0 %9742
        %9744 = vrot.lane.b32.xlu0 %v9581, 100
        %v9745 = vpop.permute.xlu0 %9744
        %9746 = vrot.lane.b32.xlu0 %v9582, 100
        %v9747 = vpop.permute.xlu0 %9746
        %9748 = vrot.lane.b32.xlu0 %v9583, 100
        %v9749 = vpop.permute.xlu0 %9748
        %9750 = vrot.lane.b32.xlu0 %v9584, 100
        %v9751 = vpop.permute.xlu0 %9750
        %9752 = vrot.lane.b32.xlu0 %v9585, 100
        %v9753 = vpop.permute.xlu0 %9752
        %9754 = vrot.lane.b32.xlu0 %v9586, 100
        %v9755 = vpop.permute.xlu0 %9754
        %9756 = vrot.lane.b32.xlu0 %v9587, 100
        %v9757 = vpop.permute.xlu0 %9756
        %9758 = vrot.lane.b32.xlu0 %v9588, 100
        %v9759 = vpop.permute.xlu0 %9758
        %9760 = vrot.lane.b32.xlu0 %v9589, 100
        %v9761 = vpop.permute.xlu0 %9760
        %9762 = vrot.lane.b32.xlu0 %v9590, 100
        %v9763 = vpop.permute.xlu0 %9762
        %9764 = vrot.lane.b32.xlu0 %v9591, 100
        %v9765 = vpop.permute.xlu0 %9764
        %9766 = vrot.lane.b32.xlu0 %v9592, 100
        %v9767 = vpop.permute.xlu0 %9766
        %9768 = vrot.lane.b32.xlu0 %v9593, 100
        %v9769 = vpop.permute.xlu0 %9768
        %9770 = vrot.lane.b32.xlu0 %v9594, 100
        %v9771 = vpop.permute.xlu0 %9770
        %9772 = vrot.lane.b32.xlu0 %v9595, 100
        %v9773 = vpop.permute.xlu0 %9772
        %9774 = vrot.lane.b32.xlu0 %v9596, 100
        %v9775 = vpop.permute.xlu0 %9774
        %9776 = vrot.lane.b32.xlu0 %v9597, 100
        %v9777 = vpop.permute.xlu0 %9776
        %9778 = vrot.lane.b32.xlu0 %v9598, 100
        %v9779 = vpop.permute.xlu0 %9778
        %9780 = vrot.lane.b32.xlu0 %v9599, 100
        %v9781 = vpop.permute.xlu0 %9780
        %9782 = vrot.lane.b32.xlu0 %v9600, 100
        %v9783 = vpop.permute.xlu0 %9782
        %9784 = vrot.lane.b32.xlu0 %v9601, 100
        %v9785 = vpop.permute.xlu0 %9784
        %9786 = vrot.lane.b32.xlu0 %v9602, 100
        %v9787 = vpop.permute.xlu0 %9786
        %9788 = vrot.lane.b32.xlu0 %v9603, 100
        %v9789 = vpop.permute.xlu0 %9788
        %9790 = vrot.lane.b32.xlu0 %v9604, 100
        %v9791 = vpop.permute.xlu0 %9790
        %9792 = vrot.lane.b32.xlu0 %v9605, 100
        %v9793 = vpop.permute.xlu0 %9792
        %9794 = vrot.lane.b32.xlu0 %v9606, 100
        %v9795 = vpop.permute.xlu0 %9794
        %9796 = vrot.lane.b32.xlu0 %v9607, 100
        %v9797 = vpop.permute.xlu0 %9796
        %9798 = vrot.lane.b32.xlu0 %v9608, 100
        %v9799 = vpop.permute.xlu0 %9798
        %9800 = vrot.lane.b32.xlu0 %v9609, 100
        %v9801 = vpop.permute.xlu0 %9800
        %vm9866 = vcmask 851744
        %9867 = vst.msk [vmem:[#allocation2] sm:$0xff] %vm9866, %v9675
        %9868 = vst.msk [vmem:[#allocation2 + $0x8] sm:$0xff] %vm9866, %v9677
        %9869 = vst.msk [vmem:[#allocation2 + $0x10] sm:$0xff] %vm9866, %v9679
        %9870 = vst.msk [vmem:[#allocation2 + $0x18] sm:$0xff] %vm9866, %v9681
        %9871 = vst.msk [vmem:[#allocation2 + $0x20] sm:$0xff] %vm9866, %v9683
        %9872 = vst.msk [vmem:[#allocation2 + $0x28] sm:$0xff] %vm9866, %v9685
        %9873 = vst.msk [vmem:[#allocation2 + $0x30] sm:$0xff] %vm9866, %v9687
        %9874 = vst.msk [vmem:[#allocation2 + $0x38] sm:$0xff] %vm9866, %v9689
        %9875 = vst.msk [vmem:[#allocation2 + $0x40] sm:$0xff] %vm9866, %v9691
        %9876 = vst.msk [vmem:[#allocation2 + $0x48] sm:$0xff] %vm9866, %v9693
        %9877 = vst.msk [vmem:[#allocation2 + $0x50] sm:$0xff] %vm9866, %v9695
        %9878 = vst.msk [vmem:[#allocation2 + $0x58] sm:$0xff] %vm9866, %v9697
        %9879 = vst.msk [vmem:[#allocation2 + $0x60] sm:$0xff] %vm9866, %v9699
        %9880 = vst.msk [vmem:[#allocation2 + $0x68] sm:$0xff] %vm9866, %v9701
        %9881 = vst.msk [vmem:[#allocation2 + $0x70] sm:$0xff] %vm9866, %v9703
        %9882 = vst.msk [vmem:[#allocation2 + $0x78] sm:$0xff] %vm9866, %v9705
        %9883 = vst.msk [vmem:[#allocation2 + $0x80] sm:$0xff] %vm9866, %v9707
        %9884 = vst.msk [vmem:[#allocation2 + $0x88] sm:$0xff] %vm9866, %v9709
        %9885 = vst.msk [vmem:[#allocation2 + $0x90] sm:$0xff] %vm9866, %v9711
        %9886 = vst.msk [vmem:[#allocation2 + $0x98] sm:$0xff] %vm9866, %v9713
        %9887 = vst.msk [vmem:[#allocation2 + $0xa0] sm:$0xff] %vm9866, %v9715
        %9888 = vst.msk [vmem:[#allocation2 + $0xa8] sm:$0xff] %vm9866, %v9717
        %9889 = vst.msk [vmem:[#allocation2 + $0xb0] sm:$0xff] %vm9866, %v9719
        %9890 = vst.msk [vmem:[#allocation2 + $0xb8] sm:$0xff] %vm9866, %v9721
        %9891 = vst.msk [vmem:[#allocation2 + $0xc0] sm:$0xff] %vm9866, %v9723
        %9892 = vst.msk [vmem:[#allocation2 + $0xc8] sm:$0xff] %vm9866, %v9725
        %9893 = vst.msk [vmem:[#allocation2 + $0xd0] sm:$0xff] %vm9866, %v9727
        %9894 = vst.msk [vmem:[#allocation2 + $0xd8] sm:$0xff] %vm9866, %v9729
        %9895 = vst.msk [vmem:[#allocation2 + $0xe0] sm:$0xff] %vm9866, %v9731
        %9896 = vst.msk [vmem:[#allocation2 + $0xe8] sm:$0xff] %vm9866, %v9733
        %9897 = vst.msk [vmem:[#allocation2 + $0xf0] sm:$0xff] %vm9866, %v9735
        %9898 = vst.msk [vmem:[#allocation2 + $0xf8] sm:$0xff] %vm9866, %v9737
        %9899 = vst.msk [vmem:[#allocation2 + $0x100] sm:$0xff] %vm9866, %v9739
        %9900 = vst.msk [vmem:[#allocation2 + $0x108] sm:$0xff] %vm9866, %v9741
        %9901 = vst.msk [vmem:[#allocation2 + $0x110] sm:$0xff] %vm9866, %v9743
        %9902 = vst.msk [vmem:[#allocation2 + $0x118] sm:$0xff] %vm9866, %v9745
        %9903 = vst.msk [vmem:[#allocation2 + $0x120] sm:$0xff] %vm9866, %v9747
        %9904 = vst.msk [vmem:[#allocation2 + $0x128] sm:$0xff] %vm9866, %v9749
        %9905 = vst.msk [vmem:[#allocation2 + $0x130] sm:$0xff] %vm9866, %v9751
        %9906 = vst.msk [vmem:[#allocation2 + $0x138] sm:$0xff] %vm9866, %v9753
        %9907 = vst.msk [vmem:[#allocation2 + $0x140] sm:$0xff] %vm9866, %v9755
        %9908 = vst.msk [vmem:[#allocation2 + $0x148] sm:$0xff] %vm9866, %v9757
        %9909 = vst.msk [vmem:[#allocation2 + $0x150] sm:$0xff] %vm9866, %v9759
        %9910 = vst.msk [vmem:[#allocation2 + $0x158] sm:$0xff] %vm9866, %v9761
        %9911 = vst.msk [vmem:[#allocation2 + $0x160] sm:$0xff] %vm9866, %v9763
        %9912 = vst.msk [vmem:[#allocation2 + $0x168] sm:$0xff] %vm9866, %v9765
        %9913 = vst.msk [vmem:[#allocation2 + $0x170] sm:$0xff] %vm9866, %v9767
        %9914 = vst.msk [vmem:[#allocation2 + $0x178] sm:$0xff] %vm9866, %v9769
        %9915 = vst.msk [vmem:[#allocation2 + $0x180] sm:$0xff] %vm9866, %v9771
        %9916 = vst.msk [vmem:[#allocation2 + $0x188] sm:$0xff] %vm9866, %v9773
        %9917 = vst.msk [vmem:[#allocation2 + $0x190] sm:$0xff] %vm9866, %v9775
        %9918 = vst.msk [vmem:[#allocation2 + $0x198] sm:$0xff] %vm9866, %v9777
        %9919 = vst.msk [vmem:[#allocation2 + $0x1a0] sm:$0xff] %vm9866, %v9779
        %9920 = vst.msk [vmem:[#allocation2 + $0x1a8] sm:$0xff] %vm9866, %v9781
        %9921 = vst.msk [vmem:[#allocation2 + $0x1b0] sm:$0xff] %vm9866, %v9783
        %9922 = vst.msk [vmem:[#allocation2 + $0x1b8] sm:$0xff] %vm9866, %v9785
        %9923 = vst.msk [vmem:[#allocation2 + $0x1c0] sm:$0xff] %vm9866, %v9787
        %9924 = vst.msk [vmem:[#allocation2 + $0x1c8] sm:$0xff] %vm9866, %v9789
        %9925 = vst.msk [vmem:[#allocation2 + $0x1d0] sm:$0xff] %vm9866, %v9791
        %9926 = vst.msk [vmem:[#allocation2 + $0x1d8] sm:$0xff] %vm9866, %v9793
        %9927 = vst.msk [vmem:[#allocation2 + $0x1e0] sm:$0xff] %vm9866, %v9795
        %9928 = vst.msk [vmem:[#allocation2 + $0x1e8] sm:$0xff] %vm9866, %v9797
        %9929 = vst.msk [vmem:[#allocation2 + $0x1f0] sm:$0xff] %vm9866, %v9799
        %9930 = vst.msk [vmem:[#allocation2 + $0x1f8] sm:$0xff] %vm9866, %v9801
        %v9931 = vld [vmem:[%s9160 + $0x2] sm:$0xff]
        %v9932 = vld [vmem:[%s9160 + $0x12] sm:$0xff]
        %v9933 = vld [vmem:[%s9160 + $0x22] sm:$0xff]
        %v9934 = vld [vmem:[%s9160 + $0x32] sm:$0xff]
        %v9935 = vld [vmem:[%s9160 + $0x42] sm:$0xff]
        %v9936 = vld [vmem:[%s9160 + $0x52] sm:$0xff]
        %v9937 = vld [vmem:[%s9160 + $0x62] sm:$0xff]
        %v9938 = vld [vmem:[%s9160 + $0x72] sm:$0xff]
        %v9939 = vld [vmem:[%s9160 + $0xa2] sm:$0xff]
        %v9940 = vld [vmem:[%s9160 + $0xb2] sm:$0xff]
        %v9941 = vld [vmem:[%s9160 + $0xc2] sm:$0xff]
        %v9942 = vld [vmem:[%s9160 + $0xd2] sm:$0xff]
        %v9943 = vld [vmem:[%s9160 + $0xe2] sm:$0xff]
        %v9944 = vld [vmem:[%s9160 + $0xf2] sm:$0xff]
        %v9945 = vld [vmem:[%s9160 + $0x102] sm:$0xff]
        %v9946 = vld [vmem:[%s9160 + $0x112] sm:$0xff]
        %v9947 = vld [vmem:[%s9160 + $0x142] sm:$0xff]
        %v9948 = vld [vmem:[%s9160 + $0x152] sm:$0xff]
        %v9949 = vld [vmem:[%s9160 + $0x162] sm:$0xff]
        %v9950 = vld [vmem:[%s9160 + $0x172] sm:$0xff]
        %v9951 = vld [vmem:[%s9160 + $0x182] sm:$0xff]
        %v9952 = vld [vmem:[%s9160 + $0x192] sm:$0xff]
        %v9953 = vld [vmem:[%s9160 + $0x1a2] sm:$0xff]
        %v9954 = vld [vmem:[%s9160 + $0x1b2] sm:$0xff]
        %v9955 = vld [vmem:[%s9160 + $0x1e2] sm:$0xff]
        %v9956 = vld [vmem:[%s9160 + $0x1f2] sm:$0xff]
        %v9957 = vld [vmem:[%s9160 + $0x202] sm:$0xff]
        %v9958 = vld [vmem:[%s9160 + $0x212] sm:$0xff]
        %v9959 = vld [vmem:[%s9160 + $0x222] sm:$0xff]
        %v9960 = vld [vmem:[%s9160 + $0x232] sm:$0xff]
        %v9961 = vld [vmem:[%s9160 + $0x242] sm:$0xff]
        %v9962 = vld [vmem:[%s9160 + $0x252] sm:$0xff]
        %v9963 = vld [vmem:[%s9160 + $0x282] sm:$0xff]
        %v9964 = vld [vmem:[%s9160 + $0x292] sm:$0xff]
        %v9965 = vld [vmem:[%s9160 + $0x2a2] sm:$0xff]
        %v9966 = vld [vmem:[%s9160 + $0x2b2] sm:$0xff]
        %v9967 = vld [vmem:[%s9160 + $0x2c2] sm:$0xff]
        %v9968 = vld [vmem:[%s9160 + $0x2d2] sm:$0xff]
        %v9969 = vld [vmem:[%s9160 + $0x2e2] sm:$0xff]
        %v9970 = vld [vmem:[%s9160 + $0x2f2] sm:$0xff]
        %v9971 = vld [vmem:[%s9160 + $0x322] sm:$0xff]
        %v9972 = vld [vmem:[%s9160 + $0x332] sm:$0xff]
        %v9973 = vld [vmem:[%s9160 + $0x342] sm:$0xff]
        %v9974 = vld [vmem:[%s9160 + $0x352] sm:$0xff]
        %v9975 = vld [vmem:[%s9160 + $0x362] sm:$0xff]
        %v9976 = vld [vmem:[%s9160 + $0x372] sm:$0xff]
        %v9977 = vld [vmem:[%s9160 + $0x382] sm:$0xff]
        %v9978 = vld [vmem:[%s9160 + $0x392] sm:$0xff]
        %v9979 = vld [vmem:[%s9160 + $0x3c2] sm:$0xff]
        %v9980 = vld [vmem:[%s9160 + $0x3d2] sm:$0xff]
        %v9981 = vld [vmem:[%s9160 + $0x3e2] sm:$0xff]
        %v9982 = vld [vmem:[%s9160 + $0x3f2] sm:$0xff]
        %v9983 = vld [vmem:[%s9160 + $0x402] sm:$0xff]
        %v9984 = vld [vmem:[%s9160 + $0x412] sm:$0xff]
        %v9985 = vld [vmem:[%s9160 + $0x422] sm:$0xff]
        %v9986 = vld [vmem:[%s9160 + $0x432] sm:$0xff]
        %v9987 = vld [vmem:[%s9160 + $0x462] sm:$0xff]
        %v9988 = vld [vmem:[%s9160 + $0x472] sm:$0xff]
        %v9989 = vld [vmem:[%s9160 + $0x482] sm:$0xff]
        %v9990 = vld [vmem:[%s9160 + $0x492] sm:$0xff]
        %v9991 = vld [vmem:[%s9160 + $0x4a2] sm:$0xff]
        %v9992 = vld [vmem:[%s9160 + $0x4b2] sm:$0xff]
        %v9993 = vld [vmem:[%s9160 + $0x4c2] sm:$0xff]
        %v9994 = vld [vmem:[%s9160 + $0x4d2] sm:$0xff]
        %10059 = vrot.lane.b32.xlu0 %v9931, 104
        %v10060 = vpop.permute.xlu0 %10059
        %10061 = vrot.lane.b32.xlu0 %v9932, 104
        %v10062 = vpop.permute.xlu0 %10061
        %10063 = vrot.lane.b32.xlu0 %v9933, 104
        %v10064 = vpop.permute.xlu0 %10063
        %10065 = vrot.lane.b32.xlu0 %v9934, 104
        %v10066 = vpop.permute.xlu0 %10065
        %10067 = vrot.lane.b32.xlu0 %v9935, 104
        %v10068 = vpop.permute.xlu0 %10067
        %10069 = vrot.lane.b32.xlu0 %v9936, 104
        %v10070 = vpop.permute.xlu0 %10069
        %10071 = vrot.lane.b32.xlu0 %v9937, 104
        %v10072 = vpop.permute.xlu0 %10071
        %10073 = vrot.lane.b32.xlu0 %v9938, 104
        %v10074 = vpop.permute.xlu0 %10073
        %10075 = vrot.lane.b32.xlu0 %v9939, 104
        %v10076 = vpop.permute.xlu0 %10075
        %10077 = vrot.lane.b32.xlu0 %v9940, 104
        %v10078 = vpop.permute.xlu0 %10077
        %10079 = vrot.lane.b32.xlu0 %v9941, 104
        %v10080 = vpop.permute.xlu0 %10079
        %10081 = vrot.lane.b32.xlu0 %v9942, 104
        %v10082 = vpop.permute.xlu0 %10081
        %10083 = vrot.lane.b32.xlu0 %v9943, 104
        %v10084 = vpop.permute.xlu0 %10083
        %10085 = vrot.lane.b32.xlu0 %v9944, 104
        %v10086 = vpop.permute.xlu0 %10085
        %10087 = vrot.lane.b32.xlu0 %v9945, 104
        %v10088 = vpop.permute.xlu0 %10087
        %10089 = vrot.lane.b32.xlu0 %v9946, 104
        %v10090 = vpop.permute.xlu0 %10089
        %10091 = vrot.lane.b32.xlu0 %v9947, 104
        %v10092 = vpop.permute.xlu0 %10091
        %10093 = vrot.lane.b32.xlu0 %v9948, 104
        %v10094 = vpop.permute.xlu0 %10093
        %10095 = vrot.lane.b32.xlu0 %v9949, 104
        %v10096 = vpop.permute.xlu0 %10095
        %10097 = vrot.lane.b32.xlu0 %v9950, 104
        %v10098 = vpop.permute.xlu0 %10097
        %10099 = vrot.lane.b32.xlu0 %v9951, 104
        %v10100 = vpop.permute.xlu0 %10099
        %10101 = vrot.lane.b32.xlu0 %v9952, 104
        %v10102 = vpop.permute.xlu0 %10101
        %10103 = vrot.lane.b32.xlu0 %v9953, 104
        %v10104 = vpop.permute.xlu0 %10103
        %10105 = vrot.lane.b32.xlu0 %v9954, 104
        %v10106 = vpop.permute.xlu0 %10105
        %10107 = vrot.lane.b32.xlu0 %v9955, 104
        %v10108 = vpop.permute.xlu0 %10107
        %10109 = vrot.lane.b32.xlu0 %v9956, 104
        %v10110 = vpop.permute.xlu0 %10109
        %10111 = vrot.lane.b32.xlu0 %v9957, 104
        %v10112 = vpop.permute.xlu0 %10111
        %10113 = vrot.lane.b32.xlu0 %v9958, 104
        %v10114 = vpop.permute.xlu0 %10113
        %10115 = vrot.lane.b32.xlu0 %v9959, 104
        %v10116 = vpop.permute.xlu0 %10115
        %10117 = vrot.lane.b32.xlu0 %v9960, 104
        %v10118 = vpop.permute.xlu0 %10117
        %10119 = vrot.lane.b32.xlu0 %v9961, 104
        %v10120 = vpop.permute.xlu0 %10119
        %10121 = vrot.lane.b32.xlu0 %v9962, 104
        %v10122 = vpop.permute.xlu0 %10121
        %10123 = vrot.lane.b32.xlu0 %v9963, 104
        %v10124 = vpop.permute.xlu0 %10123
        %10125 = vrot.lane.b32.xlu0 %v9964, 104
        %v10126 = vpop.permute.xlu0 %10125
        %10127 = vrot.lane.b32.xlu0 %v9965, 104
        %v10128 = vpop.permute.xlu0 %10127
        %10129 = vrot.lane.b32.xlu0 %v9966, 104
        %v10130 = vpop.permute.xlu0 %10129
        %10131 = vrot.lane.b32.xlu0 %v9967, 104
        %v10132 = vpop.permute.xlu0 %10131
        %10133 = vrot.lane.b32.xlu0 %v9968, 104
        %v10134 = vpop.permute.xlu0 %10133
        %10135 = vrot.lane.b32.xlu0 %v9969, 104
        %v10136 = vpop.permute.xlu0 %10135
        %10137 = vrot.lane.b32.xlu0 %v9970, 104
        %v10138 = vpop.permute.xlu0 %10137
        %10139 = vrot.lane.b32.xlu0 %v9971, 104
        %v10140 = vpop.permute.xlu0 %10139
        %10141 = vrot.lane.b32.xlu0 %v9972, 104
        %v10142 = vpop.permute.xlu0 %10141
        %10143 = vrot.lane.b32.xlu0 %v9973, 104
        %v10144 = vpop.permute.xlu0 %10143
        %10145 = vrot.lane.b32.xlu0 %v9974, 104
        %v10146 = vpop.permute.xlu0 %10145
        %10147 = vrot.lane.b32.xlu0 %v9975, 104
        %v10148 = vpop.permute.xlu0 %10147
        %10149 = vrot.lane.b32.xlu0 %v9976, 104
        %v10150 = vpop.permute.xlu0 %10149
        %10151 = vrot.lane.b32.xlu0 %v9977, 104
        %v10152 = vpop.permute.xlu0 %10151
        %10153 = vrot.lane.b32.xlu0 %v9978, 104
        %v10154 = vpop.permute.xlu0 %10153
        %10155 = vrot.lane.b32.xlu0 %v9979, 104
        %v10156 = vpop.permute.xlu0 %10155
        %10157 = vrot.lane.b32.xlu0 %v9980, 104
        %v10158 = vpop.permute.xlu0 %10157
        %10159 = vrot.lane.b32.xlu0 %v9981, 104
        %v10160 = vpop.permute.xlu0 %10159
        %10161 = vrot.lane.b32.xlu0 %v9982, 104
        %v10162 = vpop.permute.xlu0 %10161
        %10163 = vrot.lane.b32.xlu0 %v9983, 104
        %v10164 = vpop.permute.xlu0 %10163
        %10165 = vrot.lane.b32.xlu0 %v9984, 104
        %v10166 = vpop.permute.xlu0 %10165
        %10167 = vrot.lane.b32.xlu0 %v9985, 104
        %v10168 = vpop.permute.xlu0 %10167
        %10169 = vrot.lane.b32.xlu0 %v9986, 104
        %v10170 = vpop.permute.xlu0 %10169
        %10171 = vrot.lane.b32.xlu0 %v9987, 104
        %v10172 = vpop.permute.xlu0 %10171
        %10173 = vrot.lane.b32.xlu0 %v9988, 104
        %v10174 = vpop.permute.xlu0 %10173
        %10175 = vrot.lane.b32.xlu0 %v9989, 104
        %v10176 = vpop.permute.xlu0 %10175
        %10177 = vrot.lane.b32.xlu0 %v9990, 104
        %v10178 = vpop.permute.xlu0 %10177
        %10179 = vrot.lane.b32.xlu0 %v9991, 104
        %v10180 = vpop.permute.xlu0 %10179
        %10181 = vrot.lane.b32.xlu0 %v9992, 104
        %v10182 = vpop.permute.xlu0 %10181
        %10183 = vrot.lane.b32.xlu0 %v9993, 104
        %v10184 = vpop.permute.xlu0 %10183
        %10185 = vrot.lane.b32.xlu0 %v9994, 104
        %v10186 = vpop.permute.xlu0 %10185
        %vm10251 = vcmask 884544
        %10252 = vst.msk [vmem:[#allocation2] sm:$0xff] %vm10251, %v10060
        %10253 = vst.msk [vmem:[#allocation2 + $0x8] sm:$0xff] %vm10251, %v10062
        %10254 = vst.msk [vmem:[#allocation2 + $0x10] sm:$0xff] %vm10251, %v10064
        %10255 = vst.msk [vmem:[#allocation2 + $0x18] sm:$0xff] %vm10251, %v10066
        %10256 = vst.msk [vmem:[#allocation2 + $0x20] sm:$0xff] %vm10251, %v10068
        %10257 = vst.msk [vmem:[#allocation2 + $0x28] sm:$0xff] %vm10251, %v10070
        %10258 = vst.msk [vmem:[#allocation2 + $0x30] sm:$0xff] %vm10251, %v10072
        %10259 = vst.msk [vmem:[#allocation2 + $0x38] sm:$0xff] %vm10251, %v10074
        %10260 = vst.msk [vmem:[#allocation2 + $0x40] sm:$0xff] %vm10251, %v10076
        %10261 = vst.msk [vmem:[#allocation2 + $0x48] sm:$0xff] %vm10251, %v10078
        %10262 = vst.msk [vmem:[#allocation2 + $0x50] sm:$0xff] %vm10251, %v10080
        %10263 = vst.msk [vmem:[#allocation2 + $0x58] sm:$0xff] %vm10251, %v10082
        %10264 = vst.msk [vmem:[#allocation2 + $0x60] sm:$0xff] %vm10251, %v10084
        %10265 = vst.msk [vmem:[#allocation2 + $0x68] sm:$0xff] %vm10251, %v10086
        %10266 = vst.msk [vmem:[#allocation2 + $0x70] sm:$0xff] %vm10251, %v10088
        %10267 = vst.msk [vmem:[#allocation2 + $0x78] sm:$0xff] %vm10251, %v10090
        %10268 = vst.msk [vmem:[#allocation2 + $0x80] sm:$0xff] %vm10251, %v10092
        %10269 = vst.msk [vmem:[#allocation2 + $0x88] sm:$0xff] %vm10251, %v10094
        %10270 = vst.msk [vmem:[#allocation2 + $0x90] sm:$0xff] %vm10251, %v10096
        %10271 = vst.msk [vmem:[#allocation2 + $0x98] sm:$0xff] %vm10251, %v10098
        %10272 = vst.msk [vmem:[#allocation2 + $0xa0] sm:$0xff] %vm10251, %v10100
        %10273 = vst.msk [vmem:[#allocation2 + $0xa8] sm:$0xff] %vm10251, %v10102
        %10274 = vst.msk [vmem:[#allocation2 + $0xb0] sm:$0xff] %vm10251, %v10104
        %10275 = vst.msk [vmem:[#allocation2 + $0xb8] sm:$0xff] %vm10251, %v10106
        %10276 = vst.msk [vmem:[#allocation2 + $0xc0] sm:$0xff] %vm10251, %v10108
        %10277 = vst.msk [vmem:[#allocation2 + $0xc8] sm:$0xff] %vm10251, %v10110
        %10278 = vst.msk [vmem:[#allocation2 + $0xd0] sm:$0xff] %vm10251, %v10112
        %10279 = vst.msk [vmem:[#allocation2 + $0xd8] sm:$0xff] %vm10251, %v10114
        %10280 = vst.msk [vmem:[#allocation2 + $0xe0] sm:$0xff] %vm10251, %v10116
        %10281 = vst.msk [vmem:[#allocation2 + $0xe8] sm:$0xff] %vm10251, %v10118
        %10282 = vst.msk [vmem:[#allocation2 + $0xf0] sm:$0xff] %vm10251, %v10120
        %10283 = vst.msk [vmem:[#allocation2 + $0xf8] sm:$0xff] %vm10251, %v10122
        %10284 = vst.msk [vmem:[#allocation2 + $0x100] sm:$0xff] %vm10251, %v10124
        %10285 = vst.msk [vmem:[#allocation2 + $0x108] sm:$0xff] %vm10251, %v10126
        %10286 = vst.msk [vmem:[#allocation2 + $0x110] sm:$0xff] %vm10251, %v10128
        %10287 = vst.msk [vmem:[#allocation2 + $0x118] sm:$0xff] %vm10251, %v10130
        %10288 = vst.msk [vmem:[#allocation2 + $0x120] sm:$0xff] %vm10251, %v10132
        %10289 = vst.msk [vmem:[#allocation2 + $0x128] sm:$0xff] %vm10251, %v10134
        %10290 = vst.msk [vmem:[#allocation2 + $0x130] sm:$0xff] %vm10251, %v10136
        %10291 = vst.msk [vmem:[#allocation2 + $0x138] sm:$0xff] %vm10251, %v10138
        %10292 = vst.msk [vmem:[#allocation2 + $0x140] sm:$0xff] %vm10251, %v10140
        %10293 = vst.msk [vmem:[#allocation2 + $0x148] sm:$0xff] %vm10251, %v10142
        %10294 = vst.msk [vmem:[#allocation2 + $0x150] sm:$0xff] %vm10251, %v10144
        %10295 = vst.msk [vmem:[#allocation2 + $0x158] sm:$0xff] %vm10251, %v10146
        %10296 = vst.msk [vmem:[#allocation2 + $0x160] sm:$0xff] %vm10251, %v10148
        %10297 = vst.msk [vmem:[#allocation2 + $0x168] sm:$0xff] %vm10251, %v10150
        %10298 = vst.msk [vmem:[#allocation2 + $0x170] sm:$0xff] %vm10251, %v10152
        %10299 = vst.msk [vmem:[#allocation2 + $0x178] sm:$0xff] %vm10251, %v10154
        %10300 = vst.msk [vmem:[#allocation2 + $0x180] sm:$0xff] %vm10251, %v10156
        %10301 = vst.msk [vmem:[#allocation2 + $0x188] sm:$0xff] %vm10251, %v10158
        %10302 = vst.msk [vmem:[#allocation2 + $0x190] sm:$0xff] %vm10251, %v10160
        %10303 = vst.msk [vmem:[#allocation2 + $0x198] sm:$0xff] %vm10251, %v10162
        %10304 = vst.msk [vmem:[#allocation2 + $0x1a0] sm:$0xff] %vm10251, %v10164
        %10305 = vst.msk [vmem:[#allocation2 + $0x1a8] sm:$0xff] %vm10251, %v10166
        %10306 = vst.msk [vmem:[#allocation2 + $0x1b0] sm:$0xff] %vm10251, %v10168
        %10307 = vst.msk [vmem:[#allocation2 + $0x1b8] sm:$0xff] %vm10251, %v10170
        %10308 = vst.msk [vmem:[#allocation2 + $0x1c0] sm:$0xff] %vm10251, %v10172
        %10309 = vst.msk [vmem:[#allocation2 + $0x1c8] sm:$0xff] %vm10251, %v10174
        %10310 = vst.msk [vmem:[#allocation2 + $0x1d0] sm:$0xff] %vm10251, %v10176
        %10311 = vst.msk [vmem:[#allocation2 + $0x1d8] sm:$0xff] %vm10251, %v10178
        %10312 = vst.msk [vmem:[#allocation2 + $0x1e0] sm:$0xff] %vm10251, %v10180
        %10313 = vst.msk [vmem:[#allocation2 + $0x1e8] sm:$0xff] %vm10251, %v10182
        %10314 = vst.msk [vmem:[#allocation2 + $0x1f0] sm:$0xff] %vm10251, %v10184
        %10315 = vst.msk [vmem:[#allocation2 + $0x1f8] sm:$0xff] %vm10251, %v10186
        %v10316 = vld [vmem:[#allocation2] sm:$0xff]
        %v10317 = vld [vmem:[#allocation2 + $0x8] sm:$0xff]
        %v10318 = vld [vmem:[#allocation2 + $0x10] sm:$0xff]
        %v10319 = vld [vmem:[#allocation2 + $0x18] sm:$0xff]
        %v10320 = vld [vmem:[#allocation2 + $0x20] sm:$0xff]
        %v10321 = vld [vmem:[#allocation2 + $0x28] sm:$0xff]
        %v10322 = vld [vmem:[#allocation2 + $0x30] sm:$0xff]
        %v10323 = vld [vmem:[#allocation2 + $0x38] sm:$0xff]
        %v10324 = vld [vmem:[#allocation2 + $0x40] sm:$0xff]
        %v10325 = vld [vmem:[#allocation2 + $0x48] sm:$0xff]
        %v10326 = vld [vmem:[#allocation2 + $0x50] sm:$0xff]
        %v10327 = vld [vmem:[#allocation2 + $0x58] sm:$0xff]
        %v10328 = vld [vmem:[#allocation2 + $0x60] sm:$0xff]
        %v10329 = vld [vmem:[#allocation2 + $0x68] sm:$0xff]
        %v10330 = vld [vmem:[#allocation2 + $0x70] sm:$0xff]
        %v10331 = vld [vmem:[#allocation2 + $0x78] sm:$0xff]
        %v10332 = vld [vmem:[#allocation2 + $0x80] sm:$0xff]
        %v10333 = vld [vmem:[#allocation2 + $0x88] sm:$0xff]
        %v10334 = vld [vmem:[#allocation2 + $0x90] sm:$0xff]
        %v10335 = vld [vmem:[#allocation2 + $0x98] sm:$0xff]
        %v10336 = vld [vmem:[#allocation2 + $0xa0] sm:$0xff]
        %v10337 = vld [vmem:[#allocation2 + $0xa8] sm:$0xff]
        %v10338 = vld [vmem:[#allocation2 + $0xb0] sm:$0xff]
        %v10339 = vld [vmem:[#allocation2 + $0xb8] sm:$0xff]
        %v10340 = vld [vmem:[#allocation2 + $0xc0] sm:$0xff]
        %v10341 = vld [vmem:[#allocation2 + $0xc8] sm:$0xff]
        %v10342 = vld [vmem:[#allocation2 + $0xd0] sm:$0xff]
        %v10343 = vld [vmem:[#allocation2 + $0xd8] sm:$0xff]
        %v10344 = vld [vmem:[#allocation2 + $0xe0] sm:$0xff]
        %v10345 = vld [vmem:[#allocation2 + $0xe8] sm:$0xff]
        %v10346 = vld [vmem:[#allocation2 + $0xf0] sm:$0xff]
        %v10347 = vld [vmem:[#allocation2 + $0xf8] sm:$0xff]
        %v10348 = vld [vmem:[#allocation2 + $0x100] sm:$0xff]
        %v10349 = vld [vmem:[#allocation2 + $0x108] sm:$0xff]
        %v10350 = vld [vmem:[#allocation2 + $0x110] sm:$0xff]
        %v10351 = vld [vmem:[#allocation2 + $0x118] sm:$0xff]
        %v10352 = vld [vmem:[#allocation2 + $0x120] sm:$0xff]
        %v10353 = vld [vmem:[#allocation2 + $0x128] sm:$0xff]
        %v10354 = vld [vmem:[#allocation2 + $0x130] sm:$0xff]
        %v10355 = vld [vmem:[#allocation2 + $0x138] sm:$0xff]
        %v10356 = vld [vmem:[#allocation2 + $0x140] sm:$0xff]
        %v10357 = vld [vmem:[#allocation2 + $0x148] sm:$0xff]
        %v10358 = vld [vmem:[#allocation2 + $0x150] sm:$0xff]
        %v10359 = vld [vmem:[#allocation2 + $0x158] sm:$0xff]
        %v10360 = vld [vmem:[#allocation2 + $0x160] sm:$0xff]
        %v10361 = vld [vmem:[#allocation2 + $0x168] sm:$0xff]
        %v10362 = vld [vmem:[#allocation2 + $0x170] sm:$0xff]
        %v10363 = vld [vmem:[#allocation2 + $0x178] sm:$0xff]
        %v10364 = vld [vmem:[#allocation2 + $0x180] sm:$0xff]
        %v10365 = vld [vmem:[#allocation2 + $0x188] sm:$0xff]
        %v10366 = vld [vmem:[#allocation2 + $0x190] sm:$0xff]
        %v10367 = vld [vmem:[#allocation2 + $0x198] sm:$0xff]
        %v10368 = vld [vmem:[#allocation2 + $0x1a0] sm:$0xff]
        %v10369 = vld [vmem:[#allocation2 + $0x1a8] sm:$0xff]
        %v10370 = vld [vmem:[#allocation2 + $0x1b0] sm:$0xff]
        %v10371 = vld [vmem:[#allocation2 + $0x1b8] sm:$0xff]
        %v10372 = vld [vmem:[#allocation2 + $0x1c0] sm:$0xff]
        %v10373 = vld [vmem:[#allocation2 + $0x1c8] sm:$0xff]
        %v10374 = vld [vmem:[#allocation2 + $0x1d0] sm:$0xff]
        %v10375 = vld [vmem:[#allocation2 + $0x1d8] sm:$0xff]
        %v10376 = vld [vmem:[#allocation2 + $0x1e0] sm:$0xff]
        %v10377 = vld [vmem:[#allocation2 + $0x1e8] sm:$0xff]
        %v10378 = vld [vmem:[#allocation2 + $0x1f0] sm:$0xff]
        %v10379 = vld [vmem:[#allocation2 + $0x1f8] sm:$0xff]
        %v10380 = vld [vmem:[%s1] sm:$0xff]
        %v10381 = vld [vmem:[%s1 + $0x8] sm:$0xff]
        %v10382 = vld [vmem:[%s1 + $0x10] sm:$0xff]
        %v10383 = vld [vmem:[%s1 + $0x18] sm:$0xff]
        %v10384 = vld [vmem:[%s1 + $0x20] sm:$0xff]
        %v10385 = vld [vmem:[%s1 + $0x28] sm:$0xff]
        %v10386 = vld [vmem:[%s1 + $0x30] sm:$0xff]
        %v10387 = vld [vmem:[%s1 + $0x38] sm:$0xff]
        %v10388 = vld [vmem:[%s1 + $0x40] sm:$0xff]
        %v10389 = vld [vmem:[%s1 + $0x48] sm:$0xff]
        %v10390 = vld [vmem:[%s1 + $0x50] sm:$0xff]
        %v10391 = vld [vmem:[%s1 + $0x58] sm:$0xff]
        %v10392 = vld [vmem:[%s1 + $0x60] sm:$0xff]
        %v10393 = vld [vmem:[%s1 + $0x68] sm:$0xf]
        %vm10394 = vcmask 883712
        %v10396 = vsel %vm10394, %v10316, 0
        %v10399 = vsel %vm10394, %v10317, 0
        %v10402 = vsel %vm10394, %v10318, 0
        %v10405 = vsel %vm10394, %v10319, 0
        %v10408 = vsel %vm10394, %v10320, 0
        %v10411 = vsel %vm10394, %v10321, 0
        %v10414 = vsel %vm10394, %v10322, 0
        %v10417 = vsel %vm10394, %v10323, 0
        %v10420 = vsel %vm10394, %v10324, 0
        %v10423 = vsel %vm10394, %v10325, 0
        %v10426 = vsel %vm10394, %v10326, 0
        %v10429 = vsel %vm10394, %v10327, 0
        %v10432 = vsel %vm10394, %v10328, 0
        %v10435 = vsel %vm10394, %v10329, 0
        %v10438 = vsel %vm10394, %v10330, 0
        %v10441 = vsel %vm10394, %v10331, 0
        %v10444 = vsel %vm10394, %v10332, 0
        %v10447 = vsel %vm10394, %v10333, 0
        %v10450 = vsel %vm10394, %v10334, 0
        %v10453 = vsel %vm10394, %v10335, 0
        %v10456 = vsel %vm10394, %v10336, 0
        %v10459 = vsel %vm10394, %v10337, 0
        %v10462 = vsel %vm10394, %v10338, 0
        %v10465 = vsel %vm10394, %v10339, 0
        %v10468 = vsel %vm10394, %v10340, 0
        %v10471 = vsel %vm10394, %v10341, 0
        %v10474 = vsel %vm10394, %v10342, 0
        %v10477 = vsel %vm10394, %v10343, 0
        %v10480 = vsel %vm10394, %v10344, 0
        %v10483 = vsel %vm10394, %v10345, 0
        %v10486 = vsel %vm10394, %v10346, 0
        %v10489 = vsel %vm10394, %v10347, 0
        %v10492 = vsel %vm10394, %v10348, 0
        %v10495 = vsel %vm10394, %v10349, 0
        %v10498 = vsel %vm10394, %v10350, 0
        %v10501 = vsel %vm10394, %v10351, 0
        %v10504 = vsel %vm10394, %v10352, 0
        %v10507 = vsel %vm10394, %v10353, 0
        %v10510 = vsel %vm10394, %v10354, 0
        %v10513 = vsel %vm10394, %v10355, 0
        %v10516 = vsel %vm10394, %v10356, 0
        %v10519 = vsel %vm10394, %v10357, 0
        %v10522 = vsel %vm10394, %v10358, 0
        %v10525 = vsel %vm10394, %v10359, 0
        %v10528 = vsel %vm10394, %v10360, 0
        %v10531 = vsel %vm10394, %v10361, 0
        %v10534 = vsel %vm10394, %v10362, 0
        %v10537 = vsel %vm10394, %v10363, 0
        %v10540 = vsel %vm10394, %v10364, 0
        %v10543 = vsel %vm10394, %v10365, 0
        %v10546 = vsel %vm10394, %v10366, 0
        %v10549 = vsel %vm10394, %v10367, 0
        %v10552 = vsel %vm10394, %v10368, 0
        %v10555 = vsel %vm10394, %v10369, 0
        %v10558 = vsel %vm10394, %v10370, 0
        %v10561 = vsel %vm10394, %v10371, 0
        %v10564 = vsel %vm10394, %v10372, 0
        %v10567 = vsel %vm10394, %v10373, 0
        %v10570 = vsel %vm10394, %v10374, 0
        %v10573 = vsel %vm10394, %v10375, 0
        %v10576 = vsel %vm10394, %v10376, 0
        %v10579 = vsel %vm10394, %v10377, 0
        %v10582 = vsel %vm10394, %v10378, 0
        %v10585 = vsel %vm10394, %v10379, 0
        %vm10587 = vcmask 1043456
        %v10589 = vsel %vm10587, %v10393, 0
        %10591 = vmatpush.msra.mxu0 0.0
        %10592 = vmatpush.msra.mxu0 0.0
        %10593 = vmatpush.msra.mxu0 %v10589
        %10594 = vmatpush.msra.mxu0 %v10392
        %10595 = vmatpush.msra.mxu0 %v10391
        %10596 = vmatpush.msra.mxu0 %v10390
        %10597 = vmatpush.msra.mxu0 %v10389
        %10598 = vmatpush.msra.mxu0 %v10388
        %10599 = vmatpush.msra.mxu0 %v10387
        %10600 = vmatpush.msra.mxu0 %v10386
        %10601 = vmatpush.msra.mxu0 %v10385
        %10602 = vmatpush.msra.mxu0 %v10384
        %10603 = vmatpush.msra.mxu0 %v10383
        %10604 = vmatpush.msra.mxu0 %v10382
        %10605 = vmatpush.msra.mxu0 %v10381
        %10606 = vmatpush.msra.mxu0 %v10380
        %10607 = vmatmul.f32.gmra.mxu0 %v10396
        %v10608 = vpop.f32.mrf.mxu0
        %v10609 = vadd.f32 0.0, %v10608
        %10610 = vmatmul.f32.gmra.mxu0 %v10399
        %v10611 = vpop.f32.mrf.mxu0
        %v10612 = vadd.f32 0.0, %v10611
        %10613 = vmatmul.f32.gmra.mxu0 %v10402
        %v10614 = vpop.f32.mrf.mxu0
        %v10615 = vadd.f32 0.0, %v10614
        %10616 = vmatmul.f32.gmra.mxu0 %v10405
        %v10617 = vpop.f32.mrf.mxu0
        %v10618 = vadd.f32 0.0, %v10617
        %10619 = vmatmul.f32.gmra.mxu0 %v10408
        %v10620 = vpop.f32.mrf.mxu0
        %v10621 = vadd.f32 0.0, %v10620
        %10622 = vmatmul.f32.gmra.mxu0 %v10411
        %v10623 = vpop.f32.mrf.mxu0
        %v10624 = vadd.f32 0.0, %v10623
        %10625 = vmatmul.f32.gmra.mxu0 %v10414
        %v10626 = vpop.f32.mrf.mxu0
        %v10627 = vadd.f32 0.0, %v10626
        %10628 = vmatmul.f32.gmra.mxu0 %v10417
        %v10629 = vpop.f32.mrf.mxu0
        %v10630 = vadd.f32 0.0, %v10629
        %10631 = vmatmul.f32.gmra.mxu0 %v10420
        %v10632 = vpop.f32.mrf.mxu0
        %v10633 = vadd.f32 0.0, %v10632
        %10634 = vmatmul.f32.gmra.mxu0 %v10423
        %v10635 = vpop.f32.mrf.mxu0
        %v10636 = vadd.f32 0.0, %v10635
        %10637 = vmatmul.f32.gmra.mxu0 %v10426
        %v10638 = vpop.f32.mrf.mxu0
        %v10639 = vadd.f32 0.0, %v10638
        %10640 = vmatmul.f32.gmra.mxu0 %v10429
        %v10641 = vpop.f32.mrf.mxu0
        %v10642 = vadd.f32 0.0, %v10641
        %10643 = vmatmul.f32.gmra.mxu0 %v10432
        %v10644 = vpop.f32.mrf.mxu0
        %v10645 = vadd.f32 0.0, %v10644
        %10646 = vmatmul.f32.gmra.mxu0 %v10435
        %v10647 = vpop.f32.mrf.mxu0
        %v10648 = vadd.f32 0.0, %v10647
        %10649 = vmatmul.f32.gmra.mxu0 %v10438
        %v10650 = vpop.f32.mrf.mxu0
        %v10651 = vadd.f32 0.0, %v10650
        %10652 = vmatmul.f32.gmra.mxu0 %v10441
        %v10653 = vpop.f32.mrf.mxu0
        %v10654 = vadd.f32 0.0, %v10653
        %10655 = vmatmul.f32.gmra.mxu0 %v10444
        %v10656 = vpop.f32.mrf.mxu0
        %v10657 = vadd.f32 0.0, %v10656
        %10658 = vmatmul.f32.gmra.mxu0 %v10447
        %v10659 = vpop.f32.mrf.mxu0
        %v10660 = vadd.f32 0.0, %v10659
        %10661 = vmatmul.f32.gmra.mxu0 %v10450
        %v10662 = vpop.f32.mrf.mxu0
        %v10663 = vadd.f32 0.0, %v10662
        %10664 = vmatmul.f32.gmra.mxu0 %v10453
        %v10665 = vpop.f32.mrf.mxu0
        %v10666 = vadd.f32 0.0, %v10665
        %10667 = vmatmul.f32.gmra.mxu0 %v10456
        %v10668 = vpop.f32.mrf.mxu0
        %v10669 = vadd.f32 0.0, %v10668
        %10670 = vmatmul.f32.gmra.mxu0 %v10459
        %v10671 = vpop.f32.mrf.mxu0
        %v10672 = vadd.f32 0.0, %v10671
        %10673 = vmatmul.f32.gmra.mxu0 %v10462
        %v10674 = vpop.f32.mrf.mxu0
        %v10675 = vadd.f32 0.0, %v10674
        %10676 = vmatmul.f32.gmra.mxu0 %v10465
        %v10677 = vpop.f32.mrf.mxu0
        %v10678 = vadd.f32 0.0, %v10677
        %10679 = vmatmul.f32.gmra.mxu0 %v10468
        %v10680 = vpop.f32.mrf.mxu0
        %v10681 = vadd.f32 0.0, %v10680
        %10682 = vmatmul.f32.gmra.mxu0 %v10471
        %v10683 = vpop.f32.mrf.mxu0
        %v10684 = vadd.f32 0.0, %v10683
        %10685 = vmatmul.f32.gmra.mxu0 %v10474
        %v10686 = vpop.f32.mrf.mxu0
        %v10687 = vadd.f32 0.0, %v10686
        %10688 = vmatmul.f32.gmra.mxu0 %v10477
        %v10689 = vpop.f32.mrf.mxu0
        %v10690 = vadd.f32 0.0, %v10689
        %10691 = vmatmul.f32.gmra.mxu0 %v10480
        %v10692 = vpop.f32.mrf.mxu0
        %v10693 = vadd.f32 0.0, %v10692
        %10694 = vmatmul.f32.gmra.mxu0 %v10483
        %v10695 = vpop.f32.mrf.mxu0
        %v10696 = vadd.f32 0.0, %v10695
        %10697 = vmatmul.f32.gmra.mxu0 %v10486
        %v10698 = vpop.f32.mrf.mxu0
        %v10699 = vadd.f32 0.0, %v10698
        %10700 = vmatmul.f32.gmra.mxu0 %v10489
        %v10701 = vpop.f32.mrf.mxu0
        %v10702 = vadd.f32 0.0, %v10701
        %10703 = vmatmul.f32.gmra.mxu0 %v10492
        %v10704 = vpop.f32.mrf.mxu0
        %v10705 = vadd.f32 0.0, %v10704
        %10706 = vmatmul.f32.gmra.mxu0 %v10495
        %v10707 = vpop.f32.mrf.mxu0
        %v10708 = vadd.f32 0.0, %v10707
        %10709 = vmatmul.f32.gmra.mxu0 %v10498
        %v10710 = vpop.f32.mrf.mxu0
        %v10711 = vadd.f32 0.0, %v10710
        %10712 = vmatmul.f32.gmra.mxu0 %v10501
        %v10713 = vpop.f32.mrf.mxu0
        %v10714 = vadd.f32 0.0, %v10713
        %10715 = vmatmul.f32.gmra.mxu0 %v10504
        %v10716 = vpop.f32.mrf.mxu0
        %v10717 = vadd.f32 0.0, %v10716
        %10718 = vmatmul.f32.gmra.mxu0 %v10507
        %v10719 = vpop.f32.mrf.mxu0
        %v10720 = vadd.f32 0.0, %v10719
        %10721 = vmatmul.f32.gmra.mxu0 %v10510
        %v10722 = vpop.f32.mrf.mxu0
        %v10723 = vadd.f32 0.0, %v10722
        %10724 = vmatmul.f32.gmra.mxu0 %v10513
        %v10725 = vpop.f32.mrf.mxu0
        %v10726 = vadd.f32 0.0, %v10725
        %10727 = vmatmul.f32.gmra.mxu0 %v10516
        %v10728 = vpop.f32.mrf.mxu0
        %v10729 = vadd.f32 0.0, %v10728
        %10730 = vmatmul.f32.gmra.mxu0 %v10519
        %v10731 = vpop.f32.mrf.mxu0
        %v10732 = vadd.f32 0.0, %v10731
        %10733 = vmatmul.f32.gmra.mxu0 %v10522
        %v10734 = vpop.f32.mrf.mxu0
        %v10735 = vadd.f32 0.0, %v10734
        %10736 = vmatmul.f32.gmra.mxu0 %v10525
        %v10737 = vpop.f32.mrf.mxu0
        %v10738 = vadd.f32 0.0, %v10737
        %10739 = vmatmul.f32.gmra.mxu0 %v10528
        %v10740 = vpop.f32.mrf.mxu0
        %v10741 = vadd.f32 0.0, %v10740
        %10742 = vmatmul.f32.gmra.mxu0 %v10531
        %v10743 = vpop.f32.mrf.mxu0
        %v10744 = vadd.f32 0.0, %v10743
        %10745 = vmatmul.f32.gmra.mxu0 %v10534
        %v10746 = vpop.f32.mrf.mxu0
        %v10747 = vadd.f32 0.0, %v10746
        %10748 = vmatmul.f32.gmra.mxu0 %v10537
        %v10749 = vpop.f32.mrf.mxu0
        %v10750 = vadd.f32 0.0, %v10749
        %10751 = vmatmul.f32.gmra.mxu0 %v10540
        %v10752 = vpop.f32.mrf.mxu0
        %v10753 = vadd.f32 0.0, %v10752
        %10754 = vmatmul.f32.gmra.mxu0 %v10543
        %v10755 = vpop.f32.mrf.mxu0
        %v10756 = vadd.f32 0.0, %v10755
        %10757 = vmatmul.f32.gmra.mxu0 %v10546
        %v10758 = vpop.f32.mrf.mxu0
        %v10759 = vadd.f32 0.0, %v10758
        %10760 = vmatmul.f32.gmra.mxu0 %v10549
        %v10761 = vpop.f32.mrf.mxu0
        %v10762 = vadd.f32 0.0, %v10761
        %10763 = vmatmul.f32.gmra.mxu0 %v10552
        %v10764 = vpop.f32.mrf.mxu0
        %v10765 = vadd.f32 0.0, %v10764
        %10766 = vmatmul.f32.gmra.mxu0 %v10555
        %v10767 = vpop.f32.mrf.mxu0
        %v10768 = vadd.f32 0.0, %v10767
        %10769 = vmatmul.f32.gmra.mxu0 %v10558
        %v10770 = vpop.f32.mrf.mxu0
        %v10771 = vadd.f32 0.0, %v10770
        %10772 = vmatmul.f32.gmra.mxu0 %v10561
        %v10773 = vpop.f32.mrf.mxu0
        %v10774 = vadd.f32 0.0, %v10773
        %10775 = vmatmul.f32.gmra.mxu0 %v10564
        %v10776 = vpop.f32.mrf.mxu0
        %v10777 = vadd.f32 0.0, %v10776
        %10778 = vmatmul.f32.gmra.mxu0 %v10567
        %v10779 = vpop.f32.mrf.mxu0
        %v10780 = vadd.f32 0.0, %v10779
        %10781 = vmatmul.f32.gmra.mxu0 %v10570
        %v10782 = vpop.f32.mrf.mxu0
        %v10783 = vadd.f32 0.0, %v10782
        %10784 = vmatmul.f32.gmra.mxu0 %v10573
        %v10785 = vpop.f32.mrf.mxu0
        %v10786 = vadd.f32 0.0, %v10785
        %10787 = vmatmul.f32.gmra.mxu0 %v10576
        %v10788 = vpop.f32.mrf.mxu0
        %v10789 = vadd.f32 0.0, %v10788
        %10790 = vmatmul.f32.gmra.mxu0 %v10579
        %v10791 = vpop.f32.mrf.mxu0
        %v10792 = vadd.f32 0.0, %v10791
        %10793 = vmatmul.f32.gmra.mxu0 %v10582
        %v10794 = vpop.f32.mrf.mxu0
        %v10795 = vadd.f32 0.0, %v10794
        %10796 = vmatmul.f32.gmra.mxu0 %v10585
        %v10797 = vpop.f32.mrf.mxu0
        %v10798 = vadd.f32 0.0, %v10797
        %10799 = vdwg.mxu0
        %10800 = vxpose.xlu0.b32.start [1/16] %v10609, 128
        %10801 = vxpose.xlu0.b32.cont [2/16] %v10612, 128
        %10802 = vxpose.xlu0.b32.cont [3/16] %v10615, 128
        %10803 = vxpose.xlu0.b32.cont [4/16] %v10618, 128
        %10804 = vxpose.xlu0.b32.cont [5/16] %v10621, 128
        %10805 = vxpose.xlu0.b32.cont [6/16] %v10624, 128
        %10806 = vxpose.xlu0.b32.cont [7/16] %v10627, 128
        %10807 = vxpose.xlu0.b32.cont [8/16] %v10630, 128
        %10808 = vxpose.xlu0.b32.cont [9/16] %v10633, 128
        %10809 = vxpose.xlu0.b32.cont [10/16] %v10636, 128
        %10810 = vxpose.xlu0.b32.cont [11/16] %v10639, 128
        %10811 = vxpose.xlu0.b32.cont [12/16] %v10642, 128
        %10812 = vxpose.xlu0.b32.cont [13/16] %v10645, 128
        %10813 = vxpose.xlu0.b32.cont [14/16] %v10648, 128
        %10814 = vxpose.xlu0.b32.cont [15/16] %v10651, 128
        %10815 = vxpose.xlu0.b32.end [16/16] %v10654, 128
        %v10816 = vpop.trf.xlu0
        %v10817 = vpop.trf.xlu0
        %v10818 = vpop.trf.xlu0
        %v10819 = vpop.trf.xlu0
        %v10820 = vpop.trf.xlu0
        %v10821 = vpop.trf.xlu0
        %v10822 = vpop.trf.xlu0
        %v10823 = vpop.trf.xlu0
        %v10824 = vpop.trf.xlu0
        %v10825 = vpop.trf.xlu0
        %v10826 = vpop.trf.xlu0
        %v10827 = vpop.trf.xlu0
        %v10828 = vpop.trf.xlu0
        %v10829 = vpop.trf.xlu0
        %v10830 = vpop.trf.xlu0
        %v10831 = vpop.trf.xlu0
        %10832 = vxpose.xlu0.b32.start [1/16] %v10657, 128
        %10833 = vxpose.xlu0.b32.cont [2/16] %v10660, 128
        %10834 = vxpose.xlu0.b32.cont [3/16] %v10663, 128
        %10835 = vxpose.xlu0.b32.cont [4/16] %v10666, 128
        %10836 = vxpose.xlu0.b32.cont [5/16] %v10669, 128
        %10837 = vxpose.xlu0.b32.cont [6/16] %v10672, 128
        %10838 = vxpose.xlu0.b32.cont [7/16] %v10675, 128
        %10839 = vxpose.xlu0.b32.cont [8/16] %v10678, 128
        %10840 = vxpose.xlu0.b32.cont [9/16] %v10681, 128
        %10841 = vxpose.xlu0.b32.cont [10/16] %v10684, 128
        %10842 = vxpose.xlu0.b32.cont [11/16] %v10687, 128
        %10843 = vxpose.xlu0.b32.cont [12/16] %v10690, 128
        %10844 = vxpose.xlu0.b32.cont [13/16] %v10693, 128
        %10845 = vxpose.xlu0.b32.cont [14/16] %v10696, 128
        %10846 = vxpose.xlu0.b32.cont [15/16] %v10699, 128
        %10847 = vxpose.xlu0.b32.end [16/16] %v10702, 128
        %v10848 = vpop.trf.xlu0
        %v10849 = vpop.trf.xlu0
        %v10850 = vpop.trf.xlu0
        %v10851 = vpop.trf.xlu0
        %v10852 = vpop.trf.xlu0
        %v10853 = vpop.trf.xlu0
        %v10854 = vpop.trf.xlu0
        %v10855 = vpop.trf.xlu0
        %v10856 = vpop.trf.xlu0
        %v10857 = vpop.trf.xlu0
        %v10858 = vpop.trf.xlu0
        %v10859 = vpop.trf.xlu0
        %v10860 = vpop.trf.xlu0
        %v10861 = vpop.trf.xlu0
        %v10862 = vpop.trf.xlu0
        %v10863 = vpop.trf.xlu0
        %10864 = vxpose.xlu0.b32.start [1/16] %v10705, 128
        %10865 = vxpose.xlu0.b32.cont [2/16] %v10708, 128
        %10866 = vxpose.xlu0.b32.cont [3/16] %v10711, 128
        %10867 = vxpose.xlu0.b32.cont [4/16] %v10714, 128
        %10868 = vxpose.xlu0.b32.cont [5/16] %v10717, 128
        %10869 = vxpose.xlu0.b32.cont [6/16] %v10720, 128
        %10870 = vxpose.xlu0.b32.cont [7/16] %v10723, 128
        %10871 = vxpose.xlu0.b32.cont [8/16] %v10726, 128
        %10872 = vxpose.xlu0.b32.cont [9/16] %v10729, 128
        %10873 = vxpose.xlu0.b32.cont [10/16] %v10732, 128
        %10874 = vxpose.xlu0.b32.cont [11/16] %v10735, 128
        %10875 = vxpose.xlu0.b32.cont [12/16] %v10738, 128
        %10876 = vxpose.xlu0.b32.cont [13/16] %v10741, 128
        %10877 = vxpose.xlu0.b32.cont [14/16] %v10744, 128
        %10878 = vxpose.xlu0.b32.cont [15/16] %v10747, 128
        %10879 = vxpose.xlu0.b32.end [16/16] %v10750, 128
        %v10880 = vpop.trf.xlu0
        %v10881 = vpop.trf.xlu0
        %v10882 = vpop.trf.xlu0
        %v10883 = vpop.trf.xlu0
        %v10884 = vpop.trf.xlu0
        %v10885 = vpop.trf.xlu0
        %v10886 = vpop.trf.xlu0
        %v10887 = vpop.trf.xlu0
        %v10888 = vpop.trf.xlu0
        %v10889 = vpop.trf.xlu0
        %v10890 = vpop.trf.xlu0
        %v10891 = vpop.trf.xlu0
        %v10892 = vpop.trf.xlu0
        %v10893 = vpop.trf.xlu0
        %v10894 = vpop.trf.xlu0
        %v10895 = vpop.trf.xlu0
        %10896 = vxpose.xlu0.b32.start [1/16] %v10753, 128
        %10897 = vxpose.xlu0.b32.cont [2/16] %v10756, 128
        %10898 = vxpose.xlu0.b32.cont [3/16] %v10759, 128
        %10899 = vxpose.xlu0.b32.cont [4/16] %v10762, 128
        %10900 = vxpose.xlu0.b32.cont [5/16] %v10765, 128
        %10901 = vxpose.xlu0.b32.cont [6/16] %v10768, 128
        %10902 = vxpose.xlu0.b32.cont [7/16] %v10771, 128
        %10903 = vxpose.xlu0.b32.cont [8/16] %v10774, 128
        %10904 = vxpose.xlu0.b32.cont [9/16] %v10777, 128
        %10905 = vxpose.xlu0.b32.cont [10/16] %v10780, 128
        %10906 = vxpose.xlu0.b32.cont [11/16] %v10783, 128
        %10907 = vxpose.xlu0.b32.cont [12/16] %v10786, 128
        %10908 = vxpose.xlu0.b32.cont [13/16] %v10789, 128
        %10909 = vxpose.xlu0.b32.cont [14/16] %v10792, 128
        %10910 = vxpose.xlu0.b32.cont [15/16] %v10795, 128
        %10911 = vxpose.xlu0.b32.end [16/16] %v10798, 128
        %v10912 = vpop.trf.xlu0
        %v10913 = vpop.trf.xlu0
        %v10914 = vpop.trf.xlu0
        %v10915 = vpop.trf.xlu0
        %v10916 = vpop.trf.xlu0
        %v10917 = vpop.trf.xlu0
        %v10918 = vpop.trf.xlu0
        %v10919 = vpop.trf.xlu0
        %v10920 = vpop.trf.xlu0
        %v10921 = vpop.trf.xlu0
        %v10922 = vpop.trf.xlu0
        %v10923 = vpop.trf.xlu0
        %v10924 = vpop.trf.xlu0
        %v10925 = vpop.trf.xlu0
        %v10926 = vpop.trf.xlu0
        %v10927 = vpop.trf.xlu0
        %v10928 = vld [vmem:[%s2] sm:$0xff]
        %10930 = vset.pattern.permute.xlu0 0
        %10931 = vperm.xlu0 %10930, %v10928
        %v10932 = vpop.permute.xlu0 %10931
        %v10934 = vadd.f32 %v10816, %v10932
        %v10935 = vadd.f32 %v10848, %v10932
        %v10936 = vadd.f32 %v10880, %v10932
        %v10937 = vadd.f32 %v10912, %v10932
        %10938 = vst [vmem:[#allocation3] sm:$0xff] %v10934
        %10939 = vst [vmem:[#allocation3 + $0x8] sm:$0xff] %v10935
        %10940 = vst [vmem:[#allocation3 + $0x10] sm:$0xff] %v10936
        %10941 = vst [vmem:[#allocation3 + $0x18] sm:$0xff] %v10937
        %v10942 = vld [vmem:[#allocation3] sm:$0xff]
        %v10943 = vld [vmem:[#allocation3 + $0x8] sm:$0xff]
        %v10944 = vld [vmem:[#allocation3 + $0x10] sm:$0xff]
        %v10945 = vld [vmem:[#allocation3 + $0x18] sm:$0xff]
        %v10946 = vadd.f32 %v10942, %v10943
        %v10947 = vadd.f32 %v10946, %v10944
        %v10948 = vadd.f32 %v10947, %v10945
        %10949 = vadd.xlane.f32.xlu0 %v10948
        %v10950 = vpop.xlane.xlu0 %10949
        %v10951 = vrcp.pop 512.0
        %v10952 = vmul.f32 512.0, %v10951
        %v10953 = vsub.f32 1.0, %v10952
        %v10954 = vmul.f32 %v10951, %v10953
        %v10955 = vadd.f32 %v10951, %v10954
        %vm10956 = vweird.f32 %v10951
        %v10957 = vsel %vm10956, %v10951, %v10955
        %v10958 = vmul.f32 %v10950, %v10957
        %v10959 = vsub.f32 %v10942, %v10958
        %v10960 = vsub.f32 %v10943, %v10958
        %v10961 = vsub.f32 %v10944, %v10958
        %v10962 = vsub.f32 %v10945, %v10958
        %v10963 = vmul.f32 %v10959, %v10959
        %v10964 = vmul.f32 %v10960, %v10960
        %v10965 = vmul.f32 %v10961, %v10961
        %v10966 = vmul.f32 %v10962, %v10962
        %v10967 = vadd.f32 %v10963, %v10964
        %v10968 = vadd.f32 %v10967, %v10965
        %v10969 = vadd.f32 %v10968, %v10966
        %10970 = vadd.xlane.f32.xlu0 %v10969
        %v10971 = vpop.xlane.xlu0 %10970
        %v10972 = vmul.f32 %v10971, %v10957
        %v10973 = vadd.f32 %v10972, 1e-05
        %v10974 = vrsqrt.pop %v10973
        %v10975 = vmul.f32 %v10974, %v10973
        %v10976 = vmul.f32 %v10975, %v10974
        %v10977 = vmul.f32 0.5, %v10976
        %v10978 = vsub.f32 1.5, %v10977
        %v10979 = vmul.f32 %v10974, %v10978
        %vm10980 = vweird.f32 %v10973
        %vm10981 = vweird.f32 %v10974
        %vm10982 = vmor %vm10980, %vm10981
        %v10983 = vsel %vm10982, %v10974, %v10979
        %v10984 = vmul.f32 %v10959, %v10983
        %v10985 = vmul.f32 %v10960, %v10983
        %v10986 = vmul.f32 %v10961, %v10983
        %v10987 = vmul.f32 %v10962, %v10983
        %v10988 = vmax.f32 %v10984, 0.0
        %v10989 = vmax.f32 %v10985, 0.0
        %v10990 = vmax.f32 %v10986, 0.0
        %v10991 = vmax.f32 %v10987, 0.0
        %10992 = vst [vmem:[%s163] sm:$0xff] %v10988
        %10993 = vst [vmem:[%s163 + $0x8] sm:$0xff] %v10989
        %10994 = vst [vmem:[%s163 + $0x10] sm:$0xff] %v10990
        %10995 = vst [vmem:[%s163 + $0x18] sm:$0xff] %v10991
        %s10996 = sand.u32 %s93, 1
        %s10997 = scalar_lea.sflag [#allocation5], %s10996
        %s10998 = sand.u32 %s93, 1
        %s10999 = smul.addr %s10998, 32
        %s11000 = scalar_lea.vmem [#allocation4], %s10999
        // Predicated region
        $region33: #{tpu_custom_call.1} parent=31 // pred_check
          %p11001 = pneg %p103
        $region34: #{tpu_custom_call.1} parent=31 // pred_check_branch
          %11003 = sbr.rel (%p11001) target = $region36
        $region35: #{tpu_custom_call.1} parent=31 // pred_region
          %11005 = vsyncadd %s10997, 0
          %s11006 = smul.addr %s17, 4
          %s11007 = smul.addr %s11006, 8
          %s11008 = scalar_lea.hbm %s3, %s11007
          %s11010 = sshll.u32 %s11000, 4
          %s11011 = int_to_ptr.vmem [resolvable:$true] %s11010
          %s11012 = sshll.u32 %s11008, 4
          %s11013 = int_to_ptr.hbm [resolvable:$true] %s11012
          %11015 = dma.vmem_to_hbm [thread:$0]  %s11011, 512, %s11013, %s10997
        $region36: #{tpu_custom_call.1} parent=31 // pred_fallthru
          _
      $region32: #{tpu_custom_call.1} parent=5 // pred_fallthru
        _
      %p11016 = scmp.le.s32.totalorder 2, %s12
      // Predicated region
      $region37: #{tpu_custom_call.1} parent=5 // pred_check
        %p11017 = pneg %p11016
      $region38: #{tpu_custom_call.1} parent=5 // pred_check_branch
        %11019 = sbr.rel (%p11017) target = $region40
      $region39: #{tpu_custom_call.1} parent=5 // pred_region
        %s11020 = ssub.s32 %s12, 2
        // Predicated region
        $region41: #{tpu_custom_call.1} parent=39 // pred_check
          %p11021 = pneg %p109
        $region42: #{tpu_custom_call.1} parent=39 // pred_check_branch
          %11023 = sbr.rel (%p11021) target = $region44
        $region43: #{tpu_custom_call.1} parent=39 // pred_region
          %s11024 = sand.u32 %s94, 1
          %s11025 = scalar_lea.sflag [#allocation5], %s11024
          %s11026 = sand.u32 %s94, 1
          %s11027 = smul.addr %s11026, 32
          %s11028 = scalar_lea.vmem [#allocation4], %s11027
          %11030 = dma.done %s11025, 512
        $region44: #{tpu_custom_call.1} parent=39 // pred_fallthru
          _
      $region40: #{tpu_custom_call.1} parent=5 // pred_fallthru
        _
    $region6: #{tpu_custom_call.1} parent=1 // loop_footer
      %s16 = sadd.s32 1, %s12
    $region7: #{tpu_custom_call.1} parent=1 // loop_footer_branch
      %11 = sbr.rel target = $region3
    $region8: #{tpu_custom_call.1} parent=1 // loop_exit
      _
    %11031 = vsyncpa [#allocation5], 1
    %s11032 = scalar_lea.sflag [#allocation5], 1
    %11033 = vsyncpa %s11032, 1

</llo_original>
